<compile_context>
chip_gen: v5e
topology: v5e:2x2
jax: 0.10.0
libtpu: 0.0.40
codegen_flags: <defaults>
</compile_context>

<pallas_src>
import functools

import jax
import jax.numpy as jnp
from jax.experimental import pallas as pl
from jax.experimental.pallas import tpu as pltpu  # noqa: F401  (TPU backend)

# ---- model dims (small, deterministic) -------------------------------------
B = 2            # batch
C = 4            # num_channels
H = 16
W = 16
IN_DIM = C * H * W   # 1024  (flattened frame)
SKIP_DIM = 128       # encoder hidden / skip connection width
FEAT_DIM = 128       # enc_dec 'dim'
HID = 128            # predictor LSTM hidden size

_BF16 = jnp.bfloat16


def _make_kernel(T, context, pred_frames, teacher_force, n_gt):
    """Build the fully-unrolled, statically-specialised kernel body."""
    first_out = context - 1          # first step whose prediction is returned

    def kernel(gt_ref,               # (n_gt*B, IN_DIM) ground-truth frames (f32)
               w1_ref, b1_ref, w2_ref, b2_ref,          # encoder
               wx_ref, wh_ref, bl_ref, wo_ref, bo_ref,  # LSTM predictor
               wd1_ref, bd1_ref, wd2_ref, bd2_ref,      # decoder
               out_ref):             # (pred_frames, B, IN_DIM) predictions
        # ---- hoisted encoder over ALL ground-truth-driven steps (one batched
        #      pair of matmuls with M = n_gt*B rows) ----
        gt = gt_ref[...].astype(_BF16)
        h1_gt = jnp.maximum(
            jnp.dot(gt, w1_ref[...], preferred_element_type=jnp.float32)
            + b1_ref[...], 0.0)                               # (n_gt*B, SKIP_DIM)
        feats_gt = jnp.tanh(
            jnp.dot(h1_gt.astype(_BF16), w2_ref[...],
                    preferred_element_type=jnp.float32) + b2_ref[...])

        # ---- init_hidden(batch_size): zero LSTM state ----
        h = jnp.zeros((B, HID), jnp.float32)
        c = jnp.zeros((B, HID), jnp.float32)
        skip = jnp.zeros((B, SKIP_DIM), jnp.float32)
        prev = jnp.zeros((B, IN_DIM), jnp.float32)

        deferred = []   # (pred_feats, skip) per output step (teacher-force path)

        for t in range(T):                      # fully unrolled at trace time
            # --- encoder: feats, skips = self.encoder(next_input) ---
            if t < n_gt:
                # ground-truth-driven step: reuse the hoisted batched encoder
                h1 = h1_gt[t * B:(t + 1) * B]
                feats = feats_gt[t * B:(t + 1) * B]
            else:
                # autoregressive step: encode the previous prediction
                xb = prev.astype(_BF16)
                h1 = jnp.maximum(
                    jnp.dot(xb, w1_ref[...],
                            preferred_element_type=jnp.float32) + b1_ref[...],
                    0.0)
                feats = jnp.tanh(
                    jnp.dot(h1.astype(_BF16), w2_ref[...],
                            preferred_element_type=jnp.float32) + b2_ref[...])
            # skips refreshed only while t < context, held afterwards
            if t < max(context, 1):
                skip = h1

            # --- predictor: LSTM cell (two accumulating matmuls, no concat) ---
            gates = (jnp.dot(feats.astype(_BF16), wx_ref[...],
                             preferred_element_type=jnp.float32)
                     + jnp.dot(h.astype(_BF16), wh_ref[...],
                               preferred_element_type=jnp.float32)
                     + bl_ref[...])                           # (B, 4*HID) f32
            i_g = jax.nn.sigmoid(gates[:, 0 * HID:1 * HID])
            f_g = jax.nn.sigmoid(gates[:, 1 * HID:2 * HID])
            g_g = jnp.tanh(gates[:, 2 * HID:3 * HID])
            o_g = jax.nn.sigmoid(gates[:, 3 * HID:4 * HID])
            c = f_g * c + i_g * g_g
            h = o_g * jnp.tanh(c)
            pred_feats = jnp.tanh(
                jnp.dot(h.astype(_BF16), wo_ref[...],
                        preferred_element_type=jnp.float32) + bo_ref[...])

            if teacher_force:
                # Predictions never feed back -> defer the decoder and run it
                # once, batched over all output steps, after the loop.
                if t >= first_out:
                    deferred.append((pred_feats, skip))
            else:
                # --- decoder: pred_output, _ = self.decoder([pred_feats, skips]) ---
                d1 = jnp.maximum(
                    jnp.dot(pred_feats.astype(_BF16), wd1_ref[...],
                            preferred_element_type=jnp.float32)
                    + bd1_ref[...] + skip, 0.0)
                pred = jax.nn.sigmoid(
                    jnp.dot(d1.astype(_BF16), wd2_ref[...],
                            preferred_element_type=jnp.float32) + bd2_ref[...])
                if t >= first_out:
                    out_ref[t - first_out] = pred
                prev = pred

        if teacher_force:
            # batched decoder over all pred_frames output steps at once
            pf = jnp.concatenate([p for p, _ in deferred], axis=0)   # (n_out*B, FEAT)
            sk = jnp.concatenate([s for _, s in deferred], axis=0)   # (n_out*B, SKIP)
            d1 = jnp.maximum(
                jnp.dot(pf.astype(_BF16), wd1_ref[...],
                        preferred_element_type=jnp.float32)
                + bd1_ref[...] + sk, 0.0)
            pred_all = jax.nn.sigmoid(
                jnp.dot(d1.astype(_BF16), wd2_ref[...],
                        preferred_element_type=jnp.float32) + bd2_ref[...])
            for k in range(pred_frames):
                out_ref[k] = pred_all[k * B:(k + 1) * B]

    return kernel


@functools.lru_cache(maxsize=None)
def _build_fused(context, pred_frames, teacher_force):
    T = context + pred_frames - 1
    # steps whose input is a ground-truth frame (all of them under teacher forcing)
    n_gt = T if teacher_force else min(context, T)
    kernel = _make_kernel(T, context, pred_frames, teacher_force, n_gt)
    # Single invocation, no grid: every operand (frames, bf16 weights, output)
    # is a full-array VMEM block, DMA'd exactly once; the recurrence is fully
    # unrolled inside the body.  Total VMEM ~1 MB.
    call = pl.pallas_call(
        kernel,
        out_shape=jax.ShapeDtypeStruct((pred_frames, B, IN_DIM), jnp.float32),
    )
    return jax.jit(call), n_gt


def init_params(key):
    ks = jax.random.split(key, 7)

    def w(k, shape, scale):
        # bf16 weights: half DMA / VMEM, native MXU rate; f32 accumulation in-kernel
        return (scale * jax.random.normal(k, shape)).astype(_BF16)

    def b(shape):
        return jnp.zeros(shape, jnp.float32)

    return {
        # encoder
        'w1': w(ks[0], (IN_DIM, SKIP_DIM), 0.02), 'b1': b((1, SKIP_DIM)),
        'w2': w(ks[1], (SKIP_DIM, FEAT_DIM), 0.05), 'b2': b((1, FEAT_DIM)),
        # predictor (LSTM cell: separate input / recurrent weights, + output proj)
        'wx': w(ks[2], (FEAT_DIM, 4 * HID), 0.05),
        'wh': w(ks[3], (HID, 4 * HID), 0.05),
        'bl': b((1, 4 * HID)),
        'wo': w(ks[4], (HID, FEAT_DIM), 0.05), 'bo': b((1, FEAT_DIM)),
        # decoder
        'wd1': w(ks[5], (FEAT_DIM, SKIP_DIM), 0.05), 'bd1': b((1, SKIP_DIM)),
        'wd2': w(ks[6], (SKIP_DIM, IN_DIM), 0.05), 'bd2': b((1, IN_DIM)),
    }


def video_pred_forward(x, params, context=4, pred_frames=4, teacher_force=False):
    """Mirrors VideoPredModel.forward. x: (B, Frames, C, H, W)."""
    Bx, num_frames, Cx, Hx, Wx = x.shape
    # torch reference implicitly requires context >= 1 (skips would be undefined)
    assert context >= 1, "context must be >= 1 (as in the torch reference)"

    fused, n_gt = _build_fused(int(context), int(pred_frames), bool(teacher_force))

    # (B, F, C, H, W) -> (T, B, IN_DIM) time-major flattened frames; only the
    # ground-truth-driven steps are shipped to the kernel, pre-flattened to
    # (n_gt*B, IN_DIM) so the hoisted encoder needs no in-kernel relayout.
    frames = jnp.transpose(
        x.astype(jnp.float32).reshape(Bx, num_frames, Cx * Hx * Wx), (1, 0, 2))
    gt_flat = frames[:n_gt].reshape(n_gt * Bx, Cx * Hx * Wx)

    # NOTE: prior/posterior are None in the abstract class, so the variational
    # branch (mu/logvar/latents) is never taken; target_feats = encoder(targets[:,t])
    # is computed but unused in torch, so it is elided here.
    # TODO(synk): hierarchical / stochastic (prior+posterior) variants not implemented.
    preds_tb = fused(
        gt_flat,
        params['w1'], params['b1'], params['w2'], params['b2'],
        params['wx'], params['wh'], params['bl'], params['wo'], params['bo'],
        params['wd1'], params['bd1'], params['wd2'], params['bd2'],
    )                                                   # (pred_frames, B, IN_DIM)

    preds = jnp.transpose(preds_tb, (1, 0, 2)).reshape(
        Bx, pred_frames, Cx, Hx, Wx)

    target_masks = jnp.zeros((num_frames,), dtype=bool).at[
        context:context + pred_frames].set(True)

    return {
        'preds': preds,
        'target_masks': target_masks,
        'mu_post': [], 'logvar_post': [],
        'mu_prior': [], 'logvar_prior': [],
        'latents': [],
    }


if __name__ == "__main__":
    key = jax.random.PRNGKey(0)
    k_x, k_p = jax.random.split(key)
    context, pred_frames = 4, 4
    num_frames = context + pred_frames          # 8, matches torch indexing assumption
    x = jax.random.uniform(k_x, (B, num_frames, C, H, W), dtype=jnp.float32)
    params = init_params(k_p)

    # autoregressive path
    out = video_pred_forward(x, params, context=context, pred_frames=pred_frames,
                             teacher_force=False)
    jax.block_until_ready(out['preds'])
    assert out['preds'].shape == (B, pred_frames, C, H, W)
    assert bool(out['target_masks'][context]) and not bool(out['target_masks'][0])
    assert bool(jnp.all(jnp.isfinite(out['preds'])))

    # teacher-forced path (hoisted encoder over all steps + batched deferred decoder)
    out_tf = video_pred_forward(x, params, context=context, pred_frames=pred_frames,
                                teacher_force=True)
    jax.block_until_ready(out_tf['preds'])
    assert out_tf['preds'].shape == (B, pred_frames, C, H, W)
    assert bool(jnp.all(jnp.isfinite(out_tf['preds'])))

    print("KERNEL_OK")
</pallas_src>

<mosaic_0001>
module attributes {stable_mosaic.version = 11 : i64} {
  func.func @kernel(%arg0: memref<8x1024xf32, #tpu.memory_space<vmem>>, %arg1: memref<1024x128xbf16, #tpu.memory_space<vmem>>, %arg2: memref<1x128xf32, #tpu.memory_space<vmem>>, %arg3: memref<128x128xbf16, #tpu.memory_space<vmem>>, %arg4: memref<1x128xf32, #tpu.memory_space<vmem>>, %arg5: memref<128x512xbf16, #tpu.memory_space<vmem>>, %arg6: memref<128x512xbf16, #tpu.memory_space<vmem>>, %arg7: memref<1x512xf32, #tpu.memory_space<vmem>>, %arg8: memref<128x128xbf16, #tpu.memory_space<vmem>>, %arg9: memref<1x128xf32, #tpu.memory_space<vmem>>, %arg10: memref<128x128xbf16, #tpu.memory_space<vmem>>, %arg11: memref<1x128xf32, #tpu.memory_space<vmem>>, %arg12: memref<128x1024xbf16, #tpu.memory_space<vmem>>, %arg13: memref<1x1024xf32, #tpu.memory_space<vmem>>, %arg14: memref<4x2x1024xf32, #tpu.memory_space<vmem>>) attributes {dimension_semantics = [], scalar_prefetch = 0 : i64, scratch_operands = 0 : i64, tpu.core_type = #tpu.core_type<tc>} {
    %c0 = arith.constant 0 : index
    %c0_0 = arith.constant 0 : index
    %0 = vector.load %arg0[%c0, %c0_0] : memref<8x1024xf32, #tpu.memory_space<vmem>>, vector<8x1024xf32>
    %1 = arith.truncf %0 : vector<8x1024xf32> to vector<8x1024xbf16>
    %c0_1 = arith.constant 0 : index
    %c0_2 = arith.constant 0 : index
    %2 = vector.load %arg1[%c0_1, %c0_2] : memref<1024x128xbf16, #tpu.memory_space<vmem>>, vector<1024x128xbf16>
    %cst = arith.constant dense<0.000000e+00> : vector<8x128xf32>
    %3 = tpu.matmul %1, %2, %cst {dimension_numbers = #tpu.dot_dimension_numbers<[1], [0], [0], [1], [0, 0, 1, 1], [], []>} : vector<8x1024xbf16>, vector<1024x128xbf16>, vector<8x128xf32> -> vector<8x128xf32>
    %c0_3 = arith.constant 0 : index
    %c0_4 = arith.constant 0 : index
    %4 = vector.load %arg2[%c0_3, %c0_4] : memref<1x128xf32, #tpu.memory_space<vmem>>, vector<1x128xf32>
    %5 = vector.broadcast %4 : vector<1x128xf32> to vector<8x128xf32>
    %6 = arith.addf %3, %5 : vector<8x128xf32>
    %cst_5 = arith.constant 0.000000e+00 : f32
    %7 = vector.broadcast %cst_5 : f32 to vector<8x128xf32>
    %8 = arith.maximumf %6, %7 : vector<8x128xf32>
    %9 = arith.truncf %8 : vector<8x128xf32> to vector<8x128xbf16>
    %c0_6 = arith.constant 0 : index
    %c0_7 = arith.constant 0 : index
    %10 = vector.load %arg3[%c0_6, %c0_7] : memref<128x128xbf16, #tpu.memory_space<vmem>>, vector<128x128xbf16>
    %cst_8 = arith.constant dense<0.000000e+00> : vector<8x128xf32>
    %11 = tpu.matmul %9, %10, %cst_8 {dimension_numbers = #tpu.dot_dimension_numbers<[1], [0], [0], [1], [0, 0, 1, 1], [], []>} : vector<8x128xbf16>, vector<128x128xbf16>, vector<8x128xf32> -> vector<8x128xf32>
    %c0_9 = arith.constant 0 : index
    %c0_10 = arith.constant 0 : index
    %12 = vector.load %arg4[%c0_9, %c0_10] : memref<1x128xf32, #tpu.memory_space<vmem>>, vector<1x128xf32>
    %13 = vector.broadcast %12 : vector<1x128xf32> to vector<8x128xf32>
    %14 = arith.addf %11, %13 : vector<8x128xf32>
    %15 = math.tanh %14 : vector<8x128xf32>
    %cst_11 = arith.constant 0.000000e+00 : f32
    %16 = vector.broadcast %cst_11 : f32 to vector<2x128xf32>
    %cst_12 = arith.constant 0.000000e+00 : f32
    %17 = vector.broadcast %cst_12 : f32 to vector<2x128xf32>
    %18 = vector.extract_strided_slice %15 {offsets = [0, 0], sizes = [2, 128], strides = [1, 1]} : vector<8x128xf32> to vector<2x128xf32>
    %19 = arith.truncf %18 : vector<2x128xf32> to vector<2x128xbf16>
    %c0_13 = arith.constant 0 : index
    %c0_14 = arith.constant 0 : index
    %20 = vector.load %arg5[%c0_13, %c0_14] : memref<128x512xbf16, #tpu.memory_space<vmem>>, vector<128x512xbf16>
    %cst_15 = arith.constant dense<0.000000e+00> : vector<2x512xf32>
    %21 = tpu.matmul %19, %20, %cst_15 {dimension_numbers = #tpu.dot_dimension_numbers<[1], [0], [0], [1], [0, 0, 1, 1], [], []>} : vector<2x128xbf16>, vector<128x512xbf16>, vector<2x512xf32> -> vector<2x512xf32>
    %22 = arith.truncf %16 : vector<2x128xf32> to vector<2x128xbf16>
    %c0_16 = arith.constant 0 : index
    %c0_17 = arith.constant 0 : index
    %23 = vector.load %arg6[%c0_16, %c0_17] : memref<128x512xbf16, #tpu.memory_space<vmem>>, vector<128x512xbf16>
    %cst_18 = arith.constant dense<0.000000e+00> : vector<2x512xf32>
    %24 = tpu.matmul %22, %23, %cst_18 {dimension_numbers = #tpu.dot_dimension_numbers<[1], [0], [0], [1], [0, 0, 1, 1], [], []>} : vector<2x128xbf16>, vector<128x512xbf16>, vector<2x512xf32> -> vector<2x512xf32>
    %25 = arith.addf %21, %24 : vector<2x512xf32>
    %c0_19 = arith.constant 0 : index
    %c0_20 = arith.constant 0 : index
    %26 = vector.load %arg7[%c0_19, %c0_20] : memref<1x512xf32, #tpu.memory_space<vmem>>, vector<1x512xf32>
    %27 = vector.broadcast %26 : vector<1x512xf32> to vector<2x512xf32>
    %28 = arith.addf %25, %27 : vector<2x512xf32>
    %29 = vector.extract_strided_slice %28 {offsets = [0, 0], sizes = [2, 128], strides = [1, 1]} : vector<2x512xf32> to vector<2x128xf32>
    %30 = arith.negf %29 : vector<2x128xf32>
    %31 = math.exp %30 : vector<2x128xf32>
    %cst_21 = arith.constant 1.000000e+00 : f32
    %32 = vector.broadcast %cst_21 : f32 to vector<2x128xf32>
    %33 = arith.addf %32, %31 : vector<2x128xf32>
    %34 = arith.divf %32, %33 : vector<2x128xf32>
    %35 = vector.extract_strided_slice %28 {offsets = [0, 128], sizes = [2, 128], strides = [1, 1]} : vector<2x512xf32> to vector<2x128xf32>
    %36 = arith.negf %35 : vector<2x128xf32>
    %37 = math.exp %36 : vector<2x128xf32>
    %cst_22 = arith.constant 1.000000e+00 : f32
    %38 = vector.broadcast %cst_22 : f32 to vector<2x128xf32>
    %39 = arith.addf %38, %37 : vector<2x128xf32>
    %40 = arith.divf %38, %39 : vector<2x128xf32>
    %41 = vector.extract_strided_slice %28 {offsets = [0, 256], sizes = [2, 128], strides = [1, 1]} : vector<2x512xf32> to vector<2x128xf32>
    %42 = math.tanh %41 : vector<2x128xf32>
    %43 = vector.extract_strided_slice %28 {offsets = [0, 384], sizes = [2, 128], strides = [1, 1]} : vector<2x512xf32> to vector<2x128xf32>
    %44 = arith.negf %43 : vector<2x128xf32>
    %45 = math.exp %44 : vector<2x128xf32>
    %cst_23 = arith.constant 1.000000e+00 : f32
    %46 = vector.broadcast %cst_23 : f32 to vector<2x128xf32>
    %47 = arith.addf %46, %45 : vector<2x128xf32>
    %48 = arith.divf %46, %47 : vector<2x128xf32>
    %49 = arith.mulf %40, %17 : vector<2x128xf32>
    %50 = arith.mulf %34, %42 : vector<2x128xf32>
    %51 = arith.addf %49, %50 : vector<2x128xf32>
    %52 = math.tanh %51 : vector<2x128xf32>
    %53 = arith.mulf %48, %52 : vector<2x128xf32>
    %54 = vector.extract_strided_slice %15 {offsets = [2, 0], sizes = [2, 128], strides = [1, 1]} : vector<8x128xf32> to vector<2x128xf32>
    %55 = arith.truncf %54 : vector<2x128xf32> to vector<2x128xbf16>
    %c0_24 = arith.constant 0 : index
    %c0_25 = arith.constant 0 : index
    %56 = vector.load %arg5[%c0_24, %c0_25] : memref<128x512xbf16, #tpu.memory_space<vmem>>, vector<128x512xbf16>
    %cst_26 = arith.constant dense<0.000000e+00> : vector<2x512xf32>
    %57 = tpu.matmul %55, %56, %cst_26 {dimension_numbers = #tpu.dot_dimension_numbers<[1], [0], [0], [1], [0, 0, 1, 1], [], []>} : vector<2x128xbf16>, vector<128x512xbf16>, vector<2x512xf32> -> vector<2x512xf32>
    %58 = arith.truncf %53 : vector<2x128xf32> to vector<2x128xbf16>
    %c0_27 = arith.constant 0 : index
    %c0_28 = arith.constant 0 : index
    %59 = vector.load %arg6[%c0_27, %c0_28] : memref<128x512xbf16, #tpu.memory_space<vmem>>, vector<128x512xbf16>
    %cst_29 = arith.constant dense<0.000000e+00> : vector<2x512xf32>
    %60 = tpu.matmul %58, %59, %cst_29 {dimension_numbers = #tpu.dot_dimension_numbers<[1], [0], [0], [1], [0, 0, 1, 1], [], []>} : vector<2x128xbf16>, vector<128x512xbf16>, vector<2x512xf32> -> vector<2x512xf32>
    %61 = arith.addf %57, %60 : vector<2x512xf32>
    %c0_30 = arith.constant 0 : index
    %c0_31 = arith.constant 0 : index
    %62 = vector.load %arg7[%c0_30, %c0_31] : memref<1x512xf32, #tpu.memory_space<vmem>>, vector<1x512xf32>
    %63 = vector.broadcast %62 : vector<1x512xf32> to vector<2x512xf32>
    %64 = arith.addf %61, %63 : vector<2x512xf32>
    %65 = vector.extract_strided_slice %64 {offsets = [0, 0], sizes = [2, 128], strides = [1, 1]} : vector<2x512xf32> to vector<2x128xf32>
    %66 = arith.negf %65 : vector<2x128xf32>
    %67 = math.exp %66 : vector<2x128xf32>
    %cst_32 = arith.constant 1.000000e+00 : f32
    %68 = vector.broadcast %cst_32 : f32 to vector<2x128xf32>
    %69 = arith.addf %68, %67 : vector<2x128xf32>
    %70 = arith.divf %68, %69 : vector<2x128xf32>
    %71 = vector.extract_strided_slice %64 {offsets = [0, 128], sizes = [2, 128], strides = [1, 1]} : vector<2x512xf32> to vector<2x128xf32>
    %72 = arith.negf %71 : vector<2x128xf32>
    %73 = math.exp %72 : vector<2x128xf32>
    %cst_33 = arith.constant 1.000000e+00 : f32
    %74 = vector.broadcast %cst_33 : f32 to vector<2x128xf32>
    %75 = arith.addf %74, %73 : vector<2x128xf32>
    %76 = arith.divf %74, %75 : vector<2x128xf32>
    %77 = vector.extract_strided_slice %64 {offsets = [0, 256], sizes = [2, 128], strides = [1, 1]} : vector<2x512xf32> to vector<2x128xf32>
    %78 = math.tanh %77 : vector<2x128xf32>
    %79 = vector.extract_strided_slice %64 {offsets = [0, 384], sizes = [2, 128], strides = [1, 1]} : vector<2x512xf32> to vector<2x128xf32>
    %80 = arith.negf %79 : vector<2x128xf32>
    %81 = math.exp %80 : vector<2x128xf32>
    %cst_34 = arith.constant 1.000000e+00 : f32
    %82 = vector.broadcast %cst_34 : f32 to vector<2x128xf32>
    %83 = arith.addf %82, %81 : vector<2x128xf32>
    %84 = arith.divf %82, %83 : vector<2x128xf32>
    %85 = arith.mulf %76, %51 : vector<2x128xf32>
    %86 = arith.mulf %70, %78 : vector<2x128xf32>
    %87 = arith.addf %85, %86 : vector<2x128xf32>
    %88 = math.tanh %87 : vector<2x128xf32>
    %89 = arith.mulf %84, %88 : vector<2x128xf32>
    %90 = vector.extract_strided_slice %15 {offsets = [4, 0], sizes = [2, 128], strides = [1, 1]} : vector<8x128xf32> to vector<2x128xf32>
    %91 = arith.truncf %90 : vector<2x128xf32> to vector<2x128xbf16>
    %c0_35 = arith.constant 0 : index
    %c0_36 = arith.constant 0 : index
    %92 = vector.load %arg5[%c0_35, %c0_36] : memref<128x512xbf16, #tpu.memory_space<vmem>>, vector<128x512xbf16>
    %cst_37 = arith.constant dense<0.000000e+00> : vector<2x512xf32>
    %93 = tpu.matmul %91, %92, %cst_37 {dimension_numbers = #tpu.dot_dimension_numbers<[1], [0], [0], [1], [0, 0, 1, 1], [], []>} : vector<2x128xbf16>, vector<128x512xbf16>, vector<2x512xf32> -> vector<2x512xf32>
    %94 = arith.truncf %89 : vector<2x128xf32> to vector<2x128xbf16>
    %c0_38 = arith.constant 0 : index
    %c0_39 = arith.constant 0 : index
    %95 = vector.load %arg6[%c0_38, %c0_39] : memref<128x512xbf16, #tpu.memory_space<vmem>>, vector<128x512xbf16>
    %cst_40 = arith.constant dense<0.000000e+00> : vector<2x512xf32>
    %96 = tpu.matmul %94, %95, %cst_40 {dimension_numbers = #tpu.dot_dimension_numbers<[1], [0], [0], [1], [0, 0, 1, 1], [], []>} : vector<2x128xbf16>, vector<128x512xbf16>, vector<2x512xf32> -> vector<2x512xf32>
    %97 = arith.addf %93, %96 : vector<2x512xf32>
    %c0_41 = arith.constant 0 : index
    %c0_42 = arith.constant 0 : index
    %98 = vector.load %arg7[%c0_41, %c0_42] : memref<1x512xf32, #tpu.memory_space<vmem>>, vector<1x512xf32>
    %99 = vector.broadcast %98 : vector<1x512xf32> to vector<2x512xf32>
    %100 = arith.addf %97, %99 : vector<2x512xf32>
    %101 = vector.extract_strided_slice %100 {offsets = [0, 0], sizes = [2, 128], strides = [1, 1]} : vector<2x512xf32> to vector<2x128xf32>
    %102 = arith.negf %101 : vector<2x128xf32>
    %103 = math.exp %102 : vector<2x128xf32>
    %cst_43 = arith.constant 1.000000e+00 : f32
    %104 = vector.broadcast %cst_43 : f32 to vector<2x128xf32>
    %105 = arith.addf %104, %103 : vector<2x128xf32>
    %106 = arith.divf %104, %105 : vector<2x128xf32>
    %107 = vector.extract_strided_slice %100 {offsets = [0, 128], sizes = [2, 128], strides = [1, 1]} : vector<2x512xf32> to vector<2x128xf32>
    %108 = arith.negf %107 : vector<2x128xf32>
    %109 = math.exp %108 : vector<2x128xf32>
    %cst_44 = arith.constant 1.000000e+00 : f32
    %110 = vector.broadcast %cst_44 : f32 to vector<2x128xf32>
    %111 = arith.addf %110, %109 : vector<2x128xf32>
    %112 = arith.divf %110, %111 : vector<2x128xf32>
    %113 = vector.extract_strided_slice %100 {offsets = [0, 256], sizes = [2, 128], strides = [1, 1]} : vector<2x512xf32> to vector<2x128xf32>
    %114 = math.tanh %113 : vector<2x128xf32>
    %115 = vector.extract_strided_slice %100 {offsets = [0, 384], sizes = [2, 128], strides = [1, 1]} : vector<2x512xf32> to vector<2x128xf32>
    %116 = arith.negf %115 : vector<2x128xf32>
    %117 = math.exp %116 : vector<2x128xf32>
    %cst_45 = arith.constant 1.000000e+00 : f32
    %118 = vector.broadcast %cst_45 : f32 to vector<2x128xf32>
    %119 = arith.addf %118, %117 : vector<2x128xf32>
    %120 = arith.divf %118, %119 : vector<2x128xf32>
    %121 = arith.mulf %112, %87 : vector<2x128xf32>
    %122 = arith.mulf %106, %114 : vector<2x128xf32>
    %123 = arith.addf %121, %122 : vector<2x128xf32>
    %124 = math.tanh %123 : vector<2x128xf32>
    %125 = arith.mulf %120, %124 : vector<2x128xf32>
    %126 = vector.extract_strided_slice %8 {offsets = [6, 0], sizes = [2, 128], strides = [1, 1]} : vector<8x128xf32> to vector<2x128xf32>
    %127 = vector.extract_strided_slice %15 {offsets = [6, 0], sizes = [2, 128], strides = [1, 1]} : vector<8x128xf32> to vector<2x128xf32>
    %128 = arith.truncf %127 : vector<2x128xf32> to vector<2x128xbf16>
    %c0_46 = arith.constant 0 : index
    %c0_47 = arith.constant 0 : index
    %129 = vector.load %arg5[%c0_46, %c0_47] : memref<128x512xbf16, #tpu.memory_space<vmem>>, vector<128x512xbf16>
    %cst_48 = arith.constant dense<0.000000e+00> : vector<2x512xf32>
    %130 = tpu.matmul %128, %129, %cst_48 {dimension_numbers = #tpu.dot_dimension_numbers<[1], [0], [0], [1], [0, 0, 1, 1], [], []>} : vector<2x128xbf16>, vector<128x512xbf16>, vector<2x512xf32> -> vector<2x512xf32>
    %131 = arith.truncf %125 : vector<2x128xf32> to vector<2x128xbf16>
    %c0_49 = arith.constant 0 : index
    %c0_50 = arith.constant 0 : index
    %132 = vector.load %arg6[%c0_49, %c0_50] : memref<128x512xbf16, #tpu.memory_space<vmem>>, vector<128x512xbf16>
    %cst_51 = arith.constant dense<0.000000e+00> : vector<2x512xf32>
    %133 = tpu.matmul %131, %132, %cst_51 {dimension_numbers = #tpu.dot_dimension_numbers<[1], [0], [0], [1], [0, 0, 1, 1], [], []>} : vector<2x128xbf16>, vector<128x512xbf16>, vector<2x512xf32> -> vector<2x512xf32>
    %134 = arith.addf %130, %133 : vector<2x512xf32>
    %c0_52 = arith.constant 0 : index
    %c0_53 = arith.constant 0 : index
    %135 = vector.load %arg7[%c0_52, %c0_53] : memref<1x512xf32, #tpu.memory_space<vmem>>, vector<1x512xf32>
    %136 = vector.broadcast %135 : vector<1x512xf32> to vector<2x512xf32>
    %137 = arith.addf %134, %136 : vector<2x512xf32>
    %138 = vector.extract_strided_slice %137 {offsets = [0, 0], sizes = [2, 128], strides = [1, 1]} : vector<2x512xf32> to vector<2x128xf32>
    %139 = arith.negf %138 : vector<2x128xf32>
    %140 = math.exp %139 : vector<2x128xf32>
    %cst_54 = arith.constant 1.000000e+00 : f32
    %141 = vector.broadcast %cst_54 : f32 to vector<2x128xf32>
    %142 = arith.addf %141, %140 : vector<2x128xf32>
    %143 = arith.divf %141, %142 : vector<2x128xf32>
    %144 = vector.extract_strided_slice %137 {offsets = [0, 128], sizes = [2, 128], strides = [1, 1]} : vector<2x512xf32> to vector<2x128xf32>
    %145 = arith.negf %144 : vector<2x128xf32>
    %146 = math.exp %145 : vector<2x128xf32>
    %cst_55 = arith.constant 1.000000e+00 : f32
    %147 = vector.broadcast %cst_55 : f32 to vector<2x128xf32>
    %148 = arith.addf %147, %146 : vector<2x128xf32>
    %149 = arith.divf %147, %148 : vector<2x128xf32>
    %150 = vector.extract_strided_slice %137 {offsets = [0, 256], sizes = [2, 128], strides = [1, 1]} : vector<2x512xf32> to vector<2x128xf32>
    %151 = math.tanh %150 : vector<2x128xf32>
    %152 = vector.extract_strided_slice %137 {offsets = [0, 384], sizes = [2, 128], strides = [1, 1]} : vector<2x512xf32> to vector<2x128xf32>
    %153 = arith.negf %152 : vector<2x128xf32>
    %154 = math.exp %153 : vector<2x128xf32>
    %cst_56 = arith.constant 1.000000e+00 : f32
    %155 = vector.broadcast %cst_56 : f32 to vector<2x128xf32>
    %156 = arith.addf %155, %154 : vector<2x128xf32>
    %157 = arith.divf %155, %156 : vector<2x128xf32>
    %158 = arith.mulf %149, %123 : vector<2x128xf32>
    %159 = arith.mulf %143, %151 : vector<2x128xf32>
    %160 = arith.addf %158, %159 : vector<2x128xf32>
    %161 = math.tanh %160 : vector<2x128xf32>
    %162 = arith.mulf %157, %161 : vector<2x128xf32>
    %163 = arith.truncf %162 : vector<2x128xf32> to vector<2x128xbf16>
    %c0_57 = arith.constant 0 : index
    %c0_58 = arith.constant 0 : index
    %164 = vector.load %arg8[%c0_57, %c0_58] : memref<128x128xbf16, #tpu.memory_space<vmem>>, vector<128x128xbf16>
    %cst_59 = arith.constant dense<0.000000e+00> : vector<2x128xf32>
    %165 = tpu.matmul %163, %164, %cst_59 {dimension_numbers = #tpu.dot_dimension_numbers<[1], [0], [0], [1], [0, 0, 1, 1], [], []>} : vector<2x128xbf16>, vector<128x128xbf16>, vector<2x128xf32> -> vector<2x128xf32>
    %c0_60 = arith.constant 0 : index
    %c0_61 = arith.constant 0 : index
    %166 = vector.load %arg9[%c0_60, %c0_61] : memref<1x128xf32, #tpu.memory_space<vmem>>, vector<1x128xf32>
    %167 = vector.broadcast %166 : vector<1x128xf32> to vector<2x128xf32>
    %168 = arith.addf %165, %167 : vector<2x128xf32>
    %169 = math.tanh %168 : vector<2x128xf32>
    %170 = arith.truncf %169 : vector<2x128xf32> to vector<2x128xbf16>
    %c0_62 = arith.constant 0 : index
    %c0_63 = arith.constant 0 : index
    %171 = vector.load %arg10[%c0_62, %c0_63] : memref<128x128xbf16, #tpu.memory_space<vmem>>, vector<128x128xbf16>
    %cst_64 = arith.constant dense<0.000000e+00> : vector<2x128xf32>
    %172 = tpu.matmul %170, %171, %cst_64 {dimension_numbers = #tpu.dot_dimension_numbers<[1], [0], [0], [1], [0, 0, 1, 1], [], []>} : vector<2x128xbf16>, vector<128x128xbf16>, vector<2x128xf32> -> vector<2x128xf32>
    %c0_65 = arith.constant 0 : index
    %c0_66 = arith.constant 0 : index
    %173 = vector.load %arg11[%c0_65, %c0_66] : memref<1x128xf32, #tpu.memory_space<vmem>>, vector<1x128xf32>
    %174 = vector.broadcast %173 : vector<1x128xf32> to vector<2x128xf32>
    %175 = arith.addf %172, %174 : vector<2x128xf32>
    %176 = arith.addf %175, %126 : vector<2x128xf32>
    %cst_67 = arith.constant 0.000000e+00 : f32
    %177 = vector.broadcast %cst_67 : f32 to vector<2x128xf32>
    %178 = arith.maximumf %176, %177 : vector<2x128xf32>
    %179 = arith.truncf %178 : vector<2x128xf32> to vector<2x128xbf16>
    %c0_68 = arith.constant 0 : index
    %c0_69 = arith.constant 0 : index
    %180 = vector.load %arg12[%c0_68, %c0_69] : memref<128x1024xbf16, #tpu.memory_space<vmem>>, vector<128x1024xbf16>
    %cst_70 = arith.constant dense<0.000000e+00> : vector<2x1024xf32>
    %181 = tpu.matmul %179, %180, %cst_70 {dimension_numbers = #tpu.dot_dimension_numbers<[1], [0], [0], [1], [0, 0, 1, 1], [], []>} : vector<2x128xbf16>, vector<128x1024xbf16>, vector<2x1024xf32> -> vector<2x1024xf32>
    %c0_71 = arith.constant 0 : index
    %c0_72 = arith.constant 0 : index
    %182 = vector.load %arg13[%c0_71, %c0_72] : memref<1x1024xf32, #tpu.memory_space<vmem>>, vector<1x1024xf32>
    %183 = vector.broadcast %182 : vector<1x1024xf32> to vector<2x1024xf32>
    %184 = arith.addf %181, %183 : vector<2x1024xf32>
    %185 = arith.negf %184 : vector<2x1024xf32>
    %186 = math.exp %185 : vector<2x1024xf32>
    %cst_73 = arith.constant 1.000000e+00 : f32
    %187 = vector.broadcast %cst_73 : f32 to vector<2x1024xf32>
    %188 = arith.addf %187, %186 : vector<2x1024xf32>
    %189 = arith.divf %187, %188 : vector<2x1024xf32>
    %c0_74 = arith.constant 0 : index
    %c0_75 = arith.constant 0 : index
    %c0_76 = arith.constant 0 : index
    %190 = vector.load %arg14[%c0_74, %c0_75, %c0_76] : memref<4x2x1024xf32, #tpu.memory_space<vmem>>, vector<1x2x1024xf32>
    %191 = vector.shape_cast %190 : vector<1x2x1024xf32> to vector<2x1024xf32>
    %192 = vector.shape_cast %189 : vector<2x1024xf32> to vector<1x2x1024xf32>
    tpu.vector_store %arg14[%c0_74, %c0_75, %c0_76], %192 {strides = array<i32>} : memref<4x2x1024xf32, #tpu.memory_space<vmem>>, vector<1x2x1024xf32>,
    %193 = arith.truncf %189 : vector<2x1024xf32> to vector<2x1024xbf16>
    %c0_77 = arith.constant 0 : index
    %c0_78 = arith.constant 0 : index
    %194 = vector.load %arg1[%c0_77, %c0_78] : memref<1024x128xbf16, #tpu.memory_space<vmem>>, vector<1024x128xbf16>
    %cst_79 = arith.constant dense<0.000000e+00> : vector<2x128xf32>
    %195 = tpu.matmul %193, %194, %cst_79 {dimension_numbers = #tpu.dot_dimension_numbers<[1], [0], [0], [1], [0, 0, 1, 1], [], []>} : vector<2x1024xbf16>, vector<1024x128xbf16>, vector<2x128xf32> -> vector<2x128xf32>
    %c0_80 = arith.constant 0 : index
    %c0_81 = arith.constant 0 : index
    %196 = vector.load %arg2[%c0_80, %c0_81] : memref<1x128xf32, #tpu.memory_space<vmem>>, vector<1x128xf32>
    %197 = vector.broadcast %196 : vector<1x128xf32> to vector<2x128xf32>
    %198 = arith.addf %195, %197 : vector<2x128xf32>
    %cst_82 = arith.constant 0.000000e+00 : f32
    %199 = vector.broadcast %cst_82 : f32 to vector<2x128xf32>
    %200 = arith.maximumf %198, %199 : vector<2x128xf32>
    %201 = arith.truncf %200 : vector<2x128xf32> to vector<2x128xbf16>
    %c0_83 = arith.constant 0 : index
    %c0_84 = arith.constant 0 : index
    %202 = vector.load %arg3[%c0_83, %c0_84] : memref<128x128xbf16, #tpu.memory_space<vmem>>, vector<128x128xbf16>
    %cst_85 = arith.constant dense<0.000000e+00> : vector<2x128xf32>
    %203 = tpu.matmul %201, %202, %cst_85 {dimension_numbers = #tpu.dot_dimension_numbers<[1], [0], [0], [1], [0, 0, 1, 1], [], []>} : vector<2x128xbf16>, vector<128x128xbf16>, vector<2x128xf32> -> vector<2x128xf32>
    %c0_86 = arith.constant 0 : index
    %c0_87 = arith.constant 0 : index
    %204 = vector.load %arg4[%c0_86, %c0_87] : memref<1x128xf32, #tpu.memory_space<vmem>>, vector<1x128xf32>
    %205 = vector.broadcast %204 : vector<1x128xf32> to vector<2x128xf32>
    %206 = arith.addf %203, %205 : vector<2x128xf32>
    %207 = math.tanh %206 : vector<2x128xf32>
    %208 = arith.truncf %207 : vector<2x128xf32> to vector<2x128xbf16>
    %c0_88 = arith.constant 0 : index
    %c0_89 = arith.constant 0 : index
    %209 = vector.load %arg5[%c0_88, %c0_89] : memref<128x512xbf16, #tpu.memory_space<vmem>>, vector<128x512xbf16>
    %cst_90 = arith.constant dense<0.000000e+00> : vector<2x512xf32>
    %210 = tpu.matmul %208, %209, %cst_90 {dimension_numbers = #tpu.dot_dimension_numbers<[1], [0], [0], [1], [0, 0, 1, 1], [], []>} : vector<2x128xbf16>, vector<128x512xbf16>, vector<2x512xf32> -> vector<2x512xf32>
    %211 = arith.truncf %162 : vector<2x128xf32> to vector<2x128xbf16>
    %c0_91 = arith.constant 0 : index
    %c0_92 = arith.constant 0 : index
    %212 = vector.load %arg6[%c0_91, %c0_92] : memref<128x512xbf16, #tpu.memory_space<vmem>>, vector<128x512xbf16>
    %cst_93 = arith.constant dense<0.000000e+00> : vector<2x512xf32>
    %213 = tpu.matmul %211, %212, %cst_93 {dimension_numbers = #tpu.dot_dimension_numbers<[1], [0], [0], [1], [0, 0, 1, 1], [], []>} : vector<2x128xbf16>, vector<128x512xbf16>, vector<2x512xf32> -> vector<2x512xf32>
    %214 = arith.addf %210, %213 : vector<2x512xf32>
    %c0_94 = arith.constant 0 : index
    %c0_95 = arith.constant 0 : index
    %215 = vector.load %arg7[%c0_94, %c0_95] : memref<1x512xf32, #tpu.memory_space<vmem>>, vector<1x512xf32>
    %216 = vector.broadcast %215 : vector<1x512xf32> to vector<2x512xf32>
    %217 = arith.addf %214, %216 : vector<2x512xf32>
    %218 = vector.extract_strided_slice %217 {offsets = [0, 0], sizes = [2, 128], strides = [1, 1]} : vector<2x512xf32> to vector<2x128xf32>
    %219 = arith.negf %218 : vector<2x128xf32>
    %220 = math.exp %219 : vector<2x128xf32>
    %cst_96 = arith.constant 1.000000e+00 : f32
    %221 = vector.broadcast %cst_96 : f32 to vector<2x128xf32>
    %222 = arith.addf %221, %220 : vector<2x128xf32>
    %223 = arith.divf %221, %222 : vector<2x128xf32>
    %224 = vector.extract_strided_slice %217 {offsets = [0, 128], sizes = [2, 128], strides = [1, 1]} : vector<2x512xf32> to vector<2x128xf32>
    %225 = arith.negf %224 : vector<2x128xf32>
    %226 = math.exp %225 : vector<2x128xf32>
    %cst_97 = arith.constant 1.000000e+00 : f32
    %227 = vector.broadcast %cst_97 : f32 to vector<2x128xf32>
    %228 = arith.addf %227, %226 : vector<2x128xf32>
    %229 = arith.divf %227, %228 : vector<2x128xf32>
    %230 = vector.extract_strided_slice %217 {offsets = [0, 256], sizes = [2, 128], strides = [1, 1]} : vector<2x512xf32> to vector<2x128xf32>
    %231 = math.tanh %230 : vector<2x128xf32>
    %232 = vector.extract_strided_slice %217 {offsets = [0, 384], sizes = [2, 128], strides = [1, 1]} : vector<2x512xf32> to vector<2x128xf32>
    %233 = arith.negf %232 : vector<2x128xf32>
    %234 = math.exp %233 : vector<2x128xf32>
    %cst_98 = arith.constant 1.000000e+00 : f32
    %235 = vector.broadcast %cst_98 : f32 to vector<2x128xf32>
    %236 = arith.addf %235, %234 : vector<2x128xf32>
    %237 = arith.divf %235, %236 : vector<2x128xf32>
    %238 = arith.mulf %229, %160 : vector<2x128xf32>
    %239 = arith.mulf %223, %231 : vector<2x128xf32>
    %240 = arith.addf %238, %239 : vector<2x128xf32>
    %241 = math.tanh %240 : vector<2x128xf32>
    %242 = arith.mulf %237, %241 : vector<2x128xf32>
    %243 = arith.truncf %242 : vector<2x128xf32> to vector<2x128xbf16>
    %c0_99 = arith.constant 0 : index
    %c0_100 = arith.constant 0 : index
    %244 = vector.load %arg8[%c0_99, %c0_100] : memref<128x128xbf16, #tpu.memory_space<vmem>>, vector<128x128xbf16>
    %cst_101 = arith.constant dense<0.000000e+00> : vector<2x128xf32>
    %245 = tpu.matmul %243, %244, %cst_101 {dimension_numbers = #tpu.dot_dimension_numbers<[1], [0], [0], [1], [0, 0, 1, 1], [], []>} : vector<2x128xbf16>, vector<128x128xbf16>, vector<2x128xf32> -> vector<2x128xf32>
    %c0_102 = arith.constant 0 : index
    %c0_103 = arith.constant 0 : index
    %246 = vector.load %arg9[%c0_102, %c0_103] : memref<1x128xf32, #tpu.memory_space<vmem>>, vector<1x128xf32>
    %247 = vector.broadcast %246 : vector<1x128xf32> to vector<2x128xf32>
    %248 = arith.addf %245, %247 : vector<2x128xf32>
    %249 = math.tanh %248 : vector<2x128xf32>
    %250 = arith.truncf %249 : vector<2x128xf32> to vector<2x128xbf16>
    %c0_104 = arith.constant 0 : index
    %c0_105 = arith.constant 0 : index
    %251 = vector.load %arg10[%c0_104, %c0_105] : memref<128x128xbf16, #tpu.memory_space<vmem>>, vector<128x128xbf16>
    %cst_106 = arith.constant dense<0.000000e+00> : vector<2x128xf32>
    %252 = tpu.matmul %250, %251, %cst_106 {dimension_numbers = #tpu.dot_dimension_numbers<[1], [0], [0], [1], [0, 0, 1, 1], [], []>} : vector<2x128xbf16>, vector<128x128xbf16>, vector<2x128xf32> -> vector<2x128xf32>
    %c0_107 = arith.constant 0 : index
    %c0_108 = arith.constant 0 : index
    %253 = vector.load %arg11[%c0_107, %c0_108] : memref<1x128xf32, #tpu.memory_space<vmem>>, vector<1x128xf32>
    %254 = vector.broadcast %253 : vector<1x128xf32> to vector<2x128xf32>
    %255 = arith.addf %252, %254 : vector<2x128xf32>
    %256 = arith.addf %255, %126 : vector<2x128xf32>
    %cst_109 = arith.constant 0.000000e+00 : f32
    %257 = vector.broadcast %cst_109 : f32 to vector<2x128xf32>
    %258 = arith.maximumf %256, %257 : vector<2x128xf32>
    %259 = arith.truncf %258 : vector<2x128xf32> to vector<2x128xbf16>
    %c0_110 = arith.constant 0 : index
    %c0_111 = arith.constant 0 : index
    %260 = vector.load %arg12[%c0_110, %c0_111] : memref<128x1024xbf16, #tpu.memory_space<vmem>>, vector<128x1024xbf16>
    %cst_112 = arith.constant dense<0.000000e+00> : vector<2x1024xf32>
    %261 = tpu.matmul %259, %260, %cst_112 {dimension_numbers = #tpu.dot_dimension_numbers<[1], [0], [0], [1], [0, 0, 1, 1], [], []>} : vector<2x128xbf16>, vector<128x1024xbf16>, vector<2x1024xf32> -> vector<2x1024xf32>
    %c0_113 = arith.constant 0 : index
    %c0_114 = arith.constant 0 : index
    %262 = vector.load %arg13[%c0_113, %c0_114] : memref<1x1024xf32, #tpu.memory_space<vmem>>, vector<1x1024xf32>
    %263 = vector.broadcast %262 : vector<1x1024xf32> to vector<2x1024xf32>
    %264 = arith.addf %261, %263 : vector<2x1024xf32>
    %265 = arith.negf %264 : vector<2x1024xf32>
    %266 = math.exp %265 : vector<2x1024xf32>
    %cst_115 = arith.constant 1.000000e+00 : f32
    %267 = vector.broadcast %cst_115 : f32 to vector<2x1024xf32>
    %268 = arith.addf %267, %266 : vector<2x1024xf32>
    %269 = arith.divf %267, %268 : vector<2x1024xf32>
    %c1 = arith.constant 1 : index
    %c0_116 = arith.constant 0 : index
    %c0_117 = arith.constant 0 : index
    %270 = vector.load %arg14[%c1, %c0_116, %c0_117] : memref<4x2x1024xf32, #tpu.memory_space<vmem>>, vector<1x2x1024xf32>
    %271 = vector.shape_cast %270 : vector<1x2x1024xf32> to vector<2x1024xf32>
    %272 = vector.shape_cast %269 : vector<2x1024xf32> to vector<1x2x1024xf32>
    tpu.vector_store %arg14[%c1, %c0_116, %c0_117], %272 {strides = array<i32>} : memref<4x2x1024xf32, #tpu.memory_space<vmem>>, vector<1x2x1024xf32>,
    %273 = arith.truncf %269 : vector<2x1024xf32> to vector<2x1024xbf16>
    %c0_118 = arith.constant 0 : index
    %c0_119 = arith.constant 0 : index
    %274 = vector.load %arg1[%c0_118, %c0_119] : memref<1024x128xbf16, #tpu.memory_space<vmem>>, vector<1024x128xbf16>
    %cst_120 = arith.constant dense<0.000000e+00> : vector<2x128xf32>
    %275 = tpu.matmul %273, %274, %cst_120 {dimension_numbers = #tpu.dot_dimension_numbers<[1], [0], [0], [1], [0, 0, 1, 1], [], []>} : vector<2x1024xbf16>, vector<1024x128xbf16>, vector<2x128xf32> -> vector<2x128xf32>
    %c0_121 = arith.constant 0 : index
    %c0_122 = arith.constant 0 : index
    %276 = vector.load %arg2[%c0_121, %c0_122] : memref<1x128xf32, #tpu.memory_space<vmem>>, vector<1x128xf32>
    %277 = vector.broadcast %276 : vector<1x128xf32> to vector<2x128xf32>
    %278 = arith.addf %275, %277 : vector<2x128xf32>
    %cst_123 = arith.constant 0.000000e+00 : f32
    %279 = vector.broadcast %cst_123 : f32 to vector<2x128xf32>
    %280 = arith.maximumf %278, %279 : vector<2x128xf32>
    %281 = arith.truncf %280 : vector<2x128xf32> to vector<2x128xbf16>
    %c0_124 = arith.constant 0 : index
    %c0_125 = arith.constant 0 : index
    %282 = vector.load %arg3[%c0_124, %c0_125] : memref<128x128xbf16, #tpu.memory_space<vmem>>, vector<128x128xbf16>
    %cst_126 = arith.constant dense<0.000000e+00> : vector<2x128xf32>
    %283 = tpu.matmul %281, %282, %cst_126 {dimension_numbers = #tpu.dot_dimension_numbers<[1], [0], [0], [1], [0, 0, 1, 1], [], []>} : vector<2x128xbf16>, vector<128x128xbf16>, vector<2x128xf32> -> vector<2x128xf32>
    %c0_127 = arith.constant 0 : index
    %c0_128 = arith.constant 0 : index
    %284 = vector.load %arg4[%c0_127, %c0_128] : memref<1x128xf32, #tpu.memory_space<vmem>>, vector<1x128xf32>
    %285 = vector.broadcast %284 : vector<1x128xf32> to vector<2x128xf32>
    %286 = arith.addf %283, %285 : vector<2x128xf32>
    %287 = math.tanh %286 : vector<2x128xf32>
    %288 = arith.truncf %287 : vector<2x128xf32> to vector<2x128xbf16>
    %c0_129 = arith.constant 0 : index
    %c0_130 = arith.constant 0 : index
    %289 = vector.load %arg5[%c0_129, %c0_130] : memref<128x512xbf16, #tpu.memory_space<vmem>>, vector<128x512xbf16>
    %cst_131 = arith.constant dense<0.000000e+00> : vector<2x512xf32>
    %290 = tpu.matmul %288, %289, %cst_131 {dimension_numbers = #tpu.dot_dimension_numbers<[1], [0], [0], [1], [0, 0, 1, 1], [], []>} : vector<2x128xbf16>, vector<128x512xbf16>, vector<2x512xf32> -> vector<2x512xf32>
    %291 = arith.truncf %242 : vector<2x128xf32> to vector<2x128xbf16>
    %c0_132 = arith.constant 0 : index
    %c0_133 = arith.constant 0 : index
    %292 = vector.load %arg6[%c0_132, %c0_133] : memref<128x512xbf16, #tpu.memory_space<vmem>>, vector<128x512xbf16>
    %cst_134 = arith.constant dense<0.000000e+00> : vector<2x512xf32>
    %293 = tpu.matmul %291, %292, %cst_134 {dimension_numbers = #tpu.dot_dimension_numbers<[1], [0], [0], [1], [0, 0, 1, 1], [], []>} : vector<2x128xbf16>, vector<128x512xbf16>, vector<2x512xf32> -> vector<2x512xf32>
    %294 = arith.addf %290, %293 : vector<2x512xf32>
    %c0_135 = arith.constant 0 : index
    %c0_136 = arith.constant 0 : index
    %295 = vector.load %arg7[%c0_135, %c0_136] : memref<1x512xf32, #tpu.memory_space<vmem>>, vector<1x512xf32>
    %296 = vector.broadcast %295 : vector<1x512xf32> to vector<2x512xf32>
    %297 = arith.addf %294, %296 : vector<2x512xf32>
    %298 = vector.extract_strided_slice %297 {offsets = [0, 0], sizes = [2, 128], strides = [1, 1]} : vector<2x512xf32> to vector<2x128xf32>
    %299 = arith.negf %298 : vector<2x128xf32>
    %300 = math.exp %299 : vector<2x128xf32>
    %cst_137 = arith.constant 1.000000e+00 : f32
    %301 = vector.broadcast %cst_137 : f32 to vector<2x128xf32>
    %302 = arith.addf %301, %300 : vector<2x128xf32>
    %303 = arith.divf %301, %302 : vector<2x128xf32>
    %304 = vector.extract_strided_slice %297 {offsets = [0, 128], sizes = [2, 128], strides = [1, 1]} : vector<2x512xf32> to vector<2x128xf32>
    %305 = arith.negf %304 : vector<2x128xf32>
    %306 = math.exp %305 : vector<2x128xf32>
    %cst_138 = arith.constant 1.000000e+00 : f32
    %307 = vector.broadcast %cst_138 : f32 to vector<2x128xf32>
    %308 = arith.addf %307, %306 : vector<2x128xf32>
    %309 = arith.divf %307, %308 : vector<2x128xf32>
    %310 = vector.extract_strided_slice %297 {offsets = [0, 256], sizes = [2, 128], strides = [1, 1]} : vector<2x512xf32> to vector<2x128xf32>
    %311 = math.tanh %310 : vector<2x128xf32>
    %312 = vector.extract_strided_slice %297 {offsets = [0, 384], sizes = [2, 128], strides = [1, 1]} : vector<2x512xf32> to vector<2x128xf32>
    %313 = arith.negf %312 : vector<2x128xf32>
    %314 = math.exp %313 : vector<2x128xf32>
    %cst_139 = arith.constant 1.000000e+00 : f32
    %315 = vector.broadcast %cst_139 : f32 to vector<2x128xf32>
    %316 = arith.addf %315, %314 : vector<2x128xf32>
    %317 = arith.divf %315, %316 : vector<2x128xf32>
    %318 = arith.mulf %309, %240 : vector<2x128xf32>
    %319 = arith.mulf %303, %311 : vector<2x128xf32>
    %320 = arith.addf %318, %319 : vector<2x128xf32>
    %321 = math.tanh %320 : vector<2x128xf32>
    %322 = arith.mulf %317, %321 : vector<2x128xf32>
    %323 = arith.truncf %322 : vector<2x128xf32> to vector<2x128xbf16>
    %c0_140 = arith.constant 0 : index
    %c0_141 = arith.constant 0 : index
    %324 = vector.load %arg8[%c0_140, %c0_141] : memref<128x128xbf16, #tpu.memory_space<vmem>>, vector<128x128xbf16>
    %cst_142 = arith.constant dense<0.000000e+00> : vector<2x128xf32>
    %325 = tpu.matmul %323, %324, %cst_142 {dimension_numbers = #tpu.dot_dimension_numbers<[1], [0], [0], [1], [0, 0, 1, 1], [], []>} : vector<2x128xbf16>, vector<128x128xbf16>, vector<2x128xf32> -> vector<2x128xf32>
    %c0_143 = arith.constant 0 : index
    %c0_144 = arith.constant 0 : index
    %326 = vector.load %arg9[%c0_143, %c0_144] : memref<1x128xf32, #tpu.memory_space<vmem>>, vector<1x128xf32>
    %327 = vector.broadcast %326 : vector<1x128xf32> to vector<2x128xf32>
    %328 = arith.addf %325, %327 : vector<2x128xf32>
    %329 = math.tanh %328 : vector<2x128xf32>
    %330 = arith.truncf %329 : vector<2x128xf32> to vector<2x128xbf16>
    %c0_145 = arith.constant 0 : index
    %c0_146 = arith.constant 0 : index
    %331 = vector.load %arg10[%c0_145, %c0_146] : memref<128x128xbf16, #tpu.memory_space<vmem>>, vector<128x128xbf16>
    %cst_147 = arith.constant dense<0.000000e+00> : vector<2x128xf32>
    %332 = tpu.matmul %330, %331, %cst_147 {dimension_numbers = #tpu.dot_dimension_numbers<[1], [0], [0], [1], [0, 0, 1, 1], [], []>} : vector<2x128xbf16>, vector<128x128xbf16>, vector<2x128xf32> -> vector<2x128xf32>
    %c0_148 = arith.constant 0 : index
    %c0_149 = arith.constant 0 : index
    %333 = vector.load %arg11[%c0_148, %c0_149] : memref<1x128xf32, #tpu.memory_space<vmem>>, vector<1x128xf32>
    %334 = vector.broadcast %333 : vector<1x128xf32> to vector<2x128xf32>
    %335 = arith.addf %332, %334 : vector<2x128xf32>
    %336 = arith.addf %335, %126 : vector<2x128xf32>
    %cst_150 = arith.constant 0.000000e+00 : f32
    %337 = vector.broadcast %cst_150 : f32 to vector<2x128xf32>
    %338 = arith.maximumf %336, %337 : vector<2x128xf32>
    %339 = arith.truncf %338 : vector<2x128xf32> to vector<2x128xbf16>
    %c0_151 = arith.constant 0 : index
    %c0_152 = arith.constant 0 : index
    %340 = vector.load %arg12[%c0_151, %c0_152] : memref<128x1024xbf16, #tpu.memory_space<vmem>>, vector<128x1024xbf16>
    %cst_153 = arith.constant dense<0.000000e+00> : vector<2x1024xf32>
    %341 = tpu.matmul %339, %340, %cst_153 {dimension_numbers = #tpu.dot_dimension_numbers<[1], [0], [0], [1], [0, 0, 1, 1], [], []>} : vector<2x128xbf16>, vector<128x1024xbf16>, vector<2x1024xf32> -> vector<2x1024xf32>
    %c0_154 = arith.constant 0 : index
    %c0_155 = arith.constant 0 : index
    %342 = vector.load %arg13[%c0_154, %c0_155] : memref<1x1024xf32, #tpu.memory_space<vmem>>, vector<1x1024xf32>
    %343 = vector.broadcast %342 : vector<1x1024xf32> to vector<2x1024xf32>
    %344 = arith.addf %341, %343 : vector<2x1024xf32>
    %345 = arith.negf %344 : vector<2x1024xf32>
    %346 = math.exp %345 : vector<2x1024xf32>
    %cst_156 = arith.constant 1.000000e+00 : f32
    %347 = vector.broadcast %cst_156 : f32 to vector<2x1024xf32>
    %348 = arith.addf %347, %346 : vector<2x1024xf32>
    %349 = arith.divf %347, %348 : vector<2x1024xf32>
    %c2 = arith.constant 2 : index
    %c0_157 = arith.constant 0 : index
    %c0_158 = arith.constant 0 : index
    %350 = vector.load %arg14[%c2, %c0_157, %c0_158] : memref<4x2x1024xf32, #tpu.memory_space<vmem>>, vector<1x2x1024xf32>
    %351 = vector.shape_cast %350 : vector<1x2x1024xf32> to vector<2x1024xf32>
    %352 = vector.shape_cast %349 : vector<2x1024xf32> to vector<1x2x1024xf32>
    tpu.vector_store %arg14[%c2, %c0_157, %c0_158], %352 {strides = array<i32>} : memref<4x2x1024xf32, #tpu.memory_space<vmem>>, vector<1x2x1024xf32>,
    %353 = arith.truncf %349 : vector<2x1024xf32> to vector<2x1024xbf16>
    %c0_159 = arith.constant 0 : index
    %c0_160 = arith.constant 0 : index
    %354 = vector.load %arg1[%c0_159, %c0_160] : memref<1024x128xbf16, #tpu.memory_space<vmem>>, vector<1024x128xbf16>
    %cst_161 = arith.constant dense<0.000000e+00> : vector<2x128xf32>
    %355 = tpu.matmul %353, %354, %cst_161 {dimension_numbers = #tpu.dot_dimension_numbers<[1], [0], [0], [1], [0, 0, 1, 1], [], []>} : vector<2x1024xbf16>, vector<1024x128xbf16>, vector<2x128xf32> -> vector<2x128xf32>
    %c0_162 = arith.constant 0 : index
    %c0_163 = arith.constant 0 : index
    %356 = vector.load %arg2[%c0_162, %c0_163] : memref<1x128xf32, #tpu.memory_space<vmem>>, vector<1x128xf32>
    %357 = vector.broadcast %356 : vector<1x128xf32> to vector<2x128xf32>
    %358 = arith.addf %355, %357 : vector<2x128xf32>
    %cst_164 = arith.constant 0.000000e+00 : f32
    %359 = vector.broadcast %cst_164 : f32 to vector<2x128xf32>
    %360 = arith.maximumf %358, %359 : vector<2x128xf32>
    %361 = arith.truncf %360 : vector<2x128xf32> to vector<2x128xbf16>
    %c0_165 = arith.constant 0 : index
    %c0_166 = arith.constant 0 : index
    %362 = vector.load %arg3[%c0_165, %c0_166] : memref<128x128xbf16, #tpu.memory_space<vmem>>, vector<128x128xbf16>
    %cst_167 = arith.constant dense<0.000000e+00> : vector<2x128xf32>
    %363 = tpu.matmul %361, %362, %cst_167 {dimension_numbers = #tpu.dot_dimension_numbers<[1], [0], [0], [1], [0, 0, 1, 1], [], []>} : vector<2x128xbf16>, vector<128x128xbf16>, vector<2x128xf32> -> vector<2x128xf32>
    %c0_168 = arith.constant 0 : index
    %c0_169 = arith.constant 0 : index
    %364 = vector.load %arg4[%c0_168, %c0_169] : memref<1x128xf32, #tpu.memory_space<vmem>>, vector<1x128xf32>
    %365 = vector.broadcast %364 : vector<1x128xf32> to vector<2x128xf32>
    %366 = arith.addf %363, %365 : vector<2x128xf32>
    %367 = math.tanh %366 : vector<2x128xf32>
    %368 = arith.truncf %367 : vector<2x128xf32> to vector<2x128xbf16>
    %c0_170 = arith.constant 0 : index
    %c0_171 = arith.constant 0 : index
    %369 = vector.load %arg5[%c0_170, %c0_171] : memref<128x512xbf16, #tpu.memory_space<vmem>>, vector<128x512xbf16>
    %cst_172 = arith.constant dense<0.000000e+00> : vector<2x512xf32>
    %370 = tpu.matmul %368, %369, %cst_172 {dimension_numbers = #tpu.dot_dimension_numbers<[1], [0], [0], [1], [0, 0, 1, 1], [], []>} : vector<2x128xbf16>, vector<128x512xbf16>, vector<2x512xf32> -> vector<2x512xf32>
    %371 = arith.truncf %322 : vector<2x128xf32> to vector<2x128xbf16>
    %c0_173 = arith.constant 0 : index
    %c0_174 = arith.constant 0 : index
    %372 = vector.load %arg6[%c0_173, %c0_174] : memref<128x512xbf16, #tpu.memory_space<vmem>>, vector<128x512xbf16>
    %cst_175 = arith.constant dense<0.000000e+00> : vector<2x512xf32>
    %373 = tpu.matmul %371, %372, %cst_175 {dimension_numbers = #tpu.dot_dimension_numbers<[1], [0], [0], [1], [0, 0, 1, 1], [], []>} : vector<2x128xbf16>, vector<128x512xbf16>, vector<2x512xf32> -> vector<2x512xf32>
    %374 = arith.addf %370, %373 : vector<2x512xf32>
    %c0_176 = arith.constant 0 : index
    %c0_177 = arith.constant 0 : index
    %375 = vector.load %arg7[%c0_176, %c0_177] : memref<1x512xf32, #tpu.memory_space<vmem>>, vector<1x512xf32>
    %376 = vector.broadcast %375 : vector<1x512xf32> to vector<2x512xf32>
    %377 = arith.addf %374, %376 : vector<2x512xf32>
    %378 = vector.extract_strided_slice %377 {offsets = [0, 0], sizes = [2, 128], strides = [1, 1]} : vector<2x512xf32> to vector<2x128xf32>
    %379 = arith.negf %378 : vector<2x128xf32>
    %380 = math.exp %379 : vector<2x128xf32>
    %cst_178 = arith.constant 1.000000e+00 : f32
    %381 = vector.broadcast %cst_178 : f32 to vector<2x128xf32>
    %382 = arith.addf %381, %380 : vector<2x128xf32>
    %383 = arith.divf %381, %382 : vector<2x128xf32>
    %384 = vector.extract_strided_slice %377 {offsets = [0, 128], sizes = [2, 128], strides = [1, 1]} : vector<2x512xf32> to vector<2x128xf32>
    %385 = arith.negf %384 : vector<2x128xf32>
    %386 = math.exp %385 : vector<2x128xf32>
    %cst_179 = arith.constant 1.000000e+00 : f32
    %387 = vector.broadcast %cst_179 : f32 to vector<2x128xf32>
    %388 = arith.addf %387, %386 : vector<2x128xf32>
    %389 = arith.divf %387, %388 : vector<2x128xf32>
    %390 = vector.extract_strided_slice %377 {offsets = [0, 256], sizes = [2, 128], strides = [1, 1]} : vector<2x512xf32> to vector<2x128xf32>
    %391 = math.tanh %390 : vector<2x128xf32>
    %392 = vector.extract_strided_slice %377 {offsets = [0, 384], sizes = [2, 128], strides = [1, 1]} : vector<2x512xf32> to vector<2x128xf32>
    %393 = arith.negf %392 : vector<2x128xf32>
    %394 = math.exp %393 : vector<2x128xf32>
    %cst_180 = arith.constant 1.000000e+00 : f32
    %395 = vector.broadcast %cst_180 : f32 to vector<2x128xf32>
    %396 = arith.addf %395, %394 : vector<2x128xf32>
    %397 = arith.divf %395, %396 : vector<2x128xf32>
    %398 = arith.mulf %389, %320 : vector<2x128xf32>
    %399 = arith.mulf %383, %391 : vector<2x128xf32>
    %400 = arith.addf %398, %399 : vector<2x128xf32>
    %401 = math.tanh %400 : vector<2x128xf32>
    %402 = arith.mulf %397, %401 : vector<2x128xf32>
    %403 = arith.truncf %402 : vector<2x128xf32> to vector<2x128xbf16>
    %c0_181 = arith.constant 0 : index
    %c0_182 = arith.constant 0 : index
    %404 = vector.load %arg8[%c0_181, %c0_182] : memref<128x128xbf16, #tpu.memory_space<vmem>>, vector<128x128xbf16>
    %cst_183 = arith.constant dense<0.000000e+00> : vector<2x128xf32>
    %405 = tpu.matmul %403, %404, %cst_183 {dimension_numbers = #tpu.dot_dimension_numbers<[1], [0], [0], [1], [0, 0, 1, 1], [], []>} : vector<2x128xbf16>, vector<128x128xbf16>, vector<2x128xf32> -> vector<2x128xf32>
    %c0_184 = arith.constant 0 : index
    %c0_185 = arith.constant 0 : index
    %406 = vector.load %arg9[%c0_184, %c0_185] : memref<1x128xf32, #tpu.memory_space<vmem>>, vector<1x128xf32>
    %407 = vector.broadcast %406 : vector<1x128xf32> to vector<2x128xf32>
    %408 = arith.addf %405, %407 : vector<2x128xf32>
    %409 = math.tanh %408 : vector<2x128xf32>
    %410 = arith.truncf %409 : vector<2x128xf32> to vector<2x128xbf16>
    %c0_186 = arith.constant 0 : index
    %c0_187 = arith.constant 0 : index
    %411 = vector.load %arg10[%c0_186, %c0_187] : memref<128x128xbf16, #tpu.memory_space<vmem>>, vector<128x128xbf16>
    %cst_188 = arith.constant dense<0.000000e+00> : vector<2x128xf32>
    %412 = tpu.matmul %410, %411, %cst_188 {dimension_numbers = #tpu.dot_dimension_numbers<[1], [0], [0], [1], [0, 0, 1, 1], [], []>} : vector<2x128xbf16>, vector<128x128xbf16>, vector<2x128xf32> -> vector<2x128xf32>
    %c0_189 = arith.constant 0 : index
    %c0_190 = arith.constant 0 : index
    %413 = vector.load %arg11[%c0_189, %c0_190] : memref<1x128xf32, #tpu.memory_space<vmem>>, vector<1x128xf32>
    %414 = vector.broadcast %413 : vector<1x128xf32> to vector<2x128xf32>
    %415 = arith.addf %412, %414 : vector<2x128xf32>
    %416 = arith.addf %415, %126 : vector<2x128xf32>
    %cst_191 = arith.constant 0.000000e+00 : f32
    %417 = vector.broadcast %cst_191 : f32 to vector<2x128xf32>
    %418 = arith.maximumf %416, %417 : vector<2x128xf32>
    %419 = arith.truncf %418 : vector<2x128xf32> to vector<2x128xbf16>
    %c0_192 = arith.constant 0 : index
    %c0_193 = arith.constant 0 : index
    %420 = vector.load %arg12[%c0_192, %c0_193] : memref<128x1024xbf16, #tpu.memory_space<vmem>>, vector<128x1024xbf16>
    %cst_194 = arith.constant dense<0.000000e+00> : vector<2x1024xf32>
    %421 = tpu.matmul %419, %420, %cst_194 {dimension_numbers = #tpu.dot_dimension_numbers<[1], [0], [0], [1], [0, 0, 1, 1], [], []>} : vector<2x128xbf16>, vector<128x1024xbf16>, vector<2x1024xf32> -> vector<2x1024xf32>
    %c0_195 = arith.constant 0 : index
    %c0_196 = arith.constant 0 : index
    %422 = vector.load %arg13[%c0_195, %c0_196] : memref<1x1024xf32, #tpu.memory_space<vmem>>, vector<1x1024xf32>
    %423 = vector.broadcast %422 : vector<1x1024xf32> to vector<2x1024xf32>
    %424 = arith.addf %421, %423 : vector<2x1024xf32>
    %425 = arith.negf %424 : vector<2x1024xf32>
    %426 = math.exp %425 : vector<2x1024xf32>
    %cst_197 = arith.constant 1.000000e+00 : f32
    %427 = vector.broadcast %cst_197 : f32 to vector<2x1024xf32>
    %428 = arith.addf %427, %426 : vector<2x1024xf32>
    %429 = arith.divf %427, %428 : vector<2x1024xf32>
    %c3 = arith.constant 3 : index
    %c0_198 = arith.constant 0 : index
    %c0_199 = arith.constant 0 : index
    %430 = vector.load %arg14[%c3, %c0_198, %c0_199] : memref<4x2x1024xf32, #tpu.memory_space<vmem>>, vector<1x2x1024xf32>
    %431 = vector.shape_cast %430 : vector<1x2x1024xf32> to vector<2x1024xf32>
    %432 = vector.shape_cast %429 : vector<2x1024xf32> to vector<1x2x1024xf32>
    tpu.vector_store %arg14[%c3, %c0_198, %c0_199], %432 {strides = array<i32>} : memref<4x2x1024xf32, #tpu.memory_space<vmem>>, vector<1x2x1024xf32>,
    return
  }
}

</mosaic_0001>

<llo_original>
// kernel: tpu_custom_call.1
$region0: #{tpu_custom_call.1}
  #allocation0 [shape = 'u32[]', space=smem, size = 0x4, offset = 0x4, fixed_abs, tag = 'smem constant byte address 0x4 - core index']
  #allocation1 [shape = 'u32[72,128]{1,0:T(1,128)}', space=vmem, size = 0x9000, scoped, tag = 'internal scratch']
  %s0 = inlined_call_operand.hbm [shape: f32[8,1024], index: 0, kind: input, shape index: {}]
  %s1 = inlined_call_operand.hbm [shape: bf16[1024,128], index: 1, kind: input, shape index: {}]
  %s2 = inlined_call_operand.hbm [shape: f32[1,128], index: 2, kind: input, shape index: {}]
  %s3 = inlined_call_operand.hbm [shape: bf16[128,128], index: 3, kind: input, shape index: {}]
  %s4 = inlined_call_operand.hbm [shape: f32[1,128], index: 4, kind: input, shape index: {}]
  %s5 = inlined_call_operand.hbm [shape: bf16[128,512], index: 5, kind: input, shape index: {}]
  %s6 = inlined_call_operand.hbm [shape: bf16[128,512], index: 6, kind: input, shape index: {}]
  %s7 = inlined_call_operand.vmem [shape: f32[1,512], index: 7, kind: input, shape index: {}]
  %s8 = inlined_call_operand.hbm [shape: bf16[128,128], index: 8, kind: input, shape index: {}]
  %s9 = inlined_call_operand.hbm [shape: f32[1,128], index: 9, kind: input, shape index: {}]
  %s10 = inlined_call_operand.hbm [shape: bf16[128,128], index: 10, kind: input, shape index: {}]
  %s11 = inlined_call_operand.hbm [shape: f32[1,128], index: 11, kind: input, shape index: {}]
  %s12 = inlined_call_operand.hbm [shape: bf16[128,1024], index: 12, kind: input, shape index: {}]
  %s13 = inlined_call_operand.vmem [shape: f32[1,1024], index: 13, kind: input, shape index: {}]
  %s14 = inlined_call_operand.hbm [shape: f32[4,2,1024], index: 14, kind: output, shape index: {}]
  %s15 = sld [smem:[#allocation0]]
  $region114: #{tpu_custom_call.1} parent=0
    _
  %s17 = ssub.s32 1, %s15
  %s18 = scalar_select 0, %s17, %s15
  $region1: #{tpu_custom_call.1} parent=0
    #allocation2 [shape = 'u8[32768]{0}', space=vmem, size = 0x8000, scoped, tag = 'input window, operand 0, single buffered']
    #allocation3 [shape = 's32[1]{0}', space=sflag, size = 0x4, scoped, tag = 'scoped memory for tpu_custom_call.1']
    #allocation4 [shape = 's32[1]{0}', space=sflag, size = 0x4, scoped, tag = 'scoped memory for tpu_custom_call.1']
    #allocation5 [shape = 'u8[262144]{0}', space=vmem, size = 0x40000, scoped, tag = 'input window, operand 1, single buffered']
    #allocation6 [shape = 's32[1]{0}', space=sflag, size = 0x4, scoped, tag = 'scoped memory for tpu_custom_call.1']
    #allocation7 [shape = 'u8[512]{0}', space=vmem, size = 0x400, scoped, tag = 'input window, operand 2, single buffered']
    #allocation8 [shape = 'u8[32768]{0}', space=vmem, size = 0x8000, scoped, tag = 'input window, operand 3, single buffered']
    #allocation9 [shape = 's32[1]{0}', space=sflag, size = 0x4, scoped, tag = 'scoped memory for tpu_custom_call.1']
    #allocation10 [shape = 'u8[512]{0}', space=vmem, size = 0x400, scoped, tag = 'input window, operand 4, single buffered']
    #allocation11 [shape = 'u8[131072]{0}', space=vmem, size = 0x20000, scoped, tag = 'input window, operand 5, single buffered']
    #allocation12 [shape = 's32[1]{0}', space=sflag, size = 0x4, scoped, tag = 'scoped memory for tpu_custom_call.1']
    #allocation13 [shape = 'u8[131072]{0}', space=vmem, size = 0x20000, scoped, tag = 'input window, operand 6, single buffered']
    #allocation14 [shape = 'u8[32768]{0}', space=vmem, size = 0x8000, scoped, tag = 'input window, operand 8, single buffered']
    #allocation15 [shape = 's32[1]{0}', space=sflag, size = 0x4, scoped, tag = 'scoped memory for tpu_custom_call.1']
    #allocation16 [shape = 'u8[512]{0}', space=vmem, size = 0x400, scoped, tag = 'input window, operand 9, single buffered']
    #allocation17 [shape = 'u8[32768]{0}', space=vmem, size = 0x8000, scoped, tag = 'input window, operand 10, single buffered']
    #allocation18 [shape = 's32[1]{0}', space=sflag, size = 0x4, scoped, tag = 'scoped memory for tpu_custom_call.1']
    #allocation19 [shape = 'u8[512]{0}', space=vmem, size = 0x400, scoped, tag = 'input window, operand 11, single buffered']
    #allocation20 [shape = 'u8[262144]{0}', space=vmem, size = 0x40000, scoped, tag = 'input window, operand 12, single buffered']
    #allocation21 [shape = 's32[1]{0}', space=sflag, size = 0x4, scoped, tag = 'scoped memory for tpu_custom_call.1']
    #allocation22 [shape = 'u8[32768]{0}', space=vmem, size = 0x8000, scoped, tag = 'output window, operand 0, single buffered']
    %19 = vsyncpa [#allocation3], 0
    %20 = vsyncpa [#allocation6], 0
    %21 = vsyncpa [#allocation9], 0
    %22 = vsyncpa [#allocation12], 0
    %23 = vsyncpa [#allocation15], 0
    %24 = vsyncpa [#allocation18], 0
    %25 = vsyncpa [#allocation21], 0
    %26 = vsyncpa [#allocation4], 0
    // Predicated region
    $region2: #{tpu_custom_call.1} parent=1 // pred_check
      _
    $region3: #{tpu_custom_call.1} parent=1 // pred_check_branch
      %28 = sbr.rel (0) target = $region5
    $region4: #{tpu_custom_call.1} parent=1 // pred_region
      %30 = vsyncadd [#allocation3], 0
      %s32 = sshll.u32 %s0, 4
      %s33 = int_to_ptr.hbm [resolvable:$true] %s32
      %s34 = sshll.u32 [#allocation2], 4
      %s35 = int_to_ptr.vmem [resolvable:$true] %s34
      %37 = dma.hbm_to_vmem [thread:$0]  %s33, 1024, %s35, [#allocation3]
    $region5: #{tpu_custom_call.1} parent=1 // pred_fallthru
      _
    // Predicated region
    $region6: #{tpu_custom_call.1} parent=1 // pred_check
      _
    $region7: #{tpu_custom_call.1} parent=1 // pred_check_branch
      %39 = sbr.rel (0) target = $region9
    $region8: #{tpu_custom_call.1} parent=1 // pred_region
      %41 = vsyncadd [#allocation6], 0
      %s42 = sshll.u32 %s1, 4
      %s43 = int_to_ptr.hbm [resolvable:$true] %s42
      %s44 = sshll.u32 [#allocation5], 4
      %s45 = int_to_ptr.vmem [resolvable:$true] %s44
      %50 = dma.hbm_to_vmem [thread:$0]  %s43, 8192, %s45, [#allocation6], 64, 64, 4
    $region9: #{tpu_custom_call.1} parent=1 // pred_fallthru
      _
    // Predicated region
    $region10: #{tpu_custom_call.1} parent=1 // pred_check
      _
    $region11: #{tpu_custom_call.1} parent=1 // pred_check_branch
      %52 = sbr.rel (0) target = $region13
    $region12: #{tpu_custom_call.1} parent=1 // pred_region
      %54 = vsyncadd [#allocation6], 0
      %s56 = sshll.u32 %s2, 4
      %s57 = int_to_ptr.hbm [resolvable:$true] %s56
      %s58 = sshll.u32 [#allocation7], 4
      %s59 = int_to_ptr.vmem [resolvable:$true] %s58
      %61 = dma.hbm_to_vmem [thread:$0]  %s57, 16, %s59, [#allocation6]
    $region13: #{tpu_custom_call.1} parent=1 // pred_fallthru
      _
    // Predicated region
    $region14: #{tpu_custom_call.1} parent=1 // pred_check
      _
    $region15: #{tpu_custom_call.1} parent=1 // pred_check_branch
      %63 = sbr.rel (0) target = $region17
    $region16: #{tpu_custom_call.1} parent=1 // pred_region
      %65 = vsyncadd [#allocation9], 0
      %s66 = sshll.u32 %s3, 4
      %s67 = int_to_ptr.hbm [resolvable:$true] %s66
      %s68 = sshll.u32 [#allocation8], 4
      %s69 = int_to_ptr.vmem [resolvable:$true] %s68
      %74 = dma.hbm_to_vmem [thread:$0]  %s67, 1024, %s69, [#allocation9], 64, 64, 4
    $region17: #{tpu_custom_call.1} parent=1 // pred_fallthru
      _
    // Predicated region
    $region18: #{tpu_custom_call.1} parent=1 // pred_check
      _
    $region19: #{tpu_custom_call.1} parent=1 // pred_check_branch
      %76 = sbr.rel (0) target = $region21
    $region20: #{tpu_custom_call.1} parent=1 // pred_region
      %78 = vsyncadd [#allocation9], 0
      %s80 = sshll.u32 %s4, 4
      %s81 = int_to_ptr.hbm [resolvable:$true] %s80
      %s82 = sshll.u32 [#allocation10], 4
      %s83 = int_to_ptr.vmem [resolvable:$true] %s82
      %85 = dma.hbm_to_vmem [thread:$0]  %s81, 16, %s83, [#allocation9]
    $region21: #{tpu_custom_call.1} parent=1 // pred_fallthru
      _
    // Predicated region
    $region22: #{tpu_custom_call.1} parent=1 // pred_check
      _
    $region23: #{tpu_custom_call.1} parent=1 // pred_check_branch
      %87 = sbr.rel (0) target = $region25
    $region24: #{tpu_custom_call.1} parent=1 // pred_region
      %89 = vsyncadd [#allocation12], 0
      %s90 = sshll.u32 %s5, 4
      %s91 = int_to_ptr.hbm [resolvable:$true] %s90
      %s92 = sshll.u32 [#allocation11], 4
      %s93 = int_to_ptr.vmem [resolvable:$true] %s92
      %98 = dma.hbm_to_vmem [thread:$0]  %s91, 4096, %s93, [#allocation12], 256, 256, 16
    $region25: #{tpu_custom_call.1} parent=1 // pred_fallthru
      _
    // Predicated region
    $region26: #{tpu_custom_call.1} parent=1 // pred_check
      _
    $region27: #{tpu_custom_call.1} parent=1 // pred_check_branch
      %100 = sbr.rel (0) target = $region29
    $region28: #{tpu_custom_call.1} parent=1 // pred_region
      %102 = vsyncadd [#allocation12], 0
      %s103 = sshll.u32 %s6, 4
      %s104 = int_to_ptr.hbm [resolvable:$true] %s103
      %s105 = sshll.u32 [#allocation13], 4
      %s106 = int_to_ptr.vmem [resolvable:$true] %s105
      %111 = dma.hbm_to_vmem [thread:$0]  %s104, 4096, %s106, [#allocation12], 256, 256, 16
    $region29: #{tpu_custom_call.1} parent=1 // pred_fallthru
      _
    // Predicated region
    $region30: #{tpu_custom_call.1} parent=1 // pred_check
      _
    $region31: #{tpu_custom_call.1} parent=1 // pred_check_branch
      %113 = sbr.rel (0) target = $region33
    $region32: #{tpu_custom_call.1} parent=1 // pred_region
      _
    $region33: #{tpu_custom_call.1} parent=1 // pred_fallthru
      _
    // Predicated region
    $region34: #{tpu_custom_call.1} parent=1 // pred_check
      _
    $region35: #{tpu_custom_call.1} parent=1 // pred_check_branch
      %115 = sbr.rel (0) target = $region37
    $region36: #{tpu_custom_call.1} parent=1 // pred_region
      %117 = vsyncadd [#allocation15], 0
      %s118 = sshll.u32 %s8, 4
      %s119 = int_to_ptr.hbm [resolvable:$true] %s118
      %s120 = sshll.u32 [#allocation14], 4
      %s121 = int_to_ptr.vmem [resolvable:$true] %s120
      %126 = dma.hbm_to_vmem [thread:$0]  %s119, 1024, %s121, [#allocation15], 64, 64, 4
    $region37: #{tpu_custom_call.1} parent=1 // pred_fallthru
      _
    // Predicated region
    $region38: #{tpu_custom_call.1} parent=1 // pred_check
      _
    $region39: #{tpu_custom_call.1} parent=1 // pred_check_branch
      %128 = sbr.rel (0) target = $region41
    $region40: #{tpu_custom_call.1} parent=1 // pred_region
      %130 = vsyncadd [#allocation15], 0
      %s132 = sshll.u32 %s9, 4
      %s133 = int_to_ptr.hbm [resolvable:$true] %s132
      %s134 = sshll.u32 [#allocation16], 4
      %s135 = int_to_ptr.vmem [resolvable:$true] %s134
      %137 = dma.hbm_to_vmem [thread:$0]  %s133, 16, %s135, [#allocation15]
    $region41: #{tpu_custom_call.1} parent=1 // pred_fallthru
      _
    // Predicated region
    $region42: #{tpu_custom_call.1} parent=1 // pred_check
      _
    $region43: #{tpu_custom_call.1} parent=1 // pred_check_branch
      %139 = sbr.rel (0) target = $region45
    $region44: #{tpu_custom_call.1} parent=1 // pred_region
      %141 = vsyncadd [#allocation18], 0
      %s142 = sshll.u32 %s10, 4
      %s143 = int_to_ptr.hbm [resolvable:$true] %s142
      %s144 = sshll.u32 [#allocation17], 4
      %s145 = int_to_ptr.vmem [resolvable:$true] %s144
      %150 = dma.hbm_to_vmem [thread:$0]  %s143, 1024, %s145, [#allocation18], 64, 64, 4
    $region45: #{tpu_custom_call.1} parent=1 // pred_fallthru
      _
    // Predicated region
    $region46: #{tpu_custom_call.1} parent=1 // pred_check
      _
    $region47: #{tpu_custom_call.1} parent=1 // pred_check_branch
      %152 = sbr.rel (0) target = $region49
    $region48: #{tpu_custom_call.1} parent=1 // pred_region
      %154 = vsyncadd [#allocation18], 0
      %s156 = sshll.u32 %s11, 4
      %s157 = int_to_ptr.hbm [resolvable:$true] %s156
      %s158 = sshll.u32 [#allocation19], 4
      %s159 = int_to_ptr.vmem [resolvable:$true] %s158
      %161 = dma.hbm_to_vmem [thread:$0]  %s157, 16, %s159, [#allocation18]
    $region49: #{tpu_custom_call.1} parent=1 // pred_fallthru
      _
    // Predicated region
    $region50: #{tpu_custom_call.1} parent=1 // pred_check
      _
    $region51: #{tpu_custom_call.1} parent=1 // pred_check_branch
      %163 = sbr.rel (0) target = $region53
    $region52: #{tpu_custom_call.1} parent=1 // pred_region
      %165 = vsyncadd [#allocation21], 0
      %s166 = sshll.u32 %s12, 4
      %s167 = int_to_ptr.hbm [resolvable:$true] %s166
      %s168 = sshll.u32 [#allocation20], 4
      %s169 = int_to_ptr.vmem [resolvable:$true] %s168
      %174 = dma.hbm_to_vmem [thread:$0]  %s167, 8192, %s169, [#allocation21], 512, 512, 32
    $region53: #{tpu_custom_call.1} parent=1 // pred_fallthru
      _
    // Predicated region
    $region54: #{tpu_custom_call.1} parent=1 // pred_check
      _
    $region55: #{tpu_custom_call.1} parent=1 // pred_check_branch
      %176 = sbr.rel (0) target = $region57
    $region56: #{tpu_custom_call.1} parent=1 // pred_region
      _
    $region57: #{tpu_custom_call.1} parent=1 // pred_fallthru
      _
    // Predicated region
    $region58: #{tpu_custom_call.1} parent=1 // pred_check
      _
    $region59: #{tpu_custom_call.1} parent=1 // pred_check_branch
      %178 = sbr.rel (0) target = $region61
    $region60: #{tpu_custom_call.1} parent=1 // pred_region
      %180 = dma.done [#allocation3], 1024
    $region61: #{tpu_custom_call.1} parent=1 // pred_fallthru
      _
    // Predicated region
    $region62: #{tpu_custom_call.1} parent=1 // pred_check
      _
    $region63: #{tpu_custom_call.1} parent=1 // pred_check_branch
      %182 = sbr.rel (0) target = $region65
    $region64: #{tpu_custom_call.1} parent=1 // pred_region
      %184 = dma.done [#allocation6], 8192
    $region65: #{tpu_custom_call.1} parent=1 // pred_fallthru
      _
    // Predicated region
    $region66: #{tpu_custom_call.1} parent=1 // pred_check
      _
    $region67: #{tpu_custom_call.1} parent=1 // pred_check_branch
      %186 = sbr.rel (0) target = $region69
    $region68: #{tpu_custom_call.1} parent=1 // pred_region
      %188 = dma.done [#allocation6], 16
    $region69: #{tpu_custom_call.1} parent=1 // pred_fallthru
      _
    // Predicated region
    $region70: #{tpu_custom_call.1} parent=1 // pred_check
      _
    $region71: #{tpu_custom_call.1} parent=1 // pred_check_branch
      %190 = sbr.rel (0) target = $region73
    $region72: #{tpu_custom_call.1} parent=1 // pred_region
      %192 = dma.done [#allocation9], 1024
    $region73: #{tpu_custom_call.1} parent=1 // pred_fallthru
      _
    // Predicated region
    $region74: #{tpu_custom_call.1} parent=1 // pred_check
      _
    $region75: #{tpu_custom_call.1} parent=1 // pred_check_branch
      %194 = sbr.rel (0) target = $region77
    $region76: #{tpu_custom_call.1} parent=1 // pred_region
      %196 = dma.done [#allocation9], 16
    $region77: #{tpu_custom_call.1} parent=1 // pred_fallthru
      _
    // Predicated region
    $region78: #{tpu_custom_call.1} parent=1 // pred_check
      _
    $region79: #{tpu_custom_call.1} parent=1 // pred_check_branch
      %198 = sbr.rel (0) target = $region81
    $region80: #{tpu_custom_call.1} parent=1 // pred_region
      %200 = dma.done [#allocation12], 4096
    $region81: #{tpu_custom_call.1} parent=1 // pred_fallthru
      _
    // Predicated region
    $region82: #{tpu_custom_call.1} parent=1 // pred_check
      _
    $region83: #{tpu_custom_call.1} parent=1 // pred_check_branch
      %202 = sbr.rel (0) target = $region85
    $region84: #{tpu_custom_call.1} parent=1 // pred_region
      %204 = dma.done [#allocation12], 4096
    $region85: #{tpu_custom_call.1} parent=1 // pred_fallthru
      _
    // Predicated region
    $region86: #{tpu_custom_call.1} parent=1 // pred_check
      _
    $region87: #{tpu_custom_call.1} parent=1 // pred_check_branch
      %206 = sbr.rel (0) target = $region89
    $region88: #{tpu_custom_call.1} parent=1 // pred_region
      %208 = dma.done [#allocation15], 1024
    $region89: #{tpu_custom_call.1} parent=1 // pred_fallthru
      _
    // Predicated region
    $region90: #{tpu_custom_call.1} parent=1 // pred_check
      _
    $region91: #{tpu_custom_call.1} parent=1 // pred_check_branch
      %210 = sbr.rel (0) target = $region93
    $region92: #{tpu_custom_call.1} parent=1 // pred_region
      %212 = dma.done [#allocation15], 16
    $region93: #{tpu_custom_call.1} parent=1 // pred_fallthru
      _
    // Predicated region
    $region94: #{tpu_custom_call.1} parent=1 // pred_check
      _
    $region95: #{tpu_custom_call.1} parent=1 // pred_check_branch
      %214 = sbr.rel (0) target = $region97
    $region96: #{tpu_custom_call.1} parent=1 // pred_region
      %216 = dma.done [#allocation18], 1024
    $region97: #{tpu_custom_call.1} parent=1 // pred_fallthru
      _
    // Predicated region
    $region98: #{tpu_custom_call.1} parent=1 // pred_check
      _
    $region99: #{tpu_custom_call.1} parent=1 // pred_check_branch
      %218 = sbr.rel (0) target = $region101
    $region100: #{tpu_custom_call.1} parent=1 // pred_region
      %220 = dma.done [#allocation18], 16
    $region101: #{tpu_custom_call.1} parent=1 // pred_fallthru
      _
    // Predicated region
    $region102: #{tpu_custom_call.1} parent=1 // pred_check
      _
    $region103: #{tpu_custom_call.1} parent=1 // pred_check_branch
      %222 = sbr.rel (0) target = $region105
    $region104: #{tpu_custom_call.1} parent=1 // pred_region
      %224 = dma.done [#allocation21], 8192
    $region105: #{tpu_custom_call.1} parent=1 // pred_fallthru
      _
    %v226 = vld [vmem:[#allocation2] sm:$0xff]
    %v227 = vld [vmem:[#allocation2 + $0x8] sm:$0xff]
    %v228 = vld [vmem:[#allocation2 + $0x10] sm:$0xff]
    %v229 = vld [vmem:[#allocation2 + $0x18] sm:$0xff]
    %v230 = vld [vmem:[#allocation2 + $0x20] sm:$0xff]
    %v231 = vld [vmem:[#allocation2 + $0x28] sm:$0xff]
    %v232 = vld [vmem:[#allocation2 + $0x30] sm:$0xff]
    %v233 = vld [vmem:[#allocation2 + $0x38] sm:$0xff]
    %v234 = vpack.c.bf16 %v226, %v226
    %v235 = vpack.c.bf16 %v227, %v227
    %v236 = vpack.c.bf16 %v228, %v228
    %v237 = vpack.c.bf16 %v229, %v229
    %v238 = vpack.c.bf16 %v230, %v230
    %v239 = vpack.c.bf16 %v231, %v231
    %v240 = vpack.c.bf16 %v232, %v232
    %v241 = vpack.c.bf16 %v233, %v233
    %v242 = vld [vmem:[#allocation5] sm:$0xf]
    %v243 = vld [vmem:[#allocation5 + $0x4] sm:$0xf]
    %v244 = vld [vmem:[#allocation5 + $0x8] sm:$0xf]
    %v245 = vld [vmem:[#allocation5 + $0xc] sm:$0xf]
    %v246 = vld [vmem:[#allocation5 + $0x10] sm:$0xf]
    %v247 = vld [vmem:[#allocation5 + $0x14] sm:$0xf]
    %v248 = vld [vmem:[#allocation5 + $0x18] sm:$0xf]
    %v249 = vld [vmem:[#allocation5 + $0x1c] sm:$0xf]
    %v250 = vld [vmem:[#allocation5 + $0x20] sm:$0xf]
    %v251 = vld [vmem:[#allocation5 + $0x24] sm:$0xf]
    %v252 = vld [vmem:[#allocation5 + $0x28] sm:$0xf]
    %v253 = vld [vmem:[#allocation5 + $0x2c] sm:$0xf]
    %v254 = vld [vmem:[#allocation5 + $0x30] sm:$0xf]
    %v255 = vld [vmem:[#allocation5 + $0x34] sm:$0xf]
    %v256 = vld [vmem:[#allocation5 + $0x38] sm:$0xf]
    %v257 = vld [vmem:[#allocation5 + $0x3c] sm:$0xf]
    %v258 = vld [vmem:[#allocation5 + $0x40] sm:$0xf]
    %v259 = vld [vmem:[#allocation5 + $0x44] sm:$0xf]
    %v260 = vld [vmem:[#allocation5 + $0x48] sm:$0xf]
    %v261 = vld [vmem:[#allocation5 + $0x4c] sm:$0xf]
    %v262 = vld [vmem:[#allocation5 + $0x50] sm:$0xf]
    %v263 = vld [vmem:[#allocation5 + $0x54] sm:$0xf]
    %v264 = vld [vmem:[#allocation5 + $0x58] sm:$0xf]
    %v265 = vld [vmem:[#allocation5 + $0x5c] sm:$0xf]
    %v266 = vld [vmem:[#allocation5 + $0x60] sm:$0xf]
    %v267 = vld [vmem:[#allocation5 + $0x64] sm:$0xf]
    %v268 = vld [vmem:[#allocation5 + $0x68] sm:$0xf]
    %v269 = vld [vmem:[#allocation5 + $0x6c] sm:$0xf]
    %v270 = vld [vmem:[#allocation5 + $0x70] sm:$0xf]
    %v271 = vld [vmem:[#allocation5 + $0x74] sm:$0xf]
    %v272 = vld [vmem:[#allocation5 + $0x78] sm:$0xf]
    %v273 = vld [vmem:[#allocation5 + $0x7c] sm:$0xf]
    %v274 = vld [vmem:[#allocation5 + $0x80] sm:$0xf]
    %v275 = vld [vmem:[#allocation5 + $0x84] sm:$0xf]
    %v276 = vld [vmem:[#allocation5 + $0x88] sm:$0xf]
    %v277 = vld [vmem:[#allocation5 + $0x8c] sm:$0xf]
    %v278 = vld [vmem:[#allocation5 + $0x90] sm:$0xf]
    %v279 = vld [vmem:[#allocation5 + $0x94] sm:$0xf]
    %v280 = vld [vmem:[#allocation5 + $0x98] sm:$0xf]
    %v281 = vld [vmem:[#allocation5 + $0x9c] sm:$0xf]
    %v282 = vld [vmem:[#allocation5 + $0xa0] sm:$0xf]
    %v283 = vld [vmem:[#allocation5 + $0xa4] sm:$0xf]
    %v284 = vld [vmem:[#allocation5 + $0xa8] sm:$0xf]
    %v285 = vld [vmem:[#allocation5 + $0xac] sm:$0xf]
    %v286 = vld [vmem:[#allocation5 + $0xb0] sm:$0xf]
    %v287 = vld [vmem:[#allocation5 + $0xb4] sm:$0xf]
    %v288 = vld [vmem:[#allocation5 + $0xb8] sm:$0xf]
    %v289 = vld [vmem:[#allocation5 + $0xbc] sm:$0xf]
    %v290 = vld [vmem:[#allocation5 + $0xc0] sm:$0xf]
    %v291 = vld [vmem:[#allocation5 + $0xc4] sm:$0xf]
    %v292 = vld [vmem:[#allocation5 + $0xc8] sm:$0xf]
    %v293 = vld [vmem:[#allocation5 + $0xcc] sm:$0xf]
    %v294 = vld [vmem:[#allocation5 + $0xd0] sm:$0xf]
    %v295 = vld [vmem:[#allocation5 + $0xd4] sm:$0xf]
    %v296 = vld [vmem:[#allocation5 + $0xd8] sm:$0xf]
    %v297 = vld [vmem:[#allocation5 + $0xdc] sm:$0xf]
    %v298 = vld [vmem:[#allocation5 + $0xe0] sm:$0xf]
    %v299 = vld [vmem:[#allocation5 + $0xe4] sm:$0xf]
    %v300 = vld [vmem:[#allocation5 + $0xe8] sm:$0xf]
    %v301 = vld [vmem:[#allocation5 + $0xec] sm:$0xf]
    %v302 = vld [vmem:[#allocation5 + $0xf0] sm:$0xf]
    %v303 = vld [vmem:[#allocation5 + $0xf4] sm:$0xf]
    %v304 = vld [vmem:[#allocation5 + $0xf8] sm:$0xf]
    %v305 = vld [vmem:[#allocation5 + $0xfc] sm:$0xf]
    %v306 = vld [vmem:[#allocation5 + $0x100] sm:$0xf]
    %v307 = vld [vmem:[#allocation5 + $0x104] sm:$0xf]
    %v308 = vld [vmem:[#allocation5 + $0x108] sm:$0xf]
    %v309 = vld [vmem:[#allocation5 + $0x10c] sm:$0xf]
    %v310 = vld [vmem:[#allocation5 + $0x110] sm:$0xf]
    %v311 = vld [vmem:[#allocation5 + $0x114] sm:$0xf]
    %v312 = vld [vmem:[#allocation5 + $0x118] sm:$0xf]
    %v313 = vld [vmem:[#allocation5 + $0x11c] sm:$0xf]
    %v314 = vld [vmem:[#allocation5 + $0x120] sm:$0xf]
    %v315 = vld [vmem:[#allocation5 + $0x124] sm:$0xf]
    %v316 = vld [vmem:[#allocation5 + $0x128] sm:$0xf]
    %v317 = vld [vmem:[#allocation5 + $0x12c] sm:$0xf]
    %v318 = vld [vmem:[#allocation5 + $0x130] sm:$0xf]
    %v319 = vld [vmem:[#allocation5 + $0x134] sm:$0xf]
    %v320 = vld [vmem:[#allocation5 + $0x138] sm:$0xf]
    %v321 = vld [vmem:[#allocation5 + $0x13c] sm:$0xf]
    %v322 = vld [vmem:[#allocation5 + $0x140] sm:$0xf]
    %v323 = vld [vmem:[#allocation5 + $0x144] sm:$0xf]
    %v324 = vld [vmem:[#allocation5 + $0x148] sm:$0xf]
    %v325 = vld [vmem:[#allocation5 + $0x14c] sm:$0xf]
    %v326 = vld [vmem:[#allocation5 + $0x150] sm:$0xf]
    %v327 = vld [vmem:[#allocation5 + $0x154] sm:$0xf]
    %v328 = vld [vmem:[#allocation5 + $0x158] sm:$0xf]
    %v329 = vld [vmem:[#allocation5 + $0x15c] sm:$0xf]
    %v330 = vld [vmem:[#allocation5 + $0x160] sm:$0xf]
    %v331 = vld [vmem:[#allocation5 + $0x164] sm:$0xf]
    %v332 = vld [vmem:[#allocation5 + $0x168] sm:$0xf]
    %v333 = vld [vmem:[#allocation5 + $0x16c] sm:$0xf]
    %v334 = vld [vmem:[#allocation5 + $0x170] sm:$0xf]
    %v335 = vld [vmem:[#allocation5 + $0x174] sm:$0xf]
    %v336 = vld [vmem:[#allocation5 + $0x178] sm:$0xf]
    %v337 = vld [vmem:[#allocation5 + $0x17c] sm:$0xf]
    %v338 = vld [vmem:[#allocation5 + $0x180] sm:$0xf]
    %v339 = vld [vmem:[#allocation5 + $0x184] sm:$0xf]
    %v340 = vld [vmem:[#allocation5 + $0x188] sm:$0xf]
    %v341 = vld [vmem:[#allocation5 + $0x18c] sm:$0xf]
    %v342 = vld [vmem:[#allocation5 + $0x190] sm:$0xf]
    %v343 = vld [vmem:[#allocation5 + $0x194] sm:$0xf]
    %v344 = vld [vmem:[#allocation5 + $0x198] sm:$0xf]
    %v345 = vld [vmem:[#allocation5 + $0x19c] sm:$0xf]
    %v346 = vld [vmem:[#allocation5 + $0x1a0] sm:$0xf]
    %v347 = vld [vmem:[#allocation5 + $0x1a4] sm:$0xf]
    %v348 = vld [vmem:[#allocation5 + $0x1a8] sm:$0xf]
    %v349 = vld [vmem:[#allocation5 + $0x1ac] sm:$0xf]
    %v350 = vld [vmem:[#allocation5 + $0x1b0] sm:$0xf]
    %v351 = vld [vmem:[#allocation5 + $0x1b4] sm:$0xf]
    %v352 = vld [vmem:[#allocation5 + $0x1b8] sm:$0xf]
    %v353 = vld [vmem:[#allocation5 + $0x1bc] sm:$0xf]
    %v354 = vld [vmem:[#allocation5 + $0x1c0] sm:$0xf]
    %v355 = vld [vmem:[#allocation5 + $0x1c4] sm:$0xf]
    %v356 = vld [vmem:[#allocation5 + $0x1c8] sm:$0xf]
    %v357 = vld [vmem:[#allocation5 + $0x1cc] sm:$0xf]
    %v358 = vld [vmem:[#allocation5 + $0x1d0] sm:$0xf]
    %v359 = vld [vmem:[#allocation5 + $0x1d4] sm:$0xf]
    %v360 = vld [vmem:[#allocation5 + $0x1d8] sm:$0xf]
    %v361 = vld [vmem:[#allocation5 + $0x1dc] sm:$0xf]
    %v362 = vld [vmem:[#allocation5 + $0x1e0] sm:$0xf]
    %v363 = vld [vmem:[#allocation5 + $0x1e4] sm:$0xf]
    %v364 = vld [vmem:[#allocation5 + $0x1e8] sm:$0xf]
    %v365 = vld [vmem:[#allocation5 + $0x1ec] sm:$0xf]
    %v366 = vld [vmem:[#allocation5 + $0x1f0] sm:$0xf]
    %v367 = vld [vmem:[#allocation5 + $0x1f4] sm:$0xf]
    %v368 = vld [vmem:[#allocation5 + $0x1f8] sm:$0xf]
    %v369 = vld [vmem:[#allocation5 + $0x1fc] sm:$0xf]
    %v370 = vld [vmem:[#allocation7] sm:$0x1]
    %v372 = vperm.slane %v370, 0
    %v502 = vunpack.c.l.b16 %v242
    %v503 = vunpack.c.l.b16 %v243
    %v504 = vunpack.c.l.b16 %v244
    %v505 = vunpack.c.l.b16 %v245
    %v506 = vunpack.c.l.b16 %v246
    %v507 = vunpack.c.l.b16 %v247
    %v508 = vunpack.c.l.b16 %v248
    %v509 = vunpack.c.l.b16 %v249
    %v510 = vunpack.c.l.b16 %v250
    %v511 = vunpack.c.l.b16 %v251
    %v512 = vunpack.c.l.b16 %v252
    %v513 = vunpack.c.l.b16 %v253
    %v514 = vunpack.c.l.b16 %v254
    %v515 = vunpack.c.l.b16 %v255
    %v516 = vunpack.c.l.b16 %v256
    %v517 = vunpack.c.l.b16 %v257
    %v518 = vunpack.c.l.b16 %v258
    %v519 = vunpack.c.l.b16 %v259
    %v520 = vunpack.c.l.b16 %v260
    %v521 = vunpack.c.l.b16 %v261
    %v522 = vunpack.c.l.b16 %v262
    %v523 = vunpack.c.l.b16 %v263
    %v524 = vunpack.c.l.b16 %v264
    %v525 = vunpack.c.l.b16 %v265
    %v526 = vunpack.c.l.b16 %v266
    %v527 = vunpack.c.l.b16 %v267
    %v528 = vunpack.c.l.b16 %v268
    %v529 = vunpack.c.l.b16 %v269
    %v530 = vunpack.c.l.b16 %v270
    %v531 = vunpack.c.l.b16 %v271
    %v532 = vunpack.c.l.b16 %v272
    %v533 = vunpack.c.l.b16 %v273
    %v534 = vunpack.c.l.b16 %v274
    %v535 = vunpack.c.l.b16 %v275
    %v536 = vunpack.c.l.b16 %v276
    %v537 = vunpack.c.l.b16 %v277
    %v538 = vunpack.c.l.b16 %v278
    %v539 = vunpack.c.l.b16 %v279
    %v540 = vunpack.c.l.b16 %v280
    %v541 = vunpack.c.l.b16 %v281
    %v542 = vunpack.c.l.b16 %v282
    %v543 = vunpack.c.l.b16 %v283
    %v544 = vunpack.c.l.b16 %v284
    %v545 = vunpack.c.l.b16 %v285
    %v546 = vunpack.c.l.b16 %v286
    %v547 = vunpack.c.l.b16 %v287
    %v548 = vunpack.c.l.b16 %v288
    %v549 = vunpack.c.l.b16 %v289
    %v550 = vunpack.c.l.b16 %v290
    %v551 = vunpack.c.l.b16 %v291
    %v552 = vunpack.c.l.b16 %v292
    %v553 = vunpack.c.l.b16 %v293
    %v554 = vunpack.c.l.b16 %v294
    %v555 = vunpack.c.l.b16 %v295
    %v556 = vunpack.c.l.b16 %v296
    %v557 = vunpack.c.l.b16 %v297
    %v558 = vunpack.c.l.b16 %v298
    %v559 = vunpack.c.l.b16 %v299
    %v560 = vunpack.c.l.b16 %v300
    %v561 = vunpack.c.l.b16 %v301
    %v562 = vunpack.c.l.b16 %v302
    %v563 = vunpack.c.l.b16 %v303
    %v564 = vunpack.c.l.b16 %v304
    %v565 = vunpack.c.l.b16 %v305
    %v566 = vunpack.c.l.b16 %v306
    %v567 = vunpack.c.l.b16 %v307
    %v568 = vunpack.c.l.b16 %v308
    %v569 = vunpack.c.l.b16 %v309
    %v570 = vunpack.c.l.b16 %v310
    %v571 = vunpack.c.l.b16 %v311
    %v572 = vunpack.c.l.b16 %v312
    %v573 = vunpack.c.l.b16 %v313
    %v574 = vunpack.c.l.b16 %v314
    %v575 = vunpack.c.l.b16 %v315
    %v576 = vunpack.c.l.b16 %v316
    %v577 = vunpack.c.l.b16 %v317
    %v578 = vunpack.c.l.b16 %v318
    %v579 = vunpack.c.l.b16 %v319
    %v580 = vunpack.c.l.b16 %v320
    %v581 = vunpack.c.l.b16 %v321
    %v582 = vunpack.c.l.b16 %v322
    %v583 = vunpack.c.l.b16 %v323
    %v584 = vunpack.c.l.b16 %v324
    %v585 = vunpack.c.l.b16 %v325
    %v586 = vunpack.c.l.b16 %v326
    %v587 = vunpack.c.l.b16 %v327
    %v588 = vunpack.c.l.b16 %v328
    %v589 = vunpack.c.l.b16 %v329
    %v590 = vunpack.c.l.b16 %v330
    %v591 = vunpack.c.l.b16 %v331
    %v592 = vunpack.c.l.b16 %v332
    %v593 = vunpack.c.l.b16 %v333
    %v594 = vunpack.c.l.b16 %v334
    %v595 = vunpack.c.l.b16 %v335
    %v596 = vunpack.c.l.b16 %v336
    %v597 = vunpack.c.l.b16 %v337
    %v598 = vunpack.c.l.b16 %v338
    %v599 = vunpack.c.l.b16 %v339
    %v600 = vunpack.c.l.b16 %v340
    %v601 = vunpack.c.l.b16 %v341
    %v602 = vunpack.c.l.b16 %v342
    %v603 = vunpack.c.l.b16 %v343
    %v604 = vunpack.c.l.b16 %v344
    %v605 = vunpack.c.l.b16 %v345
    %v606 = vunpack.c.l.b16 %v346
    %v607 = vunpack.c.l.b16 %v347
    %v608 = vunpack.c.l.b16 %v348
    %v609 = vunpack.c.l.b16 %v349
    %v610 = vunpack.c.l.b16 %v350
    %v611 = vunpack.c.l.b16 %v351
    %v612 = vunpack.c.l.b16 %v352
    %v613 = vunpack.c.l.b16 %v353
    %v614 = vunpack.c.l.b16 %v354
    %v615 = vunpack.c.l.b16 %v355
    %v616 = vunpack.c.l.b16 %v356
    %v617 = vunpack.c.l.b16 %v357
    %v618 = vunpack.c.l.b16 %v358
    %v619 = vunpack.c.l.b16 %v359
    %v620 = vunpack.c.l.b16 %v360
    %v621 = vunpack.c.l.b16 %v361
    %v622 = vunpack.c.l.b16 %v362
    %v623 = vunpack.c.l.b16 %v363
    %v624 = vunpack.c.l.b16 %v364
    %v625 = vunpack.c.l.b16 %v365
    %v626 = vunpack.c.l.b16 %v366
    %v627 = vunpack.c.l.b16 %v367
    %v628 = vunpack.c.l.b16 %v368
    %v629 = vunpack.c.l.b16 %v369
    %v630 = vpack.c.b16 %v503, %v502
    %v631 = vpack.c.b16 %v505, %v504
    %v632 = vpack.c.b16 %v507, %v506
    %v633 = vpack.c.b16 %v509, %v508
    %v634 = vpack.c.b16 %v511, %v510
    %v635 = vpack.c.b16 %v513, %v512
    %v636 = vpack.c.b16 %v515, %v514
    %v637 = vpack.c.b16 %v517, %v516
    %v638 = vpack.c.b16 %v519, %v518
    %v639 = vpack.c.b16 %v521, %v520
    %v640 = vpack.c.b16 %v523, %v522
    %v641 = vpack.c.b16 %v525, %v524
    %v642 = vpack.c.b16 %v527, %v526
    %v643 = vpack.c.b16 %v529, %v528
    %v644 = vpack.c.b16 %v531, %v530
    %v645 = vpack.c.b16 %v533, %v532
    %v646 = vpack.c.b16 %v535, %v534
    %v647 = vpack.c.b16 %v537, %v536
    %v648 = vpack.c.b16 %v539, %v538
    %v649 = vpack.c.b16 %v541, %v540
    %v650 = vpack.c.b16 %v543, %v542
    %v651 = vpack.c.b16 %v545, %v544
    %v652 = vpack.c.b16 %v547, %v546
    %v653 = vpack.c.b16 %v549, %v548
    %v654 = vpack.c.b16 %v551, %v550
    %v655 = vpack.c.b16 %v553, %v552
    %v656 = vpack.c.b16 %v555, %v554
    %v657 = vpack.c.b16 %v557, %v556
    %v658 = vpack.c.b16 %v559, %v558
    %v659 = vpack.c.b16 %v561, %v560
    %v660 = vpack.c.b16 %v563, %v562
    %v661 = vpack.c.b16 %v565, %v564
    %v662 = vpack.c.b16 %v567, %v566
    %v663 = vpack.c.b16 %v569, %v568
    %v664 = vpack.c.b16 %v571, %v570
    %v665 = vpack.c.b16 %v573, %v572
    %v666 = vpack.c.b16 %v575, %v574
    %v667 = vpack.c.b16 %v577, %v576
    %v668 = vpack.c.b16 %v579, %v578
    %v669 = vpack.c.b16 %v581, %v580
    %v670 = vpack.c.b16 %v583, %v582
    %v671 = vpack.c.b16 %v585, %v584
    %v672 = vpack.c.b16 %v587, %v586
    %v673 = vpack.c.b16 %v589, %v588
    %v674 = vpack.c.b16 %v591, %v590
    %v675 = vpack.c.b16 %v593, %v592
    %v676 = vpack.c.b16 %v595, %v594
    %v677 = vpack.c.b16 %v597, %v596
    %v678 = vpack.c.b16 %v599, %v598
    %v679 = vpack.c.b16 %v601, %v600
    %v680 = vpack.c.b16 %v603, %v602
    %v681 = vpack.c.b16 %v605, %v604
    %v682 = vpack.c.b16 %v607, %v606
    %v683 = vpack.c.b16 %v609, %v608
    %v684 = vpack.c.b16 %v611, %v610
    %v685 = vpack.c.b16 %v613, %v612
    %v686 = vpack.c.b16 %v615, %v614
    %v687 = vpack.c.b16 %v617, %v616
    %v688 = vpack.c.b16 %v619, %v618
    %v689 = vpack.c.b16 %v621, %v620
    %v690 = vpack.c.b16 %v623, %v622
    %v691 = vpack.c.b16 %v625, %v624
    %v692 = vpack.c.b16 %v627, %v626
    %v693 = vpack.c.b16 %v629, %v628
    %758 = vmatpush.bf16.msra.mxu0 %v637
    %759 = vmatpush.bf16.msra.mxu0 %v636
    %760 = vmatpush.bf16.msra.mxu0 %v635
    %761 = vmatpush.bf16.msra.mxu0 %v634
    %762 = vmatpush.bf16.msra.mxu0 %v633
    %763 = vmatpush.bf16.msra.mxu0 %v632
    %764 = vmatpush.bf16.msra.mxu0 %v631
    %765 = vmatpush.bf16.msra.mxu0 %v630
    %766 = vmatmul.bf16.gmra.mxu0 %v234
    %v767 = vpop.f32.mrf.mxu0
    %v768 = vadd.f32 %v372, %v767
    %v769 = vpop.f32.mrf.mxu0
    %770 = vdwg.mxu0
    %771 = vmatpush.bf16.msra.mxu0 %v645
    %772 = vmatpush.bf16.msra.mxu0 %v644
    %773 = vmatpush.bf16.msra.mxu0 %v643
    %774 = vmatpush.bf16.msra.mxu0 %v642
    %775 = vmatpush.bf16.msra.mxu0 %v641
    %776 = vmatpush.bf16.msra.mxu0 %v640
    %777 = vmatpush.bf16.msra.mxu0 %v639
    %778 = vmatpush.bf16.msra.mxu0 %v638
    %779 = vmatmul.bf16.gmra.mxu0 %v235
    %v780 = vpop.f32.mrf.mxu0
    %v781 = vadd.f32 %v768, %v780
    %v782 = vpop.f32.mrf.mxu0
    %783 = vdwg.mxu0
    %784 = vmatpush.bf16.msra.mxu0 %v653
    %785 = vmatpush.bf16.msra.mxu0 %v652
    %786 = vmatpush.bf16.msra.mxu0 %v651
    %787 = vmatpush.bf16.msra.mxu0 %v650
    %788 = vmatpush.bf16.msra.mxu0 %v649
    %789 = vmatpush.bf16.msra.mxu0 %v648
    %790 = vmatpush.bf16.msra.mxu0 %v647
    %791 = vmatpush.bf16.msra.mxu0 %v646
    %792 = vmatmul.bf16.gmra.mxu0 %v236
    %v793 = vpop.f32.mrf.mxu0
    %v794 = vadd.f32 %v781, %v793
    %v795 = vpop.f32.mrf.mxu0
    %796 = vdwg.mxu0
    %797 = vmatpush.bf16.msra.mxu0 %v661
    %798 = vmatpush.bf16.msra.mxu0 %v660
    %799 = vmatpush.bf16.msra.mxu0 %v659
    %800 = vmatpush.bf16.msra.mxu0 %v658
    %801 = vmatpush.bf16.msra.mxu0 %v657
    %802 = vmatpush.bf16.msra.mxu0 %v656
    %803 = vmatpush.bf16.msra.mxu0 %v655
    %804 = vmatpush.bf16.msra.mxu0 %v654
    %805 = vmatmul.bf16.gmra.mxu0 %v237
    %v806 = vpop.f32.mrf.mxu0
    %v807 = vadd.f32 %v794, %v806
    %v808 = vpop.f32.mrf.mxu0
    %809 = vdwg.mxu0
    %810 = vmatpush.bf16.msra.mxu0 %v669
    %811 = vmatpush.bf16.msra.mxu0 %v668
    %812 = vmatpush.bf16.msra.mxu0 %v667
    %813 = vmatpush.bf16.msra.mxu0 %v666
    %814 = vmatpush.bf16.msra.mxu0 %v665
    %815 = vmatpush.bf16.msra.mxu0 %v664
    %816 = vmatpush.bf16.msra.mxu0 %v663
    %817 = vmatpush.bf16.msra.mxu0 %v662
    %818 = vmatmul.bf16.gmra.mxu0 %v238
    %v819 = vpop.f32.mrf.mxu0
    %v820 = vadd.f32 %v807, %v819
    %v821 = vpop.f32.mrf.mxu0
    %822 = vdwg.mxu0
    %823 = vmatpush.bf16.msra.mxu0 %v677
    %824 = vmatpush.bf16.msra.mxu0 %v676
    %825 = vmatpush.bf16.msra.mxu0 %v675
    %826 = vmatpush.bf16.msra.mxu0 %v674
    %827 = vmatpush.bf16.msra.mxu0 %v673
    %828 = vmatpush.bf16.msra.mxu0 %v672
    %829 = vmatpush.bf16.msra.mxu0 %v671
    %830 = vmatpush.bf16.msra.mxu0 %v670
    %831 = vmatmul.bf16.gmra.mxu0 %v239
    %v832 = vpop.f32.mrf.mxu0
    %v833 = vadd.f32 %v820, %v832
    %v834 = vpop.f32.mrf.mxu0
    %835 = vdwg.mxu0
    %836 = vmatpush.bf16.msra.mxu0 %v685
    %837 = vmatpush.bf16.msra.mxu0 %v684
    %838 = vmatpush.bf16.msra.mxu0 %v683
    %839 = vmatpush.bf16.msra.mxu0 %v682
    %840 = vmatpush.bf16.msra.mxu0 %v681
    %841 = vmatpush.bf16.msra.mxu0 %v680
    %842 = vmatpush.bf16.msra.mxu0 %v679
    %843 = vmatpush.bf16.msra.mxu0 %v678
    %844 = vmatmul.bf16.gmra.mxu0 %v240
    %v845 = vpop.f32.mrf.mxu0
    %v846 = vadd.f32 %v833, %v845
    %v847 = vpop.f32.mrf.mxu0
    %848 = vdwg.mxu0
    %849 = vmatpush.bf16.msra.mxu0 %v693
    %850 = vmatpush.bf16.msra.mxu0 %v692
    %851 = vmatpush.bf16.msra.mxu0 %v691
    %852 = vmatpush.bf16.msra.mxu0 %v690
    %853 = vmatpush.bf16.msra.mxu0 %v689
    %854 = vmatpush.bf16.msra.mxu0 %v688
    %855 = vmatpush.bf16.msra.mxu0 %v687
    %856 = vmatpush.bf16.msra.mxu0 %v686
    %857 = vmatmul.bf16.gmra.mxu0 %v241
    %v858 = vpop.f32.mrf.mxu0
    %v859 = vadd.f32 %v846, %v858
    %v860 = vpop.f32.mrf.mxu0
    %861 = vdwg.mxu0
    %v862 = vmax.f32 %v859, 0.0
    %v863 = vpack.c.bf16 %v862, %v862
    %v864 = vld [vmem:[#allocation8] sm:$0xf]
    %v865 = vld [vmem:[#allocation8 + $0x4] sm:$0xf]
    %v866 = vld [vmem:[#allocation8 + $0x8] sm:$0xf]
    %v867 = vld [vmem:[#allocation8 + $0xc] sm:$0xf]
    %v868 = vld [vmem:[#allocation8 + $0x10] sm:$0xf]
    %v869 = vld [vmem:[#allocation8 + $0x14] sm:$0xf]
    %v870 = vld [vmem:[#allocation8 + $0x18] sm:$0xf]
    %v871 = vld [vmem:[#allocation8 + $0x1c] sm:$0xf]
    %v872 = vld [vmem:[#allocation8 + $0x20] sm:$0xf]
    %v873 = vld [vmem:[#allocation8 + $0x24] sm:$0xf]
    %v874 = vld [vmem:[#allocation8 + $0x28] sm:$0xf]
    %v875 = vld [vmem:[#allocation8 + $0x2c] sm:$0xf]
    %v876 = vld [vmem:[#allocation8 + $0x30] sm:$0xf]
    %v877 = vld [vmem:[#allocation8 + $0x34] sm:$0xf]
    %v878 = vld [vmem:[#allocation8 + $0x38] sm:$0xf]
    %v879 = vld [vmem:[#allocation8 + $0x3c] sm:$0xf]
    %v880 = vld [vmem:[#allocation10] sm:$0x1]
    %v882 = vperm.slane %v880, 0
    %v900 = vunpack.c.l.b16 %v864
    %v901 = vunpack.c.l.b16 %v865
    %v902 = vunpack.c.l.b16 %v866
    %v903 = vunpack.c.l.b16 %v867
    %v904 = vunpack.c.l.b16 %v868
    %v905 = vunpack.c.l.b16 %v869
    %v906 = vunpack.c.l.b16 %v870
    %v907 = vunpack.c.l.b16 %v871
    %v908 = vunpack.c.l.b16 %v872
    %v909 = vunpack.c.l.b16 %v873
    %v910 = vunpack.c.l.b16 %v874
    %v911 = vunpack.c.l.b16 %v875
    %v912 = vunpack.c.l.b16 %v876
    %v913 = vunpack.c.l.b16 %v877
    %v914 = vunpack.c.l.b16 %v878
    %v915 = vunpack.c.l.b16 %v879
    %v916 = vpack.c.b16 %v901, %v900
    %v917 = vpack.c.b16 %v903, %v902
    %v918 = vpack.c.b16 %v905, %v904
    %v919 = vpack.c.b16 %v907, %v906
    %v920 = vpack.c.b16 %v909, %v908
    %v921 = vpack.c.b16 %v911, %v910
    %v922 = vpack.c.b16 %v913, %v912
    %v923 = vpack.c.b16 %v915, %v914
    %932 = vmatpush.bf16.msra.mxu0 %v923
    %933 = vmatpush.bf16.msra.mxu0 %v922
    %934 = vmatpush.bf16.msra.mxu0 %v921
    %935 = vmatpush.bf16.msra.mxu0 %v920
    %936 = vmatpush.bf16.msra.mxu0 %v919
    %937 = vmatpush.bf16.msra.mxu0 %v918
    %938 = vmatpush.bf16.msra.mxu0 %v917
    %939 = vmatpush.bf16.msra.mxu0 %v916
    %940 = vmatmul.bf16.gmra.mxu0 %v863
    %v941 = vpop.f32.mrf.mxu0
    %v942 = vadd.f32 %v882, %v941
    %v943 = vpop.f32.mrf.mxu0
    %944 = vdwg.mxu0
    %v945 = vtanh.pop %v942
    %v946 = vpack.c.bf16 %v945, %v945
    %v947 = vld [vmem:[#allocation11] sm:$0xff]
    %v948 = vld [vmem:[#allocation11 + $0x8] sm:$0xff]
    %v949 = vld [vmem:[#allocation11 + $0x10] sm:$0xff]
    %v950 = vld [vmem:[#allocation11 + $0x18] sm:$0xff]
    %v951 = vld [vmem:[#allocation11 + $0x20] sm:$0xff]
    %v952 = vld [vmem:[#allocation11 + $0x28] sm:$0xff]
    %v953 = vld [vmem:[#allocation11 + $0x30] sm:$0xff]
    %v954 = vld [vmem:[#allocation11 + $0x38] sm:$0xff]
    %v955 = vld [vmem:[#allocation11 + $0x40] sm:$0xff]
    %v956 = vld [vmem:[#allocation11 + $0x48] sm:$0xff]
    %v957 = vld [vmem:[#allocation11 + $0x50] sm:$0xff]
    %v958 = vld [vmem:[#allocation11 + $0x58] sm:$0xff]
    %v959 = vld [vmem:[#allocation11 + $0x60] sm:$0xff]
    %v960 = vld [vmem:[#allocation11 + $0x68] sm:$0xff]
    %v961 = vld [vmem:[#allocation11 + $0x70] sm:$0xff]
    %v962 = vld [vmem:[#allocation11 + $0x78] sm:$0xff]
    %v963 = vld [vmem:[#allocation11 + $0x80] sm:$0xff]
    %v964 = vld [vmem:[#allocation11 + $0x88] sm:$0xff]
    %v965 = vld [vmem:[#allocation11 + $0x90] sm:$0xff]
    %v966 = vld [vmem:[#allocation11 + $0x98] sm:$0xff]
    %v967 = vld [vmem:[#allocation11 + $0xa0] sm:$0xff]
    %v968 = vld [vmem:[#allocation11 + $0xa8] sm:$0xff]
    %v969 = vld [vmem:[#allocation11 + $0xb0] sm:$0xff]
    %v970 = vld [vmem:[#allocation11 + $0xb8] sm:$0xff]
    %v971 = vld [vmem:[#allocation11 + $0xc0] sm:$0xff]
    %v972 = vld [vmem:[#allocation11 + $0xc8] sm:$0xff]
    %v973 = vld [vmem:[#allocation11 + $0xd0] sm:$0xff]
    %v974 = vld [vmem:[#allocation11 + $0xd8] sm:$0xff]
    %v975 = vld [vmem:[#allocation11 + $0xe0] sm:$0xff]
    %v976 = vld [vmem:[#allocation11 + $0xe8] sm:$0xff]
    %v977 = vld [vmem:[#allocation11 + $0xf0] sm:$0xff]
    %v978 = vld [vmem:[#allocation11 + $0xf8] sm:$0xff]
    %v979 = vld [vmem:[#allocation13] sm:$0xff]
    %v980 = vld [vmem:[#allocation13 + $0x8] sm:$0xff]
    %v981 = vld [vmem:[#allocation13 + $0x10] sm:$0xff]
    %v982 = vld [vmem:[#allocation13 + $0x18] sm:$0xff]
    %v983 = vld [vmem:[#allocation13 + $0x20] sm:$0xff]
    %v984 = vld [vmem:[#allocation13 + $0x28] sm:$0xff]
    %v985 = vld [vmem:[#allocation13 + $0x30] sm:$0xff]
    %v986 = vld [vmem:[#allocation13 + $0x38] sm:$0xff]
    %v987 = vld [vmem:[#allocation13 + $0x40] sm:$0xff]
    %v988 = vld [vmem:[#allocation13 + $0x48] sm:$0xff]
    %v989 = vld [vmem:[#allocation13 + $0x50] sm:$0xff]
    %v990 = vld [vmem:[#allocation13 + $0x58] sm:$0xff]
    %v991 = vld [vmem:[#allocation13 + $0x60] sm:$0xff]
    %v992 = vld [vmem:[#allocation13 + $0x68] sm:$0xff]
    %v993 = vld [vmem:[#allocation13 + $0x70] sm:$0xff]
    %v994 = vld [vmem:[#allocation13 + $0x78] sm:$0xff]
    %v995 = vld [vmem:[#allocation13 + $0x80] sm:$0xff]
    %v996 = vld [vmem:[#allocation13 + $0x88] sm:$0xff]
    %v997 = vld [vmem:[#allocation13 + $0x90] sm:$0xff]
    %v998 = vld [vmem:[#allocation13 + $0x98] sm:$0xff]
    %v999 = vld [vmem:[#allocation13 + $0xa0] sm:$0xff]
    %v1000 = vld [vmem:[#allocation13 + $0xa8] sm:$0xff]
    %v1001 = vld [vmem:[#allocation13 + $0xb0] sm:$0xff]
    %v1002 = vld [vmem:[#allocation13 + $0xb8] sm:$0xff]
    %v1003 = vld [vmem:[#allocation13 + $0xc0] sm:$0xff]
    %v1004 = vld [vmem:[#allocation13 + $0xc8] sm:$0xff]
    %v1005 = vld [vmem:[#allocation13 + $0xd0] sm:$0xff]
    %v1006 = vld [vmem:[#allocation13 + $0xd8] sm:$0xff]
    %v1007 = vld [vmem:[#allocation13 + $0xe0] sm:$0xff]
    %v1008 = vld [vmem:[#allocation13 + $0xe8] sm:$0xff]
    %v1009 = vld [vmem:[#allocation13 + $0xf0] sm:$0xff]
    %v1010 = vld [vmem:[#allocation13 + $0xf8] sm:$0xff]
    %v1043 = vunpack.c.l.b16 %v979
    %v1044 = vunpack.c.h.b16 %v979
    %v1045 = vunpack.c.l.b16 %v980
    %v1046 = vunpack.c.h.b16 %v980
    %v1047 = vunpack.c.l.b16 %v981
    %v1048 = vunpack.c.h.b16 %v981
    %v1049 = vunpack.c.l.b16 %v982
    %v1050 = vunpack.c.h.b16 %v982
    %v1051 = vunpack.c.l.b16 %v983
    %v1052 = vunpack.c.h.b16 %v983
    %v1053 = vunpack.c.l.b16 %v984
    %v1054 = vunpack.c.h.b16 %v984
    %v1055 = vunpack.c.l.b16 %v985
    %v1056 = vunpack.c.h.b16 %v985
    %v1057 = vunpack.c.l.b16 %v986
    %v1058 = vunpack.c.h.b16 %v986
    %v1059 = vunpack.c.l.b16 %v987
    %v1060 = vunpack.c.h.b16 %v987
    %v1061 = vunpack.c.l.b16 %v988
    %v1062 = vunpack.c.h.b16 %v988
    %v1063 = vunpack.c.l.b16 %v989
    %v1064 = vunpack.c.h.b16 %v989
    %v1065 = vunpack.c.l.b16 %v990
    %v1066 = vunpack.c.h.b16 %v990
    %v1067 = vunpack.c.l.b16 %v991
    %v1068 = vunpack.c.h.b16 %v991
    %v1069 = vunpack.c.l.b16 %v992
    %v1070 = vunpack.c.h.b16 %v992
    %v1071 = vunpack.c.l.b16 %v993
    %v1072 = vunpack.c.h.b16 %v993
    %v1073 = vunpack.c.l.b16 %v994
    %v1074 = vunpack.c.h.b16 %v994
    %v1075 = vunpack.c.l.b16 %v995
    %v1076 = vunpack.c.h.b16 %v995
    %v1077 = vunpack.c.l.b16 %v996
    %v1078 = vunpack.c.h.b16 %v996
    %v1079 = vunpack.c.l.b16 %v997
    %v1080 = vunpack.c.h.b16 %v997
    %v1081 = vunpack.c.l.b16 %v998
    %v1082 = vunpack.c.h.b16 %v998
    %v1083 = vunpack.c.l.b16 %v999
    %v1084 = vunpack.c.h.b16 %v999
    %v1085 = vunpack.c.l.b16 %v1000
    %v1086 = vunpack.c.h.b16 %v1000
    %v1087 = vunpack.c.l.b16 %v1001
    %v1088 = vunpack.c.h.b16 %v1001
    %v1089 = vunpack.c.l.b16 %v1002
    %v1090 = vunpack.c.h.b16 %v1002
    %v1091 = vunpack.c.l.b16 %v1003
    %v1092 = vunpack.c.h.b16 %v1003
    %v1093 = vunpack.c.l.b16 %v1004
    %v1094 = vunpack.c.h.b16 %v1004
    %v1095 = vunpack.c.l.b16 %v1005
    %v1096 = vunpack.c.h.b16 %v1005
    %v1097 = vunpack.c.l.b16 %v1006
    %v1098 = vunpack.c.h.b16 %v1006
    %v1099 = vunpack.c.l.b16 %v1007
    %v1100 = vunpack.c.h.b16 %v1007
    %v1101 = vunpack.c.l.b16 %v1008
    %v1102 = vunpack.c.h.b16 %v1008
    %v1103 = vunpack.c.l.b16 %v1009
    %v1104 = vunpack.c.h.b16 %v1009
    %v1105 = vunpack.c.l.b16 %v1010
    %v1106 = vunpack.c.h.b16 %v1010
    %v1107 = vpack.c.b16 %v1047, %v1043
    %v1108 = vpack.c.b16 %v1048, %v1044
    %v1109 = vpack.c.b16 %v1049, %v1045
    %v1110 = vpack.c.b16 %v1050, %v1046
    %v1111 = vpack.c.b16 %v1055, %v1051
    %v1112 = vpack.c.b16 %v1056, %v1052
    %v1113 = vpack.c.b16 %v1057, %v1053
    %v1114 = vpack.c.b16 %v1058, %v1054
    %v1115 = vpack.c.b16 %v1063, %v1059
    %v1116 = vpack.c.b16 %v1064, %v1060
    %v1117 = vpack.c.b16 %v1065, %v1061
    %v1118 = vpack.c.b16 %v1066, %v1062
    %v1119 = vpack.c.b16 %v1071, %v1067
    %v1120 = vpack.c.b16 %v1072, %v1068
    %v1121 = vpack.c.b16 %v1073, %v1069
    %v1122 = vpack.c.b16 %v1074, %v1070
    %v1123 = vpack.c.b16 %v1079, %v1075
    %v1124 = vpack.c.b16 %v1080, %v1076
    %v1125 = vpack.c.b16 %v1081, %v1077
    %v1126 = vpack.c.b16 %v1082, %v1078
    %v1127 = vpack.c.b16 %v1087, %v1083
    %v1128 = vpack.c.b16 %v1088, %v1084
    %v1129 = vpack.c.b16 %v1089, %v1085
    %v1130 = vpack.c.b16 %v1090, %v1086
    %v1131 = vpack.c.b16 %v1095, %v1091
    %v1132 = vpack.c.b16 %v1096, %v1092
    %v1133 = vpack.c.b16 %v1097, %v1093
    %v1134 = vpack.c.b16 %v1098, %v1094
    %v1135 = vpack.c.b16 %v1103, %v1099
    %v1136 = vpack.c.b16 %v1104, %v1100
    %v1137 = vpack.c.b16 %v1105, %v1101
    %v1138 = vpack.c.b16 %v1106, %v1102
    %1171 = vmatpush.bf16.msra.mxu0 %v1135
    %1172 = vmatpush.bf16.msra.mxu0 %v1131
    %1173 = vmatpush.bf16.msra.mxu0 %v1127
    %1174 = vmatpush.bf16.msra.mxu0 %v1123
    %1175 = vmatpush.bf16.msra.mxu0 %v1119
    %1176 = vmatpush.bf16.msra.mxu0 %v1115
    %1177 = vmatpush.bf16.msra.mxu0 %v1111
    %1178 = vmatpush.bf16.msra.mxu0 %v1107
    %1179 = vmatmul.bf16.gmra.mxu0 0
    %v1180 = vpop.f32.mrf.mxu0
    %v1181 = vadd.f32 0.0, %v1180
    %v1182 = vpop.f32.mrf.mxu0
    %1183 = vdwg.mxu0
    %1184 = vmatpush.bf16.msra.mxu0 %v1136
    %1185 = vmatpush.bf16.msra.mxu0 %v1132
    %1186 = vmatpush.bf16.msra.mxu0 %v1128
    %1187 = vmatpush.bf16.msra.mxu0 %v1124
    %1188 = vmatpush.bf16.msra.mxu0 %v1120
    %1189 = vmatpush.bf16.msra.mxu0 %v1116
    %1190 = vmatpush.bf16.msra.mxu0 %v1112
    %1191 = vmatpush.bf16.msra.mxu0 %v1108
    %1192 = vmatmul.bf16.gmra.mxu0 0
    %v1193 = vpop.f32.mrf.mxu0
    %v1194 = vadd.f32 0.0, %v1193
    %v1195 = vpop.f32.mrf.mxu0
    %1196 = vdwg.mxu0
    %1197 = vmatpush.bf16.msra.mxu0 %v1137
    %1198 = vmatpush.bf16.msra.mxu0 %v1133
    %1199 = vmatpush.bf16.msra.mxu0 %v1129
    %1200 = vmatpush.bf16.msra.mxu0 %v1125
    %1201 = vmatpush.bf16.msra.mxu0 %v1121
    %1202 = vmatpush.bf16.msra.mxu0 %v1117
    %1203 = vmatpush.bf16.msra.mxu0 %v1113
    %1204 = vmatpush.bf16.msra.mxu0 %v1109
    %1205 = vmatmul.bf16.gmra.mxu0 0
    %v1206 = vpop.f32.mrf.mxu0
    %v1207 = vadd.f32 0.0, %v1206
    %v1208 = vpop.f32.mrf.mxu0
    %1209 = vdwg.mxu0
    %1210 = vmatpush.bf16.msra.mxu0 %v1138
    %1211 = vmatpush.bf16.msra.mxu0 %v1134
    %1212 = vmatpush.bf16.msra.mxu0 %v1130
    %1213 = vmatpush.bf16.msra.mxu0 %v1126
    %1214 = vmatpush.bf16.msra.mxu0 %v1122
    %1215 = vmatpush.bf16.msra.mxu0 %v1118
    %1216 = vmatpush.bf16.msra.mxu0 %v1114
    %1217 = vmatpush.bf16.msra.mxu0 %v1110
    %1218 = vmatmul.bf16.gmra.mxu0 0
    %v1219 = vpop.f32.mrf.mxu0
    %v1220 = vadd.f32 0.0, %v1219
    %v1221 = vpop.f32.mrf.mxu0
    %1222 = vdwg.mxu0
    %v1255 = vunpack.c.l.b16 %v947
    %v1256 = vunpack.c.h.b16 %v947
    %v1257 = vunpack.c.l.b16 %v948
    %v1258 = vunpack.c.h.b16 %v948
    %v1259 = vunpack.c.l.b16 %v949
    %v1260 = vunpack.c.h.b16 %v949
    %v1261 = vunpack.c.l.b16 %v950
    %v1262 = vunpack.c.h.b16 %v950
    %v1263 = vunpack.c.l.b16 %v951
    %v1264 = vunpack.c.h.b16 %v951
    %v1265 = vunpack.c.l.b16 %v952
    %v1266 = vunpack.c.h.b16 %v952
    %v1267 = vunpack.c.l.b16 %v953
    %v1268 = vunpack.c.h.b16 %v953
    %v1269 = vunpack.c.l.b16 %v954
    %v1270 = vunpack.c.h.b16 %v954
    %v1271 = vunpack.c.l.b16 %v955
    %v1272 = vunpack.c.h.b16 %v955
    %v1273 = vunpack.c.l.b16 %v956
    %v1274 = vunpack.c.h.b16 %v956
    %v1275 = vunpack.c.l.b16 %v957
    %v1276 = vunpack.c.h.b16 %v957
    %v1277 = vunpack.c.l.b16 %v958
    %v1278 = vunpack.c.h.b16 %v958
    %v1279 = vunpack.c.l.b16 %v959
    %v1280 = vunpack.c.h.b16 %v959
    %v1281 = vunpack.c.l.b16 %v960
    %v1282 = vunpack.c.h.b16 %v960
    %v1283 = vunpack.c.l.b16 %v961
    %v1284 = vunpack.c.h.b16 %v961
    %v1285 = vunpack.c.l.b16 %v962
    %v1286 = vunpack.c.h.b16 %v962
    %v1287 = vunpack.c.l.b16 %v963
    %v1288 = vunpack.c.h.b16 %v963
    %v1289 = vunpack.c.l.b16 %v964
    %v1290 = vunpack.c.h.b16 %v964
    %v1291 = vunpack.c.l.b16 %v965
    %v1292 = vunpack.c.h.b16 %v965
    %v1293 = vunpack.c.l.b16 %v966
    %v1294 = vunpack.c.h.b16 %v966
    %v1295 = vunpack.c.l.b16 %v967
    %v1296 = vunpack.c.h.b16 %v967
    %v1297 = vunpack.c.l.b16 %v968
    %v1298 = vunpack.c.h.b16 %v968
    %v1299 = vunpack.c.l.b16 %v969
    %v1300 = vunpack.c.h.b16 %v969
    %v1301 = vunpack.c.l.b16 %v970
    %v1302 = vunpack.c.h.b16 %v970
    %v1303 = vunpack.c.l.b16 %v971
    %v1304 = vunpack.c.h.b16 %v971
    %v1305 = vunpack.c.l.b16 %v972
    %v1306 = vunpack.c.h.b16 %v972
    %v1307 = vunpack.c.l.b16 %v973
    %v1308 = vunpack.c.h.b16 %v973
    %v1309 = vunpack.c.l.b16 %v974
    %v1310 = vunpack.c.h.b16 %v974
    %v1311 = vunpack.c.l.b16 %v975
    %v1312 = vunpack.c.h.b16 %v975
    %v1313 = vunpack.c.l.b16 %v976
    %v1314 = vunpack.c.h.b16 %v976
    %v1315 = vunpack.c.l.b16 %v977
    %v1316 = vunpack.c.h.b16 %v977
    %v1317 = vunpack.c.l.b16 %v978
    %v1318 = vunpack.c.h.b16 %v978
    %v1319 = vpack.c.b16 %v1259, %v1255
    %v1320 = vpack.c.b16 %v1260, %v1256
    %v1321 = vpack.c.b16 %v1261, %v1257
    %v1322 = vpack.c.b16 %v1262, %v1258
    %v1323 = vpack.c.b16 %v1267, %v1263
    %v1324 = vpack.c.b16 %v1268, %v1264
    %v1325 = vpack.c.b16 %v1269, %v1265
    %v1326 = vpack.c.b16 %v1270, %v1266
    %v1327 = vpack.c.b16 %v1275, %v1271
    %v1328 = vpack.c.b16 %v1276, %v1272
    %v1329 = vpack.c.b16 %v1277, %v1273
    %v1330 = vpack.c.b16 %v1278, %v1274
    %v1331 = vpack.c.b16 %v1283, %v1279
    %v1332 = vpack.c.b16 %v1284, %v1280
    %v1333 = vpack.c.b16 %v1285, %v1281
    %v1334 = vpack.c.b16 %v1286, %v1282
    %v1335 = vpack.c.b16 %v1291, %v1287
    %v1336 = vpack.c.b16 %v1292, %v1288
    %v1337 = vpack.c.b16 %v1293, %v1289
    %v1338 = vpack.c.b16 %v1294, %v1290
    %v1339 = vpack.c.b16 %v1299, %v1295
    %v1340 = vpack.c.b16 %v1300, %v1296
    %v1341 = vpack.c.b16 %v1301, %v1297
    %v1342 = vpack.c.b16 %v1302, %v1298
    %v1343 = vpack.c.b16 %v1307, %v1303
    %v1344 = vpack.c.b16 %v1308, %v1304
    %v1345 = vpack.c.b16 %v1309, %v1305
    %v1346 = vpack.c.b16 %v1310, %v1306
    %v1347 = vpack.c.b16 %v1315, %v1311
    %v1348 = vpack.c.b16 %v1316, %v1312
    %v1349 = vpack.c.b16 %v1317, %v1313
    %v1350 = vpack.c.b16 %v1318, %v1314
    %1383 = vmatpush.bf16.msra.mxu0 %v1347
    %1384 = vmatpush.bf16.msra.mxu0 %v1343
    %1385 = vmatpush.bf16.msra.mxu0 %v1339
    %1386 = vmatpush.bf16.msra.mxu0 %v1335
    %1387 = vmatpush.bf16.msra.mxu0 %v1331
    %1388 = vmatpush.bf16.msra.mxu0 %v1327
    %1389 = vmatpush.bf16.msra.mxu0 %v1323
    %1390 = vmatpush.bf16.msra.mxu0 %v1319
    %1391 = vmatmul.bf16.gmra.mxu0 %v946
    %v1392 = vpop.f32.mrf.mxu0
    %v1393 = vadd.f32 %v1181, %v1392
    %v1394 = vpop.f32.mrf.mxu0
    %1395 = vdwg.mxu0
    %1396 = vmatpush.bf16.msra.mxu0 %v1348
    %1397 = vmatpush.bf16.msra.mxu0 %v1344
    %1398 = vmatpush.bf16.msra.mxu0 %v1340
    %1399 = vmatpush.bf16.msra.mxu0 %v1336
    %1400 = vmatpush.bf16.msra.mxu0 %v1332
    %1401 = vmatpush.bf16.msra.mxu0 %v1328
    %1402 = vmatpush.bf16.msra.mxu0 %v1324
    %1403 = vmatpush.bf16.msra.mxu0 %v1320
    %1404 = vmatmul.bf16.gmra.mxu0 %v946
    %v1405 = vpop.f32.mrf.mxu0
    %v1406 = vadd.f32 %v1194, %v1405
    %v1407 = vpop.f32.mrf.mxu0
    %1408 = vdwg.mxu0
    %1409 = vmatpush.bf16.msra.mxu0 %v1349
    %1410 = vmatpush.bf16.msra.mxu0 %v1345
    %1411 = vmatpush.bf16.msra.mxu0 %v1341
    %1412 = vmatpush.bf16.msra.mxu0 %v1337
    %1413 = vmatpush.bf16.msra.mxu0 %v1333
    %1414 = vmatpush.bf16.msra.mxu0 %v1329
    %1415 = vmatpush.bf16.msra.mxu0 %v1325
    %1416 = vmatpush.bf16.msra.mxu0 %v1321
    %1417 = vmatmul.bf16.gmra.mxu0 %v946
    %v1418 = vpop.f32.mrf.mxu0
    %v1419 = vadd.f32 %v1207, %v1418
    %v1420 = vpop.f32.mrf.mxu0
    %1421 = vdwg.mxu0
    %1422 = vmatpush.bf16.msra.mxu0 %v1350
    %1423 = vmatpush.bf16.msra.mxu0 %v1346
    %1424 = vmatpush.bf16.msra.mxu0 %v1342
    %1425 = vmatpush.bf16.msra.mxu0 %v1338
    %1426 = vmatpush.bf16.msra.mxu0 %v1334
    %1427 = vmatpush.bf16.msra.mxu0 %v1330
    %1428 = vmatpush.bf16.msra.mxu0 %v1326
    %1429 = vmatpush.bf16.msra.mxu0 %v1322
    %1430 = vmatmul.bf16.gmra.mxu0 %v946
    %v1431 = vpop.f32.mrf.mxu0
    %v1432 = vadd.f32 %v1220, %v1431
    %v1433 = vpop.f32.mrf.mxu0
    %1434 = vdwg.mxu0
    %v1435 = vld [vmem:[%s7] sm:$0xf]
    %v1437 = vperm.slane %v1435, 0
    %v1438 = vperm.slane %v1435, 1
    %v1439 = vperm.slane %v1435, 2
    %v1440 = vperm.slane %v1435, 3
    %v1445 = vadd.f32 %v1393, %v1437
    %v1446 = vadd.f32 %v1406, %v1438
    %v1447 = vadd.f32 %v1419, %v1439
    %v1448 = vadd.f32 %v1432, %v1440
    %v1449 = vxor.u32 %v1445, 2147483648
    %v1450 = vmul.f32 %v1449, 1.442695
    %v1451 = vpow.pop %v1450
    %v1452 = vadd.f32 %v1451, 1.0
    %v1453 = vrcp.pop %v1452
    %v1454 = vmul.f32 %v1452, %v1453
    %v1455 = vsub.f32 1.0, %v1454
    %v1456 = vmul.f32 %v1453, %v1455
    %v1457 = vadd.f32 %v1453, %v1456
    %vm1458 = vweird.f32 %v1452
    %vm1459 = vweird.f32 %v1453
    %vm1460 = vmor %vm1458, %vm1459
    %v1461 = vsel %vm1460, %v1453, %v1457
    %v1462 = vand.u32 2147483647, %v1452
    %vm1463 = vcmp.eq.f32.partialorder %v1462, 8.507059e+37
    %v1464 = vand.u32 %v1452, 2147483648
    %v1465 = vor.u32 1.1754944e-38, %v1464
    %v1466 = vsel %vm1463, %v1465, %v1461
    %v1467 = vmul.f32 1.0, %v1466
    %v1468 = vxor.u32 %v1446, 2147483648
    %v1469 = vmul.f32 %v1468, 1.442695
    %v1470 = vpow.pop %v1469
    %v1471 = vadd.f32 %v1470, 1.0
    %v1472 = vrcp.pop %v1471
    %v1473 = vmul.f32 %v1471, %v1472
    %v1474 = vsub.f32 1.0, %v1473
    %v1475 = vmul.f32 %v1472, %v1474
    %v1476 = vadd.f32 %v1472, %v1475
    %vm1477 = vweird.f32 %v1471
    %vm1478 = vweird.f32 %v1472
    %vm1479 = vmor %vm1477, %vm1478
    %v1480 = vsel %vm1479, %v1472, %v1476
    %v1481 = vand.u32 2147483647, %v1471
    %vm1482 = vcmp.eq.f32.partialorder %v1481, 8.507059e+37
    %v1483 = vand.u32 %v1471, 2147483648
    %v1484 = vor.u32 1.1754944e-38, %v1483
    %v1485 = vsel %vm1482, %v1484, %v1480
    %v1486 = vmul.f32 1.0, %v1485
    %v1487 = vtanh.pop %v1447
    %v1488 = vxor.u32 %v1448, 2147483648
    %v1489 = vmul.f32 %v1488, 1.442695
    %v1490 = vpow.pop %v1489
    %v1491 = vadd.f32 %v1490, 1.0
    %v1492 = vrcp.pop %v1491
    %v1493 = vmul.f32 %v1491, %v1492
    %v1494 = vsub.f32 1.0, %v1493
    %v1495 = vmul.f32 %v1492, %v1494
    %v1496 = vadd.f32 %v1492, %v1495
    %vm1497 = vweird.f32 %v1491
    %vm1498 = vweird.f32 %v1492
    %vm1499 = vmor %vm1497, %vm1498
    %v1500 = vsel %vm1499, %v1492, %v1496
    %v1501 = vand.u32 2147483647, %v1491
    %vm1502 = vcmp.eq.f32.partialorder %v1501, 8.507059e+37
    %v1503 = vand.u32 %v1491, 2147483648
    %v1504 = vor.u32 1.1754944e-38, %v1503
    %v1505 = vsel %vm1502, %v1504, %v1500
    %v1506 = vmul.f32 1.0, %v1505
    %v1507 = vmul.f32 %v1486, 0.0
    %v1508 = vmul.f32 %v1467, %v1487
    %v1509 = vadd.f32 %v1507, %v1508
    %v1510 = vtanh.pop %v1509
    %v1511 = vmul.f32 %v1506, %v1510
    %v1512 = vpack.c.bf16 %v1511, %v1511
    %1513 = vmatpush.bf16.msra.mxu0 %v1135
    %1514 = vmatpush.bf16.msra.mxu0 %v1131
    %1515 = vmatpush.bf16.msra.mxu0 %v1127
    %1516 = vmatpush.bf16.msra.mxu0 %v1123
    %1517 = vmatpush.bf16.msra.mxu0 %v1119
    %1518 = vmatpush.bf16.msra.mxu0 %v1115
    %1519 = vmatpush.bf16.msra.mxu0 %v1111
    %1520 = vmatpush.bf16.msra.mxu0 %v1107
    %1521 = vmatmul.bf16.gmra.mxu0 %v1512
    %v1522 = vpop.f32.mrf.mxu0
    %v1523 = vadd.f32 0.0, %v1522
    %v1524 = vpop.f32.mrf.mxu0
    %1525 = vdwg.mxu0
    %1526 = vmatpush.bf16.msra.mxu0 %v1136
    %1527 = vmatpush.bf16.msra.mxu0 %v1132
    %1528 = vmatpush.bf16.msra.mxu0 %v1128
    %1529 = vmatpush.bf16.msra.mxu0 %v1124
    %1530 = vmatpush.bf16.msra.mxu0 %v1120
    %1531 = vmatpush.bf16.msra.mxu0 %v1116
    %1532 = vmatpush.bf16.msra.mxu0 %v1112
    %1533 = vmatpush.bf16.msra.mxu0 %v1108
    %1534 = vmatmul.bf16.gmra.mxu0 %v1512
    %v1535 = vpop.f32.mrf.mxu0
    %v1536 = vadd.f32 0.0, %v1535
    %v1537 = vpop.f32.mrf.mxu0
    %1538 = vdwg.mxu0
    %1539 = vmatpush.bf16.msra.mxu0 %v1137
    %1540 = vmatpush.bf16.msra.mxu0 %v1133
    %1541 = vmatpush.bf16.msra.mxu0 %v1129
    %1542 = vmatpush.bf16.msra.mxu0 %v1125
    %1543 = vmatpush.bf16.msra.mxu0 %v1121
    %1544 = vmatpush.bf16.msra.mxu0 %v1117
    %1545 = vmatpush.bf16.msra.mxu0 %v1113
    %1546 = vmatpush.bf16.msra.mxu0 %v1109
    %1547 = vmatmul.bf16.gmra.mxu0 %v1512
    %v1548 = vpop.f32.mrf.mxu0
    %v1549 = vadd.f32 0.0, %v1548
    %v1550 = vpop.f32.mrf.mxu0
    %1551 = vdwg.mxu0
    %1552 = vmatpush.bf16.msra.mxu0 %v1138
    %1553 = vmatpush.bf16.msra.mxu0 %v1134
    %1554 = vmatpush.bf16.msra.mxu0 %v1130
    %1555 = vmatpush.bf16.msra.mxu0 %v1126
    %1556 = vmatpush.bf16.msra.mxu0 %v1122
    %1557 = vmatpush.bf16.msra.mxu0 %v1118
    %1558 = vmatpush.bf16.msra.mxu0 %v1114
    %1559 = vmatpush.bf16.msra.mxu0 %v1110
    %1560 = vmatmul.bf16.gmra.mxu0 %v1512
    %v1561 = vpop.f32.mrf.mxu0
    %v1562 = vadd.f32 0.0, %v1561
    %v1563 = vpop.f32.mrf.mxu0
    %1564 = vdwg.mxu0
    %v1566 = vrot.slane %v946, 1
    %1568 = vmatpush.bf16.msra.mxu0 %v1347
    %1569 = vmatpush.bf16.msra.mxu0 %v1343
    %1570 = vmatpush.bf16.msra.mxu0 %v1339
    %1571 = vmatpush.bf16.msra.mxu0 %v1335
    %1572 = vmatpush.bf16.msra.mxu0 %v1331
    %1573 = vmatpush.bf16.msra.mxu0 %v1327
    %1574 = vmatpush.bf16.msra.mxu0 %v1323
    %1575 = vmatpush.bf16.msra.mxu0 %v1319
    %1576 = vmatmul.bf16.gmra.mxu0 %v1566
    %v1577 = vpop.f32.mrf.mxu0
    %v1578 = vadd.f32 %v1523, %v1577
    %v1579 = vpop.f32.mrf.mxu0
    %1580 = vdwg.mxu0
    %1581 = vmatpush.bf16.msra.mxu0 %v1348
    %1582 = vmatpush.bf16.msra.mxu0 %v1344
    %1583 = vmatpush.bf16.msra.mxu0 %v1340
    %1584 = vmatpush.bf16.msra.mxu0 %v1336
    %1585 = vmatpush.bf16.msra.mxu0 %v1332
    %1586 = vmatpush.bf16.msra.mxu0 %v1328
    %1587 = vmatpush.bf16.msra.mxu0 %v1324
    %1588 = vmatpush.bf16.msra.mxu0 %v1320
    %1589 = vmatmul.bf16.gmra.mxu0 %v1566
    %v1590 = vpop.f32.mrf.mxu0
    %v1591 = vadd.f32 %v1536, %v1590
    %v1592 = vpop.f32.mrf.mxu0
    %1593 = vdwg.mxu0
    %1594 = vmatpush.bf16.msra.mxu0 %v1349
    %1595 = vmatpush.bf16.msra.mxu0 %v1345
    %1596 = vmatpush.bf16.msra.mxu0 %v1341
    %1597 = vmatpush.bf16.msra.mxu0 %v1337
    %1598 = vmatpush.bf16.msra.mxu0 %v1333
    %1599 = vmatpush.bf16.msra.mxu0 %v1329
    %1600 = vmatpush.bf16.msra.mxu0 %v1325
    %1601 = vmatpush.bf16.msra.mxu0 %v1321
    %1602 = vmatmul.bf16.gmra.mxu0 %v1566
    %v1603 = vpop.f32.mrf.mxu0
    %v1604 = vadd.f32 %v1549, %v1603
    %v1605 = vpop.f32.mrf.mxu0
    %1606 = vdwg.mxu0
    %1607 = vmatpush.bf16.msra.mxu0 %v1350
    %1608 = vmatpush.bf16.msra.mxu0 %v1346
    %1609 = vmatpush.bf16.msra.mxu0 %v1342
    %1610 = vmatpush.bf16.msra.mxu0 %v1338
    %1611 = vmatpush.bf16.msra.mxu0 %v1334
    %1612 = vmatpush.bf16.msra.mxu0 %v1330
    %1613 = vmatpush.bf16.msra.mxu0 %v1326
    %1614 = vmatpush.bf16.msra.mxu0 %v1322
    %1615 = vmatmul.bf16.gmra.mxu0 %v1566
    %v1616 = vpop.f32.mrf.mxu0
    %v1617 = vadd.f32 %v1562, %v1616
    %v1618 = vpop.f32.mrf.mxu0
    %1619 = vdwg.mxu0
    %v1620 = vadd.f32 %v1578, %v1437
    %v1621 = vadd.f32 %v1591, %v1438
    %v1622 = vadd.f32 %v1604, %v1439
    %v1623 = vadd.f32 %v1617, %v1440
    %v1624 = vxor.u32 %v1620, 2147483648
    %v1625 = vmul.f32 %v1624, 1.442695
    %v1626 = vpow.pop %v1625
    %v1627 = vadd.f32 %v1626, 1.0
    %v1628 = vrcp.pop %v1627
    %v1629 = vmul.f32 %v1627, %v1628
    %v1630 = vsub.f32 1.0, %v1629
    %v1631 = vmul.f32 %v1628, %v1630
    %v1632 = vadd.f32 %v1628, %v1631
    %vm1633 = vweird.f32 %v1627
    %vm1634 = vweird.f32 %v1628
    %vm1635 = vmor %vm1633, %vm1634
    %v1636 = vsel %vm1635, %v1628, %v1632
    %v1637 = vand.u32 2147483647, %v1627
    %vm1638 = vcmp.eq.f32.partialorder %v1637, 8.507059e+37
    %v1639 = vand.u32 %v1627, 2147483648
    %v1640 = vor.u32 1.1754944e-38, %v1639
    %v1641 = vsel %vm1638, %v1640, %v1636
    %v1642 = vmul.f32 1.0, %v1641
    %v1643 = vxor.u32 %v1621, 2147483648
    %v1644 = vmul.f32 %v1643, 1.442695
    %v1645 = vpow.pop %v1644
    %v1646 = vadd.f32 %v1645, 1.0
    %v1647 = vrcp.pop %v1646
    %v1648 = vmul.f32 %v1646, %v1647
    %v1649 = vsub.f32 1.0, %v1648
    %v1650 = vmul.f32 %v1647, %v1649
    %v1651 = vadd.f32 %v1647, %v1650
    %vm1652 = vweird.f32 %v1646
    %vm1653 = vweird.f32 %v1647
    %vm1654 = vmor %vm1652, %vm1653
    %v1655 = vsel %vm1654, %v1647, %v1651
    %v1656 = vand.u32 2147483647, %v1646
    %vm1657 = vcmp.eq.f32.partialorder %v1656, 8.507059e+37
    %v1658 = vand.u32 %v1646, 2147483648
    %v1659 = vor.u32 1.1754944e-38, %v1658
    %v1660 = vsel %vm1657, %v1659, %v1655
    %v1661 = vmul.f32 1.0, %v1660
    %v1662 = vtanh.pop %v1622
    %v1663 = vxor.u32 %v1623, 2147483648
    %v1664 = vmul.f32 %v1663, 1.442695
    %v1665 = vpow.pop %v1664
    %v1666 = vadd.f32 %v1665, 1.0
    %v1667 = vrcp.pop %v1666
    %v1668 = vmul.f32 %v1666, %v1667
    %v1669 = vsub.f32 1.0, %v1668
    %v1670 = vmul.f32 %v1667, %v1669
    %v1671 = vadd.f32 %v1667, %v1670
    %vm1672 = vweird.f32 %v1666
    %vm1673 = vweird.f32 %v1667
    %vm1674 = vmor %vm1672, %vm1673
    %v1675 = vsel %vm1674, %v1667, %v1671
    %v1676 = vand.u32 2147483647, %v1666
    %vm1677 = vcmp.eq.f32.partialorder %v1676, 8.507059e+37
    %v1678 = vand.u32 %v1666, 2147483648
    %v1679 = vor.u32 1.1754944e-38, %v1678
    %v1680 = vsel %vm1677, %v1679, %v1675
    %v1681 = vmul.f32 1.0, %v1680
    %v1682 = vmul.f32 %v1661, %v1509
    %v1683 = vmul.f32 %v1642, %v1662
    %v1684 = vadd.f32 %v1682, %v1683
    %v1685 = vtanh.pop %v1684
    %v1686 = vmul.f32 %v1681, %v1685
    %v1687 = vpack.c.bf16 %v1686, %v1686
    %1688 = vmatpush.bf16.msra.mxu0 %v1135
    %1689 = vmatpush.bf16.msra.mxu0 %v1131
    %1690 = vmatpush.bf16.msra.mxu0 %v1127
    %1691 = vmatpush.bf16.msra.mxu0 %v1123
    %1692 = vmatpush.bf16.msra.mxu0 %v1119
    %1693 = vmatpush.bf16.msra.mxu0 %v1115
    %1694 = vmatpush.bf16.msra.mxu0 %v1111
    %1695 = vmatpush.bf16.msra.mxu0 %v1107
    %1696 = vmatmul.bf16.gmra.mxu0 %v1687
    %v1697 = vpop.f32.mrf.mxu0
    %v1698 = vadd.f32 0.0, %v1697
    %v1699 = vpop.f32.mrf.mxu0
    %1700 = vdwg.mxu0
    %1701 = vmatpush.bf16.msra.mxu0 %v1136
    %1702 = vmatpush.bf16.msra.mxu0 %v1132
    %1703 = vmatpush.bf16.msra.mxu0 %v1128
    %1704 = vmatpush.bf16.msra.mxu0 %v1124
    %1705 = vmatpush.bf16.msra.mxu0 %v1120
    %1706 = vmatpush.bf16.msra.mxu0 %v1116
    %1707 = vmatpush.bf16.msra.mxu0 %v1112
    %1708 = vmatpush.bf16.msra.mxu0 %v1108
    %1709 = vmatmul.bf16.gmra.mxu0 %v1687
    %v1710 = vpop.f32.mrf.mxu0
    %v1711 = vadd.f32 0.0, %v1710
    %v1712 = vpop.f32.mrf.mxu0
    %1713 = vdwg.mxu0
    %1714 = vmatpush.bf16.msra.mxu0 %v1137
    %1715 = vmatpush.bf16.msra.mxu0 %v1133
    %1716 = vmatpush.bf16.msra.mxu0 %v1129
    %1717 = vmatpush.bf16.msra.mxu0 %v1125
    %1718 = vmatpush.bf16.msra.mxu0 %v1121
    %1719 = vmatpush.bf16.msra.mxu0 %v1117
    %1720 = vmatpush.bf16.msra.mxu0 %v1113
    %1721 = vmatpush.bf16.msra.mxu0 %v1109
    %1722 = vmatmul.bf16.gmra.mxu0 %v1687
    %v1723 = vpop.f32.mrf.mxu0
    %v1724 = vadd.f32 0.0, %v1723
    %v1725 = vpop.f32.mrf.mxu0
    %1726 = vdwg.mxu0
    %1727 = vmatpush.bf16.msra.mxu0 %v1138
    %1728 = vmatpush.bf16.msra.mxu0 %v1134
    %1729 = vmatpush.bf16.msra.mxu0 %v1130
    %1730 = vmatpush.bf16.msra.mxu0 %v1126
    %1731 = vmatpush.bf16.msra.mxu0 %v1122
    %1732 = vmatpush.bf16.msra.mxu0 %v1118
    %1733 = vmatpush.bf16.msra.mxu0 %v1114
    %1734 = vmatpush.bf16.msra.mxu0 %v1110
    %1735 = vmatmul.bf16.gmra.mxu0 %v1687
    %v1736 = vpop.f32.mrf.mxu0
    %v1737 = vadd.f32 0.0, %v1736
    %v1738 = vpop.f32.mrf.mxu0
    %1739 = vdwg.mxu0
    %v1740 = vrot.slane %v946, 2
    %1742 = vmatpush.bf16.msra.mxu0 %v1347
    %1743 = vmatpush.bf16.msra.mxu0 %v1343
    %1744 = vmatpush.bf16.msra.mxu0 %v1339
    %1745 = vmatpush.bf16.msra.mxu0 %v1335
    %1746 = vmatpush.bf16.msra.mxu0 %v1331
    %1747 = vmatpush.bf16.msra.mxu0 %v1327
    %1748 = vmatpush.bf16.msra.mxu0 %v1323
    %1749 = vmatpush.bf16.msra.mxu0 %v1319
    %1750 = vmatmul.bf16.gmra.mxu0 %v1740
    %v1751 = vpop.f32.mrf.mxu0
    %v1752 = vadd.f32 %v1698, %v1751
    %v1753 = vpop.f32.mrf.mxu0
    %1754 = vdwg.mxu0
    %1755 = vmatpush.bf16.msra.mxu0 %v1348
    %1756 = vmatpush.bf16.msra.mxu0 %v1344
    %1757 = vmatpush.bf16.msra.mxu0 %v1340
    %1758 = vmatpush.bf16.msra.mxu0 %v1336
    %1759 = vmatpush.bf16.msra.mxu0 %v1332
    %1760 = vmatpush.bf16.msra.mxu0 %v1328
    %1761 = vmatpush.bf16.msra.mxu0 %v1324
    %1762 = vmatpush.bf16.msra.mxu0 %v1320
    %1763 = vmatmul.bf16.gmra.mxu0 %v1740
    %v1764 = vpop.f32.mrf.mxu0
    %v1765 = vadd.f32 %v1711, %v1764
    %v1766 = vpop.f32.mrf.mxu0
    %1767 = vdwg.mxu0
    %1768 = vmatpush.bf16.msra.mxu0 %v1349
    %1769 = vmatpush.bf16.msra.mxu0 %v1345
    %1770 = vmatpush.bf16.msra.mxu0 %v1341
    %1771 = vmatpush.bf16.msra.mxu0 %v1337
    %1772 = vmatpush.bf16.msra.mxu0 %v1333
    %1773 = vmatpush.bf16.msra.mxu0 %v1329
    %1774 = vmatpush.bf16.msra.mxu0 %v1325
    %1775 = vmatpush.bf16.msra.mxu0 %v1321
    %1776 = vmatmul.bf16.gmra.mxu0 %v1740
    %v1777 = vpop.f32.mrf.mxu0
    %v1778 = vadd.f32 %v1724, %v1777
    %v1779 = vpop.f32.mrf.mxu0
    %1780 = vdwg.mxu0
    %1781 = vmatpush.bf16.msra.mxu0 %v1350
    %1782 = vmatpush.bf16.msra.mxu0 %v1346
    %1783 = vmatpush.bf16.msra.mxu0 %v1342
    %1784 = vmatpush.bf16.msra.mxu0 %v1338
    %1785 = vmatpush.bf16.msra.mxu0 %v1334
    %1786 = vmatpush.bf16.msra.mxu0 %v1330
    %1787 = vmatpush.bf16.msra.mxu0 %v1326
    %1788 = vmatpush.bf16.msra.mxu0 %v1322
    %1789 = vmatmul.bf16.gmra.mxu0 %v1740
    %v1790 = vpop.f32.mrf.mxu0
    %v1791 = vadd.f32 %v1737, %v1790
    %v1792 = vpop.f32.mrf.mxu0
    %1793 = vdwg.mxu0
    %v1794 = vadd.f32 %v1752, %v1437
    %v1795 = vadd.f32 %v1765, %v1438
    %v1796 = vadd.f32 %v1778, %v1439
    %v1797 = vadd.f32 %v1791, %v1440
    %v1798 = vxor.u32 %v1794, 2147483648
    %v1799 = vmul.f32 %v1798, 1.442695
    %v1800 = vpow.pop %v1799
    %v1801 = vadd.f32 %v1800, 1.0
    %v1802 = vrcp.pop %v1801
    %v1803 = vmul.f32 %v1801, %v1802
    %v1804 = vsub.f32 1.0, %v1803
    %v1805 = vmul.f32 %v1802, %v1804
    %v1806 = vadd.f32 %v1802, %v1805
    %vm1807 = vweird.f32 %v1801
    %vm1808 = vweird.f32 %v1802
    %vm1809 = vmor %vm1807, %vm1808
    %v1810 = vsel %vm1809, %v1802, %v1806
    %v1811 = vand.u32 2147483647, %v1801
    %vm1812 = vcmp.eq.f32.partialorder %v1811, 8.507059e+37
    %v1813 = vand.u32 %v1801, 2147483648
    %v1814 = vor.u32 1.1754944e-38, %v1813
    %v1815 = vsel %vm1812, %v1814, %v1810
    %v1816 = vmul.f32 1.0, %v1815
    %v1817 = vxor.u32 %v1795, 2147483648
    %v1818 = vmul.f32 %v1817, 1.442695
    %v1819 = vpow.pop %v1818
    %v1820 = vadd.f32 %v1819, 1.0
    %v1821 = vrcp.pop %v1820
    %v1822 = vmul.f32 %v1820, %v1821
    %v1823 = vsub.f32 1.0, %v1822
    %v1824 = vmul.f32 %v1821, %v1823
    %v1825 = vadd.f32 %v1821, %v1824
    %vm1826 = vweird.f32 %v1820
    %vm1827 = vweird.f32 %v1821
    %vm1828 = vmor %vm1826, %vm1827
    %v1829 = vsel %vm1828, %v1821, %v1825
    %v1830 = vand.u32 2147483647, %v1820
    %vm1831 = vcmp.eq.f32.partialorder %v1830, 8.507059e+37
    %v1832 = vand.u32 %v1820, 2147483648
    %v1833 = vor.u32 1.1754944e-38, %v1832
    %v1834 = vsel %vm1831, %v1833, %v1829
    %v1835 = vmul.f32 1.0, %v1834
    %v1836 = vtanh.pop %v1796
    %v1837 = vxor.u32 %v1797, 2147483648
    %v1838 = vmul.f32 %v1837, 1.442695
    %v1839 = vpow.pop %v1838
    %v1840 = vadd.f32 %v1839, 1.0
    %v1841 = vrcp.pop %v1840
    %v1842 = vmul.f32 %v1840, %v1841
    %v1843 = vsub.f32 1.0, %v1842
    %v1844 = vmul.f32 %v1841, %v1843
    %v1845 = vadd.f32 %v1841, %v1844
    %vm1846 = vweird.f32 %v1840
    %vm1847 = vweird.f32 %v1841
    %vm1848 = vmor %vm1846, %vm1847
    %v1849 = vsel %vm1848, %v1841, %v1845
    %v1850 = vand.u32 2147483647, %v1840
    %vm1851 = vcmp.eq.f32.partialorder %v1850, 8.507059e+37
    %v1852 = vand.u32 %v1840, 2147483648
    %v1853 = vor.u32 1.1754944e-38, %v1852
    %v1854 = vsel %vm1851, %v1853, %v1849
    %v1855 = vmul.f32 1.0, %v1854
    %v1856 = vmul.f32 %v1835, %v1684
    %v1857 = vmul.f32 %v1816, %v1836
    %v1858 = vadd.f32 %v1856, %v1857
    %v1859 = vtanh.pop %v1858
    %v1860 = vmul.f32 %v1855, %v1859
    %v1861 = vpack.c.bf16 %v1860, %v1860
    %1862 = vmatpush.bf16.msra.mxu0 %v1135
    %1863 = vmatpush.bf16.msra.mxu0 %v1131
    %1864 = vmatpush.bf16.msra.mxu0 %v1127
    %1865 = vmatpush.bf16.msra.mxu0 %v1123
    %1866 = vmatpush.bf16.msra.mxu0 %v1119
    %1867 = vmatpush.bf16.msra.mxu0 %v1115
    %1868 = vmatpush.bf16.msra.mxu0 %v1111
    %1869 = vmatpush.bf16.msra.mxu0 %v1107
    %1870 = vmatmul.bf16.gmra.mxu0 %v1861
    %v1871 = vpop.f32.mrf.mxu0
    %v1872 = vadd.f32 0.0, %v1871
    %v1873 = vpop.f32.mrf.mxu0
    %1874 = vdwg.mxu0
    %1875 = vmatpush.bf16.msra.mxu0 %v1136
    %1876 = vmatpush.bf16.msra.mxu0 %v1132
    %1877 = vmatpush.bf16.msra.mxu0 %v1128
    %1878 = vmatpush.bf16.msra.mxu0 %v1124
    %1879 = vmatpush.bf16.msra.mxu0 %v1120
    %1880 = vmatpush.bf16.msra.mxu0 %v1116
    %1881 = vmatpush.bf16.msra.mxu0 %v1112
    %1882 = vmatpush.bf16.msra.mxu0 %v1108
    %1883 = vmatmul.bf16.gmra.mxu0 %v1861
    %v1884 = vpop.f32.mrf.mxu0
    %v1885 = vadd.f32 0.0, %v1884
    %v1886 = vpop.f32.mrf.mxu0
    %1887 = vdwg.mxu0
    %1888 = vmatpush.bf16.msra.mxu0 %v1137
    %1889 = vmatpush.bf16.msra.mxu0 %v1133
    %1890 = vmatpush.bf16.msra.mxu0 %v1129
    %1891 = vmatpush.bf16.msra.mxu0 %v1125
    %1892 = vmatpush.bf16.msra.mxu0 %v1121
    %1893 = vmatpush.bf16.msra.mxu0 %v1117
    %1894 = vmatpush.bf16.msra.mxu0 %v1113
    %1895 = vmatpush.bf16.msra.mxu0 %v1109
    %1896 = vmatmul.bf16.gmra.mxu0 %v1861
    %v1897 = vpop.f32.mrf.mxu0
    %v1898 = vadd.f32 0.0, %v1897
    %v1899 = vpop.f32.mrf.mxu0
    %1900 = vdwg.mxu0
    %1901 = vmatpush.bf16.msra.mxu0 %v1138
    %1902 = vmatpush.bf16.msra.mxu0 %v1134
    %1903 = vmatpush.bf16.msra.mxu0 %v1130
    %1904 = vmatpush.bf16.msra.mxu0 %v1126
    %1905 = vmatpush.bf16.msra.mxu0 %v1122
    %1906 = vmatpush.bf16.msra.mxu0 %v1118
    %1907 = vmatpush.bf16.msra.mxu0 %v1114
    %1908 = vmatpush.bf16.msra.mxu0 %v1110
    %1909 = vmatmul.bf16.gmra.mxu0 %v1861
    %v1910 = vpop.f32.mrf.mxu0
    %v1911 = vadd.f32 0.0, %v1910
    %v1912 = vpop.f32.mrf.mxu0
    %1913 = vdwg.mxu0
    %v1914 = vrot.slane %v946, 3
    %1916 = vmatpush.bf16.msra.mxu0 %v1347
    %1917 = vmatpush.bf16.msra.mxu0 %v1343
    %1918 = vmatpush.bf16.msra.mxu0 %v1339
    %1919 = vmatpush.bf16.msra.mxu0 %v1335
    %1920 = vmatpush.bf16.msra.mxu0 %v1331
    %1921 = vmatpush.bf16.msra.mxu0 %v1327
    %1922 = vmatpush.bf16.msra.mxu0 %v1323
    %1923 = vmatpush.bf16.msra.mxu0 %v1319
    %1924 = vmatmul.bf16.gmra.mxu0 %v1914
    %v1925 = vpop.f32.mrf.mxu0
    %v1926 = vadd.f32 %v1872, %v1925
    %v1927 = vpop.f32.mrf.mxu0
    %1928 = vdwg.mxu0
    %1929 = vmatpush.bf16.msra.mxu0 %v1348
    %1930 = vmatpush.bf16.msra.mxu0 %v1344
    %1931 = vmatpush.bf16.msra.mxu0 %v1340
    %1932 = vmatpush.bf16.msra.mxu0 %v1336
    %1933 = vmatpush.bf16.msra.mxu0 %v1332
    %1934 = vmatpush.bf16.msra.mxu0 %v1328
    %1935 = vmatpush.bf16.msra.mxu0 %v1324
    %1936 = vmatpush.bf16.msra.mxu0 %v1320
    %1937 = vmatmul.bf16.gmra.mxu0 %v1914
    %v1938 = vpop.f32.mrf.mxu0
    %v1939 = vadd.f32 %v1885, %v1938
    %v1940 = vpop.f32.mrf.mxu0
    %1941 = vdwg.mxu0
    %1942 = vmatpush.bf16.msra.mxu0 %v1349
    %1943 = vmatpush.bf16.msra.mxu0 %v1345
    %1944 = vmatpush.bf16.msra.mxu0 %v1341
    %1945 = vmatpush.bf16.msra.mxu0 %v1337
    %1946 = vmatpush.bf16.msra.mxu0 %v1333
    %1947 = vmatpush.bf16.msra.mxu0 %v1329
    %1948 = vmatpush.bf16.msra.mxu0 %v1325
    %1949 = vmatpush.bf16.msra.mxu0 %v1321
    %1950 = vmatmul.bf16.gmra.mxu0 %v1914
    %v1951 = vpop.f32.mrf.mxu0
    %v1952 = vadd.f32 %v1898, %v1951
    %v1953 = vpop.f32.mrf.mxu0
    %1954 = vdwg.mxu0
    %1955 = vmatpush.bf16.msra.mxu0 %v1350
    %1956 = vmatpush.bf16.msra.mxu0 %v1346
    %1957 = vmatpush.bf16.msra.mxu0 %v1342
    %1958 = vmatpush.bf16.msra.mxu0 %v1338
    %1959 = vmatpush.bf16.msra.mxu0 %v1334
    %1960 = vmatpush.bf16.msra.mxu0 %v1330
    %1961 = vmatpush.bf16.msra.mxu0 %v1326
    %1962 = vmatpush.bf16.msra.mxu0 %v1322
    %1963 = vmatmul.bf16.gmra.mxu0 %v1914
    %v1964 = vpop.f32.mrf.mxu0
    %v1965 = vadd.f32 %v1911, %v1964
    %v1966 = vpop.f32.mrf.mxu0
    %1967 = vdwg.mxu0
    %v1968 = vadd.f32 %v1926, %v1437
    %v1969 = vadd.f32 %v1939, %v1438
    %v1970 = vadd.f32 %v1952, %v1439
    %v1971 = vadd.f32 %v1965, %v1440
    %v1972 = vxor.u32 %v1968, 2147483648
    %v1973 = vmul.f32 %v1972, 1.442695
    %v1974 = vpow.pop %v1973
    %v1975 = vadd.f32 %v1974, 1.0
    %v1976 = vrcp.pop %v1975
    %v1977 = vmul.f32 %v1975, %v1976
    %v1978 = vsub.f32 1.0, %v1977
    %v1979 = vmul.f32 %v1976, %v1978
    %v1980 = vadd.f32 %v1976, %v1979
    %vm1981 = vweird.f32 %v1975
    %vm1982 = vweird.f32 %v1976
    %vm1983 = vmor %vm1981, %vm1982
    %v1984 = vsel %vm1983, %v1976, %v1980
    %v1985 = vand.u32 2147483647, %v1975
    %vm1986 = vcmp.eq.f32.partialorder %v1985, 8.507059e+37
    %v1987 = vand.u32 %v1975, 2147483648
    %v1988 = vor.u32 1.1754944e-38, %v1987
    %v1989 = vsel %vm1986, %v1988, %v1984
    %v1990 = vmul.f32 1.0, %v1989
    %v1991 = vxor.u32 %v1969, 2147483648
    %v1992 = vmul.f32 %v1991, 1.442695
    %v1993 = vpow.pop %v1992
    %v1994 = vadd.f32 %v1993, 1.0
    %v1995 = vrcp.pop %v1994
    %v1996 = vmul.f32 %v1994, %v1995
    %v1997 = vsub.f32 1.0, %v1996
    %v1998 = vmul.f32 %v1995, %v1997
    %v1999 = vadd.f32 %v1995, %v1998
    %vm2000 = vweird.f32 %v1994
    %vm2001 = vweird.f32 %v1995
    %vm2002 = vmor %vm2000, %vm2001
    %v2003 = vsel %vm2002, %v1995, %v1999
    %v2004 = vand.u32 2147483647, %v1994
    %vm2005 = vcmp.eq.f32.partialorder %v2004, 8.507059e+37
    %v2006 = vand.u32 %v1994, 2147483648
    %v2007 = vor.u32 1.1754944e-38, %v2006
    %v2008 = vsel %vm2005, %v2007, %v2003
    %v2009 = vmul.f32 1.0, %v2008
    %v2010 = vtanh.pop %v1970
    %v2011 = vxor.u32 %v1971, 2147483648
    %v2012 = vmul.f32 %v2011, 1.442695
    %v2013 = vpow.pop %v2012
    %v2014 = vadd.f32 %v2013, 1.0
    %v2015 = vrcp.pop %v2014
    %v2016 = vmul.f32 %v2014, %v2015
    %v2017 = vsub.f32 1.0, %v2016
    %v2018 = vmul.f32 %v2015, %v2017
    %v2019 = vadd.f32 %v2015, %v2018
    %vm2020 = vweird.f32 %v2014
    %vm2021 = vweird.f32 %v2015
    %vm2022 = vmor %vm2020, %vm2021
    %v2023 = vsel %vm2022, %v2015, %v2019
    %v2024 = vand.u32 2147483647, %v2014
    %vm2025 = vcmp.eq.f32.partialorder %v2024, 8.507059e+37
    %v2026 = vand.u32 %v2014, 2147483648
    %v2027 = vor.u32 1.1754944e-38, %v2026
    %v2028 = vsel %vm2025, %v2027, %v2023
    %v2029 = vmul.f32 1.0, %v2028
    %v2030 = vmul.f32 %v2009, %v1858
    %v2031 = vmul.f32 %v1990, %v2010
    %v2032 = vadd.f32 %v2030, %v2031
    %v2033 = vtanh.pop %v2032
    %v2034 = vmul.f32 %v2029, %v2033
    %v2035 = vpack.c.bf16 %v2034, %v2034
    %v2036 = vld [vmem:[#allocation14] sm:$0xf]
    %v2037 = vld [vmem:[#allocation14 + $0x4] sm:$0xf]
    %v2038 = vld [vmem:[#allocation14 + $0x8] sm:$0xf]
    %v2039 = vld [vmem:[#allocation14 + $0xc] sm:$0xf]
    %v2040 = vld [vmem:[#allocation14 + $0x10] sm:$0xf]
    %v2041 = vld [vmem:[#allocation14 + $0x14] sm:$0xf]
    %v2042 = vld [vmem:[#allocation14 + $0x18] sm:$0xf]
    %v2043 = vld [vmem:[#allocation14 + $0x1c] sm:$0xf]
    %v2044 = vld [vmem:[#allocation14 + $0x20] sm:$0xf]
    %v2045 = vld [vmem:[#allocation14 + $0x24] sm:$0xf]
    %v2046 = vld [vmem:[#allocation14 + $0x28] sm:$0xf]
    %v2047 = vld [vmem:[#allocation14 + $0x2c] sm:$0xf]
    %v2048 = vld [vmem:[#allocation14 + $0x30] sm:$0xf]
    %v2049 = vld [vmem:[#allocation14 + $0x34] sm:$0xf]
    %v2050 = vld [vmem:[#allocation14 + $0x38] sm:$0xf]
    %v2051 = vld [vmem:[#allocation14 + $0x3c] sm:$0xf]
    %v2052 = vld [vmem:[#allocation16] sm:$0x1]
    %v2054 = vperm.slane %v2052, 0
    %v2072 = vunpack.c.l.b16 %v2036
    %v2073 = vunpack.c.l.b16 %v2037
    %v2074 = vunpack.c.l.b16 %v2038
    %v2075 = vunpack.c.l.b16 %v2039
    %v2076 = vunpack.c.l.b16 %v2040
    %v2077 = vunpack.c.l.b16 %v2041
    %v2078 = vunpack.c.l.b16 %v2042
    %v2079 = vunpack.c.l.b16 %v2043
    %v2080 = vunpack.c.l.b16 %v2044
    %v2081 = vunpack.c.l.b16 %v2045
    %v2082 = vunpack.c.l.b16 %v2046
    %v2083 = vunpack.c.l.b16 %v2047
    %v2084 = vunpack.c.l.b16 %v2048
    %v2085 = vunpack.c.l.b16 %v2049
    %v2086 = vunpack.c.l.b16 %v2050
    %v2087 = vunpack.c.l.b16 %v2051
    %v2088 = vpack.c.b16 %v2073, %v2072
    %v2089 = vpack.c.b16 %v2075, %v2074
    %v2090 = vpack.c.b16 %v2077, %v2076
    %v2091 = vpack.c.b16 %v2079, %v2078
    %v2092 = vpack.c.b16 %v2081, %v2080
    %v2093 = vpack.c.b16 %v2083, %v2082
    %v2094 = vpack.c.b16 %v2085, %v2084
    %v2095 = vpack.c.b16 %v2087, %v2086
    %2104 = vmatpush.bf16.msra.mxu0 %v2095
    %2105 = vmatpush.bf16.msra.mxu0 %v2094
    %2106 = vmatpush.bf16.msra.mxu0 %v2093
    %2107 = vmatpush.bf16.msra.mxu0 %v2092
    %2108 = vmatpush.bf16.msra.mxu0 %v2091
    %2109 = vmatpush.bf16.msra.mxu0 %v2090
    %2110 = vmatpush.bf16.msra.mxu0 %v2089
    %2111 = vmatpush.bf16.msra.mxu0 %v2088
    %2112 = vmatmul.bf16.gmra.mxu0 %v2035
    %v2113 = vpop.f32.mrf.mxu0
    %v2114 = vadd.f32 %v2054, %v2113
    %v2115 = vpop.f32.mrf.mxu0
    %2116 = vdwg.mxu0
    %v2117 = vtanh.pop %v2114
    %v2118 = vpack.c.bf16 %v2117, %v2117
    %v2119 = vld [vmem:[#allocation17] sm:$0xf]
    %v2120 = vld [vmem:[#allocation17 + $0x4] sm:$0xf]
    %v2121 = vld [vmem:[#allocation17 + $0x8] sm:$0xf]
    %v2122 = vld [vmem:[#allocation17 + $0xc] sm:$0xf]
    %v2123 = vld [vmem:[#allocation17 + $0x10] sm:$0xf]
    %v2124 = vld [vmem:[#allocation17 + $0x14] sm:$0xf]
    %v2125 = vld [vmem:[#allocation17 + $0x18] sm:$0xf]
    %v2126 = vld [vmem:[#allocation17 + $0x1c] sm:$0xf]
    %v2127 = vld [vmem:[#allocation17 + $0x20] sm:$0xf]
    %v2128 = vld [vmem:[#allocation17 + $0x24] sm:$0xf]
    %v2129 = vld [vmem:[#allocation17 + $0x28] sm:$0xf]
    %v2130 = vld [vmem:[#allocation17 + $0x2c] sm:$0xf]
    %v2131 = vld [vmem:[#allocation17 + $0x30] sm:$0xf]
    %v2132 = vld [vmem:[#allocation17 + $0x34] sm:$0xf]
    %v2133 = vld [vmem:[#allocation17 + $0x38] sm:$0xf]
    %v2134 = vld [vmem:[#allocation17 + $0x3c] sm:$0xf]
    %v2135 = vld [vmem:[#allocation19] sm:$0x1]
    %v2137 = vperm.slane %v2135, 0
    %v2155 = vunpack.c.l.b16 %v2119
    %v2156 = vunpack.c.l.b16 %v2120
    %v2157 = vunpack.c.l.b16 %v2121
    %v2158 = vunpack.c.l.b16 %v2122
    %v2159 = vunpack.c.l.b16 %v2123
    %v2160 = vunpack.c.l.b16 %v2124
    %v2161 = vunpack.c.l.b16 %v2125
    %v2162 = vunpack.c.l.b16 %v2126
    %v2163 = vunpack.c.l.b16 %v2127
    %v2164 = vunpack.c.l.b16 %v2128
    %v2165 = vunpack.c.l.b16 %v2129
    %v2166 = vunpack.c.l.b16 %v2130
    %v2167 = vunpack.c.l.b16 %v2131
    %v2168 = vunpack.c.l.b16 %v2132
    %v2169 = vunpack.c.l.b16 %v2133
    %v2170 = vunpack.c.l.b16 %v2134
    %v2171 = vpack.c.b16 %v2156, %v2155
    %v2172 = vpack.c.b16 %v2158, %v2157
    %v2173 = vpack.c.b16 %v2160, %v2159
    %v2174 = vpack.c.b16 %v2162, %v2161
    %v2175 = vpack.c.b16 %v2164, %v2163
    %v2176 = vpack.c.b16 %v2166, %v2165
    %v2177 = vpack.c.b16 %v2168, %v2167
    %v2178 = vpack.c.b16 %v2170, %v2169
    %2187 = vmatpush.bf16.msra.mxu0 %v2178
    %2188 = vmatpush.bf16.msra.mxu0 %v2177
    %2189 = vmatpush.bf16.msra.mxu0 %v2176
    %2190 = vmatpush.bf16.msra.mxu0 %v2175
    %2191 = vmatpush.bf16.msra.mxu0 %v2174
    %2192 = vmatpush.bf16.msra.mxu0 %v2173
    %2193 = vmatpush.bf16.msra.mxu0 %v2172
    %2194 = vmatpush.bf16.msra.mxu0 %v2171
    %2195 = vmatmul.bf16.gmra.mxu0 %v2118
    %v2196 = vpop.f32.mrf.mxu0
    %v2197 = vadd.f32 %v2137, %v2196
    %v2198 = vpop.f32.mrf.mxu0
    %2199 = vdwg.mxu0
    %v2201 = vrot.slane %v862, 6
    %v2203 = vadd.f32 %v2197, %v2201
    %v2204 = vmax.f32 %v2203, 0.0
    %v2205 = vpack.c.bf16 %v2204, %v2204
    %v2206 = vld [vmem:[#allocation20] sm:$0xff]
    %v2207 = vld [vmem:[#allocation20 + $0x8] sm:$0xff]
    %v2208 = vld [vmem:[#allocation20 + $0x10] sm:$0xff]
    %v2209 = vld [vmem:[#allocation20 + $0x18] sm:$0xff]
    %v2210 = vld [vmem:[#allocation20 + $0x20] sm:$0xff]
    %v2211 = vld [vmem:[#allocation20 + $0x28] sm:$0xff]
    %v2212 = vld [vmem:[#allocation20 + $0x30] sm:$0xff]
    %v2213 = vld [vmem:[#allocation20 + $0x38] sm:$0xff]
    %v2214 = vld [vmem:[#allocation20 + $0x40] sm:$0xff]
    %v2215 = vld [vmem:[#allocation20 + $0x48] sm:$0xff]
    %v2216 = vld [vmem:[#allocation20 + $0x50] sm:$0xff]
    %v2217 = vld [vmem:[#allocation20 + $0x58] sm:$0xff]
    %v2218 = vld [vmem:[#allocation20 + $0x60] sm:$0xff]
    %v2219 = vld [vmem:[#allocation20 + $0x68] sm:$0xff]
    %v2220 = vld [vmem:[#allocation20 + $0x70] sm:$0xff]
    %v2221 = vld [vmem:[#allocation20 + $0x78] sm:$0xff]
    %v2222 = vld [vmem:[#allocation20 + $0x80] sm:$0xff]
    %v2223 = vld [vmem:[#allocation20 + $0x88] sm:$0xff]
    %v2224 = vld [vmem:[#allocation20 + $0x90] sm:$0xff]
    %v2225 = vld [vmem:[#allocation20 + $0x98] sm:$0xff]
    %v2226 = vld [vmem:[#allocation20 + $0xa0] sm:$0xff]
    %v2227 = vld [vmem:[#allocation20 + $0xa8] sm:$0xff]
    %v2228 = vld [vmem:[#allocation20 + $0xb0] sm:$0xff]
    %v2229 = vld [vmem:[#allocation20 + $0xb8] sm:$0xff]
    %v2230 = vld [vmem:[#allocation20 + $0xc0] sm:$0xff]
    %v2231 = vld [vmem:[#allocation20 + $0xc8] sm:$0xff]
    %v2232 = vld [vmem:[#allocation20 + $0xd0] sm:$0xff]
    %v2233 = vld [vmem:[#allocation20 + $0xd8] sm:$0xff]
    %v2234 = vld [vmem:[#allocation20 + $0xe0] sm:$0xff]
    %v2235 = vld [vmem:[#allocation20 + $0xe8] sm:$0xff]
    %v2236 = vld [vmem:[#allocation20 + $0xf0] sm:$0xff]
    %v2237 = vld [vmem:[#allocation20 + $0xf8] sm:$0xff]
    %v2238 = vld [vmem:[#allocation20 + $0x100] sm:$0xff]
    %v2239 = vld [vmem:[#allocation20 + $0x108] sm:$0xff]
    %v2240 = vld [vmem:[#allocation20 + $0x110] sm:$0xff]
    %v2241 = vld [vmem:[#allocation20 + $0x118] sm:$0xff]
    %v2242 = vld [vmem:[#allocation20 + $0x120] sm:$0xff]
    %v2243 = vld [vmem:[#allocation20 + $0x128] sm:$0xff]
    %v2244 = vld [vmem:[#allocation20 + $0x130] sm:$0xff]
    %v2245 = vld [vmem:[#allocation20 + $0x138] sm:$0xff]
    %v2246 = vld [vmem:[#allocation20 + $0x140] sm:$0xff]
    %v2247 = vld [vmem:[#allocation20 + $0x148] sm:$0xff]
    %v2248 = vld [vmem:[#allocation20 + $0x150] sm:$0xff]
    %v2249 = vld [vmem:[#allocation20 + $0x158] sm:$0xff]
    %v2250 = vld [vmem:[#allocation20 + $0x160] sm:$0xff]
    %v2251 = vld [vmem:[#allocation20 + $0x168] sm:$0xff]
    %v2252 = vld [vmem:[#allocation20 + $0x170] sm:$0xff]
    %v2253 = vld [vmem:[#allocation20 + $0x178] sm:$0xff]
    %v2254 = vld [vmem:[#allocation20 + $0x180] sm:$0xff]
    %v2255 = vld [vmem:[#allocation20 + $0x188] sm:$0xff]
    %v2256 = vld [vmem:[#allocation20 + $0x190] sm:$0xff]
    %v2257 = vld [vmem:[#allocation20 + $0x198] sm:$0xff]
    %v2258 = vld [vmem:[#allocation20 + $0x1a0] sm:$0xff]
    %v2259 = vld [vmem:[#allocation20 + $0x1a8] sm:$0xff]
    %v2260 = vld [vmem:[#allocation20 + $0x1b0] sm:$0xff]
    %v2261 = vld [vmem:[#allocation20 + $0x1b8] sm:$0xff]
    %v2262 = vld [vmem:[#allocation20 + $0x1c0] sm:$0xff]
    %v2263 = vld [vmem:[#allocation20 + $0x1c8] sm:$0xff]
    %v2264 = vld [vmem:[#allocation20 + $0x1d0] sm:$0xff]
    %v2265 = vld [vmem:[#allocation20 + $0x1d8] sm:$0xff]
    %v2266 = vld [vmem:[#allocation20 + $0x1e0] sm:$0xff]
    %v2267 = vld [vmem:[#allocation20 + $0x1e8] sm:$0xff]
    %v2268 = vld [vmem:[#allocation20 + $0x1f0] sm:$0xff]
    %v2269 = vld [vmem:[#allocation20 + $0x1f8] sm:$0xff]
    %v2270 = vld [vmem:[%s13] sm:$0xff]
    %v2272 = vperm.slane %v2270, 0
    %v2273 = vperm.slane %v2270, 1
    %v2274 = vperm.slane %v2270, 2
    %v2275 = vperm.slane %v2270, 3
    %v2276 = vperm.slane %v2270, 4
    %v2277 = vperm.slane %v2270, 5
    %v2278 = vperm.slane %v2270, 6
    %v2279 = vperm.slane %v2270, 7
    %v2352 = vunpack.c.l.b16 %v2206
    %v2353 = vunpack.c.h.b16 %v2206
    %v2354 = vunpack.c.l.b16 %v2207
    %v2355 = vunpack.c.h.b16 %v2207
    %v2356 = vunpack.c.l.b16 %v2208
    %v2357 = vunpack.c.h.b16 %v2208
    %v2358 = vunpack.c.l.b16 %v2209
    %v2359 = vunpack.c.h.b16 %v2209
    %v2360 = vunpack.c.l.b16 %v2210
    %v2361 = vunpack.c.h.b16 %v2210
    %v2362 = vunpack.c.l.b16 %v2211
    %v2363 = vunpack.c.h.b16 %v2211
    %v2364 = vunpack.c.l.b16 %v2212
    %v2365 = vunpack.c.h.b16 %v2212
    %v2366 = vunpack.c.l.b16 %v2213
    %v2367 = vunpack.c.h.b16 %v2213
    %v2368 = vunpack.c.l.b16 %v2214
    %v2369 = vunpack.c.h.b16 %v2214
    %v2370 = vunpack.c.l.b16 %v2215
    %v2371 = vunpack.c.h.b16 %v2215
    %v2372 = vunpack.c.l.b16 %v2216
    %v2373 = vunpack.c.h.b16 %v2216
    %v2374 = vunpack.c.l.b16 %v2217
    %v2375 = vunpack.c.h.b16 %v2217
    %v2376 = vunpack.c.l.b16 %v2218
    %v2377 = vunpack.c.h.b16 %v2218
    %v2378 = vunpack.c.l.b16 %v2219
    %v2379 = vunpack.c.h.b16 %v2219
    %v2380 = vunpack.c.l.b16 %v2220
    %v2381 = vunpack.c.h.b16 %v2220
    %v2382 = vunpack.c.l.b16 %v2221
    %v2383 = vunpack.c.h.b16 %v2221
    %v2384 = vunpack.c.l.b16 %v2222
    %v2385 = vunpack.c.h.b16 %v2222
    %v2386 = vunpack.c.l.b16 %v2223
    %v2387 = vunpack.c.h.b16 %v2223
    %v2388 = vunpack.c.l.b16 %v2224
    %v2389 = vunpack.c.h.b16 %v2224
    %v2390 = vunpack.c.l.b16 %v2225
    %v2391 = vunpack.c.h.b16 %v2225
    %v2392 = vunpack.c.l.b16 %v2226
    %v2393 = vunpack.c.h.b16 %v2226
    %v2394 = vunpack.c.l.b16 %v2227
    %v2395 = vunpack.c.h.b16 %v2227
    %v2396 = vunpack.c.l.b16 %v2228
    %v2397 = vunpack.c.h.b16 %v2228
    %v2398 = vunpack.c.l.b16 %v2229
    %v2399 = vunpack.c.h.b16 %v2229
    %v2400 = vunpack.c.l.b16 %v2230
    %v2401 = vunpack.c.h.b16 %v2230
    %v2402 = vunpack.c.l.b16 %v2231
    %v2403 = vunpack.c.h.b16 %v2231
    %v2404 = vunpack.c.l.b16 %v2232
    %v2405 = vunpack.c.h.b16 %v2232
    %v2406 = vunpack.c.l.b16 %v2233
    %v2407 = vunpack.c.h.b16 %v2233
    %v2408 = vunpack.c.l.b16 %v2234
    %v2409 = vunpack.c.h.b16 %v2234
    %v2410 = vunpack.c.l.b16 %v2235
    %v2411 = vunpack.c.h.b16 %v2235
    %v2412 = vunpack.c.l.b16 %v2236
    %v2413 = vunpack.c.h.b16 %v2236
    %v2414 = vunpack.c.l.b16 %v2237
    %v2415 = vunpack.c.h.b16 %v2237
    %v2416 = vunpack.c.l.b16 %v2238
    %v2417 = vunpack.c.h.b16 %v2238
    %v2418 = vunpack.c.l.b16 %v2239
    %v2419 = vunpack.c.h.b16 %v2239
    %v2420 = vunpack.c.l.b16 %v2240
    %v2421 = vunpack.c.h.b16 %v2240
    %v2422 = vunpack.c.l.b16 %v2241
    %v2423 = vunpack.c.h.b16 %v2241
    %v2424 = vunpack.c.l.b16 %v2242
    %v2425 = vunpack.c.h.b16 %v2242
    %v2426 = vunpack.c.l.b16 %v2243
    %v2427 = vunpack.c.h.b16 %v2243
    %v2428 = vunpack.c.l.b16 %v2244
    %v2429 = vunpack.c.h.b16 %v2244
    %v2430 = vunpack.c.l.b16 %v2245
    %v2431 = vunpack.c.h.b16 %v2245
    %v2432 = vunpack.c.l.b16 %v2246
    %v2433 = vunpack.c.h.b16 %v2246
    %v2434 = vunpack.c.l.b16 %v2247
    %v2435 = vunpack.c.h.b16 %v2247
    %v2436 = vunpack.c.l.b16 %v2248
    %v2437 = vunpack.c.h.b16 %v2248
    %v2438 = vunpack.c.l.b16 %v2249
    %v2439 = vunpack.c.h.b16 %v2249
    %v2440 = vunpack.c.l.b16 %v2250
    %v2441 = vunpack.c.h.b16 %v2250
    %v2442 = vunpack.c.l.b16 %v2251
    %v2443 = vunpack.c.h.b16 %v2251
    %v2444 = vunpack.c.l.b16 %v2252
    %v2445 = vunpack.c.h.b16 %v2252
    %v2446 = vunpack.c.l.b16 %v2253
    %v2447 = vunpack.c.h.b16 %v2253
    %v2448 = vunpack.c.l.b16 %v2254
    %v2449 = vunpack.c.h.b16 %v2254
    %v2450 = vunpack.c.l.b16 %v2255
    %v2451 = vunpack.c.h.b16 %v2255
    %v2452 = vunpack.c.l.b16 %v2256
    %v2453 = vunpack.c.h.b16 %v2256
    %v2454 = vunpack.c.l.b16 %v2257
    %v2455 = vunpack.c.h.b16 %v2257
    %v2456 = vunpack.c.l.b16 %v2258
    %v2457 = vunpack.c.h.b16 %v2258
    %v2458 = vunpack.c.l.b16 %v2259
    %v2459 = vunpack.c.h.b16 %v2259
    %v2460 = vunpack.c.l.b16 %v2260
    %v2461 = vunpack.c.h.b16 %v2260
    %v2462 = vunpack.c.l.b16 %v2261
    %v2463 = vunpack.c.h.b16 %v2261
    %v2464 = vunpack.c.l.b16 %v2262
    %v2465 = vunpack.c.h.b16 %v2262
    %v2466 = vunpack.c.l.b16 %v2263
    %v2467 = vunpack.c.h.b16 %v2263
    %v2468 = vunpack.c.l.b16 %v2264
    %v2469 = vunpack.c.h.b16 %v2264
    %v2470 = vunpack.c.l.b16 %v2265
    %v2471 = vunpack.c.h.b16 %v2265
    %v2472 = vunpack.c.l.b16 %v2266
    %v2473 = vunpack.c.h.b16 %v2266
    %v2474 = vunpack.c.l.b16 %v2267
    %v2475 = vunpack.c.h.b16 %v2267
    %v2476 = vunpack.c.l.b16 %v2268
    %v2477 = vunpack.c.h.b16 %v2268
    %v2478 = vunpack.c.l.b16 %v2269
    %v2479 = vunpack.c.h.b16 %v2269
    %v2480 = vpack.c.b16 %v2360, %v2352
    %v2481 = vpack.c.b16 %v2361, %v2353
    %v2482 = vpack.c.b16 %v2362, %v2354
    %v2483 = vpack.c.b16 %v2363, %v2355
    %v2484 = vpack.c.b16 %v2364, %v2356
    %v2485 = vpack.c.b16 %v2365, %v2357
    %v2486 = vpack.c.b16 %v2366, %v2358
    %v2487 = vpack.c.b16 %v2367, %v2359
    %v2488 = vpack.c.b16 %v2376, %v2368
    %v2489 = vpack.c.b16 %v2377, %v2369
    %v2490 = vpack.c.b16 %v2378, %v2370
    %v2491 = vpack.c.b16 %v2379, %v2371
    %v2492 = vpack.c.b16 %v2380, %v2372
    %v2493 = vpack.c.b16 %v2381, %v2373
    %v2494 = vpack.c.b16 %v2382, %v2374
    %v2495 = vpack.c.b16 %v2383, %v2375
    %v2496 = vpack.c.b16 %v2392, %v2384
    %v2497 = vpack.c.b16 %v2393, %v2385
    %v2498 = vpack.c.b16 %v2394, %v2386
    %v2499 = vpack.c.b16 %v2395, %v2387
    %v2500 = vpack.c.b16 %v2396, %v2388
    %v2501 = vpack.c.b16 %v2397, %v2389
    %v2502 = vpack.c.b16 %v2398, %v2390
    %v2503 = vpack.c.b16 %v2399, %v2391
    %v2504 = vpack.c.b16 %v2408, %v2400
    %v2505 = vpack.c.b16 %v2409, %v2401
    %v2506 = vpack.c.b16 %v2410, %v2402
    %v2507 = vpack.c.b16 %v2411, %v2403
    %v2508 = vpack.c.b16 %v2412, %v2404
    %v2509 = vpack.c.b16 %v2413, %v2405
    %v2510 = vpack.c.b16 %v2414, %v2406
    %v2511 = vpack.c.b16 %v2415, %v2407
    %v2512 = vpack.c.b16 %v2424, %v2416
    %v2513 = vpack.c.b16 %v2425, %v2417
    %v2514 = vpack.c.b16 %v2426, %v2418
    %v2515 = vpack.c.b16 %v2427, %v2419
    %v2516 = vpack.c.b16 %v2428, %v2420
    %v2517 = vpack.c.b16 %v2429, %v2421
    %v2518 = vpack.c.b16 %v2430, %v2422
    %v2519 = vpack.c.b16 %v2431, %v2423
    %v2520 = vpack.c.b16 %v2440, %v2432
    %v2521 = vpack.c.b16 %v2441, %v2433
    %v2522 = vpack.c.b16 %v2442, %v2434
    %v2523 = vpack.c.b16 %v2443, %v2435
    %v2524 = vpack.c.b16 %v2444, %v2436
    %v2525 = vpack.c.b16 %v2445, %v2437
    %v2526 = vpack.c.b16 %v2446, %v2438
    %v2527 = vpack.c.b16 %v2447, %v2439
    %v2528 = vpack.c.b16 %v2456, %v2448
    %v2529 = vpack.c.b16 %v2457, %v2449
    %v2530 = vpack.c.b16 %v2458, %v2450
    %v2531 = vpack.c.b16 %v2459, %v2451
    %v2532 = vpack.c.b16 %v2460, %v2452
    %v2533 = vpack.c.b16 %v2461, %v2453
    %v2534 = vpack.c.b16 %v2462, %v2454
    %v2535 = vpack.c.b16 %v2463, %v2455
    %v2536 = vpack.c.b16 %v2472, %v2464
    %v2537 = vpack.c.b16 %v2473, %v2465
    %v2538 = vpack.c.b16 %v2474, %v2466
    %v2539 = vpack.c.b16 %v2475, %v2467
    %v2540 = vpack.c.b16 %v2476, %v2468
    %v2541 = vpack.c.b16 %v2477, %v2469
    %v2542 = vpack.c.b16 %v2478, %v2470
    %v2543 = vpack.c.b16 %v2479, %v2471
    %2608 = vmatpush.bf16.msra.mxu0 %v2536
    %2609 = vmatpush.bf16.msra.mxu0 %v2528
    %2610 = vmatpush.bf16.msra.mxu0 %v2520
    %2611 = vmatpush.bf16.msra.mxu0 %v2512
    %2612 = vmatpush.bf16.msra.mxu0 %v2504
    %2613 = vmatpush.bf16.msra.mxu0 %v2496
    %2614 = vmatpush.bf16.msra.mxu0 %v2488
    %2615 = vmatpush.bf16.msra.mxu0 %v2480
    %2616 = vmatmul.bf16.gmra.mxu0 %v2205
    %v2617 = vpop.f32.mrf.mxu0
    %v2618 = vadd.f32 %v2272, %v2617
    %v2619 = vpop.f32.mrf.mxu0
    %2620 = vdwg.mxu0
    %2621 = vmatpush.bf16.msra.mxu0 %v2537
    %2622 = vmatpush.bf16.msra.mxu0 %v2529
    %2623 = vmatpush.bf16.msra.mxu0 %v2521
    %2624 = vmatpush.bf16.msra.mxu0 %v2513
    %2625 = vmatpush.bf16.msra.mxu0 %v2505
    %2626 = vmatpush.bf16.msra.mxu0 %v2497
    %2627 = vmatpush.bf16.msra.mxu0 %v2489
    %2628 = vmatpush.bf16.msra.mxu0 %v2481
    %2629 = vmatmul.bf16.gmra.mxu0 %v2205
    %v2630 = vpop.f32.mrf.mxu0
    %v2631 = vadd.f32 %v2273, %v2630
    %v2632 = vpop.f32.mrf.mxu0
    %2633 = vdwg.mxu0
    %2634 = vmatpush.bf16.msra.mxu0 %v2538
    %2635 = vmatpush.bf16.msra.mxu0 %v2530
    %2636 = vmatpush.bf16.msra.mxu0 %v2522
    %2637 = vmatpush.bf16.msra.mxu0 %v2514
    %2638 = vmatpush.bf16.msra.mxu0 %v2506
    %2639 = vmatpush.bf16.msra.mxu0 %v2498
    %2640 = vmatpush.bf16.msra.mxu0 %v2490
    %2641 = vmatpush.bf16.msra.mxu0 %v2482
    %2642 = vmatmul.bf16.gmra.mxu0 %v2205
    %v2643 = vpop.f32.mrf.mxu0
    %v2644 = vadd.f32 %v2274, %v2643
    %v2645 = vpop.f32.mrf.mxu0
    %2646 = vdwg.mxu0
    %2647 = vmatpush.bf16.msra.mxu0 %v2539
    %2648 = vmatpush.bf16.msra.mxu0 %v2531
    %2649 = vmatpush.bf16.msra.mxu0 %v2523
    %2650 = vmatpush.bf16.msra.mxu0 %v2515
    %2651 = vmatpush.bf16.msra.mxu0 %v2507
    %2652 = vmatpush.bf16.msra.mxu0 %v2499
    %2653 = vmatpush.bf16.msra.mxu0 %v2491
    %2654 = vmatpush.bf16.msra.mxu0 %v2483
    %2655 = vmatmul.bf16.gmra.mxu0 %v2205
    %v2656 = vpop.f32.mrf.mxu0
    %v2657 = vadd.f32 %v2275, %v2656
    %v2658 = vpop.f32.mrf.mxu0
    %2659 = vdwg.mxu0
    %2660 = vmatpush.bf16.msra.mxu0 %v2540
    %2661 = vmatpush.bf16.msra.mxu0 %v2532
    %2662 = vmatpush.bf16.msra.mxu0 %v2524
    %2663 = vmatpush.bf16.msra.mxu0 %v2516
    %2664 = vmatpush.bf16.msra.mxu0 %v2508
    %2665 = vmatpush.bf16.msra.mxu0 %v2500
    %2666 = vmatpush.bf16.msra.mxu0 %v2492
    %2667 = vmatpush.bf16.msra.mxu0 %v2484
    %2668 = vmatmul.bf16.gmra.mxu0 %v2205
    %v2669 = vpop.f32.mrf.mxu0
    %v2670 = vadd.f32 %v2276, %v2669
    %v2671 = vpop.f32.mrf.mxu0
    %2672 = vdwg.mxu0
    %2673 = vmatpush.bf16.msra.mxu0 %v2541
    %2674 = vmatpush.bf16.msra.mxu0 %v2533
    %2675 = vmatpush.bf16.msra.mxu0 %v2525
    %2676 = vmatpush.bf16.msra.mxu0 %v2517
    %2677 = vmatpush.bf16.msra.mxu0 %v2509
    %2678 = vmatpush.bf16.msra.mxu0 %v2501
    %2679 = vmatpush.bf16.msra.mxu0 %v2493
    %2680 = vmatpush.bf16.msra.mxu0 %v2485
    %2681 = vmatmul.bf16.gmra.mxu0 %v2205
    %v2682 = vpop.f32.mrf.mxu0
    %v2683 = vadd.f32 %v2277, %v2682
    %v2684 = vpop.f32.mrf.mxu0
    %2685 = vdwg.mxu0
    %2686 = vmatpush.bf16.msra.mxu0 %v2542
    %2687 = vmatpush.bf16.msra.mxu0 %v2534
    %2688 = vmatpush.bf16.msra.mxu0 %v2526
    %2689 = vmatpush.bf16.msra.mxu0 %v2518
    %2690 = vmatpush.bf16.msra.mxu0 %v2510
    %2691 = vmatpush.bf16.msra.mxu0 %v2502
    %2692 = vmatpush.bf16.msra.mxu0 %v2494
    %2693 = vmatpush.bf16.msra.mxu0 %v2486
    %2694 = vmatmul.bf16.gmra.mxu0 %v2205
    %v2695 = vpop.f32.mrf.mxu0
    %v2696 = vadd.f32 %v2278, %v2695
    %v2697 = vpop.f32.mrf.mxu0
    %2698 = vdwg.mxu0
    %2699 = vmatpush.bf16.msra.mxu0 %v2543
    %2700 = vmatpush.bf16.msra.mxu0 %v2535
    %2701 = vmatpush.bf16.msra.mxu0 %v2527
    %2702 = vmatpush.bf16.msra.mxu0 %v2519
    %2703 = vmatpush.bf16.msra.mxu0 %v2511
    %2704 = vmatpush.bf16.msra.mxu0 %v2503
    %2705 = vmatpush.bf16.msra.mxu0 %v2495
    %2706 = vmatpush.bf16.msra.mxu0 %v2487
    %2707 = vmatmul.bf16.gmra.mxu0 %v2205
    %v2708 = vpop.f32.mrf.mxu0
    %v2709 = vadd.f32 %v2279, %v2708
    %v2710 = vpop.f32.mrf.mxu0
    %2711 = vdwg.mxu0
    %v2712 = vxor.u32 %v2618, 2147483648
    %v2713 = vxor.u32 %v2631, 2147483648
    %v2714 = vxor.u32 %v2644, 2147483648
    %v2715 = vxor.u32 %v2657, 2147483648
    %v2716 = vxor.u32 %v2670, 2147483648
    %v2717 = vxor.u32 %v2683, 2147483648
    %v2718 = vxor.u32 %v2696, 2147483648
    %v2719 = vxor.u32 %v2709, 2147483648
    %v2720 = vmul.f32 %v2712, 1.442695
    %v2721 = vpow.pop %v2720
    %v2722 = vmul.f32 %v2713, 1.442695
    %v2723 = vpow.pop %v2722
    %v2724 = vmul.f32 %v2714, 1.442695
    %v2725 = vpow.pop %v2724
    %v2726 = vmul.f32 %v2715, 1.442695
    %v2727 = vpow.pop %v2726
    %v2728 = vmul.f32 %v2716, 1.442695
    %v2729 = vpow.pop %v2728
    %v2730 = vmul.f32 %v2717, 1.442695
    %v2731 = vpow.pop %v2730
    %v2732 = vmul.f32 %v2718, 1.442695
    %v2733 = vpow.pop %v2732
    %v2734 = vmul.f32 %v2719, 1.442695
    %v2735 = vpow.pop %v2734
    %v2736 = vadd.f32 %v2721, 1.0
    %v2737 = vadd.f32 %v2723, 1.0
    %v2738 = vadd.f32 %v2725, 1.0
    %v2739 = vadd.f32 %v2727, 1.0
    %v2740 = vadd.f32 %v2729, 1.0
    %v2741 = vadd.f32 %v2731, 1.0
    %v2742 = vadd.f32 %v2733, 1.0
    %v2743 = vadd.f32 %v2735, 1.0
    %v2744 = vrcp.pop %v2736
    %v2745 = vmul.f32 %v2736, %v2744
    %v2746 = vsub.f32 1.0, %v2745
    %v2747 = vmul.f32 %v2744, %v2746
    %v2748 = vadd.f32 %v2744, %v2747
    %vm2749 = vweird.f32 %v2736
    %vm2750 = vweird.f32 %v2744
    %vm2751 = vmor %vm2749, %vm2750
    %v2752 = vsel %vm2751, %v2744, %v2748
    %v2753 = vand.u32 2147483647, %v2736
    %vm2754 = vcmp.eq.f32.partialorder %v2753, 8.507059e+37
    %v2755 = vand.u32 %v2736, 2147483648
    %v2756 = vor.u32 1.1754944e-38, %v2755
    %v2757 = vsel %vm2754, %v2756, %v2752
    %v2758 = vmul.f32 1.0, %v2757
    %v2759 = vrcp.pop %v2737
    %v2760 = vmul.f32 %v2737, %v2759
    %v2761 = vsub.f32 1.0, %v2760
    %v2762 = vmul.f32 %v2759, %v2761
    %v2763 = vadd.f32 %v2759, %v2762
    %vm2764 = vweird.f32 %v2737
    %vm2765 = vweird.f32 %v2759
    %vm2766 = vmor %vm2764, %vm2765
    %v2767 = vsel %vm2766, %v2759, %v2763
    %v2768 = vand.u32 2147483647, %v2737
    %vm2769 = vcmp.eq.f32.partialorder %v2768, 8.507059e+37
    %v2770 = vand.u32 %v2737, 2147483648
    %v2771 = vor.u32 1.1754944e-38, %v2770
    %v2772 = vsel %vm2769, %v2771, %v2767
    %v2773 = vmul.f32 1.0, %v2772
    %v2774 = vrcp.pop %v2738
    %v2775 = vmul.f32 %v2738, %v2774
    %v2776 = vsub.f32 1.0, %v2775
    %v2777 = vmul.f32 %v2774, %v2776
    %v2778 = vadd.f32 %v2774, %v2777
    %vm2779 = vweird.f32 %v2738
    %vm2780 = vweird.f32 %v2774
    %vm2781 = vmor %vm2779, %vm2780
    %v2782 = vsel %vm2781, %v2774, %v2778
    %v2783 = vand.u32 2147483647, %v2738
    %vm2784 = vcmp.eq.f32.partialorder %v2783, 8.507059e+37
    %v2785 = vand.u32 %v2738, 2147483648
    %v2786 = vor.u32 1.1754944e-38, %v2785
    %v2787 = vsel %vm2784, %v2786, %v2782
    %v2788 = vmul.f32 1.0, %v2787
    %v2789 = vrcp.pop %v2739
    %v2790 = vmul.f32 %v2739, %v2789
    %v2791 = vsub.f32 1.0, %v2790
    %v2792 = vmul.f32 %v2789, %v2791
    %v2793 = vadd.f32 %v2789, %v2792
    %vm2794 = vweird.f32 %v2739
    %vm2795 = vweird.f32 %v2789
    %vm2796 = vmor %vm2794, %vm2795
    %v2797 = vsel %vm2796, %v2789, %v2793
    %v2798 = vand.u32 2147483647, %v2739
    %vm2799 = vcmp.eq.f32.partialorder %v2798, 8.507059e+37
    %v2800 = vand.u32 %v2739, 2147483648
    %v2801 = vor.u32 1.1754944e-38, %v2800
    %v2802 = vsel %vm2799, %v2801, %v2797
    %v2803 = vmul.f32 1.0, %v2802
    %v2804 = vrcp.pop %v2740
    %v2805 = vmul.f32 %v2740, %v2804
    %v2806 = vsub.f32 1.0, %v2805
    %v2807 = vmul.f32 %v2804, %v2806
    %v2808 = vadd.f32 %v2804, %v2807
    %vm2809 = vweird.f32 %v2740
    %vm2810 = vweird.f32 %v2804
    %vm2811 = vmor %vm2809, %vm2810
    %v2812 = vsel %vm2811, %v2804, %v2808
    %v2813 = vand.u32 2147483647, %v2740
    %vm2814 = vcmp.eq.f32.partialorder %v2813, 8.507059e+37
    %v2815 = vand.u32 %v2740, 2147483648
    %v2816 = vor.u32 1.1754944e-38, %v2815
    %v2817 = vsel %vm2814, %v2816, %v2812
    %v2818 = vmul.f32 1.0, %v2817
    %v2819 = vrcp.pop %v2741
    %v2820 = vmul.f32 %v2741, %v2819
    %v2821 = vsub.f32 1.0, %v2820
    %v2822 = vmul.f32 %v2819, %v2821
    %v2823 = vadd.f32 %v2819, %v2822
    %vm2824 = vweird.f32 %v2741
    %vm2825 = vweird.f32 %v2819
    %vm2826 = vmor %vm2824, %vm2825
    %v2827 = vsel %vm2826, %v2819, %v2823
    %v2828 = vand.u32 2147483647, %v2741
    %vm2829 = vcmp.eq.f32.partialorder %v2828, 8.507059e+37
    %v2830 = vand.u32 %v2741, 2147483648
    %v2831 = vor.u32 1.1754944e-38, %v2830
    %v2832 = vsel %vm2829, %v2831, %v2827
    %v2833 = vmul.f32 1.0, %v2832
    %v2834 = vrcp.pop %v2742
    %v2835 = vmul.f32 %v2742, %v2834
    %v2836 = vsub.f32 1.0, %v2835
    %v2837 = vmul.f32 %v2834, %v2836
    %v2838 = vadd.f32 %v2834, %v2837
    %vm2839 = vweird.f32 %v2742
    %vm2840 = vweird.f32 %v2834
    %vm2841 = vmor %vm2839, %vm2840
    %v2842 = vsel %vm2841, %v2834, %v2838
    %v2843 = vand.u32 2147483647, %v2742
    %vm2844 = vcmp.eq.f32.partialorder %v2843, 8.507059e+37
    %v2845 = vand.u32 %v2742, 2147483648
    %v2846 = vor.u32 1.1754944e-38, %v2845
    %v2847 = vsel %vm2844, %v2846, %v2842
    %v2848 = vmul.f32 1.0, %v2847
    %v2849 = vrcp.pop %v2743
    %v2850 = vmul.f32 %v2743, %v2849
    %v2851 = vsub.f32 1.0, %v2850
    %v2852 = vmul.f32 %v2849, %v2851
    %v2853 = vadd.f32 %v2849, %v2852
    %vm2854 = vweird.f32 %v2743
    %vm2855 = vweird.f32 %v2849
    %vm2856 = vmor %vm2854, %vm2855
    %v2857 = vsel %vm2856, %v2849, %v2853
    %v2858 = vand.u32 2147483647, %v2743
    %vm2859 = vcmp.eq.f32.partialorder %v2858, 8.507059e+37
    %v2860 = vand.u32 %v2743, 2147483648
    %v2861 = vor.u32 1.1754944e-38, %v2860
    %v2862 = vsel %vm2859, %v2861, %v2857
    %v2863 = vmul.f32 1.0, %v2862
    %v2872 = vrot.slane %v2773, 6
    %v2873 = vrot.slane %v2788, 4
    %v2874 = vrot.slane %v2803, 2
    %v2875 = vrot.slane %v2833, 6
    %v2876 = vrot.slane %v2848, 4
    %v2877 = vrot.slane %v2863, 2
    %vm2878 = vcmask 1041408
    %v2879 = vsel %vm2878, %v2758, %v2872
    %vm2880 = vcmask 1045508
    %v2881 = vsel %vm2880, %v2873, %v2874
    %vm2882 = vcmask 1043456
    %v2883 = vsel %vm2882, %v2879, %v2881
    %v2884 = vsel %vm2878, %v2818, %v2875
    %v2885 = vsel %vm2880, %v2876, %v2877
    %v2886 = vsel %vm2882, %v2884, %v2885
    %2889 = vst [vmem:[#allocation22] sm:$0xff] %v2883
    %2890 = vst [vmem:[#allocation22 + $0x8] sm:$0xff] %v2886
    %v2891 = vpack.c.bf16 %v2758, %v2758
    %v2892 = vpack.c.bf16 %v2773, %v2773
    %v2893 = vpack.c.bf16 %v2788, %v2788
    %v2894 = vpack.c.bf16 %v2803, %v2803
    %v2895 = vpack.c.bf16 %v2818, %v2818
    %v2896 = vpack.c.bf16 %v2833, %v2833
    %v2897 = vpack.c.bf16 %v2848, %v2848
    %v2898 = vpack.c.bf16 %v2863, %v2863
    %v2899 = vld [vmem:[#allocation5] sm:$0xf]
    %v2900 = vld [vmem:[#allocation5 + $0x4] sm:$0xf]
    %v2901 = vld [vmem:[#allocation5 + $0x8] sm:$0xf]
    %v2902 = vld [vmem:[#allocation5 + $0xc] sm:$0xf]
    %v2903 = vld [vmem:[#allocation5 + $0x10] sm:$0xf]
    %v2904 = vld [vmem:[#allocation5 + $0x14] sm:$0xf]
    %v2905 = vld [vmem:[#allocation5 + $0x18] sm:$0xf]
    %v2906 = vld [vmem:[#allocation5 + $0x1c] sm:$0xf]
    %v2907 = vld [vmem:[#allocation5 + $0x20] sm:$0xf]
    %v2908 = vld [vmem:[#allocation5 + $0x24] sm:$0xf]
    %v2909 = vld [vmem:[#allocation5 + $0x28] sm:$0xf]
    %v2910 = vld [vmem:[#allocation5 + $0x2c] sm:$0xf]
    %v2911 = vld [vmem:[#allocation5 + $0x30] sm:$0xf]
    %v2912 = vld [vmem:[#allocation5 + $0x34] sm:$0xf]
    %v2913 = vld [vmem:[#allocation5 + $0x38] sm:$0xf]
    %v2914 = vld [vmem:[#allocation5 + $0x3c] sm:$0xf]
    %v2915 = vld [vmem:[#allocation5 + $0x40] sm:$0xf]
    %v2916 = vld [vmem:[#allocation5 + $0x44] sm:$0xf]
    %v2917 = vld [vmem:[#allocation5 + $0x48] sm:$0xf]
    %v2918 = vld [vmem:[#allocation5 + $0x4c] sm:$0xf]
    %v2919 = vld [vmem:[#allocation5 + $0x50] sm:$0xf]
    %v2920 = vld [vmem:[#allocation5 + $0x54] sm:$0xf]
    %v2921 = vld [vmem:[#allocation5 + $0x58] sm:$0xf]
    %v2922 = vld [vmem:[#allocation5 + $0x5c] sm:$0xf]
    %v2923 = vld [vmem:[#allocation5 + $0x60] sm:$0xf]
    %v2924 = vld [vmem:[#allocation5 + $0x64] sm:$0xf]
    %v2925 = vld [vmem:[#allocation5 + $0x68] sm:$0xf]
    %v2926 = vld [vmem:[#allocation5 + $0x6c] sm:$0xf]
    %v2927 = vld [vmem:[#allocation5 + $0x70] sm:$0xf]
    %v2928 = vld [vmem:[#allocation5 + $0x74] sm:$0xf]
    %v2929 = vld [vmem:[#allocation5 + $0x78] sm:$0xf]
    %v2930 = vld [vmem:[#allocation5 + $0x7c] sm:$0xf]
    %v2931 = vld [vmem:[#allocation5 + $0x80] sm:$0xf]
    %v2932 = vld [vmem:[#allocation5 + $0x84] sm:$0xf]
    %v2933 = vld [vmem:[#allocation5 + $0x88] sm:$0xf]
    %v2934 = vld [vmem:[#allocation5 + $0x8c] sm:$0xf]
    %v2935 = vld [vmem:[#allocation5 + $0x90] sm:$0xf]
    %v2936 = vld [vmem:[#allocation5 + $0x94] sm:$0xf]
    %v2937 = vld [vmem:[#allocation5 + $0x98] sm:$0xf]
    %v2938 = vld [vmem:[#allocation5 + $0x9c] sm:$0xf]
    %v2939 = vld [vmem:[#allocation5 + $0xa0] sm:$0xf]
    %v2940 = vld [vmem:[#allocation5 + $0xa4] sm:$0xf]
    %v2941 = vld [vmem:[#allocation5 + $0xa8] sm:$0xf]
    %v2942 = vld [vmem:[#allocation5 + $0xac] sm:$0xf]
    %v2943 = vld [vmem:[#allocation5 + $0xb0] sm:$0xf]
    %v2944 = vld [vmem:[#allocation5 + $0xb4] sm:$0xf]
    %v2945 = vld [vmem:[#allocation5 + $0xb8] sm:$0xf]
    %v2946 = vld [vmem:[#allocation5 + $0xbc] sm:$0xf]
    %v2947 = vld [vmem:[#allocation5 + $0xc0] sm:$0xf]
    %v2948 = vld [vmem:[#allocation5 + $0xc4] sm:$0xf]
    %v2949 = vld [vmem:[#allocation5 + $0xc8] sm:$0xf]
    %v2950 = vld [vmem:[#allocation5 + $0xcc] sm:$0xf]
    %v2951 = vld [vmem:[#allocation5 + $0xd0] sm:$0xf]
    %v2952 = vld [vmem:[#allocation5 + $0xd4] sm:$0xf]
    %v2953 = vld [vmem:[#allocation5 + $0xd8] sm:$0xf]
    %v2954 = vld [vmem:[#allocation5 + $0xdc] sm:$0xf]
    %v2955 = vld [vmem:[#allocation5 + $0xe0] sm:$0xf]
    %v2956 = vld [vmem:[#allocation5 + $0xe4] sm:$0xf]
    %v2957 = vld [vmem:[#allocation5 + $0xe8] sm:$0xf]
    %v2958 = vld [vmem:[#allocation5 + $0xec] sm:$0xf]
    %v2959 = vld [vmem:[#allocation5 + $0xf0] sm:$0xf]
    %v2960 = vld [vmem:[#allocation5 + $0xf4] sm:$0xf]
    %v2961 = vld [vmem:[#allocation5 + $0xf8] sm:$0xf]
    %v2962 = vld [vmem:[#allocation5 + $0xfc] sm:$0xf]
    %v2963 = vld [vmem:[#allocation5 + $0x100] sm:$0xf]
    %v2964 = vld [vmem:[#allocation5 + $0x104] sm:$0xf]
    %v2965 = vld [vmem:[#allocation5 + $0x108] sm:$0xf]
    %v2966 = vld [vmem:[#allocation5 + $0x10c] sm:$0xf]
    %v2967 = vld [vmem:[#allocation5 + $0x110] sm:$0xf]
    %v2968 = vld [vmem:[#allocation5 + $0x114] sm:$0xf]
    %v2969 = vld [vmem:[#allocation5 + $0x118] sm:$0xf]
    %v2970 = vld [vmem:[#allocation5 + $0x11c] sm:$0xf]
    %v2971 = vld [vmem:[#allocation5 + $0x120] sm:$0xf]
    %v2972 = vld [vmem:[#allocation5 + $0x124] sm:$0xf]
    %v2973 = vld [vmem:[#allocation5 + $0x128] sm:$0xf]
    %v2974 = vld [vmem:[#allocation5 + $0x12c] sm:$0xf]
    %v2975 = vld [vmem:[#allocation5 + $0x130] sm:$0xf]
    %v2976 = vld [vmem:[#allocation5 + $0x134] sm:$0xf]
    %v2977 = vld [vmem:[#allocation5 + $0x138] sm:$0xf]
    %v2978 = vld [vmem:[#allocation5 + $0x13c] sm:$0xf]
    %v2979 = vld [vmem:[#allocation5 + $0x140] sm:$0xf]
    %v2980 = vld [vmem:[#allocation5 + $0x144] sm:$0xf]
    %v2981 = vld [vmem:[#allocation5 + $0x148] sm:$0xf]
    %v2982 = vld [vmem:[#allocation5 + $0x14c] sm:$0xf]
    %v2983 = vld [vmem:[#allocation5 + $0x150] sm:$0xf]
    %v2984 = vld [vmem:[#allocation5 + $0x154] sm:$0xf]
    %v2985 = vld [vmem:[#allocation5 + $0x158] sm:$0xf]
    %v2986 = vld [vmem:[#allocation5 + $0x15c] sm:$0xf]
    %v2987 = vld [vmem:[#allocation5 + $0x160] sm:$0xf]
    %v2988 = vld [vmem:[#allocation5 + $0x164] sm:$0xf]
    %v2989 = vld [vmem:[#allocation5 + $0x168] sm:$0xf]
    %v2990 = vld [vmem:[#allocation5 + $0x16c] sm:$0xf]
    %v2991 = vld [vmem:[#allocation5 + $0x170] sm:$0xf]
    %v2992 = vld [vmem:[#allocation5 + $0x174] sm:$0xf]
    %v2993 = vld [vmem:[#allocation5 + $0x178] sm:$0xf]
    %v2994 = vld [vmem:[#allocation5 + $0x17c] sm:$0xf]
    %v2995 = vld [vmem:[#allocation5 + $0x180] sm:$0xf]
    %v2996 = vld [vmem:[#allocation5 + $0x184] sm:$0xf]
    %v2997 = vld [vmem:[#allocation5 + $0x188] sm:$0xf]
    %v2998 = vld [vmem:[#allocation5 + $0x18c] sm:$0xf]
    %v2999 = vld [vmem:[#allocation5 + $0x190] sm:$0xf]
    %v3000 = vld [vmem:[#allocation5 + $0x194] sm:$0xf]
    %v3001 = vld [vmem:[#allocation5 + $0x198] sm:$0xf]
    %v3002 = vld [vmem:[#allocation5 + $0x19c] sm:$0xf]
    %v3003 = vld [vmem:[#allocation5 + $0x1a0] sm:$0xf]
    %v3004 = vld [vmem:[#allocation5 + $0x1a4] sm:$0xf]
    %v3005 = vld [vmem:[#allocation5 + $0x1a8] sm:$0xf]
    %v3006 = vld [vmem:[#allocation5 + $0x1ac] sm:$0xf]
    %v3007 = vld [vmem:[#allocation5 + $0x1b0] sm:$0xf]
    %v3008 = vld [vmem:[#allocation5 + $0x1b4] sm:$0xf]
    %v3009 = vld [vmem:[#allocation5 + $0x1b8] sm:$0xf]
    %v3010 = vld [vmem:[#allocation5 + $0x1bc] sm:$0xf]
    %v3011 = vld [vmem:[#allocation5 + $0x1c0] sm:$0xf]
    %v3012 = vld [vmem:[#allocation5 + $0x1c4] sm:$0xf]
    %v3013 = vld [vmem:[#allocation5 + $0x1c8] sm:$0xf]
    %v3014 = vld [vmem:[#allocation5 + $0x1cc] sm:$0xf]
    %v3015 = vld [vmem:[#allocation5 + $0x1d0] sm:$0xf]
    %v3016 = vld [vmem:[#allocation5 + $0x1d4] sm:$0xf]
    %v3017 = vld [vmem:[#allocation5 + $0x1d8] sm:$0xf]
    %v3018 = vld [vmem:[#allocation5 + $0x1dc] sm:$0xf]
    %v3019 = vld [vmem:[#allocation5 + $0x1e0] sm:$0xf]
    %v3020 = vld [vmem:[#allocation5 + $0x1e4] sm:$0xf]
    %v3021 = vld [vmem:[#allocation5 + $0x1e8] sm:$0xf]
    %v3022 = vld [vmem:[#allocation5 + $0x1ec] sm:$0xf]
    %v3023 = vld [vmem:[#allocation5 + $0x1f0] sm:$0xf]
    %v3024 = vld [vmem:[#allocation5 + $0x1f4] sm:$0xf]
    %v3025 = vld [vmem:[#allocation5 + $0x1f8] sm:$0xf]
    %v3026 = vld [vmem:[#allocation5 + $0x1fc] sm:$0xf]
    %v3027 = vld [vmem:[#allocation7] sm:$0x1]
    %v3029 = vperm.slane %v3027, 0
    %v3159 = vunpack.c.l.b16 %v2899
    %v3160 = vunpack.c.l.b16 %v2900
    %v3161 = vunpack.c.l.b16 %v2901
    %v3162 = vunpack.c.l.b16 %v2902
    %v3163 = vunpack.c.l.b16 %v2903
    %v3164 = vunpack.c.l.b16 %v2904
    %v3165 = vunpack.c.l.b16 %v2905
    %v3166 = vunpack.c.l.b16 %v2906
    %v3167 = vunpack.c.l.b16 %v2907
    %v3168 = vunpack.c.l.b16 %v2908
    %v3169 = vunpack.c.l.b16 %v2909
    %v3170 = vunpack.c.l.b16 %v2910
    %v3171 = vunpack.c.l.b16 %v2911
    %v3172 = vunpack.c.l.b16 %v2912
    %v3173 = vunpack.c.l.b16 %v2913
    %v3174 = vunpack.c.l.b16 %v2914
    %v3175 = vunpack.c.l.b16 %v2915
    %v3176 = vunpack.c.l.b16 %v2916
    %v3177 = vunpack.c.l.b16 %v2917
    %v3178 = vunpack.c.l.b16 %v2918
    %v3179 = vunpack.c.l.b16 %v2919
    %v3180 = vunpack.c.l.b16 %v2920
    %v3181 = vunpack.c.l.b16 %v2921
    %v3182 = vunpack.c.l.b16 %v2922
    %v3183 = vunpack.c.l.b16 %v2923
    %v3184 = vunpack.c.l.b16 %v2924
    %v3185 = vunpack.c.l.b16 %v2925
    %v3186 = vunpack.c.l.b16 %v2926
    %v3187 = vunpack.c.l.b16 %v2927
    %v3188 = vunpack.c.l.b16 %v2928
    %v3189 = vunpack.c.l.b16 %v2929
    %v3190 = vunpack.c.l.b16 %v2930
    %v3191 = vunpack.c.l.b16 %v2931
    %v3192 = vunpack.c.l.b16 %v2932
    %v3193 = vunpack.c.l.b16 %v2933
    %v3194 = vunpack.c.l.b16 %v2934
    %v3195 = vunpack.c.l.b16 %v2935
    %v3196 = vunpack.c.l.b16 %v2936
    %v3197 = vunpack.c.l.b16 %v2937
    %v3198 = vunpack.c.l.b16 %v2938
    %v3199 = vunpack.c.l.b16 %v2939
    %v3200 = vunpack.c.l.b16 %v2940
    %v3201 = vunpack.c.l.b16 %v2941
    %v3202 = vunpack.c.l.b16 %v2942
    %v3203 = vunpack.c.l.b16 %v2943
    %v3204 = vunpack.c.l.b16 %v2944
    %v3205 = vunpack.c.l.b16 %v2945
    %v3206 = vunpack.c.l.b16 %v2946
    %v3207 = vunpack.c.l.b16 %v2947
    %v3208 = vunpack.c.l.b16 %v2948
    %v3209 = vunpack.c.l.b16 %v2949
    %v3210 = vunpack.c.l.b16 %v2950
    %v3211 = vunpack.c.l.b16 %v2951
    %v3212 = vunpack.c.l.b16 %v2952
    %v3213 = vunpack.c.l.b16 %v2953
    %v3214 = vunpack.c.l.b16 %v2954
    %v3215 = vunpack.c.l.b16 %v2955
    %v3216 = vunpack.c.l.b16 %v2956
    %v3217 = vunpack.c.l.b16 %v2957
    %v3218 = vunpack.c.l.b16 %v2958
    %v3219 = vunpack.c.l.b16 %v2959
    %v3220 = vunpack.c.l.b16 %v2960
    %v3221 = vunpack.c.l.b16 %v2961
    %v3222 = vunpack.c.l.b16 %v2962
    %v3223 = vunpack.c.l.b16 %v2963
    %v3224 = vunpack.c.l.b16 %v2964
    %v3225 = vunpack.c.l.b16 %v2965
    %v3226 = vunpack.c.l.b16 %v2966
    %v3227 = vunpack.c.l.b16 %v2967
    %v3228 = vunpack.c.l.b16 %v2968
    %v3229 = vunpack.c.l.b16 %v2969
    %v3230 = vunpack.c.l.b16 %v2970
    %v3231 = vunpack.c.l.b16 %v2971
    %v3232 = vunpack.c.l.b16 %v2972
    %v3233 = vunpack.c.l.b16 %v2973
    %v3234 = vunpack.c.l.b16 %v2974
    %v3235 = vunpack.c.l.b16 %v2975
    %v3236 = vunpack.c.l.b16 %v2976
    %v3237 = vunpack.c.l.b16 %v2977
    %v3238 = vunpack.c.l.b16 %v2978
    %v3239 = vunpack.c.l.b16 %v2979
    %v3240 = vunpack.c.l.b16 %v2980
    %v3241 = vunpack.c.l.b16 %v2981
    %v3242 = vunpack.c.l.b16 %v2982
    %v3243 = vunpack.c.l.b16 %v2983
    %v3244 = vunpack.c.l.b16 %v2984
    %v3245 = vunpack.c.l.b16 %v2985
    %v3246 = vunpack.c.l.b16 %v2986
    %v3247 = vunpack.c.l.b16 %v2987
    %v3248 = vunpack.c.l.b16 %v2988
    %v3249 = vunpack.c.l.b16 %v2989
    %v3250 = vunpack.c.l.b16 %v2990
    %v3251 = vunpack.c.l.b16 %v2991
    %v3252 = vunpack.c.l.b16 %v2992
    %v3253 = vunpack.c.l.b16 %v2993
    %v3254 = vunpack.c.l.b16 %v2994
    %v3255 = vunpack.c.l.b16 %v2995
    %v3256 = vunpack.c.l.b16 %v2996
    %v3257 = vunpack.c.l.b16 %v2997
    %v3258 = vunpack.c.l.b16 %v2998
    %v3259 = vunpack.c.l.b16 %v2999
    %v3260 = vunpack.c.l.b16 %v3000
    %v3261 = vunpack.c.l.b16 %v3001
    %v3262 = vunpack.c.l.b16 %v3002
    %v3263 = vunpack.c.l.b16 %v3003
    %v3264 = vunpack.c.l.b16 %v3004
    %v3265 = vunpack.c.l.b16 %v3005
    %v3266 = vunpack.c.l.b16 %v3006
    %v3267 = vunpack.c.l.b16 %v3007
    %v3268 = vunpack.c.l.b16 %v3008
    %v3269 = vunpack.c.l.b16 %v3009
    %v3270 = vunpack.c.l.b16 %v3010
    %v3271 = vunpack.c.l.b16 %v3011
    %v3272 = vunpack.c.l.b16 %v3012
    %v3273 = vunpack.c.l.b16 %v3013
    %v3274 = vunpack.c.l.b16 %v3014
    %v3275 = vunpack.c.l.b16 %v3015
    %v3276 = vunpack.c.l.b16 %v3016
    %v3277 = vunpack.c.l.b16 %v3017
    %v3278 = vunpack.c.l.b16 %v3018
    %v3279 = vunpack.c.l.b16 %v3019
    %v3280 = vunpack.c.l.b16 %v3020
    %v3281 = vunpack.c.l.b16 %v3021
    %v3282 = vunpack.c.l.b16 %v3022
    %v3283 = vunpack.c.l.b16 %v3023
    %v3284 = vunpack.c.l.b16 %v3024
    %v3285 = vunpack.c.l.b16 %v3025
    %v3286 = vunpack.c.l.b16 %v3026
    %v3287 = vpack.c.b16 %v3160, %v3159
    %v3288 = vpack.c.b16 %v3162, %v3161
    %v3289 = vpack.c.b16 %v3164, %v3163
    %v3290 = vpack.c.b16 %v3166, %v3165
    %v3291 = vpack.c.b16 %v3168, %v3167
    %v3292 = vpack.c.b16 %v3170, %v3169
    %v3293 = vpack.c.b16 %v3172, %v3171
    %v3294 = vpack.c.b16 %v3174, %v3173
    %v3295 = vpack.c.b16 %v3176, %v3175
    %v3296 = vpack.c.b16 %v3178, %v3177
    %v3297 = vpack.c.b16 %v3180, %v3179
    %v3298 = vpack.c.b16 %v3182, %v3181
    %v3299 = vpack.c.b16 %v3184, %v3183
    %v3300 = vpack.c.b16 %v3186, %v3185
    %v3301 = vpack.c.b16 %v3188, %v3187
    %v3302 = vpack.c.b16 %v3190, %v3189
    %v3303 = vpack.c.b16 %v3192, %v3191
    %v3304 = vpack.c.b16 %v3194, %v3193
    %v3305 = vpack.c.b16 %v3196, %v3195
    %v3306 = vpack.c.b16 %v3198, %v3197
    %v3307 = vpack.c.b16 %v3200, %v3199
    %v3308 = vpack.c.b16 %v3202, %v3201
    %v3309 = vpack.c.b16 %v3204, %v3203
    %v3310 = vpack.c.b16 %v3206, %v3205
    %v3311 = vpack.c.b16 %v3208, %v3207
    %v3312 = vpack.c.b16 %v3210, %v3209
    %v3313 = vpack.c.b16 %v3212, %v3211
    %v3314 = vpack.c.b16 %v3214, %v3213
    %v3315 = vpack.c.b16 %v3216, %v3215
    %v3316 = vpack.c.b16 %v3218, %v3217
    %v3317 = vpack.c.b16 %v3220, %v3219
    %v3318 = vpack.c.b16 %v3222, %v3221
    %v3319 = vpack.c.b16 %v3224, %v3223
    %v3320 = vpack.c.b16 %v3226, %v3225
    %v3321 = vpack.c.b16 %v3228, %v3227
    %v3322 = vpack.c.b16 %v3230, %v3229
    %v3323 = vpack.c.b16 %v3232, %v3231
    %v3324 = vpack.c.b16 %v3234, %v3233
    %v3325 = vpack.c.b16 %v3236, %v3235
    %v3326 = vpack.c.b16 %v3238, %v3237
    %v3327 = vpack.c.b16 %v3240, %v3239
    %v3328 = vpack.c.b16 %v3242, %v3241
    %v3329 = vpack.c.b16 %v3244, %v3243
    %v3330 = vpack.c.b16 %v3246, %v3245
    %v3331 = vpack.c.b16 %v3248, %v3247
    %v3332 = vpack.c.b16 %v3250, %v3249
    %v3333 = vpack.c.b16 %v3252, %v3251
    %v3334 = vpack.c.b16 %v3254, %v3253
    %v3335 = vpack.c.b16 %v3256, %v3255
    %v3336 = vpack.c.b16 %v3258, %v3257
    %v3337 = vpack.c.b16 %v3260, %v3259
    %v3338 = vpack.c.b16 %v3262, %v3261
    %v3339 = vpack.c.b16 %v3264, %v3263
    %v3340 = vpack.c.b16 %v3266, %v3265
    %v3341 = vpack.c.b16 %v3268, %v3267
    %v3342 = vpack.c.b16 %v3270, %v3269
    %v3343 = vpack.c.b16 %v3272, %v3271
    %v3344 = vpack.c.b16 %v3274, %v3273
    %v3345 = vpack.c.b16 %v3276, %v3275
    %v3346 = vpack.c.b16 %v3278, %v3277
    %v3347 = vpack.c.b16 %v3280, %v3279
    %v3348 = vpack.c.b16 %v3282, %v3281
    %v3349 = vpack.c.b16 %v3284, %v3283
    %v3350 = vpack.c.b16 %v3286, %v3285
    %3415 = vmatpush.bf16.msra.mxu0 %v3294
    %3416 = vmatpush.bf16.msra.mxu0 %v3293
    %3417 = vmatpush.bf16.msra.mxu0 %v3292
    %3418 = vmatpush.bf16.msra.mxu0 %v3291
    %3419 = vmatpush.bf16.msra.mxu0 %v3290
    %3420 = vmatpush.bf16.msra.mxu0 %v3289
    %3421 = vmatpush.bf16.msra.mxu0 %v3288
    %3422 = vmatpush.bf16.msra.mxu0 %v3287
    %3423 = vmatmul.bf16.gmra.mxu0 %v2891
    %v3424 = vpop.f32.mrf.mxu0
    %v3425 = vadd.f32 %v3029, %v3424
    %v3426 = vpop.f32.mrf.mxu0
    %3427 = vdwg.mxu0
    %3428 = vmatpush.bf16.msra.mxu0 %v3302
    %3429 = vmatpush.bf16.msra.mxu0 %v3301
    %3430 = vmatpush.bf16.msra.mxu0 %v3300
    %3431 = vmatpush.bf16.msra.mxu0 %v3299
    %3432 = vmatpush.bf16.msra.mxu0 %v3298
    %3433 = vmatpush.bf16.msra.mxu0 %v3297
    %3434 = vmatpush.bf16.msra.mxu0 %v3296
    %3435 = vmatpush.bf16.msra.mxu0 %v3295
    %3436 = vmatmul.bf16.gmra.mxu0 %v2892
    %v3437 = vpop.f32.mrf.mxu0
    %v3438 = vadd.f32 %v3425, %v3437
    %v3439 = vpop.f32.mrf.mxu0
    %3440 = vdwg.mxu0
    %3441 = vmatpush.bf16.msra.mxu0 %v3310
    %3442 = vmatpush.bf16.msra.mxu0 %v3309
    %3443 = vmatpush.bf16.msra.mxu0 %v3308
    %3444 = vmatpush.bf16.msra.mxu0 %v3307
    %3445 = vmatpush.bf16.msra.mxu0 %v3306
    %3446 = vmatpush.bf16.msra.mxu0 %v3305
    %3447 = vmatpush.bf16.msra.mxu0 %v3304
    %3448 = vmatpush.bf16.msra.mxu0 %v3303
    %3449 = vmatmul.bf16.gmra.mxu0 %v2893
    %v3450 = vpop.f32.mrf.mxu0
    %v3451 = vadd.f32 %v3438, %v3450
    %v3452 = vpop.f32.mrf.mxu0
    %3453 = vdwg.mxu0
    %3454 = vmatpush.bf16.msra.mxu0 %v3318
    %3455 = vmatpush.bf16.msra.mxu0 %v3317
    %3456 = vmatpush.bf16.msra.mxu0 %v3316
    %3457 = vmatpush.bf16.msra.mxu0 %v3315
    %3458 = vmatpush.bf16.msra.mxu0 %v3314
    %3459 = vmatpush.bf16.msra.mxu0 %v3313
    %3460 = vmatpush.bf16.msra.mxu0 %v3312
    %3461 = vmatpush.bf16.msra.mxu0 %v3311
    %3462 = vmatmul.bf16.gmra.mxu0 %v2894
    %v3463 = vpop.f32.mrf.mxu0
    %v3464 = vadd.f32 %v3451, %v3463
    %v3465 = vpop.f32.mrf.mxu0
    %3466 = vdwg.mxu0
    %3467 = vmatpush.bf16.msra.mxu0 %v3326
    %3468 = vmatpush.bf16.msra.mxu0 %v3325
    %3469 = vmatpush.bf16.msra.mxu0 %v3324
    %3470 = vmatpush.bf16.msra.mxu0 %v3323
    %3471 = vmatpush.bf16.msra.mxu0 %v3322
    %3472 = vmatpush.bf16.msra.mxu0 %v3321
    %3473 = vmatpush.bf16.msra.mxu0 %v3320
    %3474 = vmatpush.bf16.msra.mxu0 %v3319
    %3475 = vmatmul.bf16.gmra.mxu0 %v2895
    %v3476 = vpop.f32.mrf.mxu0
    %v3477 = vadd.f32 %v3464, %v3476
    %v3478 = vpop.f32.mrf.mxu0
    %3479 = vdwg.mxu0
    %3480 = vmatpush.bf16.msra.mxu0 %v3334
    %3481 = vmatpush.bf16.msra.mxu0 %v3333
    %3482 = vmatpush.bf16.msra.mxu0 %v3332
    %3483 = vmatpush.bf16.msra.mxu0 %v3331
    %3484 = vmatpush.bf16.msra.mxu0 %v3330
    %3485 = vmatpush.bf16.msra.mxu0 %v3329
    %3486 = vmatpush.bf16.msra.mxu0 %v3328
    %3487 = vmatpush.bf16.msra.mxu0 %v3327
    %3488 = vmatmul.bf16.gmra.mxu0 %v2896
    %v3489 = vpop.f32.mrf.mxu0
    %v3490 = vadd.f32 %v3477, %v3489
    %v3491 = vpop.f32.mrf.mxu0
    %3492 = vdwg.mxu0
    %3493 = vmatpush.bf16.msra.mxu0 %v3342
    %3494 = vmatpush.bf16.msra.mxu0 %v3341
    %3495 = vmatpush.bf16.msra.mxu0 %v3340
    %3496 = vmatpush.bf16.msra.mxu0 %v3339
    %3497 = vmatpush.bf16.msra.mxu0 %v3338
    %3498 = vmatpush.bf16.msra.mxu0 %v3337
    %3499 = vmatpush.bf16.msra.mxu0 %v3336
    %3500 = vmatpush.bf16.msra.mxu0 %v3335
    %3501 = vmatmul.bf16.gmra.mxu0 %v2897
    %v3502 = vpop.f32.mrf.mxu0
    %v3503 = vadd.f32 %v3490, %v3502
    %v3504 = vpop.f32.mrf.mxu0
    %3505 = vdwg.mxu0
    %3506 = vmatpush.bf16.msra.mxu0 %v3350
    %3507 = vmatpush.bf16.msra.mxu0 %v3349
    %3508 = vmatpush.bf16.msra.mxu0 %v3348
    %3509 = vmatpush.bf16.msra.mxu0 %v3347
    %3510 = vmatpush.bf16.msra.mxu0 %v3346
    %3511 = vmatpush.bf16.msra.mxu0 %v3345
    %3512 = vmatpush.bf16.msra.mxu0 %v3344
    %3513 = vmatpush.bf16.msra.mxu0 %v3343
    %3514 = vmatmul.bf16.gmra.mxu0 %v2898
    %v3515 = vpop.f32.mrf.mxu0
    %v3516 = vadd.f32 %v3503, %v3515
    %v3517 = vpop.f32.mrf.mxu0
    %3518 = vdwg.mxu0
    %v3519 = vmax.f32 %v3516, 0.0
    %v3520 = vpack.c.bf16 %v3519, %v3519
    %v3521 = vld [vmem:[#allocation8] sm:$0xf]
    %v3522 = vld [vmem:[#allocation8 + $0x4] sm:$0xf]
    %v3523 = vld [vmem:[#allocation8 + $0x8] sm:$0xf]
    %v3524 = vld [vmem:[#allocation8 + $0xc] sm:$0xf]
    %v3525 = vld [vmem:[#allocation8 + $0x10] sm:$0xf]
    %v3526 = vld [vmem:[#allocation8 + $0x14] sm:$0xf]
    %v3527 = vld [vmem:[#allocation8 + $0x18] sm:$0xf]
    %v3528 = vld [vmem:[#allocation8 + $0x1c] sm:$0xf]
    %v3529 = vld [vmem:[#allocation8 + $0x20] sm:$0xf]
    %v3530 = vld [vmem:[#allocation8 + $0x24] sm:$0xf]
    %v3531 = vld [vmem:[#allocation8 + $0x28] sm:$0xf]
    %v3532 = vld [vmem:[#allocation8 + $0x2c] sm:$0xf]
    %v3533 = vld [vmem:[#allocation8 + $0x30] sm:$0xf]
    %v3534 = vld [vmem:[#allocation8 + $0x34] sm:$0xf]
    %v3535 = vld [vmem:[#allocation8 + $0x38] sm:$0xf]
    %v3536 = vld [vmem:[#allocation8 + $0x3c] sm:$0xf]
    %v3537 = vld [vmem:[#allocation10] sm:$0x1]
    %v3539 = vperm.slane %v3537, 0
    %v3557 = vunpack.c.l.b16 %v3521
    %v3558 = vunpack.c.l.b16 %v3522
    %v3559 = vunpack.c.l.b16 %v3523
    %v3560 = vunpack.c.l.b16 %v3524
    %v3561 = vunpack.c.l.b16 %v3525
    %v3562 = vunpack.c.l.b16 %v3526
    %v3563 = vunpack.c.l.b16 %v3527
    %v3564 = vunpack.c.l.b16 %v3528
    %v3565 = vunpack.c.l.b16 %v3529
    %v3566 = vunpack.c.l.b16 %v3530
    %v3567 = vunpack.c.l.b16 %v3531
    %v3568 = vunpack.c.l.b16 %v3532
    %v3569 = vunpack.c.l.b16 %v3533
    %v3570 = vunpack.c.l.b16 %v3534
    %v3571 = vunpack.c.l.b16 %v3535
    %v3572 = vunpack.c.l.b16 %v3536
    %v3573 = vpack.c.b16 %v3558, %v3557
    %v3574 = vpack.c.b16 %v3560, %v3559
    %v3575 = vpack.c.b16 %v3562, %v3561
    %v3576 = vpack.c.b16 %v3564, %v3563
    %v3577 = vpack.c.b16 %v3566, %v3565
    %v3578 = vpack.c.b16 %v3568, %v3567
    %v3579 = vpack.c.b16 %v3570, %v3569
    %v3580 = vpack.c.b16 %v3572, %v3571
    %3589 = vmatpush.bf16.msra.mxu0 %v3580
    %3590 = vmatpush.bf16.msra.mxu0 %v3579
    %3591 = vmatpush.bf16.msra.mxu0 %v3578
    %3592 = vmatpush.bf16.msra.mxu0 %v3577
    %3593 = vmatpush.bf16.msra.mxu0 %v3576
    %3594 = vmatpush.bf16.msra.mxu0 %v3575
    %3595 = vmatpush.bf16.msra.mxu0 %v3574
    %3596 = vmatpush.bf16.msra.mxu0 %v3573
    %3597 = vmatmul.bf16.gmra.mxu0 %v3520
    %v3598 = vpop.f32.mrf.mxu0
    %v3599 = vadd.f32 %v3539, %v3598
    %v3600 = vpop.f32.mrf.mxu0
    %3601 = vdwg.mxu0
    %v3602 = vtanh.pop %v3599
    %v3603 = vpack.c.bf16 %v3602, %v3602
    %v3604 = vld [vmem:[#allocation11] sm:$0xff]
    %v3605 = vld [vmem:[#allocation11 + $0x8] sm:$0xff]
    %v3606 = vld [vmem:[#allocation11 + $0x10] sm:$0xff]
    %v3607 = vld [vmem:[#allocation11 + $0x18] sm:$0xff]
    %v3608 = vld [vmem:[#allocation11 + $0x20] sm:$0xff]
    %v3609 = vld [vmem:[#allocation11 + $0x28] sm:$0xff]
    %v3610 = vld [vmem:[#allocation11 + $0x30] sm:$0xff]
    %v3611 = vld [vmem:[#allocation11 + $0x38] sm:$0xff]
    %v3612 = vld [vmem:[#allocation11 + $0x40] sm:$0xff]
    %v3613 = vld [vmem:[#allocation11 + $0x48] sm:$0xff]
    %v3614 = vld [vmem:[#allocation11 + $0x50] sm:$0xff]
    %v3615 = vld [vmem:[#allocation11 + $0x58] sm:$0xff]
    %v3616 = vld [vmem:[#allocation11 + $0x60] sm:$0xff]
    %v3617 = vld [vmem:[#allocation11 + $0x68] sm:$0xff]
    %v3618 = vld [vmem:[#allocation11 + $0x70] sm:$0xff]
    %v3619 = vld [vmem:[#allocation11 + $0x78] sm:$0xff]
    %v3620 = vld [vmem:[#allocation11 + $0x80] sm:$0xff]
    %v3621 = vld [vmem:[#allocation11 + $0x88] sm:$0xff]
    %v3622 = vld [vmem:[#allocation11 + $0x90] sm:$0xff]
    %v3623 = vld [vmem:[#allocation11 + $0x98] sm:$0xff]
    %v3624 = vld [vmem:[#allocation11 + $0xa0] sm:$0xff]
    %v3625 = vld [vmem:[#allocation11 + $0xa8] sm:$0xff]
    %v3626 = vld [vmem:[#allocation11 + $0xb0] sm:$0xff]
    %v3627 = vld [vmem:[#allocation11 + $0xb8] sm:$0xff]
    %v3628 = vld [vmem:[#allocation11 + $0xc0] sm:$0xff]
    %v3629 = vld [vmem:[#allocation11 + $0xc8] sm:$0xff]
    %v3630 = vld [vmem:[#allocation11 + $0xd0] sm:$0xff]
    %v3631 = vld [vmem:[#allocation11 + $0xd8] sm:$0xff]
    %v3632 = vld [vmem:[#allocation11 + $0xe0] sm:$0xff]
    %v3633 = vld [vmem:[#allocation11 + $0xe8] sm:$0xff]
    %v3634 = vld [vmem:[#allocation11 + $0xf0] sm:$0xff]
    %v3635 = vld [vmem:[#allocation11 + $0xf8] sm:$0xff]
    %v3636 = vld [vmem:[#allocation13] sm:$0xff]
    %v3637 = vld [vmem:[#allocation13 + $0x8] sm:$0xff]
    %v3638 = vld [vmem:[#allocation13 + $0x10] sm:$0xff]
    %v3639 = vld [vmem:[#allocation13 + $0x18] sm:$0xff]
    %v3640 = vld [vmem:[#allocation13 + $0x20] sm:$0xff]
    %v3641 = vld [vmem:[#allocation13 + $0x28] sm:$0xff]
    %v3642 = vld [vmem:[#allocation13 + $0x30] sm:$0xff]
    %v3643 = vld [vmem:[#allocation13 + $0x38] sm:$0xff]
    %v3644 = vld [vmem:[#allocation13 + $0x40] sm:$0xff]
    %v3645 = vld [vmem:[#allocation13 + $0x48] sm:$0xff]
    %v3646 = vld [vmem:[#allocation13 + $0x50] sm:$0xff]
    %v3647 = vld [vmem:[#allocation13 + $0x58] sm:$0xff]
    %v3648 = vld [vmem:[#allocation13 + $0x60] sm:$0xff]
    %v3649 = vld [vmem:[#allocation13 + $0x68] sm:$0xff]
    %v3650 = vld [vmem:[#allocation13 + $0x70] sm:$0xff]
    %v3651 = vld [vmem:[#allocation13 + $0x78] sm:$0xff]
    %v3652 = vld [vmem:[#allocation13 + $0x80] sm:$0xff]
    %v3653 = vld [vmem:[#allocation13 + $0x88] sm:$0xff]
    %v3654 = vld [vmem:[#allocation13 + $0x90] sm:$0xff]
    %v3655 = vld [vmem:[#allocation13 + $0x98] sm:$0xff]
    %v3656 = vld [vmem:[#allocation13 + $0xa0] sm:$0xff]
    %v3657 = vld [vmem:[#allocation13 + $0xa8] sm:$0xff]
    %v3658 = vld [vmem:[#allocation13 + $0xb0] sm:$0xff]
    %v3659 = vld [vmem:[#allocation13 + $0xb8] sm:$0xff]
    %v3660 = vld [vmem:[#allocation13 + $0xc0] sm:$0xff]
    %v3661 = vld [vmem:[#allocation13 + $0xc8] sm:$0xff]
    %v3662 = vld [vmem:[#allocation13 + $0xd0] sm:$0xff]
    %v3663 = vld [vmem:[#allocation13 + $0xd8] sm:$0xff]
    %v3664 = vld [vmem:[#allocation13 + $0xe0] sm:$0xff]
    %v3665 = vld [vmem:[#allocation13 + $0xe8] sm:$0xff]
    %v3666 = vld [vmem:[#allocation13 + $0xf0] sm:$0xff]
    %v3667 = vld [vmem:[#allocation13 + $0xf8] sm:$0xff]
    %v3700 = vunpack.c.l.b16 %v3636
    %v3701 = vunpack.c.h.b16 %v3636
    %v3702 = vunpack.c.l.b16 %v3637
    %v3703 = vunpack.c.h.b16 %v3637
    %v3704 = vunpack.c.l.b16 %v3638
    %v3705 = vunpack.c.h.b16 %v3638
    %v3706 = vunpack.c.l.b16 %v3639
    %v3707 = vunpack.c.h.b16 %v3639
    %v3708 = vunpack.c.l.b16 %v3640
    %v3709 = vunpack.c.h.b16 %v3640
    %v3710 = vunpack.c.l.b16 %v3641
    %v3711 = vunpack.c.h.b16 %v3641
    %v3712 = vunpack.c.l.b16 %v3642
    %v3713 = vunpack.c.h.b16 %v3642
    %v3714 = vunpack.c.l.b16 %v3643
    %v3715 = vunpack.c.h.b16 %v3643
    %v3716 = vunpack.c.l.b16 %v3644
    %v3717 = vunpack.c.h.b16 %v3644
    %v3718 = vunpack.c.l.b16 %v3645
    %v3719 = vunpack.c.h.b16 %v3645
    %v3720 = vunpack.c.l.b16 %v3646
    %v3721 = vunpack.c.h.b16 %v3646
    %v3722 = vunpack.c.l.b16 %v3647
    %v3723 = vunpack.c.h.b16 %v3647
    %v3724 = vunpack.c.l.b16 %v3648
    %v3725 = vunpack.c.h.b16 %v3648
    %v3726 = vunpack.c.l.b16 %v3649
    %v3727 = vunpack.c.h.b16 %v3649
    %v3728 = vunpack.c.l.b16 %v3650
    %v3729 = vunpack.c.h.b16 %v3650
    %v3730 = vunpack.c.l.b16 %v3651
    %v3731 = vunpack.c.h.b16 %v3651
    %v3732 = vunpack.c.l.b16 %v3652
    %v3733 = vunpack.c.h.b16 %v3652
    %v3734 = vunpack.c.l.b16 %v3653
    %v3735 = vunpack.c.h.b16 %v3653
    %v3736 = vunpack.c.l.b16 %v3654
    %v3737 = vunpack.c.h.b16 %v3654
    %v3738 = vunpack.c.l.b16 %v3655
    %v3739 = vunpack.c.h.b16 %v3655
    %v3740 = vunpack.c.l.b16 %v3656
    %v3741 = vunpack.c.h.b16 %v3656
    %v3742 = vunpack.c.l.b16 %v3657
    %v3743 = vunpack.c.h.b16 %v3657
    %v3744 = vunpack.c.l.b16 %v3658
    %v3745 = vunpack.c.h.b16 %v3658
    %v3746 = vunpack.c.l.b16 %v3659
    %v3747 = vunpack.c.h.b16 %v3659
    %v3748 = vunpack.c.l.b16 %v3660
    %v3749 = vunpack.c.h.b16 %v3660
    %v3750 = vunpack.c.l.b16 %v3661
    %v3751 = vunpack.c.h.b16 %v3661
    %v3752 = vunpack.c.l.b16 %v3662
    %v3753 = vunpack.c.h.b16 %v3662
    %v3754 = vunpack.c.l.b16 %v3663
    %v3755 = vunpack.c.h.b16 %v3663
    %v3756 = vunpack.c.l.b16 %v3664
    %v3757 = vunpack.c.h.b16 %v3664
    %v3758 = vunpack.c.l.b16 %v3665
    %v3759 = vunpack.c.h.b16 %v3665
    %v3760 = vunpack.c.l.b16 %v3666
    %v3761 = vunpack.c.h.b16 %v3666
    %v3762 = vunpack.c.l.b16 %v3667
    %v3763 = vunpack.c.h.b16 %v3667
    %v3764 = vpack.c.b16 %v3704, %v3700
    %v3765 = vpack.c.b16 %v3705, %v3701
    %v3766 = vpack.c.b16 %v3706, %v3702
    %v3767 = vpack.c.b16 %v3707, %v3703
    %v3768 = vpack.c.b16 %v3712, %v3708
    %v3769 = vpack.c.b16 %v3713, %v3709
    %v3770 = vpack.c.b16 %v3714, %v3710
    %v3771 = vpack.c.b16 %v3715, %v3711
    %v3772 = vpack.c.b16 %v3720, %v3716
    %v3773 = vpack.c.b16 %v3721, %v3717
    %v3774 = vpack.c.b16 %v3722, %v3718
    %v3775 = vpack.c.b16 %v3723, %v3719
    %v3776 = vpack.c.b16 %v3728, %v3724
    %v3777 = vpack.c.b16 %v3729, %v3725
    %v3778 = vpack.c.b16 %v3730, %v3726
    %v3779 = vpack.c.b16 %v3731, %v3727
    %v3780 = vpack.c.b16 %v3736, %v3732
    %v3781 = vpack.c.b16 %v3737, %v3733
    %v3782 = vpack.c.b16 %v3738, %v3734
    %v3783 = vpack.c.b16 %v3739, %v3735
    %v3784 = vpack.c.b16 %v3744, %v3740
    %v3785 = vpack.c.b16 %v3745, %v3741
    %v3786 = vpack.c.b16 %v3746, %v3742
    %v3787 = vpack.c.b16 %v3747, %v3743
    %v3788 = vpack.c.b16 %v3752, %v3748
    %v3789 = vpack.c.b16 %v3753, %v3749
    %v3790 = vpack.c.b16 %v3754, %v3750
    %v3791 = vpack.c.b16 %v3755, %v3751
    %v3792 = vpack.c.b16 %v3760, %v3756
    %v3793 = vpack.c.b16 %v3761, %v3757
    %v3794 = vpack.c.b16 %v3762, %v3758
    %v3795 = vpack.c.b16 %v3763, %v3759
    %3828 = vmatpush.bf16.msra.mxu0 %v3792
    %3829 = vmatpush.bf16.msra.mxu0 %v3788
    %3830 = vmatpush.bf16.msra.mxu0 %v3784
    %3831 = vmatpush.bf16.msra.mxu0 %v3780
    %3832 = vmatpush.bf16.msra.mxu0 %v3776
    %3833 = vmatpush.bf16.msra.mxu0 %v3772
    %3834 = vmatpush.bf16.msra.mxu0 %v3768
    %3835 = vmatpush.bf16.msra.mxu0 %v3764
    %3836 = vmatmul.bf16.gmra.mxu0 %v2035
    %v3837 = vpop.f32.mrf.mxu0
    %v3838 = vadd.f32 0.0, %v3837
    %v3839 = vpop.f32.mrf.mxu0
    %3840 = vdwg.mxu0
    %3841 = vmatpush.bf16.msra.mxu0 %v3793
    %3842 = vmatpush.bf16.msra.mxu0 %v3789
    %3843 = vmatpush.bf16.msra.mxu0 %v3785
    %3844 = vmatpush.bf16.msra.mxu0 %v3781
    %3845 = vmatpush.bf16.msra.mxu0 %v3777
    %3846 = vmatpush.bf16.msra.mxu0 %v3773
    %3847 = vmatpush.bf16.msra.mxu0 %v3769
    %3848 = vmatpush.bf16.msra.mxu0 %v3765
    %3849 = vmatmul.bf16.gmra.mxu0 %v2035
    %v3850 = vpop.f32.mrf.mxu0
    %v3851 = vadd.f32 0.0, %v3850
    %v3852 = vpop.f32.mrf.mxu0
    %3853 = vdwg.mxu0
    %3854 = vmatpush.bf16.msra.mxu0 %v3794
    %3855 = vmatpush.bf16.msra.mxu0 %v3790
    %3856 = vmatpush.bf16.msra.mxu0 %v3786
    %3857 = vmatpush.bf16.msra.mxu0 %v3782
    %3858 = vmatpush.bf16.msra.mxu0 %v3778
    %3859 = vmatpush.bf16.msra.mxu0 %v3774
    %3860 = vmatpush.bf16.msra.mxu0 %v3770
    %3861 = vmatpush.bf16.msra.mxu0 %v3766
    %3862 = vmatmul.bf16.gmra.mxu0 %v2035
    %v3863 = vpop.f32.mrf.mxu0
    %v3864 = vadd.f32 0.0, %v3863
    %v3865 = vpop.f32.mrf.mxu0
    %3866 = vdwg.mxu0
    %3867 = vmatpush.bf16.msra.mxu0 %v3795
    %3868 = vmatpush.bf16.msra.mxu0 %v3791
    %3869 = vmatpush.bf16.msra.mxu0 %v3787
    %3870 = vmatpush.bf16.msra.mxu0 %v3783
    %3871 = vmatpush.bf16.msra.mxu0 %v3779
    %3872 = vmatpush.bf16.msra.mxu0 %v3775
    %3873 = vmatpush.bf16.msra.mxu0 %v3771
    %3874 = vmatpush.bf16.msra.mxu0 %v3767
    %3875 = vmatmul.bf16.gmra.mxu0 %v2035
    %v3876 = vpop.f32.mrf.mxu0
    %v3877 = vadd.f32 0.0, %v3876
    %v3878 = vpop.f32.mrf.mxu0
    %3879 = vdwg.mxu0
    %v3912 = vunpack.c.l.b16 %v3604
    %v3913 = vunpack.c.h.b16 %v3604
    %v3914 = vunpack.c.l.b16 %v3605
    %v3915 = vunpack.c.h.b16 %v3605
    %v3916 = vunpack.c.l.b16 %v3606
    %v3917 = vunpack.c.h.b16 %v3606
    %v3918 = vunpack.c.l.b16 %v3607
    %v3919 = vunpack.c.h.b16 %v3607
    %v3920 = vunpack.c.l.b16 %v3608
    %v3921 = vunpack.c.h.b16 %v3608
    %v3922 = vunpack.c.l.b16 %v3609
    %v3923 = vunpack.c.h.b16 %v3609
    %v3924 = vunpack.c.l.b16 %v3610
    %v3925 = vunpack.c.h.b16 %v3610
    %v3926 = vunpack.c.l.b16 %v3611
    %v3927 = vunpack.c.h.b16 %v3611
    %v3928 = vunpack.c.l.b16 %v3612
    %v3929 = vunpack.c.h.b16 %v3612
    %v3930 = vunpack.c.l.b16 %v3613
    %v3931 = vunpack.c.h.b16 %v3613
    %v3932 = vunpack.c.l.b16 %v3614
    %v3933 = vunpack.c.h.b16 %v3614
    %v3934 = vunpack.c.l.b16 %v3615
    %v3935 = vunpack.c.h.b16 %v3615
    %v3936 = vunpack.c.l.b16 %v3616
    %v3937 = vunpack.c.h.b16 %v3616
    %v3938 = vunpack.c.l.b16 %v3617
    %v3939 = vunpack.c.h.b16 %v3617
    %v3940 = vunpack.c.l.b16 %v3618
    %v3941 = vunpack.c.h.b16 %v3618
    %v3942 = vunpack.c.l.b16 %v3619
    %v3943 = vunpack.c.h.b16 %v3619
    %v3944 = vunpack.c.l.b16 %v3620
    %v3945 = vunpack.c.h.b16 %v3620
    %v3946 = vunpack.c.l.b16 %v3621
    %v3947 = vunpack.c.h.b16 %v3621
    %v3948 = vunpack.c.l.b16 %v3622
    %v3949 = vunpack.c.h.b16 %v3622
    %v3950 = vunpack.c.l.b16 %v3623
    %v3951 = vunpack.c.h.b16 %v3623
    %v3952 = vunpack.c.l.b16 %v3624
    %v3953 = vunpack.c.h.b16 %v3624
    %v3954 = vunpack.c.l.b16 %v3625
    %v3955 = vunpack.c.h.b16 %v3625
    %v3956 = vunpack.c.l.b16 %v3626
    %v3957 = vunpack.c.h.b16 %v3626
    %v3958 = vunpack.c.l.b16 %v3627
    %v3959 = vunpack.c.h.b16 %v3627
    %v3960 = vunpack.c.l.b16 %v3628
    %v3961 = vunpack.c.h.b16 %v3628
    %v3962 = vunpack.c.l.b16 %v3629
    %v3963 = vunpack.c.h.b16 %v3629
    %v3964 = vunpack.c.l.b16 %v3630
    %v3965 = vunpack.c.h.b16 %v3630
    %v3966 = vunpack.c.l.b16 %v3631
    %v3967 = vunpack.c.h.b16 %v3631
    %v3968 = vunpack.c.l.b16 %v3632
    %v3969 = vunpack.c.h.b16 %v3632
    %v3970 = vunpack.c.l.b16 %v3633
    %v3971 = vunpack.c.h.b16 %v3633
    %v3972 = vunpack.c.l.b16 %v3634
    %v3973 = vunpack.c.h.b16 %v3634
    %v3974 = vunpack.c.l.b16 %v3635
    %v3975 = vunpack.c.h.b16 %v3635
    %v3976 = vpack.c.b16 %v3916, %v3912
    %v3977 = vpack.c.b16 %v3917, %v3913
    %v3978 = vpack.c.b16 %v3918, %v3914
    %v3979 = vpack.c.b16 %v3919, %v3915
    %v3980 = vpack.c.b16 %v3924, %v3920
    %v3981 = vpack.c.b16 %v3925, %v3921
    %v3982 = vpack.c.b16 %v3926, %v3922
    %v3983 = vpack.c.b16 %v3927, %v3923
    %v3984 = vpack.c.b16 %v3932, %v3928
    %v3985 = vpack.c.b16 %v3933, %v3929
    %v3986 = vpack.c.b16 %v3934, %v3930
    %v3987 = vpack.c.b16 %v3935, %v3931
    %v3988 = vpack.c.b16 %v3940, %v3936
    %v3989 = vpack.c.b16 %v3941, %v3937
    %v3990 = vpack.c.b16 %v3942, %v3938
    %v3991 = vpack.c.b16 %v3943, %v3939
    %v3992 = vpack.c.b16 %v3948, %v3944
    %v3993 = vpack.c.b16 %v3949, %v3945
    %v3994 = vpack.c.b16 %v3950, %v3946
    %v3995 = vpack.c.b16 %v3951, %v3947
    %v3996 = vpack.c.b16 %v3956, %v3952
    %v3997 = vpack.c.b16 %v3957, %v3953
    %v3998 = vpack.c.b16 %v3958, %v3954
    %v3999 = vpack.c.b16 %v3959, %v3955
    %v4000 = vpack.c.b16 %v3964, %v3960
    %v4001 = vpack.c.b16 %v3965, %v3961
    %v4002 = vpack.c.b16 %v3966, %v3962
    %v4003 = vpack.c.b16 %v3967, %v3963
    %v4004 = vpack.c.b16 %v3972, %v3968
    %v4005 = vpack.c.b16 %v3973, %v3969
    %v4006 = vpack.c.b16 %v3974, %v3970
    %v4007 = vpack.c.b16 %v3975, %v3971
    %4040 = vmatpush.bf16.msra.mxu0 %v4004
    %4041 = vmatpush.bf16.msra.mxu0 %v4000
    %4042 = vmatpush.bf16.msra.mxu0 %v3996
    %4043 = vmatpush.bf16.msra.mxu0 %v3992
    %4044 = vmatpush.bf16.msra.mxu0 %v3988
    %4045 = vmatpush.bf16.msra.mxu0 %v3984
    %4046 = vmatpush.bf16.msra.mxu0 %v3980
    %4047 = vmatpush.bf16.msra.mxu0 %v3976
    %4048 = vmatmul.bf16.gmra.mxu0 %v3603
    %v4049 = vpop.f32.mrf.mxu0
    %v4050 = vadd.f32 %v3838, %v4049
    %v4051 = vpop.f32.mrf.mxu0
    %4052 = vdwg.mxu0
    %4053 = vmatpush.bf16.msra.mxu0 %v4005
    %4054 = vmatpush.bf16.msra.mxu0 %v4001
    %4055 = vmatpush.bf16.msra.mxu0 %v3997
    %4056 = vmatpush.bf16.msra.mxu0 %v3993
    %4057 = vmatpush.bf16.msra.mxu0 %v3989
    %4058 = vmatpush.bf16.msra.mxu0 %v3985
    %4059 = vmatpush.bf16.msra.mxu0 %v3981
    %4060 = vmatpush.bf16.msra.mxu0 %v3977
    %4061 = vmatmul.bf16.gmra.mxu0 %v3603
    %v4062 = vpop.f32.mrf.mxu0
    %v4063 = vadd.f32 %v3851, %v4062
    %v4064 = vpop.f32.mrf.mxu0
    %4065 = vdwg.mxu0
    %4066 = vmatpush.bf16.msra.mxu0 %v4006
    %4067 = vmatpush.bf16.msra.mxu0 %v4002
    %4068 = vmatpush.bf16.msra.mxu0 %v3998
    %4069 = vmatpush.bf16.msra.mxu0 %v3994
    %4070 = vmatpush.bf16.msra.mxu0 %v3990
    %4071 = vmatpush.bf16.msra.mxu0 %v3986
    %4072 = vmatpush.bf16.msra.mxu0 %v3982
    %4073 = vmatpush.bf16.msra.mxu0 %v3978
    %4074 = vmatmul.bf16.gmra.mxu0 %v3603
    %v4075 = vpop.f32.mrf.mxu0
    %v4076 = vadd.f32 %v3864, %v4075
    %v4077 = vpop.f32.mrf.mxu0
    %4078 = vdwg.mxu0
    %4079 = vmatpush.bf16.msra.mxu0 %v4007
    %4080 = vmatpush.bf16.msra.mxu0 %v4003
    %4081 = vmatpush.bf16.msra.mxu0 %v3999
    %4082 = vmatpush.bf16.msra.mxu0 %v3995
    %4083 = vmatpush.bf16.msra.mxu0 %v3991
    %4084 = vmatpush.bf16.msra.mxu0 %v3987
    %4085 = vmatpush.bf16.msra.mxu0 %v3983
    %4086 = vmatpush.bf16.msra.mxu0 %v3979
    %4087 = vmatmul.bf16.gmra.mxu0 %v3603
    %v4088 = vpop.f32.mrf.mxu0
    %v4089 = vadd.f32 %v3877, %v4088
    %v4090 = vpop.f32.mrf.mxu0
    %4091 = vdwg.mxu0
    %v4092 = vld [vmem:[%s7] sm:$0xf]
    %v4094 = vperm.slane %v4092, 0
    %v4095 = vperm.slane %v4092, 1
    %v4096 = vperm.slane %v4092, 2
    %v4097 = vperm.slane %v4092, 3
    %v4102 = vadd.f32 %v4050, %v4094
    %v4103 = vadd.f32 %v4063, %v4095
    %v4104 = vadd.f32 %v4076, %v4096
    %v4105 = vadd.f32 %v4089, %v4097
    %v4106 = vxor.u32 %v4102, 2147483648
    %v4107 = vmul.f32 %v4106, 1.442695
    %v4108 = vpow.pop %v4107
    %v4109 = vadd.f32 %v4108, 1.0
    %v4110 = vrcp.pop %v4109
    %v4111 = vmul.f32 %v4109, %v4110
    %v4112 = vsub.f32 1.0, %v4111
    %v4113 = vmul.f32 %v4110, %v4112
    %v4114 = vadd.f32 %v4110, %v4113
    %vm4115 = vweird.f32 %v4109
    %vm4116 = vweird.f32 %v4110
    %vm4117 = vmor %vm4115, %vm4116
    %v4118 = vsel %vm4117, %v4110, %v4114
    %v4119 = vand.u32 2147483647, %v4109
    %vm4120 = vcmp.eq.f32.partialorder %v4119, 8.507059e+37
    %v4121 = vand.u32 %v4109, 2147483648
    %v4122 = vor.u32 1.1754944e-38, %v4121
    %v4123 = vsel %vm4120, %v4122, %v4118
    %v4124 = vmul.f32 1.0, %v4123
    %v4125 = vxor.u32 %v4103, 2147483648
    %v4126 = vmul.f32 %v4125, 1.442695
    %v4127 = vpow.pop %v4126
    %v4128 = vadd.f32 %v4127, 1.0
    %v4129 = vrcp.pop %v4128
    %v4130 = vmul.f32 %v4128, %v4129
    %v4131 = vsub.f32 1.0, %v4130
    %v4132 = vmul.f32 %v4129, %v4131
    %v4133 = vadd.f32 %v4129, %v4132
    %vm4134 = vweird.f32 %v4128
    %vm4135 = vweird.f32 %v4129
    %vm4136 = vmor %vm4134, %vm4135
    %v4137 = vsel %vm4136, %v4129, %v4133
    %v4138 = vand.u32 2147483647, %v4128
    %vm4139 = vcmp.eq.f32.partialorder %v4138, 8.507059e+37
    %v4140 = vand.u32 %v4128, 2147483648
    %v4141 = vor.u32 1.1754944e-38, %v4140
    %v4142 = vsel %vm4139, %v4141, %v4137
    %v4143 = vmul.f32 1.0, %v4142
    %v4144 = vtanh.pop %v4104
    %v4145 = vxor.u32 %v4105, 2147483648
    %v4146 = vmul.f32 %v4145, 1.442695
    %v4147 = vpow.pop %v4146
    %v4148 = vadd.f32 %v4147, 1.0
    %v4149 = vrcp.pop %v4148
    %v4150 = vmul.f32 %v4148, %v4149
    %v4151 = vsub.f32 1.0, %v4150
    %v4152 = vmul.f32 %v4149, %v4151
    %v4153 = vadd.f32 %v4149, %v4152
    %vm4154 = vweird.f32 %v4148
    %vm4155 = vweird.f32 %v4149
    %vm4156 = vmor %vm4154, %vm4155
    %v4157 = vsel %vm4156, %v4149, %v4153
    %v4158 = vand.u32 2147483647, %v4148
    %vm4159 = vcmp.eq.f32.partialorder %v4158, 8.507059e+37
    %v4160 = vand.u32 %v4148, 2147483648
    %v4161 = vor.u32 1.1754944e-38, %v4160
    %v4162 = vsel %vm4159, %v4161, %v4157
    %v4163 = vmul.f32 1.0, %v4162
    %v4164 = vmul.f32 %v4143, %v2032
    %v4165 = vmul.f32 %v4124, %v4144
    %v4166 = vadd.f32 %v4164, %v4165
    %v4167 = vtanh.pop %v4166
    %v4168 = vmul.f32 %v4163, %v4167
    %v4169 = vpack.c.bf16 %v4168, %v4168
    %v4170 = vld [vmem:[#allocation14] sm:$0xf]
    %v4171 = vld [vmem:[#allocation14 + $0x4] sm:$0xf]
    %v4172 = vld [vmem:[#allocation14 + $0x8] sm:$0xf]
    %v4173 = vld [vmem:[#allocation14 + $0xc] sm:$0xf]
    %v4174 = vld [vmem:[#allocation14 + $0x10] sm:$0xf]
    %v4175 = vld [vmem:[#allocation14 + $0x14] sm:$0xf]
    %v4176 = vld [vmem:[#allocation14 + $0x18] sm:$0xf]
    %v4177 = vld [vmem:[#allocation14 + $0x1c] sm:$0xf]
    %v4178 = vld [vmem:[#allocation14 + $0x20] sm:$0xf]
    %v4179 = vld [vmem:[#allocation14 + $0x24] sm:$0xf]
    %v4180 = vld [vmem:[#allocation14 + $0x28] sm:$0xf]
    %v4181 = vld [vmem:[#allocation14 + $0x2c] sm:$0xf]
    %v4182 = vld [vmem:[#allocation14 + $0x30] sm:$0xf]
    %v4183 = vld [vmem:[#allocation14 + $0x34] sm:$0xf]
    %v4184 = vld [vmem:[#allocation14 + $0x38] sm:$0xf]
    %v4185 = vld [vmem:[#allocation14 + $0x3c] sm:$0xf]
    %v4186 = vld [vmem:[#allocation16] sm:$0x1]
    %v4188 = vperm.slane %v4186, 0
    %v4206 = vunpack.c.l.b16 %v4170
    %v4207 = vunpack.c.l.b16 %v4171
    %v4208 = vunpack.c.l.b16 %v4172
    %v4209 = vunpack.c.l.b16 %v4173
    %v4210 = vunpack.c.l.b16 %v4174
    %v4211 = vunpack.c.l.b16 %v4175
    %v4212 = vunpack.c.l.b16 %v4176
    %v4213 = vunpack.c.l.b16 %v4177
    %v4214 = vunpack.c.l.b16 %v4178
    %v4215 = vunpack.c.l.b16 %v4179
    %v4216 = vunpack.c.l.b16 %v4180
    %v4217 = vunpack.c.l.b16 %v4181
    %v4218 = vunpack.c.l.b16 %v4182
    %v4219 = vunpack.c.l.b16 %v4183
    %v4220 = vunpack.c.l.b16 %v4184
    %v4221 = vunpack.c.l.b16 %v4185
    %v4222 = vpack.c.b16 %v4207, %v4206
    %v4223 = vpack.c.b16 %v4209, %v4208
    %v4224 = vpack.c.b16 %v4211, %v4210
    %v4225 = vpack.c.b16 %v4213, %v4212
    %v4226 = vpack.c.b16 %v4215, %v4214
    %v4227 = vpack.c.b16 %v4217, %v4216
    %v4228 = vpack.c.b16 %v4219, %v4218
    %v4229 = vpack.c.b16 %v4221, %v4220
    %4238 = vmatpush.bf16.msra.mxu0 %v4229
    %4239 = vmatpush.bf16.msra.mxu0 %v4228
    %4240 = vmatpush.bf16.msra.mxu0 %v4227
    %4241 = vmatpush.bf16.msra.mxu0 %v4226
    %4242 = vmatpush.bf16.msra.mxu0 %v4225
    %4243 = vmatpush.bf16.msra.mxu0 %v4224
    %4244 = vmatpush.bf16.msra.mxu0 %v4223
    %4245 = vmatpush.bf16.msra.mxu0 %v4222
    %4246 = vmatmul.bf16.gmra.mxu0 %v4169
    %v4247 = vpop.f32.mrf.mxu0
    %v4248 = vadd.f32 %v4188, %v4247
    %v4249 = vpop.f32.mrf.mxu0
    %4250 = vdwg.mxu0
    %v4251 = vtanh.pop %v4248
    %v4252 = vpack.c.bf16 %v4251, %v4251
    %v4253 = vld [vmem:[#allocation17] sm:$0xf]
    %v4254 = vld [vmem:[#allocation17 + $0x4] sm:$0xf]
    %v4255 = vld [vmem:[#allocation17 + $0x8] sm:$0xf]
    %v4256 = vld [vmem:[#allocation17 + $0xc] sm:$0xf]
    %v4257 = vld [vmem:[#allocation17 + $0x10] sm:$0xf]
    %v4258 = vld [vmem:[#allocation17 + $0x14] sm:$0xf]
    %v4259 = vld [vmem:[#allocation17 + $0x18] sm:$0xf]
    %v4260 = vld [vmem:[#allocation17 + $0x1c] sm:$0xf]
    %v4261 = vld [vmem:[#allocation17 + $0x20] sm:$0xf]
    %v4262 = vld [vmem:[#allocation17 + $0x24] sm:$0xf]
    %v4263 = vld [vmem:[#allocation17 + $0x28] sm:$0xf]
    %v4264 = vld [vmem:[#allocation17 + $0x2c] sm:$0xf]
    %v4265 = vld [vmem:[#allocation17 + $0x30] sm:$0xf]
    %v4266 = vld [vmem:[#allocation17 + $0x34] sm:$0xf]
    %v4267 = vld [vmem:[#allocation17 + $0x38] sm:$0xf]
    %v4268 = vld [vmem:[#allocation17 + $0x3c] sm:$0xf]
    %v4269 = vld [vmem:[#allocation19] sm:$0x1]
    %v4271 = vperm.slane %v4269, 0
    %v4289 = vunpack.c.l.b16 %v4253
    %v4290 = vunpack.c.l.b16 %v4254
    %v4291 = vunpack.c.l.b16 %v4255
    %v4292 = vunpack.c.l.b16 %v4256
    %v4293 = vunpack.c.l.b16 %v4257
    %v4294 = vunpack.c.l.b16 %v4258
    %v4295 = vunpack.c.l.b16 %v4259
    %v4296 = vunpack.c.l.b16 %v4260
    %v4297 = vunpack.c.l.b16 %v4261
    %v4298 = vunpack.c.l.b16 %v4262
    %v4299 = vunpack.c.l.b16 %v4263
    %v4300 = vunpack.c.l.b16 %v4264
    %v4301 = vunpack.c.l.b16 %v4265
    %v4302 = vunpack.c.l.b16 %v4266
    %v4303 = vunpack.c.l.b16 %v4267
    %v4304 = vunpack.c.l.b16 %v4268
    %v4305 = vpack.c.b16 %v4290, %v4289
    %v4306 = vpack.c.b16 %v4292, %v4291
    %v4307 = vpack.c.b16 %v4294, %v4293
    %v4308 = vpack.c.b16 %v4296, %v4295
    %v4309 = vpack.c.b16 %v4298, %v4297
    %v4310 = vpack.c.b16 %v4300, %v4299
    %v4311 = vpack.c.b16 %v4302, %v4301
    %v4312 = vpack.c.b16 %v4304, %v4303
    %4321 = vmatpush.bf16.msra.mxu0 %v4312
    %4322 = vmatpush.bf16.msra.mxu0 %v4311
    %4323 = vmatpush.bf16.msra.mxu0 %v4310
    %4324 = vmatpush.bf16.msra.mxu0 %v4309
    %4325 = vmatpush.bf16.msra.mxu0 %v4308
    %4326 = vmatpush.bf16.msra.mxu0 %v4307
    %4327 = vmatpush.bf16.msra.mxu0 %v4306
    %4328 = vmatpush.bf16.msra.mxu0 %v4305
    %4329 = vmatmul.bf16.gmra.mxu0 %v4252
    %v4330 = vpop.f32.mrf.mxu0
    %v4331 = vadd.f32 %v4271, %v4330
    %v4332 = vpop.f32.mrf.mxu0
    %4333 = vdwg.mxu0
    %v4334 = vadd.f32 %v4331, %v2201
    %v4335 = vmax.f32 %v4334, 0.0
    %v4336 = vpack.c.bf16 %v4335, %v4335
    %v4337 = vld [vmem:[#allocation20] sm:$0xff]
    %v4338 = vld [vmem:[#allocation20 + $0x8] sm:$0xff]
    %v4339 = vld [vmem:[#allocation20 + $0x10] sm:$0xff]
    %v4340 = vld [vmem:[#allocation20 + $0x18] sm:$0xff]
    %v4341 = vld [vmem:[#allocation20 + $0x20] sm:$0xff]
    %v4342 = vld [vmem:[#allocation20 + $0x28] sm:$0xff]
    %v4343 = vld [vmem:[#allocation20 + $0x30] sm:$0xff]
    %v4344 = vld [vmem:[#allocation20 + $0x38] sm:$0xff]
    %v4345 = vld [vmem:[#allocation20 + $0x40] sm:$0xff]
    %v4346 = vld [vmem:[#allocation20 + $0x48] sm:$0xff]
    %v4347 = vld [vmem:[#allocation20 + $0x50] sm:$0xff]
    %v4348 = vld [vmem:[#allocation20 + $0x58] sm:$0xff]
    %v4349 = vld [vmem:[#allocation20 + $0x60] sm:$0xff]
    %v4350 = vld [vmem:[#allocation20 + $0x68] sm:$0xff]
    %v4351 = vld [vmem:[#allocation20 + $0x70] sm:$0xff]
    %v4352 = vld [vmem:[#allocation20 + $0x78] sm:$0xff]
    %v4353 = vld [vmem:[#allocation20 + $0x80] sm:$0xff]
    %v4354 = vld [vmem:[#allocation20 + $0x88] sm:$0xff]
    %v4355 = vld [vmem:[#allocation20 + $0x90] sm:$0xff]
    %v4356 = vld [vmem:[#allocation20 + $0x98] sm:$0xff]
    %v4357 = vld [vmem:[#allocation20 + $0xa0] sm:$0xff]
    %v4358 = vld [vmem:[#allocation20 + $0xa8] sm:$0xff]
    %v4359 = vld [vmem:[#allocation20 + $0xb0] sm:$0xff]
    %v4360 = vld [vmem:[#allocation20 + $0xb8] sm:$0xff]
    %v4361 = vld [vmem:[#allocation20 + $0xc0] sm:$0xff]
    %v4362 = vld [vmem:[#allocation20 + $0xc8] sm:$0xff]
    %v4363 = vld [vmem:[#allocation20 + $0xd0] sm:$0xff]
    %v4364 = vld [vmem:[#allocation20 + $0xd8] sm:$0xff]
    %v4365 = vld [vmem:[#allocation20 + $0xe0] sm:$0xff]
    %v4366 = vld [vmem:[#allocation20 + $0xe8] sm:$0xff]
    %v4367 = vld [vmem:[#allocation20 + $0xf0] sm:$0xff]
    %v4368 = vld [vmem:[#allocation20 + $0xf8] sm:$0xff]
    %v4369 = vld [vmem:[#allocation20 + $0x100] sm:$0xff]
    %v4370 = vld [vmem:[#allocation20 + $0x108] sm:$0xff]
    %v4371 = vld [vmem:[#allocation20 + $0x110] sm:$0xff]
    %v4372 = vld [vmem:[#allocation20 + $0x118] sm:$0xff]
    %v4373 = vld [vmem:[#allocation20 + $0x120] sm:$0xff]
    %v4374 = vld [vmem:[#allocation20 + $0x128] sm:$0xff]
    %v4375 = vld [vmem:[#allocation20 + $0x130] sm:$0xff]
    %v4376 = vld [vmem:[#allocation20 + $0x138] sm:$0xff]
    %v4377 = vld [vmem:[#allocation20 + $0x140] sm:$0xff]
    %v4378 = vld [vmem:[#allocation20 + $0x148] sm:$0xff]
    %v4379 = vld [vmem:[#allocation20 + $0x150] sm:$0xff]
    %v4380 = vld [vmem:[#allocation20 + $0x158] sm:$0xff]
    %v4381 = vld [vmem:[#allocation20 + $0x160] sm:$0xff]
    %v4382 = vld [vmem:[#allocation20 + $0x168] sm:$0xff]
    %v4383 = vld [vmem:[#allocation20 + $0x170] sm:$0xff]
    %v4384 = vld [vmem:[#allocation20 + $0x178] sm:$0xff]
    %v4385 = vld [vmem:[#allocation20 + $0x180] sm:$0xff]
    %v4386 = vld [vmem:[#allocation20 + $0x188] sm:$0xff]
    %v4387 = vld [vmem:[#allocation20 + $0x190] sm:$0xff]
    %v4388 = vld [vmem:[#allocation20 + $0x198] sm:$0xff]
    %v4389 = vld [vmem:[#allocation20 + $0x1a0] sm:$0xff]
    %v4390 = vld [vmem:[#allocation20 + $0x1a8] sm:$0xff]
    %v4391 = vld [vmem:[#allocation20 + $0x1b0] sm:$0xff]
    %v4392 = vld [vmem:[#allocation20 + $0x1b8] sm:$0xff]
    %v4393 = vld [vmem:[#allocation20 + $0x1c0] sm:$0xff]
    %v4394 = vld [vmem:[#allocation20 + $0x1c8] sm:$0xff]
    %v4395 = vld [vmem:[#allocation20 + $0x1d0] sm:$0xff]
    %v4396 = vld [vmem:[#allocation20 + $0x1d8] sm:$0xff]
    %v4397 = vld [vmem:[#allocation20 + $0x1e0] sm:$0xff]
    %v4398 = vld [vmem:[#allocation20 + $0x1e8] sm:$0xff]
    %v4399 = vld [vmem:[#allocation20 + $0x1f0] sm:$0xff]
    %v4400 = vld [vmem:[#allocation20 + $0x1f8] sm:$0xff]
    %v4401 = vld [vmem:[%s13] sm:$0xff]
    %v4403 = vperm.slane %v4401, 0
    %v4404 = vperm.slane %v4401, 1
    %v4405 = vperm.slane %v4401, 2
    %v4406 = vperm.slane %v4401, 3
    %v4407 = vperm.slane %v4401, 4
    %v4408 = vperm.slane %v4401, 5
    %v4409 = vperm.slane %v4401, 6
    %v4410 = vperm.slane %v4401, 7
    %v4483 = vunpack.c.l.b16 %v4337
    %v4484 = vunpack.c.h.b16 %v4337
    %v4485 = vunpack.c.l.b16 %v4338
    %v4486 = vunpack.c.h.b16 %v4338
    %v4487 = vunpack.c.l.b16 %v4339
    %v4488 = vunpack.c.h.b16 %v4339
    %v4489 = vunpack.c.l.b16 %v4340
    %v4490 = vunpack.c.h.b16 %v4340
    %v4491 = vunpack.c.l.b16 %v4341
    %v4492 = vunpack.c.h.b16 %v4341
    %v4493 = vunpack.c.l.b16 %v4342
    %v4494 = vunpack.c.h.b16 %v4342
    %v4495 = vunpack.c.l.b16 %v4343
    %v4496 = vunpack.c.h.b16 %v4343
    %v4497 = vunpack.c.l.b16 %v4344
    %v4498 = vunpack.c.h.b16 %v4344
    %v4499 = vunpack.c.l.b16 %v4345
    %v4500 = vunpack.c.h.b16 %v4345
    %v4501 = vunpack.c.l.b16 %v4346
    %v4502 = vunpack.c.h.b16 %v4346
    %v4503 = vunpack.c.l.b16 %v4347
    %v4504 = vunpack.c.h.b16 %v4347
    %v4505 = vunpack.c.l.b16 %v4348
    %v4506 = vunpack.c.h.b16 %v4348
    %v4507 = vunpack.c.l.b16 %v4349
    %v4508 = vunpack.c.h.b16 %v4349
    %v4509 = vunpack.c.l.b16 %v4350
    %v4510 = vunpack.c.h.b16 %v4350
    %v4511 = vunpack.c.l.b16 %v4351
    %v4512 = vunpack.c.h.b16 %v4351
    %v4513 = vunpack.c.l.b16 %v4352
    %v4514 = vunpack.c.h.b16 %v4352
    %v4515 = vunpack.c.l.b16 %v4353
    %v4516 = vunpack.c.h.b16 %v4353
    %v4517 = vunpack.c.l.b16 %v4354
    %v4518 = vunpack.c.h.b16 %v4354
    %v4519 = vunpack.c.l.b16 %v4355
    %v4520 = vunpack.c.h.b16 %v4355
    %v4521 = vunpack.c.l.b16 %v4356
    %v4522 = vunpack.c.h.b16 %v4356
    %v4523 = vunpack.c.l.b16 %v4357
    %v4524 = vunpack.c.h.b16 %v4357
    %v4525 = vunpack.c.l.b16 %v4358
    %v4526 = vunpack.c.h.b16 %v4358
    %v4527 = vunpack.c.l.b16 %v4359
    %v4528 = vunpack.c.h.b16 %v4359
    %v4529 = vunpack.c.l.b16 %v4360
    %v4530 = vunpack.c.h.b16 %v4360
    %v4531 = vunpack.c.l.b16 %v4361
    %v4532 = vunpack.c.h.b16 %v4361
    %v4533 = vunpack.c.l.b16 %v4362
    %v4534 = vunpack.c.h.b16 %v4362
    %v4535 = vunpack.c.l.b16 %v4363
    %v4536 = vunpack.c.h.b16 %v4363
    %v4537 = vunpack.c.l.b16 %v4364
    %v4538 = vunpack.c.h.b16 %v4364
    %v4539 = vunpack.c.l.b16 %v4365
    %v4540 = vunpack.c.h.b16 %v4365
    %v4541 = vunpack.c.l.b16 %v4366
    %v4542 = vunpack.c.h.b16 %v4366
    %v4543 = vunpack.c.l.b16 %v4367
    %v4544 = vunpack.c.h.b16 %v4367
    %v4545 = vunpack.c.l.b16 %v4368
    %v4546 = vunpack.c.h.b16 %v4368
    %v4547 = vunpack.c.l.b16 %v4369
    %v4548 = vunpack.c.h.b16 %v4369
    %v4549 = vunpack.c.l.b16 %v4370
    %v4550 = vunpack.c.h.b16 %v4370
    %v4551 = vunpack.c.l.b16 %v4371
    %v4552 = vunpack.c.h.b16 %v4371
    %v4553 = vunpack.c.l.b16 %v4372
    %v4554 = vunpack.c.h.b16 %v4372
    %v4555 = vunpack.c.l.b16 %v4373
    %v4556 = vunpack.c.h.b16 %v4373
    %v4557 = vunpack.c.l.b16 %v4374
    %v4558 = vunpack.c.h.b16 %v4374
    %v4559 = vunpack.c.l.b16 %v4375
    %v4560 = vunpack.c.h.b16 %v4375
    %v4561 = vunpack.c.l.b16 %v4376
    %v4562 = vunpack.c.h.b16 %v4376
    %v4563 = vunpack.c.l.b16 %v4377
    %v4564 = vunpack.c.h.b16 %v4377
    %v4565 = vunpack.c.l.b16 %v4378
    %v4566 = vunpack.c.h.b16 %v4378
    %v4567 = vunpack.c.l.b16 %v4379
    %v4568 = vunpack.c.h.b16 %v4379
    %v4569 = vunpack.c.l.b16 %v4380
    %v4570 = vunpack.c.h.b16 %v4380
    %v4571 = vunpack.c.l.b16 %v4381
    %v4572 = vunpack.c.h.b16 %v4381
    %v4573 = vunpack.c.l.b16 %v4382
    %v4574 = vunpack.c.h.b16 %v4382
    %v4575 = vunpack.c.l.b16 %v4383
    %v4576 = vunpack.c.h.b16 %v4383
    %v4577 = vunpack.c.l.b16 %v4384
    %v4578 = vunpack.c.h.b16 %v4384
    %v4579 = vunpack.c.l.b16 %v4385
    %v4580 = vunpack.c.h.b16 %v4385
    %v4581 = vunpack.c.l.b16 %v4386
    %v4582 = vunpack.c.h.b16 %v4386
    %v4583 = vunpack.c.l.b16 %v4387
    %v4584 = vunpack.c.h.b16 %v4387
    %v4585 = vunpack.c.l.b16 %v4388
    %v4586 = vunpack.c.h.b16 %v4388
    %v4587 = vunpack.c.l.b16 %v4389
    %v4588 = vunpack.c.h.b16 %v4389
    %v4589 = vunpack.c.l.b16 %v4390
    %v4590 = vunpack.c.h.b16 %v4390
    %v4591 = vunpack.c.l.b16 %v4391
    %v4592 = vunpack.c.h.b16 %v4391
    %v4593 = vunpack.c.l.b16 %v4392
    %v4594 = vunpack.c.h.b16 %v4392
    %v4595 = vunpack.c.l.b16 %v4393
    %v4596 = vunpack.c.h.b16 %v4393
    %v4597 = vunpack.c.l.b16 %v4394
    %v4598 = vunpack.c.h.b16 %v4394
    %v4599 = vunpack.c.l.b16 %v4395
    %v4600 = vunpack.c.h.b16 %v4395
    %v4601 = vunpack.c.l.b16 %v4396
    %v4602 = vunpack.c.h.b16 %v4396
    %v4603 = vunpack.c.l.b16 %v4397
    %v4604 = vunpack.c.h.b16 %v4397
    %v4605 = vunpack.c.l.b16 %v4398
    %v4606 = vunpack.c.h.b16 %v4398
    %v4607 = vunpack.c.l.b16 %v4399
    %v4608 = vunpack.c.h.b16 %v4399
    %v4609 = vunpack.c.l.b16 %v4400
    %v4610 = vunpack.c.h.b16 %v4400
    %v4611 = vpack.c.b16 %v4491, %v4483
    %v4612 = vpack.c.b16 %v4492, %v4484
    %v4613 = vpack.c.b16 %v4493, %v4485
    %v4614 = vpack.c.b16 %v4494, %v4486
    %v4615 = vpack.c.b16 %v4495, %v4487
    %v4616 = vpack.c.b16 %v4496, %v4488
    %v4617 = vpack.c.b16 %v4497, %v4489
    %v4618 = vpack.c.b16 %v4498, %v4490
    %v4619 = vpack.c.b16 %v4507, %v4499
    %v4620 = vpack.c.b16 %v4508, %v4500
    %v4621 = vpack.c.b16 %v4509, %v4501
    %v4622 = vpack.c.b16 %v4510, %v4502
    %v4623 = vpack.c.b16 %v4511, %v4503
    %v4624 = vpack.c.b16 %v4512, %v4504
    %v4625 = vpack.c.b16 %v4513, %v4505
    %v4626 = vpack.c.b16 %v4514, %v4506
    %v4627 = vpack.c.b16 %v4523, %v4515
    %v4628 = vpack.c.b16 %v4524, %v4516
    %v4629 = vpack.c.b16 %v4525, %v4517
    %v4630 = vpack.c.b16 %v4526, %v4518
    %v4631 = vpack.c.b16 %v4527, %v4519
    %v4632 = vpack.c.b16 %v4528, %v4520
    %v4633 = vpack.c.b16 %v4529, %v4521
    %v4634 = vpack.c.b16 %v4530, %v4522
    %v4635 = vpack.c.b16 %v4539, %v4531
    %v4636 = vpack.c.b16 %v4540, %v4532
    %v4637 = vpack.c.b16 %v4541, %v4533
    %v4638 = vpack.c.b16 %v4542, %v4534
    %v4639 = vpack.c.b16 %v4543, %v4535
    %v4640 = vpack.c.b16 %v4544, %v4536
    %v4641 = vpack.c.b16 %v4545, %v4537
    %v4642 = vpack.c.b16 %v4546, %v4538
    %v4643 = vpack.c.b16 %v4555, %v4547
    %v4644 = vpack.c.b16 %v4556, %v4548
    %v4645 = vpack.c.b16 %v4557, %v4549
    %v4646 = vpack.c.b16 %v4558, %v4550
    %v4647 = vpack.c.b16 %v4559, %v4551
    %v4648 = vpack.c.b16 %v4560, %v4552
    %v4649 = vpack.c.b16 %v4561, %v4553
    %v4650 = vpack.c.b16 %v4562, %v4554
    %v4651 = vpack.c.b16 %v4571, %v4563
    %v4652 = vpack.c.b16 %v4572, %v4564
    %v4653 = vpack.c.b16 %v4573, %v4565
    %v4654 = vpack.c.b16 %v4574, %v4566
    %v4655 = vpack.c.b16 %v4575, %v4567
    %v4656 = vpack.c.b16 %v4576, %v4568
    %v4657 = vpack.c.b16 %v4577, %v4569
    %v4658 = vpack.c.b16 %v4578, %v4570
    %v4659 = vpack.c.b16 %v4587, %v4579
    %v4660 = vpack.c.b16 %v4588, %v4580
    %v4661 = vpack.c.b16 %v4589, %v4581
    %v4662 = vpack.c.b16 %v4590, %v4582
    %v4663 = vpack.c.b16 %v4591, %v4583
    %v4664 = vpack.c.b16 %v4592, %v4584
    %v4665 = vpack.c.b16 %v4593, %v4585
    %v4666 = vpack.c.b16 %v4594, %v4586
    %v4667 = vpack.c.b16 %v4603, %v4595
    %v4668 = vpack.c.b16 %v4604, %v4596
    %v4669 = vpack.c.b16 %v4605, %v4597
    %v4670 = vpack.c.b16 %v4606, %v4598
    %v4671 = vpack.c.b16 %v4607, %v4599
    %v4672 = vpack.c.b16 %v4608, %v4600
    %v4673 = vpack.c.b16 %v4609, %v4601
    %v4674 = vpack.c.b16 %v4610, %v4602
    %4739 = vmatpush.bf16.msra.mxu0 %v4667
    %4740 = vmatpush.bf16.msra.mxu0 %v4659
    %4741 = vmatpush.bf16.msra.mxu0 %v4651
    %4742 = vmatpush.bf16.msra.mxu0 %v4643
    %4743 = vmatpush.bf16.msra.mxu0 %v4635
    %4744 = vmatpush.bf16.msra.mxu0 %v4627
    %4745 = vmatpush.bf16.msra.mxu0 %v4619
    %4746 = vmatpush.bf16.msra.mxu0 %v4611
    %4747 = vmatmul.bf16.gmra.mxu0 %v4336
    %v4748 = vpop.f32.mrf.mxu0
    %v4749 = vadd.f32 %v4403, %v4748
    %v4750 = vpop.f32.mrf.mxu0
    %4751 = vdwg.mxu0
    %4752 = vmatpush.bf16.msra.mxu0 %v4668
    %4753 = vmatpush.bf16.msra.mxu0 %v4660
    %4754 = vmatpush.bf16.msra.mxu0 %v4652
    %4755 = vmatpush.bf16.msra.mxu0 %v4644
    %4756 = vmatpush.bf16.msra.mxu0 %v4636
    %4757 = vmatpush.bf16.msra.mxu0 %v4628
    %4758 = vmatpush.bf16.msra.mxu0 %v4620
    %4759 = vmatpush.bf16.msra.mxu0 %v4612
    %4760 = vmatmul.bf16.gmra.mxu0 %v4336
    %v4761 = vpop.f32.mrf.mxu0
    %v4762 = vadd.f32 %v4404, %v4761
    %v4763 = vpop.f32.mrf.mxu0
    %4764 = vdwg.mxu0
    %4765 = vmatpush.bf16.msra.mxu0 %v4669
    %4766 = vmatpush.bf16.msra.mxu0 %v4661
    %4767 = vmatpush.bf16.msra.mxu0 %v4653
    %4768 = vmatpush.bf16.msra.mxu0 %v4645
    %4769 = vmatpush.bf16.msra.mxu0 %v4637
    %4770 = vmatpush.bf16.msra.mxu0 %v4629
    %4771 = vmatpush.bf16.msra.mxu0 %v4621
    %4772 = vmatpush.bf16.msra.mxu0 %v4613
    %4773 = vmatmul.bf16.gmra.mxu0 %v4336
    %v4774 = vpop.f32.mrf.mxu0
    %v4775 = vadd.f32 %v4405, %v4774
    %v4776 = vpop.f32.mrf.mxu0
    %4777 = vdwg.mxu0
    %4778 = vmatpush.bf16.msra.mxu0 %v4670
    %4779 = vmatpush.bf16.msra.mxu0 %v4662
    %4780 = vmatpush.bf16.msra.mxu0 %v4654
    %4781 = vmatpush.bf16.msra.mxu0 %v4646
    %4782 = vmatpush.bf16.msra.mxu0 %v4638
    %4783 = vmatpush.bf16.msra.mxu0 %v4630
    %4784 = vmatpush.bf16.msra.mxu0 %v4622
    %4785 = vmatpush.bf16.msra.mxu0 %v4614
    %4786 = vmatmul.bf16.gmra.mxu0 %v4336
    %v4787 = vpop.f32.mrf.mxu0
    %v4788 = vadd.f32 %v4406, %v4787
    %v4789 = vpop.f32.mrf.mxu0
    %4790 = vdwg.mxu0
    %4791 = vmatpush.bf16.msra.mxu0 %v4671
    %4792 = vmatpush.bf16.msra.mxu0 %v4663
    %4793 = vmatpush.bf16.msra.mxu0 %v4655
    %4794 = vmatpush.bf16.msra.mxu0 %v4647
    %4795 = vmatpush.bf16.msra.mxu0 %v4639
    %4796 = vmatpush.bf16.msra.mxu0 %v4631
    %4797 = vmatpush.bf16.msra.mxu0 %v4623
    %4798 = vmatpush.bf16.msra.mxu0 %v4615
    %4799 = vmatmul.bf16.gmra.mxu0 %v4336
    %v4800 = vpop.f32.mrf.mxu0
    %v4801 = vadd.f32 %v4407, %v4800
    %v4802 = vpop.f32.mrf.mxu0
    %4803 = vdwg.mxu0
    %4804 = vmatpush.bf16.msra.mxu0 %v4672
    %4805 = vmatpush.bf16.msra.mxu0 %v4664
    %4806 = vmatpush.bf16.msra.mxu0 %v4656
    %4807 = vmatpush.bf16.msra.mxu0 %v4648
    %4808 = vmatpush.bf16.msra.mxu0 %v4640
    %4809 = vmatpush.bf16.msra.mxu0 %v4632
    %4810 = vmatpush.bf16.msra.mxu0 %v4624
    %4811 = vmatpush.bf16.msra.mxu0 %v4616
    %4812 = vmatmul.bf16.gmra.mxu0 %v4336
    %v4813 = vpop.f32.mrf.mxu0
    %v4814 = vadd.f32 %v4408, %v4813
    %v4815 = vpop.f32.mrf.mxu0
    %4816 = vdwg.mxu0
    %4817 = vmatpush.bf16.msra.mxu0 %v4673
    %4818 = vmatpush.bf16.msra.mxu0 %v4665
    %4819 = vmatpush.bf16.msra.mxu0 %v4657
    %4820 = vmatpush.bf16.msra.mxu0 %v4649
    %4821 = vmatpush.bf16.msra.mxu0 %v4641
    %4822 = vmatpush.bf16.msra.mxu0 %v4633
    %4823 = vmatpush.bf16.msra.mxu0 %v4625
    %4824 = vmatpush.bf16.msra.mxu0 %v4617
    %4825 = vmatmul.bf16.gmra.mxu0 %v4336
    %v4826 = vpop.f32.mrf.mxu0
    %v4827 = vadd.f32 %v4409, %v4826
    %v4828 = vpop.f32.mrf.mxu0
    %4829 = vdwg.mxu0
    %4830 = vmatpush.bf16.msra.mxu0 %v4674
    %4831 = vmatpush.bf16.msra.mxu0 %v4666
    %4832 = vmatpush.bf16.msra.mxu0 %v4658
    %4833 = vmatpush.bf16.msra.mxu0 %v4650
    %4834 = vmatpush.bf16.msra.mxu0 %v4642
    %4835 = vmatpush.bf16.msra.mxu0 %v4634
    %4836 = vmatpush.bf16.msra.mxu0 %v4626
    %4837 = vmatpush.bf16.msra.mxu0 %v4618
    %4838 = vmatmul.bf16.gmra.mxu0 %v4336
    %v4839 = vpop.f32.mrf.mxu0
    %v4840 = vadd.f32 %v4410, %v4839
    %v4841 = vpop.f32.mrf.mxu0
    %4842 = vdwg.mxu0
    %v4843 = vxor.u32 %v4749, 2147483648
    %v4844 = vxor.u32 %v4762, 2147483648
    %v4845 = vxor.u32 %v4775, 2147483648
    %v4846 = vxor.u32 %v4788, 2147483648
    %v4847 = vxor.u32 %v4801, 2147483648
    %v4848 = vxor.u32 %v4814, 2147483648
    %v4849 = vxor.u32 %v4827, 2147483648
    %v4850 = vxor.u32 %v4840, 2147483648
    %v4851 = vmul.f32 %v4843, 1.442695
    %v4852 = vpow.pop %v4851
    %v4853 = vmul.f32 %v4844, 1.442695
    %v4854 = vpow.pop %v4853
    %v4855 = vmul.f32 %v4845, 1.442695
    %v4856 = vpow.pop %v4855
    %v4857 = vmul.f32 %v4846, 1.442695
    %v4858 = vpow.pop %v4857
    %v4859 = vmul.f32 %v4847, 1.442695
    %v4860 = vpow.pop %v4859
    %v4861 = vmul.f32 %v4848, 1.442695
    %v4862 = vpow.pop %v4861
    %v4863 = vmul.f32 %v4849, 1.442695
    %v4864 = vpow.pop %v4863
    %v4865 = vmul.f32 %v4850, 1.442695
    %v4866 = vpow.pop %v4865
    %v4867 = vadd.f32 %v4852, 1.0
    %v4868 = vadd.f32 %v4854, 1.0
    %v4869 = vadd.f32 %v4856, 1.0
    %v4870 = vadd.f32 %v4858, 1.0
    %v4871 = vadd.f32 %v4860, 1.0
    %v4872 = vadd.f32 %v4862, 1.0
    %v4873 = vadd.f32 %v4864, 1.0
    %v4874 = vadd.f32 %v4866, 1.0
    %v4875 = vrcp.pop %v4867
    %v4876 = vmul.f32 %v4867, %v4875
    %v4877 = vsub.f32 1.0, %v4876
    %v4878 = vmul.f32 %v4875, %v4877
    %v4879 = vadd.f32 %v4875, %v4878
    %vm4880 = vweird.f32 %v4867
    %vm4881 = vweird.f32 %v4875
    %vm4882 = vmor %vm4880, %vm4881
    %v4883 = vsel %vm4882, %v4875, %v4879
    %v4884 = vand.u32 2147483647, %v4867
    %vm4885 = vcmp.eq.f32.partialorder %v4884, 8.507059e+37
    %v4886 = vand.u32 %v4867, 2147483648
    %v4887 = vor.u32 1.1754944e-38, %v4886
    %v4888 = vsel %vm4885, %v4887, %v4883
    %v4889 = vmul.f32 1.0, %v4888
    %v4890 = vrcp.pop %v4868
    %v4891 = vmul.f32 %v4868, %v4890
    %v4892 = vsub.f32 1.0, %v4891
    %v4893 = vmul.f32 %v4890, %v4892
    %v4894 = vadd.f32 %v4890, %v4893
    %vm4895 = vweird.f32 %v4868
    %vm4896 = vweird.f32 %v4890
    %vm4897 = vmor %vm4895, %vm4896
    %v4898 = vsel %vm4897, %v4890, %v4894
    %v4899 = vand.u32 2147483647, %v4868
    %vm4900 = vcmp.eq.f32.partialorder %v4899, 8.507059e+37
    %v4901 = vand.u32 %v4868, 2147483648
    %v4902 = vor.u32 1.1754944e-38, %v4901
    %v4903 = vsel %vm4900, %v4902, %v4898
    %v4904 = vmul.f32 1.0, %v4903
    %v4905 = vrcp.pop %v4869
    %v4906 = vmul.f32 %v4869, %v4905
    %v4907 = vsub.f32 1.0, %v4906
    %v4908 = vmul.f32 %v4905, %v4907
    %v4909 = vadd.f32 %v4905, %v4908
    %vm4910 = vweird.f32 %v4869
    %vm4911 = vweird.f32 %v4905
    %vm4912 = vmor %vm4910, %vm4911
    %v4913 = vsel %vm4912, %v4905, %v4909
    %v4914 = vand.u32 2147483647, %v4869
    %vm4915 = vcmp.eq.f32.partialorder %v4914, 8.507059e+37
    %v4916 = vand.u32 %v4869, 2147483648
    %v4917 = vor.u32 1.1754944e-38, %v4916
    %v4918 = vsel %vm4915, %v4917, %v4913
    %v4919 = vmul.f32 1.0, %v4918
    %v4920 = vrcp.pop %v4870
    %v4921 = vmul.f32 %v4870, %v4920
    %v4922 = vsub.f32 1.0, %v4921
    %v4923 = vmul.f32 %v4920, %v4922
    %v4924 = vadd.f32 %v4920, %v4923
    %vm4925 = vweird.f32 %v4870
    %vm4926 = vweird.f32 %v4920
    %vm4927 = vmor %vm4925, %vm4926
    %v4928 = vsel %vm4927, %v4920, %v4924
    %v4929 = vand.u32 2147483647, %v4870
    %vm4930 = vcmp.eq.f32.partialorder %v4929, 8.507059e+37
    %v4931 = vand.u32 %v4870, 2147483648
    %v4932 = vor.u32 1.1754944e-38, %v4931
    %v4933 = vsel %vm4930, %v4932, %v4928
    %v4934 = vmul.f32 1.0, %v4933
    %v4935 = vrcp.pop %v4871
    %v4936 = vmul.f32 %v4871, %v4935
    %v4937 = vsub.f32 1.0, %v4936
    %v4938 = vmul.f32 %v4935, %v4937
    %v4939 = vadd.f32 %v4935, %v4938
    %vm4940 = vweird.f32 %v4871
    %vm4941 = vweird.f32 %v4935
    %vm4942 = vmor %vm4940, %vm4941
    %v4943 = vsel %vm4942, %v4935, %v4939
    %v4944 = vand.u32 2147483647, %v4871
    %vm4945 = vcmp.eq.f32.partialorder %v4944, 8.507059e+37
    %v4946 = vand.u32 %v4871, 2147483648
    %v4947 = vor.u32 1.1754944e-38, %v4946
    %v4948 = vsel %vm4945, %v4947, %v4943
    %v4949 = vmul.f32 1.0, %v4948
    %v4950 = vrcp.pop %v4872
    %v4951 = vmul.f32 %v4872, %v4950
    %v4952 = vsub.f32 1.0, %v4951
    %v4953 = vmul.f32 %v4950, %v4952
    %v4954 = vadd.f32 %v4950, %v4953
    %vm4955 = vweird.f32 %v4872
    %vm4956 = vweird.f32 %v4950
    %vm4957 = vmor %vm4955, %vm4956
    %v4958 = vsel %vm4957, %v4950, %v4954
    %v4959 = vand.u32 2147483647, %v4872
    %vm4960 = vcmp.eq.f32.partialorder %v4959, 8.507059e+37
    %v4961 = vand.u32 %v4872, 2147483648
    %v4962 = vor.u32 1.1754944e-38, %v4961
    %v4963 = vsel %vm4960, %v4962, %v4958
    %v4964 = vmul.f32 1.0, %v4963
    %v4965 = vrcp.pop %v4873
    %v4966 = vmul.f32 %v4873, %v4965
    %v4967 = vsub.f32 1.0, %v4966
    %v4968 = vmul.f32 %v4965, %v4967
    %v4969 = vadd.f32 %v4965, %v4968
    %vm4970 = vweird.f32 %v4873
    %vm4971 = vweird.f32 %v4965
    %vm4972 = vmor %vm4970, %vm4971
    %v4973 = vsel %vm4972, %v4965, %v4969
    %v4974 = vand.u32 2147483647, %v4873
    %vm4975 = vcmp.eq.f32.partialorder %v4974, 8.507059e+37
    %v4976 = vand.u32 %v4873, 2147483648
    %v4977 = vor.u32 1.1754944e-38, %v4976
    %v4978 = vsel %vm4975, %v4977, %v4973
    %v4979 = vmul.f32 1.0, %v4978
    %v4980 = vrcp.pop %v4874
    %v4981 = vmul.f32 %v4874, %v4980
    %v4982 = vsub.f32 1.0, %v4981
    %v4983 = vmul.f32 %v4980, %v4982
    %v4984 = vadd.f32 %v4980, %v4983
    %vm4985 = vweird.f32 %v4874
    %vm4986 = vweird.f32 %v4980
    %vm4987 = vmor %vm4985, %vm4986
    %v4988 = vsel %vm4987, %v4980, %v4984
    %v4989 = vand.u32 2147483647, %v4874
    %vm4990 = vcmp.eq.f32.partialorder %v4989, 8.507059e+37
    %v4991 = vand.u32 %v4874, 2147483648
    %v4992 = vor.u32 1.1754944e-38, %v4991
    %v4993 = vsel %vm4990, %v4992, %v4988
    %v4994 = vmul.f32 1.0, %v4993
    %v5003 = vrot.slane %v4904, 6
    %v5004 = vrot.slane %v4919, 4
    %v5005 = vrot.slane %v4934, 2
    %v5006 = vrot.slane %v4964, 6
    %v5007 = vrot.slane %v4979, 4
    %v5008 = vrot.slane %v4994, 2
    %v5009 = vsel %vm2878, %v4889, %v5003
    %v5010 = vsel %vm2880, %v5004, %v5005
    %v5011 = vsel %vm2882, %v5009, %v5010
    %v5012 = vsel %vm2878, %v4949, %v5006
    %v5013 = vsel %vm2880, %v5007, %v5008
    %v5014 = vsel %vm2882, %v5012, %v5013
    %s5017 = scalar_lea.vmem [#allocation22], 16
    %5018 = vst [vmem:[%s5017] sm:$0xff] %v5011
    %5019 = vst [vmem:[%s5017 + $0x8] sm:$0xff] %v5014
    %v5020 = vpack.c.bf16 %v4889, %v4889
    %v5021 = vpack.c.bf16 %v4904, %v4904
    %v5022 = vpack.c.bf16 %v4919, %v4919
    %v5023 = vpack.c.bf16 %v4934, %v4934
    %v5024 = vpack.c.bf16 %v4949, %v4949
    %v5025 = vpack.c.bf16 %v4964, %v4964
    %v5026 = vpack.c.bf16 %v4979, %v4979
    %v5027 = vpack.c.bf16 %v4994, %v4994
    %v5028 = vld [vmem:[#allocation5] sm:$0xf]
    %v5029 = vld [vmem:[#allocation5 + $0x4] sm:$0xf]
    %v5030 = vld [vmem:[#allocation5 + $0x8] sm:$0xf]
    %v5031 = vld [vmem:[#allocation5 + $0xc] sm:$0xf]
    %v5032 = vld [vmem:[#allocation5 + $0x10] sm:$0xf]
    %v5033 = vld [vmem:[#allocation5 + $0x14] sm:$0xf]
    %v5034 = vld [vmem:[#allocation5 + $0x18] sm:$0xf]
    %v5035 = vld [vmem:[#allocation5 + $0x1c] sm:$0xf]
    %v5036 = vld [vmem:[#allocation5 + $0x20] sm:$0xf]
    %v5037 = vld [vmem:[#allocation5 + $0x24] sm:$0xf]
    %v5038 = vld [vmem:[#allocation5 + $0x28] sm:$0xf]
    %v5039 = vld [vmem:[#allocation5 + $0x2c] sm:$0xf]
    %v5040 = vld [vmem:[#allocation5 + $0x30] sm:$0xf]
    %v5041 = vld [vmem:[#allocation5 + $0x34] sm:$0xf]
    %v5042 = vld [vmem:[#allocation5 + $0x38] sm:$0xf]
    %v5043 = vld [vmem:[#allocation5 + $0x3c] sm:$0xf]
    %v5044 = vld [vmem:[#allocation5 + $0x40] sm:$0xf]
    %v5045 = vld [vmem:[#allocation5 + $0x44] sm:$0xf]
    %v5046 = vld [vmem:[#allocation5 + $0x48] sm:$0xf]
    %v5047 = vld [vmem:[#allocation5 + $0x4c] sm:$0xf]
    %v5048 = vld [vmem:[#allocation5 + $0x50] sm:$0xf]
    %v5049 = vld [vmem:[#allocation5 + $0x54] sm:$0xf]
    %v5050 = vld [vmem:[#allocation5 + $0x58] sm:$0xf]
    %v5051 = vld [vmem:[#allocation5 + $0x5c] sm:$0xf]
    %v5052 = vld [vmem:[#allocation5 + $0x60] sm:$0xf]
    %v5053 = vld [vmem:[#allocation5 + $0x64] sm:$0xf]
    %v5054 = vld [vmem:[#allocation5 + $0x68] sm:$0xf]
    %v5055 = vld [vmem:[#allocation5 + $0x6c] sm:$0xf]
    %v5056 = vld [vmem:[#allocation5 + $0x70] sm:$0xf]
    %v5057 = vld [vmem:[#allocation5 + $0x74] sm:$0xf]
    %v5058 = vld [vmem:[#allocation5 + $0x78] sm:$0xf]
    %v5059 = vld [vmem:[#allocation5 + $0x7c] sm:$0xf]
    %v5060 = vld [vmem:[#allocation5 + $0x80] sm:$0xf]
    %v5061 = vld [vmem:[#allocation5 + $0x84] sm:$0xf]
    %v5062 = vld [vmem:[#allocation5 + $0x88] sm:$0xf]
    %v5063 = vld [vmem:[#allocation5 + $0x8c] sm:$0xf]
    %v5064 = vld [vmem:[#allocation5 + $0x90] sm:$0xf]
    %v5065 = vld [vmem:[#allocation5 + $0x94] sm:$0xf]
    %v5066 = vld [vmem:[#allocation5 + $0x98] sm:$0xf]
    %v5067 = vld [vmem:[#allocation5 + $0x9c] sm:$0xf]
    %v5068 = vld [vmem:[#allocation5 + $0xa0] sm:$0xf]
    %v5069 = vld [vmem:[#allocation5 + $0xa4] sm:$0xf]
    %v5070 = vld [vmem:[#allocation5 + $0xa8] sm:$0xf]
    %v5071 = vld [vmem:[#allocation5 + $0xac] sm:$0xf]
    %v5072 = vld [vmem:[#allocation5 + $0xb0] sm:$0xf]
    %v5073 = vld [vmem:[#allocation5 + $0xb4] sm:$0xf]
    %v5074 = vld [vmem:[#allocation5 + $0xb8] sm:$0xf]
    %v5075 = vld [vmem:[#allocation5 + $0xbc] sm:$0xf]
    %v5076 = vld [vmem:[#allocation5 + $0xc0] sm:$0xf]
    %v5077 = vld [vmem:[#allocation5 + $0xc4] sm:$0xf]
    %v5078 = vld [vmem:[#allocation5 + $0xc8] sm:$0xf]
    %v5079 = vld [vmem:[#allocation5 + $0xcc] sm:$0xf]
    %v5080 = vld [vmem:[#allocation5 + $0xd0] sm:$0xf]
    %v5081 = vld [vmem:[#allocation5 + $0xd4] sm:$0xf]
    %v5082 = vld [vmem:[#allocation5 + $0xd8] sm:$0xf]
    %v5083 = vld [vmem:[#allocation5 + $0xdc] sm:$0xf]
    %v5084 = vld [vmem:[#allocation5 + $0xe0] sm:$0xf]
    %v5085 = vld [vmem:[#allocation5 + $0xe4] sm:$0xf]
    %v5086 = vld [vmem:[#allocation5 + $0xe8] sm:$0xf]
    %v5087 = vld [vmem:[#allocation5 + $0xec] sm:$0xf]
    %v5088 = vld [vmem:[#allocation5 + $0xf0] sm:$0xf]
    %v5089 = vld [vmem:[#allocation5 + $0xf4] sm:$0xf]
    %v5090 = vld [vmem:[#allocation5 + $0xf8] sm:$0xf]
    %v5091 = vld [vmem:[#allocation5 + $0xfc] sm:$0xf]
    %v5092 = vld [vmem:[#allocation5 + $0x100] sm:$0xf]
    %v5093 = vld [vmem:[#allocation5 + $0x104] sm:$0xf]
    %v5094 = vld [vmem:[#allocation5 + $0x108] sm:$0xf]
    %v5095 = vld [vmem:[#allocation5 + $0x10c] sm:$0xf]
    %v5096 = vld [vmem:[#allocation5 + $0x110] sm:$0xf]
    %v5097 = vld [vmem:[#allocation5 + $0x114] sm:$0xf]
    %v5098 = vld [vmem:[#allocation5 + $0x118] sm:$0xf]
    %v5099 = vld [vmem:[#allocation5 + $0x11c] sm:$0xf]
    %v5100 = vld [vmem:[#allocation5 + $0x120] sm:$0xf]
    %v5101 = vld [vmem:[#allocation5 + $0x124] sm:$0xf]
    %v5102 = vld [vmem:[#allocation5 + $0x128] sm:$0xf]
    %v5103 = vld [vmem:[#allocation5 + $0x12c] sm:$0xf]
    %v5104 = vld [vmem:[#allocation5 + $0x130] sm:$0xf]
    %v5105 = vld [vmem:[#allocation5 + $0x134] sm:$0xf]
    %v5106 = vld [vmem:[#allocation5 + $0x138] sm:$0xf]
    %v5107 = vld [vmem:[#allocation5 + $0x13c] sm:$0xf]
    %v5108 = vld [vmem:[#allocation5 + $0x140] sm:$0xf]
    %v5109 = vld [vmem:[#allocation5 + $0x144] sm:$0xf]
    %v5110 = vld [vmem:[#allocation5 + $0x148] sm:$0xf]
    %v5111 = vld [vmem:[#allocation5 + $0x14c] sm:$0xf]
    %v5112 = vld [vmem:[#allocation5 + $0x150] sm:$0xf]
    %v5113 = vld [vmem:[#allocation5 + $0x154] sm:$0xf]
    %v5114 = vld [vmem:[#allocation5 + $0x158] sm:$0xf]
    %v5115 = vld [vmem:[#allocation5 + $0x15c] sm:$0xf]
    %v5116 = vld [vmem:[#allocation5 + $0x160] sm:$0xf]
    %v5117 = vld [vmem:[#allocation5 + $0x164] sm:$0xf]
    %v5118 = vld [vmem:[#allocation5 + $0x168] sm:$0xf]
    %v5119 = vld [vmem:[#allocation5 + $0x16c] sm:$0xf]
    %v5120 = vld [vmem:[#allocation5 + $0x170] sm:$0xf]
    %v5121 = vld [vmem:[#allocation5 + $0x174] sm:$0xf]
    %v5122 = vld [vmem:[#allocation5 + $0x178] sm:$0xf]
    %v5123 = vld [vmem:[#allocation5 + $0x17c] sm:$0xf]
    %v5124 = vld [vmem:[#allocation5 + $0x180] sm:$0xf]
    %v5125 = vld [vmem:[#allocation5 + $0x184] sm:$0xf]
    %v5126 = vld [vmem:[#allocation5 + $0x188] sm:$0xf]
    %v5127 = vld [vmem:[#allocation5 + $0x18c] sm:$0xf]
    %v5128 = vld [vmem:[#allocation5 + $0x190] sm:$0xf]
    %v5129 = vld [vmem:[#allocation5 + $0x194] sm:$0xf]
    %v5130 = vld [vmem:[#allocation5 + $0x198] sm:$0xf]
    %v5131 = vld [vmem:[#allocation5 + $0x19c] sm:$0xf]
    %v5132 = vld [vmem:[#allocation5 + $0x1a0] sm:$0xf]
    %v5133 = vld [vmem:[#allocation5 + $0x1a4] sm:$0xf]
    %v5134 = vld [vmem:[#allocation5 + $0x1a8] sm:$0xf]
    %v5135 = vld [vmem:[#allocation5 + $0x1ac] sm:$0xf]
    %v5136 = vld [vmem:[#allocation5 + $0x1b0] sm:$0xf]
    %v5137 = vld [vmem:[#allocation5 + $0x1b4] sm:$0xf]
    %v5138 = vld [vmem:[#allocation5 + $0x1b8] sm:$0xf]
    %v5139 = vld [vmem:[#allocation5 + $0x1bc] sm:$0xf]
    %v5140 = vld [vmem:[#allocation5 + $0x1c0] sm:$0xf]
    %v5141 = vld [vmem:[#allocation5 + $0x1c4] sm:$0xf]
    %v5142 = vld [vmem:[#allocation5 + $0x1c8] sm:$0xf]
    %v5143 = vld [vmem:[#allocation5 + $0x1cc] sm:$0xf]
    %v5144 = vld [vmem:[#allocation5 + $0x1d0] sm:$0xf]
    %v5145 = vld [vmem:[#allocation5 + $0x1d4] sm:$0xf]
    %v5146 = vld [vmem:[#allocation5 + $0x1d8] sm:$0xf]
    %v5147 = vld [vmem:[#allocation5 + $0x1dc] sm:$0xf]
    %v5148 = vld [vmem:[#allocation5 + $0x1e0] sm:$0xf]
    %v5149 = vld [vmem:[#allocation5 + $0x1e4] sm:$0xf]
    %v5150 = vld [vmem:[#allocation5 + $0x1e8] sm:$0xf]
    %v5151 = vld [vmem:[#allocation5 + $0x1ec] sm:$0xf]
    %v5152 = vld [vmem:[#allocation5 + $0x1f0] sm:$0xf]
    %v5153 = vld [vmem:[#allocation5 + $0x1f4] sm:$0xf]
    %v5154 = vld [vmem:[#allocation5 + $0x1f8] sm:$0xf]
    %v5155 = vld [vmem:[#allocation5 + $0x1fc] sm:$0xf]
    %v5156 = vld [vmem:[#allocation7] sm:$0x1]
    %v5158 = vperm.slane %v5156, 0
    %v5288 = vunpack.c.l.b16 %v5028
    %v5289 = vunpack.c.l.b16 %v5029
    %v5290 = vunpack.c.l.b16 %v5030
    %v5291 = vunpack.c.l.b16 %v5031
    %v5292 = vunpack.c.l.b16 %v5032
    %v5293 = vunpack.c.l.b16 %v5033
    %v5294 = vunpack.c.l.b16 %v5034
    %v5295 = vunpack.c.l.b16 %v5035
    %v5296 = vunpack.c.l.b16 %v5036
    %v5297 = vunpack.c.l.b16 %v5037
    %v5298 = vunpack.c.l.b16 %v5038
    %v5299 = vunpack.c.l.b16 %v5039
    %v5300 = vunpack.c.l.b16 %v5040
    %v5301 = vunpack.c.l.b16 %v5041
    %v5302 = vunpack.c.l.b16 %v5042
    %v5303 = vunpack.c.l.b16 %v5043
    %v5304 = vunpack.c.l.b16 %v5044
    %v5305 = vunpack.c.l.b16 %v5045
    %v5306 = vunpack.c.l.b16 %v5046
    %v5307 = vunpack.c.l.b16 %v5047
    %v5308 = vunpack.c.l.b16 %v5048
    %v5309 = vunpack.c.l.b16 %v5049
    %v5310 = vunpack.c.l.b16 %v5050
    %v5311 = vunpack.c.l.b16 %v5051
    %v5312 = vunpack.c.l.b16 %v5052
    %v5313 = vunpack.c.l.b16 %v5053
    %v5314 = vunpack.c.l.b16 %v5054
    %v5315 = vunpack.c.l.b16 %v5055
    %v5316 = vunpack.c.l.b16 %v5056
    %v5317 = vunpack.c.l.b16 %v5057
    %v5318 = vunpack.c.l.b16 %v5058
    %v5319 = vunpack.c.l.b16 %v5059
    %v5320 = vunpack.c.l.b16 %v5060
    %v5321 = vunpack.c.l.b16 %v5061
    %v5322 = vunpack.c.l.b16 %v5062
    %v5323 = vunpack.c.l.b16 %v5063
    %v5324 = vunpack.c.l.b16 %v5064
    %v5325 = vunpack.c.l.b16 %v5065
    %v5326 = vunpack.c.l.b16 %v5066
    %v5327 = vunpack.c.l.b16 %v5067
    %v5328 = vunpack.c.l.b16 %v5068
    %v5329 = vunpack.c.l.b16 %v5069
    %v5330 = vunpack.c.l.b16 %v5070
    %v5331 = vunpack.c.l.b16 %v5071
    %v5332 = vunpack.c.l.b16 %v5072
    %v5333 = vunpack.c.l.b16 %v5073
    %v5334 = vunpack.c.l.b16 %v5074
    %v5335 = vunpack.c.l.b16 %v5075
    %v5336 = vunpack.c.l.b16 %v5076
    %v5337 = vunpack.c.l.b16 %v5077
    %v5338 = vunpack.c.l.b16 %v5078
    %v5339 = vunpack.c.l.b16 %v5079
    %v5340 = vunpack.c.l.b16 %v5080
    %v5341 = vunpack.c.l.b16 %v5081
    %v5342 = vunpack.c.l.b16 %v5082
    %v5343 = vunpack.c.l.b16 %v5083
    %v5344 = vunpack.c.l.b16 %v5084
    %v5345 = vunpack.c.l.b16 %v5085
    %v5346 = vunpack.c.l.b16 %v5086
    %v5347 = vunpack.c.l.b16 %v5087
    %v5348 = vunpack.c.l.b16 %v5088
    %v5349 = vunpack.c.l.b16 %v5089
    %v5350 = vunpack.c.l.b16 %v5090
    %v5351 = vunpack.c.l.b16 %v5091
    %v5352 = vunpack.c.l.b16 %v5092
    %v5353 = vunpack.c.l.b16 %v5093
    %v5354 = vunpack.c.l.b16 %v5094
    %v5355 = vunpack.c.l.b16 %v5095
    %v5356 = vunpack.c.l.b16 %v5096
    %v5357 = vunpack.c.l.b16 %v5097
    %v5358 = vunpack.c.l.b16 %v5098
    %v5359 = vunpack.c.l.b16 %v5099
    %v5360 = vunpack.c.l.b16 %v5100
    %v5361 = vunpack.c.l.b16 %v5101
    %v5362 = vunpack.c.l.b16 %v5102
    %v5363 = vunpack.c.l.b16 %v5103
    %v5364 = vunpack.c.l.b16 %v5104
    %v5365 = vunpack.c.l.b16 %v5105
    %v5366 = vunpack.c.l.b16 %v5106
    %v5367 = vunpack.c.l.b16 %v5107
    %v5368 = vunpack.c.l.b16 %v5108
    %v5369 = vunpack.c.l.b16 %v5109
    %v5370 = vunpack.c.l.b16 %v5110
    %v5371 = vunpack.c.l.b16 %v5111
    %v5372 = vunpack.c.l.b16 %v5112
    %v5373 = vunpack.c.l.b16 %v5113
    %v5374 = vunpack.c.l.b16 %v5114
    %v5375 = vunpack.c.l.b16 %v5115
    %v5376 = vunpack.c.l.b16 %v5116
    %v5377 = vunpack.c.l.b16 %v5117
    %v5378 = vunpack.c.l.b16 %v5118
    %v5379 = vunpack.c.l.b16 %v5119
    %v5380 = vunpack.c.l.b16 %v5120
    %v5381 = vunpack.c.l.b16 %v5121
    %v5382 = vunpack.c.l.b16 %v5122
    %v5383 = vunpack.c.l.b16 %v5123
    %v5384 = vunpack.c.l.b16 %v5124
    %v5385 = vunpack.c.l.b16 %v5125
    %v5386 = vunpack.c.l.b16 %v5126
    %v5387 = vunpack.c.l.b16 %v5127
    %v5388 = vunpack.c.l.b16 %v5128
    %v5389 = vunpack.c.l.b16 %v5129
    %v5390 = vunpack.c.l.b16 %v5130
    %v5391 = vunpack.c.l.b16 %v5131
    %v5392 = vunpack.c.l.b16 %v5132
    %v5393 = vunpack.c.l.b16 %v5133
    %v5394 = vunpack.c.l.b16 %v5134
    %v5395 = vunpack.c.l.b16 %v5135
    %v5396 = vunpack.c.l.b16 %v5136
    %v5397 = vunpack.c.l.b16 %v5137
    %v5398 = vunpack.c.l.b16 %v5138
    %v5399 = vunpack.c.l.b16 %v5139
    %v5400 = vunpack.c.l.b16 %v5140
    %v5401 = vunpack.c.l.b16 %v5141
    %v5402 = vunpack.c.l.b16 %v5142
    %v5403 = vunpack.c.l.b16 %v5143
    %v5404 = vunpack.c.l.b16 %v5144
    %v5405 = vunpack.c.l.b16 %v5145
    %v5406 = vunpack.c.l.b16 %v5146
    %v5407 = vunpack.c.l.b16 %v5147
    %v5408 = vunpack.c.l.b16 %v5148
    %v5409 = vunpack.c.l.b16 %v5149
    %v5410 = vunpack.c.l.b16 %v5150
    %v5411 = vunpack.c.l.b16 %v5151
    %v5412 = vunpack.c.l.b16 %v5152
    %v5413 = vunpack.c.l.b16 %v5153
    %v5414 = vunpack.c.l.b16 %v5154
    %v5415 = vunpack.c.l.b16 %v5155
    %v5416 = vpack.c.b16 %v5289, %v5288
    %v5417 = vpack.c.b16 %v5291, %v5290
    %v5418 = vpack.c.b16 %v5293, %v5292
    %v5419 = vpack.c.b16 %v5295, %v5294
    %v5420 = vpack.c.b16 %v5297, %v5296
    %v5421 = vpack.c.b16 %v5299, %v5298
    %v5422 = vpack.c.b16 %v5301, %v5300
    %v5423 = vpack.c.b16 %v5303, %v5302
    %v5424 = vpack.c.b16 %v5305, %v5304
    %v5425 = vpack.c.b16 %v5307, %v5306
    %v5426 = vpack.c.b16 %v5309, %v5308
    %v5427 = vpack.c.b16 %v5311, %v5310
    %v5428 = vpack.c.b16 %v5313, %v5312
    %v5429 = vpack.c.b16 %v5315, %v5314
    %v5430 = vpack.c.b16 %v5317, %v5316
    %v5431 = vpack.c.b16 %v5319, %v5318
    %v5432 = vpack.c.b16 %v5321, %v5320
    %v5433 = vpack.c.b16 %v5323, %v5322
    %v5434 = vpack.c.b16 %v5325, %v5324
    %v5435 = vpack.c.b16 %v5327, %v5326
    %v5436 = vpack.c.b16 %v5329, %v5328
    %v5437 = vpack.c.b16 %v5331, %v5330
    %v5438 = vpack.c.b16 %v5333, %v5332
    %v5439 = vpack.c.b16 %v5335, %v5334
    %v5440 = vpack.c.b16 %v5337, %v5336
    %v5441 = vpack.c.b16 %v5339, %v5338
    %v5442 = vpack.c.b16 %v5341, %v5340
    %v5443 = vpack.c.b16 %v5343, %v5342
    %v5444 = vpack.c.b16 %v5345, %v5344
    %v5445 = vpack.c.b16 %v5347, %v5346
    %v5446 = vpack.c.b16 %v5349, %v5348
    %v5447 = vpack.c.b16 %v5351, %v5350
    %v5448 = vpack.c.b16 %v5353, %v5352
    %v5449 = vpack.c.b16 %v5355, %v5354
    %v5450 = vpack.c.b16 %v5357, %v5356
    %v5451 = vpack.c.b16 %v5359, %v5358
    %v5452 = vpack.c.b16 %v5361, %v5360
    %v5453 = vpack.c.b16 %v5363, %v5362
    %v5454 = vpack.c.b16 %v5365, %v5364
    %v5455 = vpack.c.b16 %v5367, %v5366
    %v5456 = vpack.c.b16 %v5369, %v5368
    %v5457 = vpack.c.b16 %v5371, %v5370
    %v5458 = vpack.c.b16 %v5373, %v5372
    %v5459 = vpack.c.b16 %v5375, %v5374
    %v5460 = vpack.c.b16 %v5377, %v5376
    %v5461 = vpack.c.b16 %v5379, %v5378
    %v5462 = vpack.c.b16 %v5381, %v5380
    %v5463 = vpack.c.b16 %v5383, %v5382
    %v5464 = vpack.c.b16 %v5385, %v5384
    %v5465 = vpack.c.b16 %v5387, %v5386
    %v5466 = vpack.c.b16 %v5389, %v5388
    %v5467 = vpack.c.b16 %v5391, %v5390
    %v5468 = vpack.c.b16 %v5393, %v5392
    %v5469 = vpack.c.b16 %v5395, %v5394
    %v5470 = vpack.c.b16 %v5397, %v5396
    %v5471 = vpack.c.b16 %v5399, %v5398
    %v5472 = vpack.c.b16 %v5401, %v5400
    %v5473 = vpack.c.b16 %v5403, %v5402
    %v5474 = vpack.c.b16 %v5405, %v5404
    %v5475 = vpack.c.b16 %v5407, %v5406
    %v5476 = vpack.c.b16 %v5409, %v5408
    %v5477 = vpack.c.b16 %v5411, %v5410
    %v5478 = vpack.c.b16 %v5413, %v5412
    %v5479 = vpack.c.b16 %v5415, %v5414
    %5544 = vmatpush.bf16.msra.mxu0 %v5423
    %5545 = vmatpush.bf16.msra.mxu0 %v5422
    %5546 = vmatpush.bf16.msra.mxu0 %v5421
    %5547 = vmatpush.bf16.msra.mxu0 %v5420
    %5548 = vmatpush.bf16.msra.mxu0 %v5419
    %5549 = vmatpush.bf16.msra.mxu0 %v5418
    %5550 = vmatpush.bf16.msra.mxu0 %v5417
    %5551 = vmatpush.bf16.msra.mxu0 %v5416
    %5552 = vmatmul.bf16.gmra.mxu0 %v5020
    %v5553 = vpop.f32.mrf.mxu0
    %v5554 = vadd.f32 %v5158, %v5553
    %v5555 = vpop.f32.mrf.mxu0
    %5556 = vdwg.mxu0
    %5557 = vmatpush.bf16.msra.mxu0 %v5431
    %5558 = vmatpush.bf16.msra.mxu0 %v5430
    %5559 = vmatpush.bf16.msra.mxu0 %v5429
    %5560 = vmatpush.bf16.msra.mxu0 %v5428
    %5561 = vmatpush.bf16.msra.mxu0 %v5427
    %5562 = vmatpush.bf16.msra.mxu0 %v5426
    %5563 = vmatpush.bf16.msra.mxu0 %v5425
    %5564 = vmatpush.bf16.msra.mxu0 %v5424
    %5565 = vmatmul.bf16.gmra.mxu0 %v5021
    %v5566 = vpop.f32.mrf.mxu0
    %v5567 = vadd.f32 %v5554, %v5566
    %v5568 = vpop.f32.mrf.mxu0
    %5569 = vdwg.mxu0
    %5570 = vmatpush.bf16.msra.mxu0 %v5439
    %5571 = vmatpush.bf16.msra.mxu0 %v5438
    %5572 = vmatpush.bf16.msra.mxu0 %v5437
    %5573 = vmatpush.bf16.msra.mxu0 %v5436
    %5574 = vmatpush.bf16.msra.mxu0 %v5435
    %5575 = vmatpush.bf16.msra.mxu0 %v5434
    %5576 = vmatpush.bf16.msra.mxu0 %v5433
    %5577 = vmatpush.bf16.msra.mxu0 %v5432
    %5578 = vmatmul.bf16.gmra.mxu0 %v5022
    %v5579 = vpop.f32.mrf.mxu0
    %v5580 = vadd.f32 %v5567, %v5579
    %v5581 = vpop.f32.mrf.mxu0
    %5582 = vdwg.mxu0
    %5583 = vmatpush.bf16.msra.mxu0 %v5447
    %5584 = vmatpush.bf16.msra.mxu0 %v5446
    %5585 = vmatpush.bf16.msra.mxu0 %v5445
    %5586 = vmatpush.bf16.msra.mxu0 %v5444
    %5587 = vmatpush.bf16.msra.mxu0 %v5443
    %5588 = vmatpush.bf16.msra.mxu0 %v5442
    %5589 = vmatpush.bf16.msra.mxu0 %v5441
    %5590 = vmatpush.bf16.msra.mxu0 %v5440
    %5591 = vmatmul.bf16.gmra.mxu0 %v5023
    %v5592 = vpop.f32.mrf.mxu0
    %v5593 = vadd.f32 %v5580, %v5592
    %v5594 = vpop.f32.mrf.mxu0
    %5595 = vdwg.mxu0
    %5596 = vmatpush.bf16.msra.mxu0 %v5455
    %5597 = vmatpush.bf16.msra.mxu0 %v5454
    %5598 = vmatpush.bf16.msra.mxu0 %v5453
    %5599 = vmatpush.bf16.msra.mxu0 %v5452
    %5600 = vmatpush.bf16.msra.mxu0 %v5451
    %5601 = vmatpush.bf16.msra.mxu0 %v5450
    %5602 = vmatpush.bf16.msra.mxu0 %v5449
    %5603 = vmatpush.bf16.msra.mxu0 %v5448
    %5604 = vmatmul.bf16.gmra.mxu0 %v5024
    %v5605 = vpop.f32.mrf.mxu0
    %v5606 = vadd.f32 %v5593, %v5605
    %v5607 = vpop.f32.mrf.mxu0
    %5608 = vdwg.mxu0
    %5609 = vmatpush.bf16.msra.mxu0 %v5463
    %5610 = vmatpush.bf16.msra.mxu0 %v5462
    %5611 = vmatpush.bf16.msra.mxu0 %v5461
    %5612 = vmatpush.bf16.msra.mxu0 %v5460
    %5613 = vmatpush.bf16.msra.mxu0 %v5459
    %5614 = vmatpush.bf16.msra.mxu0 %v5458
    %5615 = vmatpush.bf16.msra.mxu0 %v5457
    %5616 = vmatpush.bf16.msra.mxu0 %v5456
    %5617 = vmatmul.bf16.gmra.mxu0 %v5025
    %v5618 = vpop.f32.mrf.mxu0
    %v5619 = vadd.f32 %v5606, %v5618
    %v5620 = vpop.f32.mrf.mxu0
    %5621 = vdwg.mxu0
    %5622 = vmatpush.bf16.msra.mxu0 %v5471
    %5623 = vmatpush.bf16.msra.mxu0 %v5470
    %5624 = vmatpush.bf16.msra.mxu0 %v5469
    %5625 = vmatpush.bf16.msra.mxu0 %v5468
    %5626 = vmatpush.bf16.msra.mxu0 %v5467
    %5627 = vmatpush.bf16.msra.mxu0 %v5466
    %5628 = vmatpush.bf16.msra.mxu0 %v5465
    %5629 = vmatpush.bf16.msra.mxu0 %v5464
    %5630 = vmatmul.bf16.gmra.mxu0 %v5026
    %v5631 = vpop.f32.mrf.mxu0
    %v5632 = vadd.f32 %v5619, %v5631
    %v5633 = vpop.f32.mrf.mxu0
    %5634 = vdwg.mxu0
    %5635 = vmatpush.bf16.msra.mxu0 %v5479
    %5636 = vmatpush.bf16.msra.mxu0 %v5478
    %5637 = vmatpush.bf16.msra.mxu0 %v5477
    %5638 = vmatpush.bf16.msra.mxu0 %v5476
    %5639 = vmatpush.bf16.msra.mxu0 %v5475
    %5640 = vmatpush.bf16.msra.mxu0 %v5474
    %5641 = vmatpush.bf16.msra.mxu0 %v5473
    %5642 = vmatpush.bf16.msra.mxu0 %v5472
    %5643 = vmatmul.bf16.gmra.mxu0 %v5027
    %v5644 = vpop.f32.mrf.mxu0
    %v5645 = vadd.f32 %v5632, %v5644
    %v5646 = vpop.f32.mrf.mxu0
    %5647 = vdwg.mxu0
    %v5648 = vmax.f32 %v5645, 0.0
    %v5649 = vpack.c.bf16 %v5648, %v5648
    %v5650 = vld [vmem:[#allocation8] sm:$0xf]
    %v5651 = vld [vmem:[#allocation8 + $0x4] sm:$0xf]
    %v5652 = vld [vmem:[#allocation8 + $0x8] sm:$0xf]
    %v5653 = vld [vmem:[#allocation8 + $0xc] sm:$0xf]
    %v5654 = vld [vmem:[#allocation8 + $0x10] sm:$0xf]
    %v5655 = vld [vmem:[#allocation8 + $0x14] sm:$0xf]
    %v5656 = vld [vmem:[#allocation8 + $0x18] sm:$0xf]
    %v5657 = vld [vmem:[#allocation8 + $0x1c] sm:$0xf]
    %v5658 = vld [vmem:[#allocation8 + $0x20] sm:$0xf]
    %v5659 = vld [vmem:[#allocation8 + $0x24] sm:$0xf]
    %v5660 = vld [vmem:[#allocation8 + $0x28] sm:$0xf]
    %v5661 = vld [vmem:[#allocation8 + $0x2c] sm:$0xf]
    %v5662 = vld [vmem:[#allocation8 + $0x30] sm:$0xf]
    %v5663 = vld [vmem:[#allocation8 + $0x34] sm:$0xf]
    %v5664 = vld [vmem:[#allocation8 + $0x38] sm:$0xf]
    %v5665 = vld [vmem:[#allocation8 + $0x3c] sm:$0xf]
    %v5666 = vld [vmem:[#allocation10] sm:$0x1]
    %v5668 = vperm.slane %v5666, 0
    %v5686 = vunpack.c.l.b16 %v5650
    %v5687 = vunpack.c.l.b16 %v5651
    %v5688 = vunpack.c.l.b16 %v5652
    %v5689 = vunpack.c.l.b16 %v5653
    %v5690 = vunpack.c.l.b16 %v5654
    %v5691 = vunpack.c.l.b16 %v5655
    %v5692 = vunpack.c.l.b16 %v5656
    %v5693 = vunpack.c.l.b16 %v5657
    %v5694 = vunpack.c.l.b16 %v5658
    %v5695 = vunpack.c.l.b16 %v5659
    %v5696 = vunpack.c.l.b16 %v5660
    %v5697 = vunpack.c.l.b16 %v5661
    %v5698 = vunpack.c.l.b16 %v5662
    %v5699 = vunpack.c.l.b16 %v5663
    %v5700 = vunpack.c.l.b16 %v5664
    %v5701 = vunpack.c.l.b16 %v5665
    %v5702 = vpack.c.b16 %v5687, %v5686
    %v5703 = vpack.c.b16 %v5689, %v5688
    %v5704 = vpack.c.b16 %v5691, %v5690
    %v5705 = vpack.c.b16 %v5693, %v5692
    %v5706 = vpack.c.b16 %v5695, %v5694
    %v5707 = vpack.c.b16 %v5697, %v5696
    %v5708 = vpack.c.b16 %v5699, %v5698
    %v5709 = vpack.c.b16 %v5701, %v5700
    %5718 = vmatpush.bf16.msra.mxu0 %v5709
    %5719 = vmatpush.bf16.msra.mxu0 %v5708
    %5720 = vmatpush.bf16.msra.mxu0 %v5707
    %5721 = vmatpush.bf16.msra.mxu0 %v5706
    %5722 = vmatpush.bf16.msra.mxu0 %v5705
    %5723 = vmatpush.bf16.msra.mxu0 %v5704
    %5724 = vmatpush.bf16.msra.mxu0 %v5703
    %5725 = vmatpush.bf16.msra.mxu0 %v5702
    %5726 = vmatmul.bf16.gmra.mxu0 %v5649
    %v5727 = vpop.f32.mrf.mxu0
    %v5728 = vadd.f32 %v5668, %v5727
    %v5729 = vpop.f32.mrf.mxu0
    %5730 = vdwg.mxu0
    %v5731 = vtanh.pop %v5728
    %v5732 = vpack.c.bf16 %v5731, %v5731
    %v5733 = vld [vmem:[#allocation11] sm:$0xff]
    %v5734 = vld [vmem:[#allocation11 + $0x8] sm:$0xff]
    %v5735 = vld [vmem:[#allocation11 + $0x10] sm:$0xff]
    %v5736 = vld [vmem:[#allocation11 + $0x18] sm:$0xff]
    %v5737 = vld [vmem:[#allocation11 + $0x20] sm:$0xff]
    %v5738 = vld [vmem:[#allocation11 + $0x28] sm:$0xff]
    %v5739 = vld [vmem:[#allocation11 + $0x30] sm:$0xff]
    %v5740 = vld [vmem:[#allocation11 + $0x38] sm:$0xff]
    %v5741 = vld [vmem:[#allocation11 + $0x40] sm:$0xff]
    %v5742 = vld [vmem:[#allocation11 + $0x48] sm:$0xff]
    %v5743 = vld [vmem:[#allocation11 + $0x50] sm:$0xff]
    %v5744 = vld [vmem:[#allocation11 + $0x58] sm:$0xff]
    %v5745 = vld [vmem:[#allocation11 + $0x60] sm:$0xff]
    %v5746 = vld [vmem:[#allocation11 + $0x68] sm:$0xff]
    %v5747 = vld [vmem:[#allocation11 + $0x70] sm:$0xff]
    %v5748 = vld [vmem:[#allocation11 + $0x78] sm:$0xff]
    %v5749 = vld [vmem:[#allocation11 + $0x80] sm:$0xff]
    %v5750 = vld [vmem:[#allocation11 + $0x88] sm:$0xff]
    %v5751 = vld [vmem:[#allocation11 + $0x90] sm:$0xff]
    %v5752 = vld [vmem:[#allocation11 + $0x98] sm:$0xff]
    %v5753 = vld [vmem:[#allocation11 + $0xa0] sm:$0xff]
    %v5754 = vld [vmem:[#allocation11 + $0xa8] sm:$0xff]
    %v5755 = vld [vmem:[#allocation11 + $0xb0] sm:$0xff]
    %v5756 = vld [vmem:[#allocation11 + $0xb8] sm:$0xff]
    %v5757 = vld [vmem:[#allocation11 + $0xc0] sm:$0xff]
    %v5758 = vld [vmem:[#allocation11 + $0xc8] sm:$0xff]
    %v5759 = vld [vmem:[#allocation11 + $0xd0] sm:$0xff]
    %v5760 = vld [vmem:[#allocation11 + $0xd8] sm:$0xff]
    %v5761 = vld [vmem:[#allocation11 + $0xe0] sm:$0xff]
    %v5762 = vld [vmem:[#allocation11 + $0xe8] sm:$0xff]
    %v5763 = vld [vmem:[#allocation11 + $0xf0] sm:$0xff]
    %v5764 = vld [vmem:[#allocation11 + $0xf8] sm:$0xff]
    %v5765 = vld [vmem:[#allocation13] sm:$0xff]
    %v5766 = vld [vmem:[#allocation13 + $0x8] sm:$0xff]
    %v5767 = vld [vmem:[#allocation13 + $0x10] sm:$0xff]
    %v5768 = vld [vmem:[#allocation13 + $0x18] sm:$0xff]
    %v5769 = vld [vmem:[#allocation13 + $0x20] sm:$0xff]
    %v5770 = vld [vmem:[#allocation13 + $0x28] sm:$0xff]
    %v5771 = vld [vmem:[#allocation13 + $0x30] sm:$0xff]
    %v5772 = vld [vmem:[#allocation13 + $0x38] sm:$0xff]
    %v5773 = vld [vmem:[#allocation13 + $0x40] sm:$0xff]
    %v5774 = vld [vmem:[#allocation13 + $0x48] sm:$0xff]
    %v5775 = vld [vmem:[#allocation13 + $0x50] sm:$0xff]
    %v5776 = vld [vmem:[#allocation13 + $0x58] sm:$0xff]
    %v5777 = vld [vmem:[#allocation13 + $0x60] sm:$0xff]
    %v5778 = vld [vmem:[#allocation13 + $0x68] sm:$0xff]
    %v5779 = vld [vmem:[#allocation13 + $0x70] sm:$0xff]
    %v5780 = vld [vmem:[#allocation13 + $0x78] sm:$0xff]
    %v5781 = vld [vmem:[#allocation13 + $0x80] sm:$0xff]
    %v5782 = vld [vmem:[#allocation13 + $0x88] sm:$0xff]
    %v5783 = vld [vmem:[#allocation13 + $0x90] sm:$0xff]
    %v5784 = vld [vmem:[#allocation13 + $0x98] sm:$0xff]
    %v5785 = vld [vmem:[#allocation13 + $0xa0] sm:$0xff]
    %v5786 = vld [vmem:[#allocation13 + $0xa8] sm:$0xff]
    %v5787 = vld [vmem:[#allocation13 + $0xb0] sm:$0xff]
    %v5788 = vld [vmem:[#allocation13 + $0xb8] sm:$0xff]
    %v5789 = vld [vmem:[#allocation13 + $0xc0] sm:$0xff]
    %v5790 = vld [vmem:[#allocation13 + $0xc8] sm:$0xff]
    %v5791 = vld [vmem:[#allocation13 + $0xd0] sm:$0xff]
    %v5792 = vld [vmem:[#allocation13 + $0xd8] sm:$0xff]
    %v5793 = vld [vmem:[#allocation13 + $0xe0] sm:$0xff]
    %v5794 = vld [vmem:[#allocation13 + $0xe8] sm:$0xff]
    %v5795 = vld [vmem:[#allocation13 + $0xf0] sm:$0xff]
    %v5796 = vld [vmem:[#allocation13 + $0xf8] sm:$0xff]
    %v5829 = vunpack.c.l.b16 %v5765
    %v5830 = vunpack.c.h.b16 %v5765
    %v5831 = vunpack.c.l.b16 %v5766
    %v5832 = vunpack.c.h.b16 %v5766
    %v5833 = vunpack.c.l.b16 %v5767
    %v5834 = vunpack.c.h.b16 %v5767
    %v5835 = vunpack.c.l.b16 %v5768
    %v5836 = vunpack.c.h.b16 %v5768
    %v5837 = vunpack.c.l.b16 %v5769
    %v5838 = vunpack.c.h.b16 %v5769
    %v5839 = vunpack.c.l.b16 %v5770
    %v5840 = vunpack.c.h.b16 %v5770
    %v5841 = vunpack.c.l.b16 %v5771
    %v5842 = vunpack.c.h.b16 %v5771
    %v5843 = vunpack.c.l.b16 %v5772
    %v5844 = vunpack.c.h.b16 %v5772
    %v5845 = vunpack.c.l.b16 %v5773
    %v5846 = vunpack.c.h.b16 %v5773
    %v5847 = vunpack.c.l.b16 %v5774
    %v5848 = vunpack.c.h.b16 %v5774
    %v5849 = vunpack.c.l.b16 %v5775
    %v5850 = vunpack.c.h.b16 %v5775
    %v5851 = vunpack.c.l.b16 %v5776
    %v5852 = vunpack.c.h.b16 %v5776
    %v5853 = vunpack.c.l.b16 %v5777
    %v5854 = vunpack.c.h.b16 %v5777
    %v5855 = vunpack.c.l.b16 %v5778
    %v5856 = vunpack.c.h.b16 %v5778
    %v5857 = vunpack.c.l.b16 %v5779
    %v5858 = vunpack.c.h.b16 %v5779
    %v5859 = vunpack.c.l.b16 %v5780
    %v5860 = vunpack.c.h.b16 %v5780
    %v5861 = vunpack.c.l.b16 %v5781
    %v5862 = vunpack.c.h.b16 %v5781
    %v5863 = vunpack.c.l.b16 %v5782
    %v5864 = vunpack.c.h.b16 %v5782
    %v5865 = vunpack.c.l.b16 %v5783
    %v5866 = vunpack.c.h.b16 %v5783
    %v5867 = vunpack.c.l.b16 %v5784
    %v5868 = vunpack.c.h.b16 %v5784
    %v5869 = vunpack.c.l.b16 %v5785
    %v5870 = vunpack.c.h.b16 %v5785
    %v5871 = vunpack.c.l.b16 %v5786
    %v5872 = vunpack.c.h.b16 %v5786
    %v5873 = vunpack.c.l.b16 %v5787
    %v5874 = vunpack.c.h.b16 %v5787
    %v5875 = vunpack.c.l.b16 %v5788
    %v5876 = vunpack.c.h.b16 %v5788
    %v5877 = vunpack.c.l.b16 %v5789
    %v5878 = vunpack.c.h.b16 %v5789
    %v5879 = vunpack.c.l.b16 %v5790
    %v5880 = vunpack.c.h.b16 %v5790
    %v5881 = vunpack.c.l.b16 %v5791
    %v5882 = vunpack.c.h.b16 %v5791
    %v5883 = vunpack.c.l.b16 %v5792
    %v5884 = vunpack.c.h.b16 %v5792
    %v5885 = vunpack.c.l.b16 %v5793
    %v5886 = vunpack.c.h.b16 %v5793
    %v5887 = vunpack.c.l.b16 %v5794
    %v5888 = vunpack.c.h.b16 %v5794
    %v5889 = vunpack.c.l.b16 %v5795
    %v5890 = vunpack.c.h.b16 %v5795
    %v5891 = vunpack.c.l.b16 %v5796
    %v5892 = vunpack.c.h.b16 %v5796
    %v5893 = vpack.c.b16 %v5833, %v5829
    %v5894 = vpack.c.b16 %v5834, %v5830
    %v5895 = vpack.c.b16 %v5835, %v5831
    %v5896 = vpack.c.b16 %v5836, %v5832
    %v5897 = vpack.c.b16 %v5841, %v5837
    %v5898 = vpack.c.b16 %v5842, %v5838
    %v5899 = vpack.c.b16 %v5843, %v5839
    %v5900 = vpack.c.b16 %v5844, %v5840
    %v5901 = vpack.c.b16 %v5849, %v5845
    %v5902 = vpack.c.b16 %v5850, %v5846
    %v5903 = vpack.c.b16 %v5851, %v5847
    %v5904 = vpack.c.b16 %v5852, %v5848
    %v5905 = vpack.c.b16 %v5857, %v5853
    %v5906 = vpack.c.b16 %v5858, %v5854
    %v5907 = vpack.c.b16 %v5859, %v5855
    %v5908 = vpack.c.b16 %v5860, %v5856
    %v5909 = vpack.c.b16 %v5865, %v5861
    %v5910 = vpack.c.b16 %v5866, %v5862
    %v5911 = vpack.c.b16 %v5867, %v5863
    %v5912 = vpack.c.b16 %v5868, %v5864
    %v5913 = vpack.c.b16 %v5873, %v5869
    %v5914 = vpack.c.b16 %v5874, %v5870
    %v5915 = vpack.c.b16 %v5875, %v5871
    %v5916 = vpack.c.b16 %v5876, %v5872
    %v5917 = vpack.c.b16 %v5881, %v5877
    %v5918 = vpack.c.b16 %v5882, %v5878
    %v5919 = vpack.c.b16 %v5883, %v5879
    %v5920 = vpack.c.b16 %v5884, %v5880
    %v5921 = vpack.c.b16 %v5889, %v5885
    %v5922 = vpack.c.b16 %v5890, %v5886
    %v5923 = vpack.c.b16 %v5891, %v5887
    %v5924 = vpack.c.b16 %v5892, %v5888
    %5957 = vmatpush.bf16.msra.mxu0 %v5921
    %5958 = vmatpush.bf16.msra.mxu0 %v5917
    %5959 = vmatpush.bf16.msra.mxu0 %v5913
    %5960 = vmatpush.bf16.msra.mxu0 %v5909
    %5961 = vmatpush.bf16.msra.mxu0 %v5905
    %5962 = vmatpush.bf16.msra.mxu0 %v5901
    %5963 = vmatpush.bf16.msra.mxu0 %v5897
    %5964 = vmatpush.bf16.msra.mxu0 %v5893
    %5965 = vmatmul.bf16.gmra.mxu0 %v4169
    %v5966 = vpop.f32.mrf.mxu0
    %v5967 = vadd.f32 0.0, %v5966
    %v5968 = vpop.f32.mrf.mxu0
    %5969 = vdwg.mxu0
    %5970 = vmatpush.bf16.msra.mxu0 %v5922
    %5971 = vmatpush.bf16.msra.mxu0 %v5918
    %5972 = vmatpush.bf16.msra.mxu0 %v5914
    %5973 = vmatpush.bf16.msra.mxu0 %v5910
    %5974 = vmatpush.bf16.msra.mxu0 %v5906
    %5975 = vmatpush.bf16.msra.mxu0 %v5902
    %5976 = vmatpush.bf16.msra.mxu0 %v5898
    %5977 = vmatpush.bf16.msra.mxu0 %v5894
    %5978 = vmatmul.bf16.gmra.mxu0 %v4169
    %v5979 = vpop.f32.mrf.mxu0
    %v5980 = vadd.f32 0.0, %v5979
    %v5981 = vpop.f32.mrf.mxu0
    %5982 = vdwg.mxu0
    %5983 = vmatpush.bf16.msra.mxu0 %v5923
    %5984 = vmatpush.bf16.msra.mxu0 %v5919
    %5985 = vmatpush.bf16.msra.mxu0 %v5915
    %5986 = vmatpush.bf16.msra.mxu0 %v5911
    %5987 = vmatpush.bf16.msra.mxu0 %v5907
    %5988 = vmatpush.bf16.msra.mxu0 %v5903
    %5989 = vmatpush.bf16.msra.mxu0 %v5899
    %5990 = vmatpush.bf16.msra.mxu0 %v5895
    %5991 = vmatmul.bf16.gmra.mxu0 %v4169
    %v5992 = vpop.f32.mrf.mxu0
    %v5993 = vadd.f32 0.0, %v5992
    %v5994 = vpop.f32.mrf.mxu0
    %5995 = vdwg.mxu0
    %5996 = vmatpush.bf16.msra.mxu0 %v5924
    %5997 = vmatpush.bf16.msra.mxu0 %v5920
    %5998 = vmatpush.bf16.msra.mxu0 %v5916
    %5999 = vmatpush.bf16.msra.mxu0 %v5912
    %6000 = vmatpush.bf16.msra.mxu0 %v5908
    %6001 = vmatpush.bf16.msra.mxu0 %v5904
    %6002 = vmatpush.bf16.msra.mxu0 %v5900
    %6003 = vmatpush.bf16.msra.mxu0 %v5896
    %6004 = vmatmul.bf16.gmra.mxu0 %v4169
    %v6005 = vpop.f32.mrf.mxu0
    %v6006 = vadd.f32 0.0, %v6005
    %v6007 = vpop.f32.mrf.mxu0
    %6008 = vdwg.mxu0
    %v6041 = vunpack.c.l.b16 %v5733
    %v6042 = vunpack.c.h.b16 %v5733
    %v6043 = vunpack.c.l.b16 %v5734
    %v6044 = vunpack.c.h.b16 %v5734
    %v6045 = vunpack.c.l.b16 %v5735
    %v6046 = vunpack.c.h.b16 %v5735
    %v6047 = vunpack.c.l.b16 %v5736
    %v6048 = vunpack.c.h.b16 %v5736
    %v6049 = vunpack.c.l.b16 %v5737
    %v6050 = vunpack.c.h.b16 %v5737
    %v6051 = vunpack.c.l.b16 %v5738
    %v6052 = vunpack.c.h.b16 %v5738
    %v6053 = vunpack.c.l.b16 %v5739
    %v6054 = vunpack.c.h.b16 %v5739
    %v6055 = vunpack.c.l.b16 %v5740
    %v6056 = vunpack.c.h.b16 %v5740
    %v6057 = vunpack.c.l.b16 %v5741
    %v6058 = vunpack.c.h.b16 %v5741
    %v6059 = vunpack.c.l.b16 %v5742
    %v6060 = vunpack.c.h.b16 %v5742
    %v6061 = vunpack.c.l.b16 %v5743
    %v6062 = vunpack.c.h.b16 %v5743
    %v6063 = vunpack.c.l.b16 %v5744
    %v6064 = vunpack.c.h.b16 %v5744
    %v6065 = vunpack.c.l.b16 %v5745
    %v6066 = vunpack.c.h.b16 %v5745
    %v6067 = vunpack.c.l.b16 %v5746
    %v6068 = vunpack.c.h.b16 %v5746
    %v6069 = vunpack.c.l.b16 %v5747
    %v6070 = vunpack.c.h.b16 %v5747
    %v6071 = vunpack.c.l.b16 %v5748
    %v6072 = vunpack.c.h.b16 %v5748
    %v6073 = vunpack.c.l.b16 %v5749
    %v6074 = vunpack.c.h.b16 %v5749
    %v6075 = vunpack.c.l.b16 %v5750
    %v6076 = vunpack.c.h.b16 %v5750
    %v6077 = vunpack.c.l.b16 %v5751
    %v6078 = vunpack.c.h.b16 %v5751
    %v6079 = vunpack.c.l.b16 %v5752
    %v6080 = vunpack.c.h.b16 %v5752
    %v6081 = vunpack.c.l.b16 %v5753
    %v6082 = vunpack.c.h.b16 %v5753
    %v6083 = vunpack.c.l.b16 %v5754
    %v6084 = vunpack.c.h.b16 %v5754
    %v6085 = vunpack.c.l.b16 %v5755
    %v6086 = vunpack.c.h.b16 %v5755
    %v6087 = vunpack.c.l.b16 %v5756
    %v6088 = vunpack.c.h.b16 %v5756
    %v6089 = vunpack.c.l.b16 %v5757
    %v6090 = vunpack.c.h.b16 %v5757
    %v6091 = vunpack.c.l.b16 %v5758
    %v6092 = vunpack.c.h.b16 %v5758
    %v6093 = vunpack.c.l.b16 %v5759
    %v6094 = vunpack.c.h.b16 %v5759
    %v6095 = vunpack.c.l.b16 %v5760
    %v6096 = vunpack.c.h.b16 %v5760
    %v6097 = vunpack.c.l.b16 %v5761
    %v6098 = vunpack.c.h.b16 %v5761
    %v6099 = vunpack.c.l.b16 %v5762
    %v6100 = vunpack.c.h.b16 %v5762
    %v6101 = vunpack.c.l.b16 %v5763
    %v6102 = vunpack.c.h.b16 %v5763
    %v6103 = vunpack.c.l.b16 %v5764
    %v6104 = vunpack.c.h.b16 %v5764
    %v6105 = vpack.c.b16 %v6045, %v6041
    %v6106 = vpack.c.b16 %v6046, %v6042
    %v6107 = vpack.c.b16 %v6047, %v6043
    %v6108 = vpack.c.b16 %v6048, %v6044
    %v6109 = vpack.c.b16 %v6053, %v6049
    %v6110 = vpack.c.b16 %v6054, %v6050
    %v6111 = vpack.c.b16 %v6055, %v6051
    %v6112 = vpack.c.b16 %v6056, %v6052
    %v6113 = vpack.c.b16 %v6061, %v6057
    %v6114 = vpack.c.b16 %v6062, %v6058
    %v6115 = vpack.c.b16 %v6063, %v6059
    %v6116 = vpack.c.b16 %v6064, %v6060
    %v6117 = vpack.c.b16 %v6069, %v6065
    %v6118 = vpack.c.b16 %v6070, %v6066
    %v6119 = vpack.c.b16 %v6071, %v6067
    %v6120 = vpack.c.b16 %v6072, %v6068
    %v6121 = vpack.c.b16 %v6077, %v6073
    %v6122 = vpack.c.b16 %v6078, %v6074
    %v6123 = vpack.c.b16 %v6079, %v6075
    %v6124 = vpack.c.b16 %v6080, %v6076
    %v6125 = vpack.c.b16 %v6085, %v6081
    %v6126 = vpack.c.b16 %v6086, %v6082
    %v6127 = vpack.c.b16 %v6087, %v6083
    %v6128 = vpack.c.b16 %v6088, %v6084
    %v6129 = vpack.c.b16 %v6093, %v6089
    %v6130 = vpack.c.b16 %v6094, %v6090
    %v6131 = vpack.c.b16 %v6095, %v6091
    %v6132 = vpack.c.b16 %v6096, %v6092
    %v6133 = vpack.c.b16 %v6101, %v6097
    %v6134 = vpack.c.b16 %v6102, %v6098
    %v6135 = vpack.c.b16 %v6103, %v6099
    %v6136 = vpack.c.b16 %v6104, %v6100
    %6169 = vmatpush.bf16.msra.mxu0 %v6133
    %6170 = vmatpush.bf16.msra.mxu0 %v6129
    %6171 = vmatpush.bf16.msra.mxu0 %v6125
    %6172 = vmatpush.bf16.msra.mxu0 %v6121
    %6173 = vmatpush.bf16.msra.mxu0 %v6117
    %6174 = vmatpush.bf16.msra.mxu0 %v6113
    %6175 = vmatpush.bf16.msra.mxu0 %v6109
    %6176 = vmatpush.bf16.msra.mxu0 %v6105
    %6177 = vmatmul.bf16.gmra.mxu0 %v5732
    %v6178 = vpop.f32.mrf.mxu0
    %v6179 = vadd.f32 %v5967, %v6178
    %v6180 = vpop.f32.mrf.mxu0
    %6181 = vdwg.mxu0
    %6182 = vmatpush.bf16.msra.mxu0 %v6134
    %6183 = vmatpush.bf16.msra.mxu0 %v6130
    %6184 = vmatpush.bf16.msra.mxu0 %v6126
    %6185 = vmatpush.bf16.msra.mxu0 %v6122
    %6186 = vmatpush.bf16.msra.mxu0 %v6118
    %6187 = vmatpush.bf16.msra.mxu0 %v6114
    %6188 = vmatpush.bf16.msra.mxu0 %v6110
    %6189 = vmatpush.bf16.msra.mxu0 %v6106
    %6190 = vmatmul.bf16.gmra.mxu0 %v5732
    %v6191 = vpop.f32.mrf.mxu0
    %v6192 = vadd.f32 %v5980, %v6191
    %v6193 = vpop.f32.mrf.mxu0
    %6194 = vdwg.mxu0
    %6195 = vmatpush.bf16.msra.mxu0 %v6135
    %6196 = vmatpush.bf16.msra.mxu0 %v6131
    %6197 = vmatpush.bf16.msra.mxu0 %v6127
    %6198 = vmatpush.bf16.msra.mxu0 %v6123
    %6199 = vmatpush.bf16.msra.mxu0 %v6119
    %6200 = vmatpush.bf16.msra.mxu0 %v6115
    %6201 = vmatpush.bf16.msra.mxu0 %v6111
    %6202 = vmatpush.bf16.msra.mxu0 %v6107
    %6203 = vmatmul.bf16.gmra.mxu0 %v5732
    %v6204 = vpop.f32.mrf.mxu0
    %v6205 = vadd.f32 %v5993, %v6204
    %v6206 = vpop.f32.mrf.mxu0
    %6207 = vdwg.mxu0
    %6208 = vmatpush.bf16.msra.mxu0 %v6136
    %6209 = vmatpush.bf16.msra.mxu0 %v6132
    %6210 = vmatpush.bf16.msra.mxu0 %v6128
    %6211 = vmatpush.bf16.msra.mxu0 %v6124
    %6212 = vmatpush.bf16.msra.mxu0 %v6120
    %6213 = vmatpush.bf16.msra.mxu0 %v6116
    %6214 = vmatpush.bf16.msra.mxu0 %v6112
    %6215 = vmatpush.bf16.msra.mxu0 %v6108
    %6216 = vmatmul.bf16.gmra.mxu0 %v5732
    %v6217 = vpop.f32.mrf.mxu0
    %v6218 = vadd.f32 %v6006, %v6217
    %v6219 = vpop.f32.mrf.mxu0
    %6220 = vdwg.mxu0
    %v6221 = vld [vmem:[%s7] sm:$0xf]
    %v6223 = vperm.slane %v6221, 0
    %v6224 = vperm.slane %v6221, 1
    %v6225 = vperm.slane %v6221, 2
    %v6226 = vperm.slane %v6221, 3
    %v6231 = vadd.f32 %v6179, %v6223
    %v6232 = vadd.f32 %v6192, %v6224
    %v6233 = vadd.f32 %v6205, %v6225
    %v6234 = vadd.f32 %v6218, %v6226
    %v6235 = vxor.u32 %v6231, 2147483648
    %v6236 = vmul.f32 %v6235, 1.442695
    %v6237 = vpow.pop %v6236
    %v6238 = vadd.f32 %v6237, 1.0
    %v6239 = vrcp.pop %v6238
    %v6240 = vmul.f32 %v6238, %v6239
    %v6241 = vsub.f32 1.0, %v6240
    %v6242 = vmul.f32 %v6239, %v6241
    %v6243 = vadd.f32 %v6239, %v6242
    %vm6244 = vweird.f32 %v6238
    %vm6245 = vweird.f32 %v6239
    %vm6246 = vmor %vm6244, %vm6245
    %v6247 = vsel %vm6246, %v6239, %v6243
    %v6248 = vand.u32 2147483647, %v6238
    %vm6249 = vcmp.eq.f32.partialorder %v6248, 8.507059e+37
    %v6250 = vand.u32 %v6238, 2147483648
    %v6251 = vor.u32 1.1754944e-38, %v6250
    %v6252 = vsel %vm6249, %v6251, %v6247
    %v6253 = vmul.f32 1.0, %v6252
    %v6254 = vxor.u32 %v6232, 2147483648
    %v6255 = vmul.f32 %v6254, 1.442695
    %v6256 = vpow.pop %v6255
    %v6257 = vadd.f32 %v6256, 1.0
    %v6258 = vrcp.pop %v6257
    %v6259 = vmul.f32 %v6257, %v6258
    %v6260 = vsub.f32 1.0, %v6259
    %v6261 = vmul.f32 %v6258, %v6260
    %v6262 = vadd.f32 %v6258, %v6261
    %vm6263 = vweird.f32 %v6257
    %vm6264 = vweird.f32 %v6258
    %vm6265 = vmor %vm6263, %vm6264
    %v6266 = vsel %vm6265, %v6258, %v6262
    %v6267 = vand.u32 2147483647, %v6257
    %vm6268 = vcmp.eq.f32.partialorder %v6267, 8.507059e+37
    %v6269 = vand.u32 %v6257, 2147483648
    %v6270 = vor.u32 1.1754944e-38, %v6269
    %v6271 = vsel %vm6268, %v6270, %v6266
    %v6272 = vmul.f32 1.0, %v6271
    %v6273 = vtanh.pop %v6233
    %v6274 = vxor.u32 %v6234, 2147483648
    %v6275 = vmul.f32 %v6274, 1.442695
    %v6276 = vpow.pop %v6275
    %v6277 = vadd.f32 %v6276, 1.0
    %v6278 = vrcp.pop %v6277
    %v6279 = vmul.f32 %v6277, %v6278
    %v6280 = vsub.f32 1.0, %v6279
    %v6281 = vmul.f32 %v6278, %v6280
    %v6282 = vadd.f32 %v6278, %v6281
    %vm6283 = vweird.f32 %v6277
    %vm6284 = vweird.f32 %v6278
    %vm6285 = vmor %vm6283, %vm6284
    %v6286 = vsel %vm6285, %v6278, %v6282
    %v6287 = vand.u32 2147483647, %v6277
    %vm6288 = vcmp.eq.f32.partialorder %v6287, 8.507059e+37
    %v6289 = vand.u32 %v6277, 2147483648
    %v6290 = vor.u32 1.1754944e-38, %v6289
    %v6291 = vsel %vm6288, %v6290, %v6286
    %v6292 = vmul.f32 1.0, %v6291
    %v6293 = vmul.f32 %v6272, %v4166
    %v6294 = vmul.f32 %v6253, %v6273
    %v6295 = vadd.f32 %v6293, %v6294
    %v6296 = vtanh.pop %v6295
    %v6297 = vmul.f32 %v6292, %v6296
    %v6298 = vpack.c.bf16 %v6297, %v6297
    %v6299 = vld [vmem:[#allocation14] sm:$0xf]
    %v6300 = vld [vmem:[#allocation14 + $0x4] sm:$0xf]
    %v6301 = vld [vmem:[#allocation14 + $0x8] sm:$0xf]
    %v6302 = vld [vmem:[#allocation14 + $0xc] sm:$0xf]
    %v6303 = vld [vmem:[#allocation14 + $0x10] sm:$0xf]
    %v6304 = vld [vmem:[#allocation14 + $0x14] sm:$0xf]
    %v6305 = vld [vmem:[#allocation14 + $0x18] sm:$0xf]
    %v6306 = vld [vmem:[#allocation14 + $0x1c] sm:$0xf]
    %v6307 = vld [vmem:[#allocation14 + $0x20] sm:$0xf]
    %v6308 = vld [vmem:[#allocation14 + $0x24] sm:$0xf]
    %v6309 = vld [vmem:[#allocation14 + $0x28] sm:$0xf]
    %v6310 = vld [vmem:[#allocation14 + $0x2c] sm:$0xf]
    %v6311 = vld [vmem:[#allocation14 + $0x30] sm:$0xf]
    %v6312 = vld [vmem:[#allocation14 + $0x34] sm:$0xf]
    %v6313 = vld [vmem:[#allocation14 + $0x38] sm:$0xf]
    %v6314 = vld [vmem:[#allocation14 + $0x3c] sm:$0xf]
    %v6315 = vld [vmem:[#allocation16] sm:$0x1]
    %v6317 = vperm.slane %v6315, 0
    %v6335 = vunpack.c.l.b16 %v6299
    %v6336 = vunpack.c.l.b16 %v6300
    %v6337 = vunpack.c.l.b16 %v6301
    %v6338 = vunpack.c.l.b16 %v6302
    %v6339 = vunpack.c.l.b16 %v6303
    %v6340 = vunpack.c.l.b16 %v6304
    %v6341 = vunpack.c.l.b16 %v6305
    %v6342 = vunpack.c.l.b16 %v6306
    %v6343 = vunpack.c.l.b16 %v6307
    %v6344 = vunpack.c.l.b16 %v6308
    %v6345 = vunpack.c.l.b16 %v6309
    %v6346 = vunpack.c.l.b16 %v6310
    %v6347 = vunpack.c.l.b16 %v6311
    %v6348 = vunpack.c.l.b16 %v6312
    %v6349 = vunpack.c.l.b16 %v6313
    %v6350 = vunpack.c.l.b16 %v6314
    %v6351 = vpack.c.b16 %v6336, %v6335
    %v6352 = vpack.c.b16 %v6338, %v6337
    %v6353 = vpack.c.b16 %v6340, %v6339
    %v6354 = vpack.c.b16 %v6342, %v6341
    %v6355 = vpack.c.b16 %v6344, %v6343
    %v6356 = vpack.c.b16 %v6346, %v6345
    %v6357 = vpack.c.b16 %v6348, %v6347
    %v6358 = vpack.c.b16 %v6350, %v6349
    %6367 = vmatpush.bf16.msra.mxu0 %v6358
    %6368 = vmatpush.bf16.msra.mxu0 %v6357
    %6369 = vmatpush.bf16.msra.mxu0 %v6356
    %6370 = vmatpush.bf16.msra.mxu0 %v6355
    %6371 = vmatpush.bf16.msra.mxu0 %v6354
    %6372 = vmatpush.bf16.msra.mxu0 %v6353
    %6373 = vmatpush.bf16.msra.mxu0 %v6352
    %6374 = vmatpush.bf16.msra.mxu0 %v6351
    %6375 = vmatmul.bf16.gmra.mxu0 %v6298
    %v6376 = vpop.f32.mrf.mxu0
    %v6377 = vadd.f32 %v6317, %v6376
    %v6378 = vpop.f32.mrf.mxu0
    %6379 = vdwg.mxu0
    %v6380 = vtanh.pop %v6377
    %v6381 = vpack.c.bf16 %v6380, %v6380
    %v6382 = vld [vmem:[#allocation17] sm:$0xf]
    %v6383 = vld [vmem:[#allocation17 + $0x4] sm:$0xf]
    %v6384 = vld [vmem:[#allocation17 + $0x8] sm:$0xf]
    %v6385 = vld [vmem:[#allocation17 + $0xc] sm:$0xf]
    %v6386 = vld [vmem:[#allocation17 + $0x10] sm:$0xf]
    %v6387 = vld [vmem:[#allocation17 + $0x14] sm:$0xf]
    %v6388 = vld [vmem:[#allocation17 + $0x18] sm:$0xf]
    %v6389 = vld [vmem:[#allocation17 + $0x1c] sm:$0xf]
    %v6390 = vld [vmem:[#allocation17 + $0x20] sm:$0xf]
    %v6391 = vld [vmem:[#allocation17 + $0x24] sm:$0xf]
    %v6392 = vld [vmem:[#allocation17 + $0x28] sm:$0xf]
    %v6393 = vld [vmem:[#allocation17 + $0x2c] sm:$0xf]
    %v6394 = vld [vmem:[#allocation17 + $0x30] sm:$0xf]
    %v6395 = vld [vmem:[#allocation17 + $0x34] sm:$0xf]
    %v6396 = vld [vmem:[#allocation17 + $0x38] sm:$0xf]
    %v6397 = vld [vmem:[#allocation17 + $0x3c] sm:$0xf]
    %v6398 = vld [vmem:[#allocation19] sm:$0x1]
    %v6400 = vperm.slane %v6398, 0
    %v6418 = vunpack.c.l.b16 %v6382
    %v6419 = vunpack.c.l.b16 %v6383
    %v6420 = vunpack.c.l.b16 %v6384
    %v6421 = vunpack.c.l.b16 %v6385
    %v6422 = vunpack.c.l.b16 %v6386
    %v6423 = vunpack.c.l.b16 %v6387
    %v6424 = vunpack.c.l.b16 %v6388
    %v6425 = vunpack.c.l.b16 %v6389
    %v6426 = vunpack.c.l.b16 %v6390
    %v6427 = vunpack.c.l.b16 %v6391
    %v6428 = vunpack.c.l.b16 %v6392
    %v6429 = vunpack.c.l.b16 %v6393
    %v6430 = vunpack.c.l.b16 %v6394
    %v6431 = vunpack.c.l.b16 %v6395
    %v6432 = vunpack.c.l.b16 %v6396
    %v6433 = vunpack.c.l.b16 %v6397
    %v6434 = vpack.c.b16 %v6419, %v6418
    %v6435 = vpack.c.b16 %v6421, %v6420
    %v6436 = vpack.c.b16 %v6423, %v6422
    %v6437 = vpack.c.b16 %v6425, %v6424
    %v6438 = vpack.c.b16 %v6427, %v6426
    %v6439 = vpack.c.b16 %v6429, %v6428
    %v6440 = vpack.c.b16 %v6431, %v6430
    %v6441 = vpack.c.b16 %v6433, %v6432
    %6450 = vmatpush.bf16.msra.mxu0 %v6441
    %6451 = vmatpush.bf16.msra.mxu0 %v6440
    %6452 = vmatpush.bf16.msra.mxu0 %v6439
    %6453 = vmatpush.bf16.msra.mxu0 %v6438
    %6454 = vmatpush.bf16.msra.mxu0 %v6437
    %6455 = vmatpush.bf16.msra.mxu0 %v6436
    %6456 = vmatpush.bf16.msra.mxu0 %v6435
    %6457 = vmatpush.bf16.msra.mxu0 %v6434
    %6458 = vmatmul.bf16.gmra.mxu0 %v6381
    %v6459 = vpop.f32.mrf.mxu0
    %v6460 = vadd.f32 %v6400, %v6459
    %v6461 = vpop.f32.mrf.mxu0
    %6462 = vdwg.mxu0
    %v6463 = vadd.f32 %v6460, %v2201
    %v6464 = vmax.f32 %v6463, 0.0
    %v6465 = vpack.c.bf16 %v6464, %v6464
    %v6466 = vld [vmem:[#allocation20] sm:$0xff]
    %v6467 = vld [vmem:[#allocation20 + $0x8] sm:$0xff]
    %v6468 = vld [vmem:[#allocation20 + $0x10] sm:$0xff]
    %v6469 = vld [vmem:[#allocation20 + $0x18] sm:$0xff]
    %v6470 = vld [vmem:[#allocation20 + $0x20] sm:$0xff]
    %v6471 = vld [vmem:[#allocation20 + $0x28] sm:$0xff]
    %v6472 = vld [vmem:[#allocation20 + $0x30] sm:$0xff]
    %v6473 = vld [vmem:[#allocation20 + $0x38] sm:$0xff]
    %v6474 = vld [vmem:[#allocation20 + $0x40] sm:$0xff]
    %v6475 = vld [vmem:[#allocation20 + $0x48] sm:$0xff]
    %v6476 = vld [vmem:[#allocation20 + $0x50] sm:$0xff]
    %v6477 = vld [vmem:[#allocation20 + $0x58] sm:$0xff]
    %v6478 = vld [vmem:[#allocation20 + $0x60] sm:$0xff]
    %v6479 = vld [vmem:[#allocation20 + $0x68] sm:$0xff]
    %v6480 = vld [vmem:[#allocation20 + $0x70] sm:$0xff]
    %v6481 = vld [vmem:[#allocation20 + $0x78] sm:$0xff]
    %v6482 = vld [vmem:[#allocation20 + $0x80] sm:$0xff]
    %v6483 = vld [vmem:[#allocation20 + $0x88] sm:$0xff]
    %v6484 = vld [vmem:[#allocation20 + $0x90] sm:$0xff]
    %v6485 = vld [vmem:[#allocation20 + $0x98] sm:$0xff]
    %v6486 = vld [vmem:[#allocation20 + $0xa0] sm:$0xff]
    %v6487 = vld [vmem:[#allocation20 + $0xa8] sm:$0xff]
    %v6488 = vld [vmem:[#allocation20 + $0xb0] sm:$0xff]
    %v6489 = vld [vmem:[#allocation20 + $0xb8] sm:$0xff]
    %v6490 = vld [vmem:[#allocation20 + $0xc0] sm:$0xff]
    %v6491 = vld [vmem:[#allocation20 + $0xc8] sm:$0xff]
    %v6492 = vld [vmem:[#allocation20 + $0xd0] sm:$0xff]
    %v6493 = vld [vmem:[#allocation20 + $0xd8] sm:$0xff]
    %v6494 = vld [vmem:[#allocation20 + $0xe0] sm:$0xff]
    %v6495 = vld [vmem:[#allocation20 + $0xe8] sm:$0xff]
    %v6496 = vld [vmem:[#allocation20 + $0xf0] sm:$0xff]
    %v6497 = vld [vmem:[#allocation20 + $0xf8] sm:$0xff]
    %v6498 = vld [vmem:[#allocation20 + $0x100] sm:$0xff]
    %v6499 = vld [vmem:[#allocation20 + $0x108] sm:$0xff]
    %v6500 = vld [vmem:[#allocation20 + $0x110] sm:$0xff]
    %v6501 = vld [vmem:[#allocation20 + $0x118] sm:$0xff]
    %v6502 = vld [vmem:[#allocation20 + $0x120] sm:$0xff]
    %v6503 = vld [vmem:[#allocation20 + $0x128] sm:$0xff]
    %v6504 = vld [vmem:[#allocation20 + $0x130] sm:$0xff]
    %v6505 = vld [vmem:[#allocation20 + $0x138] sm:$0xff]
    %v6506 = vld [vmem:[#allocation20 + $0x140] sm:$0xff]
    %v6507 = vld [vmem:[#allocation20 + $0x148] sm:$0xff]
    %v6508 = vld [vmem:[#allocation20 + $0x150] sm:$0xff]
    %v6509 = vld [vmem:[#allocation20 + $0x158] sm:$0xff]
    %v6510 = vld [vmem:[#allocation20 + $0x160] sm:$0xff]
    %v6511 = vld [vmem:[#allocation20 + $0x168] sm:$0xff]
    %v6512 = vld [vmem:[#allocation20 + $0x170] sm:$0xff]
    %v6513 = vld [vmem:[#allocation20 + $0x178] sm:$0xff]
    %v6514 = vld [vmem:[#allocation20 + $0x180] sm:$0xff]
    %v6515 = vld [vmem:[#allocation20 + $0x188] sm:$0xff]
    %v6516 = vld [vmem:[#allocation20 + $0x190] sm:$0xff]
    %v6517 = vld [vmem:[#allocation20 + $0x198] sm:$0xff]
    %v6518 = vld [vmem:[#allocation20 + $0x1a0] sm:$0xff]
    %v6519 = vld [vmem:[#allocation20 + $0x1a8] sm:$0xff]
    %v6520 = vld [vmem:[#allocation20 + $0x1b0] sm:$0xff]
    %v6521 = vld [vmem:[#allocation20 + $0x1b8] sm:$0xff]
    %v6522 = vld [vmem:[#allocation20 + $0x1c0] sm:$0xff]
    %v6523 = vld [vmem:[#allocation20 + $0x1c8] sm:$0xff]
    %v6524 = vld [vmem:[#allocation20 + $0x1d0] sm:$0xff]
    %v6525 = vld [vmem:[#allocation20 + $0x1d8] sm:$0xff]
    %v6526 = vld [vmem:[#allocation20 + $0x1e0] sm:$0xff]
    %v6527 = vld [vmem:[#allocation20 + $0x1e8] sm:$0xff]
    %v6528 = vld [vmem:[#allocation20 + $0x1f0] sm:$0xff]
    %v6529 = vld [vmem:[#allocation20 + $0x1f8] sm:$0xff]
    %v6530 = vld [vmem:[%s13] sm:$0xff]
    %v6532 = vperm.slane %v6530, 0
    %v6533 = vperm.slane %v6530, 1
    %v6534 = vperm.slane %v6530, 2
    %v6535 = vperm.slane %v6530, 3
    %v6536 = vperm.slane %v6530, 4
    %v6537 = vperm.slane %v6530, 5
    %v6538 = vperm.slane %v6530, 6
    %v6539 = vperm.slane %v6530, 7
    %v6612 = vunpack.c.l.b16 %v6466
    %v6613 = vunpack.c.h.b16 %v6466
    %v6614 = vunpack.c.l.b16 %v6467
    %v6615 = vunpack.c.h.b16 %v6467
    %v6616 = vunpack.c.l.b16 %v6468
    %v6617 = vunpack.c.h.b16 %v6468
    %v6618 = vunpack.c.l.b16 %v6469
    %v6619 = vunpack.c.h.b16 %v6469
    %v6620 = vunpack.c.l.b16 %v6470
    %v6621 = vunpack.c.h.b16 %v6470
    %v6622 = vunpack.c.l.b16 %v6471
    %v6623 = vunpack.c.h.b16 %v6471
    %v6624 = vunpack.c.l.b16 %v6472
    %v6625 = vunpack.c.h.b16 %v6472
    %v6626 = vunpack.c.l.b16 %v6473
    %v6627 = vunpack.c.h.b16 %v6473
    %v6628 = vunpack.c.l.b16 %v6474
    %v6629 = vunpack.c.h.b16 %v6474
    %v6630 = vunpack.c.l.b16 %v6475
    %v6631 = vunpack.c.h.b16 %v6475
    %v6632 = vunpack.c.l.b16 %v6476
    %v6633 = vunpack.c.h.b16 %v6476
    %v6634 = vunpack.c.l.b16 %v6477
    %v6635 = vunpack.c.h.b16 %v6477
    %v6636 = vunpack.c.l.b16 %v6478
    %v6637 = vunpack.c.h.b16 %v6478
    %v6638 = vunpack.c.l.b16 %v6479
    %v6639 = vunpack.c.h.b16 %v6479
    %v6640 = vunpack.c.l.b16 %v6480
    %v6641 = vunpack.c.h.b16 %v6480
    %v6642 = vunpack.c.l.b16 %v6481
    %v6643 = vunpack.c.h.b16 %v6481
    %v6644 = vunpack.c.l.b16 %v6482
    %v6645 = vunpack.c.h.b16 %v6482
    %v6646 = vunpack.c.l.b16 %v6483
    %v6647 = vunpack.c.h.b16 %v6483
    %v6648 = vunpack.c.l.b16 %v6484
    %v6649 = vunpack.c.h.b16 %v6484
    %v6650 = vunpack.c.l.b16 %v6485
    %v6651 = vunpack.c.h.b16 %v6485
    %v6652 = vunpack.c.l.b16 %v6486
    %v6653 = vunpack.c.h.b16 %v6486
    %v6654 = vunpack.c.l.b16 %v6487
    %v6655 = vunpack.c.h.b16 %v6487
    %v6656 = vunpack.c.l.b16 %v6488
    %v6657 = vunpack.c.h.b16 %v6488
    %v6658 = vunpack.c.l.b16 %v6489
    %v6659 = vunpack.c.h.b16 %v6489
    %v6660 = vunpack.c.l.b16 %v6490
    %v6661 = vunpack.c.h.b16 %v6490
    %v6662 = vunpack.c.l.b16 %v6491
    %v6663 = vunpack.c.h.b16 %v6491
    %v6664 = vunpack.c.l.b16 %v6492
    %v6665 = vunpack.c.h.b16 %v6492
    %v6666 = vunpack.c.l.b16 %v6493
    %v6667 = vunpack.c.h.b16 %v6493
    %v6668 = vunpack.c.l.b16 %v6494
    %v6669 = vunpack.c.h.b16 %v6494
    %v6670 = vunpack.c.l.b16 %v6495
    %v6671 = vunpack.c.h.b16 %v6495
    %v6672 = vunpack.c.l.b16 %v6496
    %v6673 = vunpack.c.h.b16 %v6496
    %v6674 = vunpack.c.l.b16 %v6497
    %v6675 = vunpack.c.h.b16 %v6497
    %v6676 = vunpack.c.l.b16 %v6498
    %v6677 = vunpack.c.h.b16 %v6498
    %v6678 = vunpack.c.l.b16 %v6499
    %v6679 = vunpack.c.h.b16 %v6499
    %v6680 = vunpack.c.l.b16 %v6500
    %v6681 = vunpack.c.h.b16 %v6500
    %v6682 = vunpack.c.l.b16 %v6501
    %v6683 = vunpack.c.h.b16 %v6501
    %v6684 = vunpack.c.l.b16 %v6502
    %v6685 = vunpack.c.h.b16 %v6502
    %v6686 = vunpack.c.l.b16 %v6503
    %v6687 = vunpack.c.h.b16 %v6503
    %v6688 = vunpack.c.l.b16 %v6504
    %v6689 = vunpack.c.h.b16 %v6504
    %v6690 = vunpack.c.l.b16 %v6505
    %v6691 = vunpack.c.h.b16 %v6505
    %v6692 = vunpack.c.l.b16 %v6506
    %v6693 = vunpack.c.h.b16 %v6506
    %v6694 = vunpack.c.l.b16 %v6507
    %v6695 = vunpack.c.h.b16 %v6507
    %v6696 = vunpack.c.l.b16 %v6508
    %v6697 = vunpack.c.h.b16 %v6508
    %v6698 = vunpack.c.l.b16 %v6509
    %v6699 = vunpack.c.h.b16 %v6509
    %v6700 = vunpack.c.l.b16 %v6510
    %v6701 = vunpack.c.h.b16 %v6510
    %v6702 = vunpack.c.l.b16 %v6511
    %v6703 = vunpack.c.h.b16 %v6511
    %v6704 = vunpack.c.l.b16 %v6512
    %v6705 = vunpack.c.h.b16 %v6512
    %v6706 = vunpack.c.l.b16 %v6513
    %v6707 = vunpack.c.h.b16 %v6513
    %v6708 = vunpack.c.l.b16 %v6514
    %v6709 = vunpack.c.h.b16 %v6514
    %v6710 = vunpack.c.l.b16 %v6515
    %v6711 = vunpack.c.h.b16 %v6515
    %v6712 = vunpack.c.l.b16 %v6516
    %v6713 = vunpack.c.h.b16 %v6516
    %v6714 = vunpack.c.l.b16 %v6517
    %v6715 = vunpack.c.h.b16 %v6517
    %v6716 = vunpack.c.l.b16 %v6518
    %v6717 = vunpack.c.h.b16 %v6518
    %v6718 = vunpack.c.l.b16 %v6519
    %v6719 = vunpack.c.h.b16 %v6519
    %v6720 = vunpack.c.l.b16 %v6520
    %v6721 = vunpack.c.h.b16 %v6520
    %v6722 = vunpack.c.l.b16 %v6521
    %v6723 = vunpack.c.h.b16 %v6521
    %v6724 = vunpack.c.l.b16 %v6522
    %v6725 = vunpack.c.h.b16 %v6522
    %v6726 = vunpack.c.l.b16 %v6523
    %v6727 = vunpack.c.h.b16 %v6523
    %v6728 = vunpack.c.l.b16 %v6524
    %v6729 = vunpack.c.h.b16 %v6524
    %v6730 = vunpack.c.l.b16 %v6525
    %v6731 = vunpack.c.h.b16 %v6525
    %v6732 = vunpack.c.l.b16 %v6526
    %v6733 = vunpack.c.h.b16 %v6526
    %v6734 = vunpack.c.l.b16 %v6527
    %v6735 = vunpack.c.h.b16 %v6527
    %v6736 = vunpack.c.l.b16 %v6528
    %v6737 = vunpack.c.h.b16 %v6528
    %v6738 = vunpack.c.l.b16 %v6529
    %v6739 = vunpack.c.h.b16 %v6529
    %v6740 = vpack.c.b16 %v6620, %v6612
    %v6741 = vpack.c.b16 %v6621, %v6613
    %v6742 = vpack.c.b16 %v6622, %v6614
    %v6743 = vpack.c.b16 %v6623, %v6615
    %v6744 = vpack.c.b16 %v6624, %v6616
    %v6745 = vpack.c.b16 %v6625, %v6617
    %v6746 = vpack.c.b16 %v6626, %v6618
    %v6747 = vpack.c.b16 %v6627, %v6619
    %v6748 = vpack.c.b16 %v6636, %v6628
    %v6749 = vpack.c.b16 %v6637, %v6629
    %v6750 = vpack.c.b16 %v6638, %v6630
    %v6751 = vpack.c.b16 %v6639, %v6631
    %v6752 = vpack.c.b16 %v6640, %v6632
    %v6753 = vpack.c.b16 %v6641, %v6633
    %v6754 = vpack.c.b16 %v6642, %v6634
    %v6755 = vpack.c.b16 %v6643, %v6635
    %v6756 = vpack.c.b16 %v6652, %v6644
    %v6757 = vpack.c.b16 %v6653, %v6645
    %v6758 = vpack.c.b16 %v6654, %v6646
    %v6759 = vpack.c.b16 %v6655, %v6647
    %v6760 = vpack.c.b16 %v6656, %v6648
    %v6761 = vpack.c.b16 %v6657, %v6649
    %v6762 = vpack.c.b16 %v6658, %v6650
    %v6763 = vpack.c.b16 %v6659, %v6651
    %v6764 = vpack.c.b16 %v6668, %v6660
    %v6765 = vpack.c.b16 %v6669, %v6661
    %v6766 = vpack.c.b16 %v6670, %v6662
    %v6767 = vpack.c.b16 %v6671, %v6663
    %v6768 = vpack.c.b16 %v6672, %v6664
    %v6769 = vpack.c.b16 %v6673, %v6665
    %v6770 = vpack.c.b16 %v6674, %v6666
    %v6771 = vpack.c.b16 %v6675, %v6667
    %v6772 = vpack.c.b16 %v6684, %v6676
    %v6773 = vpack.c.b16 %v6685, %v6677
    %v6774 = vpack.c.b16 %v6686, %v6678
    %v6775 = vpack.c.b16 %v6687, %v6679
    %v6776 = vpack.c.b16 %v6688, %v6680
    %v6777 = vpack.c.b16 %v6689, %v6681
    %v6778 = vpack.c.b16 %v6690, %v6682
    %v6779 = vpack.c.b16 %v6691, %v6683
    %v6780 = vpack.c.b16 %v6700, %v6692
    %v6781 = vpack.c.b16 %v6701, %v6693
    %v6782 = vpack.c.b16 %v6702, %v6694
    %v6783 = vpack.c.b16 %v6703, %v6695
    %v6784 = vpack.c.b16 %v6704, %v6696
    %v6785 = vpack.c.b16 %v6705, %v6697
    %v6786 = vpack.c.b16 %v6706, %v6698
    %v6787 = vpack.c.b16 %v6707, %v6699
    %v6788 = vpack.c.b16 %v6716, %v6708
    %v6789 = vpack.c.b16 %v6717, %v6709
    %v6790 = vpack.c.b16 %v6718, %v6710
    %v6791 = vpack.c.b16 %v6719, %v6711
    %v6792 = vpack.c.b16 %v6720, %v6712
    %v6793 = vpack.c.b16 %v6721, %v6713
    %v6794 = vpack.c.b16 %v6722, %v6714
    %v6795 = vpack.c.b16 %v6723, %v6715
    %v6796 = vpack.c.b16 %v6732, %v6724
    %v6797 = vpack.c.b16 %v6733, %v6725
    %v6798 = vpack.c.b16 %v6734, %v6726
    %v6799 = vpack.c.b16 %v6735, %v6727
    %v6800 = vpack.c.b16 %v6736, %v6728
    %v6801 = vpack.c.b16 %v6737, %v6729
    %v6802 = vpack.c.b16 %v6738, %v6730
    %v6803 = vpack.c.b16 %v6739, %v6731
    %6868 = vmatpush.bf16.msra.mxu0 %v6796
    %6869 = vmatpush.bf16.msra.mxu0 %v6788
    %6870 = vmatpush.bf16.msra.mxu0 %v6780
    %6871 = vmatpush.bf16.msra.mxu0 %v6772
    %6872 = vmatpush.bf16.msra.mxu0 %v6764
    %6873 = vmatpush.bf16.msra.mxu0 %v6756
    %6874 = vmatpush.bf16.msra.mxu0 %v6748
    %6875 = vmatpush.bf16.msra.mxu0 %v6740
    %6876 = vmatmul.bf16.gmra.mxu0 %v6465
    %v6877 = vpop.f32.mrf.mxu0
    %v6878 = vadd.f32 %v6532, %v6877
    %v6879 = vpop.f32.mrf.mxu0
    %6880 = vdwg.mxu0
    %6881 = vmatpush.bf16.msra.mxu0 %v6797
    %6882 = vmatpush.bf16.msra.mxu0 %v6789
    %6883 = vmatpush.bf16.msra.mxu0 %v6781
    %6884 = vmatpush.bf16.msra.mxu0 %v6773
    %6885 = vmatpush.bf16.msra.mxu0 %v6765
    %6886 = vmatpush.bf16.msra.mxu0 %v6757
    %6887 = vmatpush.bf16.msra.mxu0 %v6749
    %6888 = vmatpush.bf16.msra.mxu0 %v6741
    %6889 = vmatmul.bf16.gmra.mxu0 %v6465
    %v6890 = vpop.f32.mrf.mxu0
    %v6891 = vadd.f32 %v6533, %v6890
    %v6892 = vpop.f32.mrf.mxu0
    %6893 = vdwg.mxu0
    %6894 = vmatpush.bf16.msra.mxu0 %v6798
    %6895 = vmatpush.bf16.msra.mxu0 %v6790
    %6896 = vmatpush.bf16.msra.mxu0 %v6782
    %6897 = vmatpush.bf16.msra.mxu0 %v6774
    %6898 = vmatpush.bf16.msra.mxu0 %v6766
    %6899 = vmatpush.bf16.msra.mxu0 %v6758
    %6900 = vmatpush.bf16.msra.mxu0 %v6750
    %6901 = vmatpush.bf16.msra.mxu0 %v6742
    %6902 = vmatmul.bf16.gmra.mxu0 %v6465
    %v6903 = vpop.f32.mrf.mxu0
    %v6904 = vadd.f32 %v6534, %v6903
    %v6905 = vpop.f32.mrf.mxu0
    %6906 = vdwg.mxu0
    %6907 = vmatpush.bf16.msra.mxu0 %v6799
    %6908 = vmatpush.bf16.msra.mxu0 %v6791
    %6909 = vmatpush.bf16.msra.mxu0 %v6783
    %6910 = vmatpush.bf16.msra.mxu0 %v6775
    %6911 = vmatpush.bf16.msra.mxu0 %v6767
    %6912 = vmatpush.bf16.msra.mxu0 %v6759
    %6913 = vmatpush.bf16.msra.mxu0 %v6751
    %6914 = vmatpush.bf16.msra.mxu0 %v6743
    %6915 = vmatmul.bf16.gmra.mxu0 %v6465
    %v6916 = vpop.f32.mrf.mxu0
    %v6917 = vadd.f32 %v6535, %v6916
    %v6918 = vpop.f32.mrf.mxu0
    %6919 = vdwg.mxu0
    %6920 = vmatpush.bf16.msra.mxu0 %v6800
    %6921 = vmatpush.bf16.msra.mxu0 %v6792
    %6922 = vmatpush.bf16.msra.mxu0 %v6784
    %6923 = vmatpush.bf16.msra.mxu0 %v6776
    %6924 = vmatpush.bf16.msra.mxu0 %v6768
    %6925 = vmatpush.bf16.msra.mxu0 %v6760
    %6926 = vmatpush.bf16.msra.mxu0 %v6752
    %6927 = vmatpush.bf16.msra.mxu0 %v6744
    %6928 = vmatmul.bf16.gmra.mxu0 %v6465
    %v6929 = vpop.f32.mrf.mxu0
    %v6930 = vadd.f32 %v6536, %v6929
    %v6931 = vpop.f32.mrf.mxu0
    %6932 = vdwg.mxu0
    %6933 = vmatpush.bf16.msra.mxu0 %v6801
    %6934 = vmatpush.bf16.msra.mxu0 %v6793
    %6935 = vmatpush.bf16.msra.mxu0 %v6785
    %6936 = vmatpush.bf16.msra.mxu0 %v6777
    %6937 = vmatpush.bf16.msra.mxu0 %v6769
    %6938 = vmatpush.bf16.msra.mxu0 %v6761
    %6939 = vmatpush.bf16.msra.mxu0 %v6753
    %6940 = vmatpush.bf16.msra.mxu0 %v6745
    %6941 = vmatmul.bf16.gmra.mxu0 %v6465
    %v6942 = vpop.f32.mrf.mxu0
    %v6943 = vadd.f32 %v6537, %v6942
    %v6944 = vpop.f32.mrf.mxu0
    %6945 = vdwg.mxu0
    %6946 = vmatpush.bf16.msra.mxu0 %v6802
    %6947 = vmatpush.bf16.msra.mxu0 %v6794
    %6948 = vmatpush.bf16.msra.mxu0 %v6786
    %6949 = vmatpush.bf16.msra.mxu0 %v6778
    %6950 = vmatpush.bf16.msra.mxu0 %v6770
    %6951 = vmatpush.bf16.msra.mxu0 %v6762
    %6952 = vmatpush.bf16.msra.mxu0 %v6754
    %6953 = vmatpush.bf16.msra.mxu0 %v6746
    %6954 = vmatmul.bf16.gmra.mxu0 %v6465
    %v6955 = vpop.f32.mrf.mxu0
    %v6956 = vadd.f32 %v6538, %v6955
    %v6957 = vpop.f32.mrf.mxu0
    %6958 = vdwg.mxu0
    %6959 = vmatpush.bf16.msra.mxu0 %v6803
    %6960 = vmatpush.bf16.msra.mxu0 %v6795
    %6961 = vmatpush.bf16.msra.mxu0 %v6787
    %6962 = vmatpush.bf16.msra.mxu0 %v6779
    %6963 = vmatpush.bf16.msra.mxu0 %v6771
    %6964 = vmatpush.bf16.msra.mxu0 %v6763
    %6965 = vmatpush.bf16.msra.mxu0 %v6755
    %6966 = vmatpush.bf16.msra.mxu0 %v6747
    %6967 = vmatmul.bf16.gmra.mxu0 %v6465
    %v6968 = vpop.f32.mrf.mxu0
    %v6969 = vadd.f32 %v6539, %v6968
    %v6970 = vpop.f32.mrf.mxu0
    %6971 = vdwg.mxu0
    %v6972 = vxor.u32 %v6878, 2147483648
    %v6973 = vxor.u32 %v6891, 2147483648
    %v6974 = vxor.u32 %v6904, 2147483648
    %v6975 = vxor.u32 %v6917, 2147483648
    %v6976 = vxor.u32 %v6930, 2147483648
    %v6977 = vxor.u32 %v6943, 2147483648
    %v6978 = vxor.u32 %v6956, 2147483648
    %v6979 = vxor.u32 %v6969, 2147483648
    %v6980 = vmul.f32 %v6972, 1.442695
    %v6981 = vpow.pop %v6980
    %v6982 = vmul.f32 %v6973, 1.442695
    %v6983 = vpow.pop %v6982
    %v6984 = vmul.f32 %v6974, 1.442695
    %v6985 = vpow.pop %v6984
    %v6986 = vmul.f32 %v6975, 1.442695
    %v6987 = vpow.pop %v6986
    %v6988 = vmul.f32 %v6976, 1.442695
    %v6989 = vpow.pop %v6988
    %v6990 = vmul.f32 %v6977, 1.442695
    %v6991 = vpow.pop %v6990
    %v6992 = vmul.f32 %v6978, 1.442695
    %v6993 = vpow.pop %v6992
    %v6994 = vmul.f32 %v6979, 1.442695
    %v6995 = vpow.pop %v6994
    %v6996 = vadd.f32 %v6981, 1.0
    %v6997 = vadd.f32 %v6983, 1.0
    %v6998 = vadd.f32 %v6985, 1.0
    %v6999 = vadd.f32 %v6987, 1.0
    %v7000 = vadd.f32 %v6989, 1.0
    %v7001 = vadd.f32 %v6991, 1.0
    %v7002 = vadd.f32 %v6993, 1.0
    %v7003 = vadd.f32 %v6995, 1.0
    %v7004 = vrcp.pop %v6996
    %v7005 = vmul.f32 %v6996, %v7004
    %v7006 = vsub.f32 1.0, %v7005
    %v7007 = vmul.f32 %v7004, %v7006
    %v7008 = vadd.f32 %v7004, %v7007
    %vm7009 = vweird.f32 %v6996
    %vm7010 = vweird.f32 %v7004
    %vm7011 = vmor %vm7009, %vm7010
    %v7012 = vsel %vm7011, %v7004, %v7008
    %v7013 = vand.u32 2147483647, %v6996
    %vm7014 = vcmp.eq.f32.partialorder %v7013, 8.507059e+37
    %v7015 = vand.u32 %v6996, 2147483648
    %v7016 = vor.u32 1.1754944e-38, %v7015
    %v7017 = vsel %vm7014, %v7016, %v7012
    %v7018 = vmul.f32 1.0, %v7017
    %v7019 = vrcp.pop %v6997
    %v7020 = vmul.f32 %v6997, %v7019
    %v7021 = vsub.f32 1.0, %v7020
    %v7022 = vmul.f32 %v7019, %v7021
    %v7023 = vadd.f32 %v7019, %v7022
    %vm7024 = vweird.f32 %v6997
    %vm7025 = vweird.f32 %v7019
    %vm7026 = vmor %vm7024, %vm7025
    %v7027 = vsel %vm7026, %v7019, %v7023
    %v7028 = vand.u32 2147483647, %v6997
    %vm7029 = vcmp.eq.f32.partialorder %v7028, 8.507059e+37
    %v7030 = vand.u32 %v6997, 2147483648
    %v7031 = vor.u32 1.1754944e-38, %v7030
    %v7032 = vsel %vm7029, %v7031, %v7027
    %v7033 = vmul.f32 1.0, %v7032
    %v7034 = vrcp.pop %v6998
    %v7035 = vmul.f32 %v6998, %v7034
    %v7036 = vsub.f32 1.0, %v7035
    %v7037 = vmul.f32 %v7034, %v7036
    %v7038 = vadd.f32 %v7034, %v7037
    %vm7039 = vweird.f32 %v6998
    %vm7040 = vweird.f32 %v7034
    %vm7041 = vmor %vm7039, %vm7040
    %v7042 = vsel %vm7041, %v7034, %v7038
    %v7043 = vand.u32 2147483647, %v6998
    %vm7044 = vcmp.eq.f32.partialorder %v7043, 8.507059e+37
    %v7045 = vand.u32 %v6998, 2147483648
    %v7046 = vor.u32 1.1754944e-38, %v7045
    %v7047 = vsel %vm7044, %v7046, %v7042
    %v7048 = vmul.f32 1.0, %v7047
    %v7049 = vrcp.pop %v6999
    %v7050 = vmul.f32 %v6999, %v7049
    %v7051 = vsub.f32 1.0, %v7050
    %v7052 = vmul.f32 %v7049, %v7051
    %v7053 = vadd.f32 %v7049, %v7052
    %vm7054 = vweird.f32 %v6999
    %vm7055 = vweird.f32 %v7049
    %vm7056 = vmor %vm7054, %vm7055
    %v7057 = vsel %vm7056, %v7049, %v7053
    %v7058 = vand.u32 2147483647, %v6999
    %vm7059 = vcmp.eq.f32.partialorder %v7058, 8.507059e+37
    %v7060 = vand.u32 %v6999, 2147483648
    %v7061 = vor.u32 1.1754944e-38, %v7060
    %v7062 = vsel %vm7059, %v7061, %v7057
    %v7063 = vmul.f32 1.0, %v7062
    %v7064 = vrcp.pop %v7000
    %v7065 = vmul.f32 %v7000, %v7064
    %v7066 = vsub.f32 1.0, %v7065
    %v7067 = vmul.f32 %v7064, %v7066
    %v7068 = vadd.f32 %v7064, %v7067
    %vm7069 = vweird.f32 %v7000
    %vm7070 = vweird.f32 %v7064
    %vm7071 = vmor %vm7069, %vm7070
    %v7072 = vsel %vm7071, %v7064, %v7068
    %v7073 = vand.u32 2147483647, %v7000
    %vm7074 = vcmp.eq.f32.partialorder %v7073, 8.507059e+37
    %v7075 = vand.u32 %v7000, 2147483648
    %v7076 = vor.u32 1.1754944e-38, %v7075
    %v7077 = vsel %vm7074, %v7076, %v7072
    %v7078 = vmul.f32 1.0, %v7077
    %v7079 = vrcp.pop %v7001
    %v7080 = vmul.f32 %v7001, %v7079
    %v7081 = vsub.f32 1.0, %v7080
    %v7082 = vmul.f32 %v7079, %v7081
    %v7083 = vadd.f32 %v7079, %v7082
    %vm7084 = vweird.f32 %v7001
    %vm7085 = vweird.f32 %v7079
    %vm7086 = vmor %vm7084, %vm7085
    %v7087 = vsel %vm7086, %v7079, %v7083
    %v7088 = vand.u32 2147483647, %v7001
    %vm7089 = vcmp.eq.f32.partialorder %v7088, 8.507059e+37
    %v7090 = vand.u32 %v7001, 2147483648
    %v7091 = vor.u32 1.1754944e-38, %v7090
    %v7092 = vsel %vm7089, %v7091, %v7087
    %v7093 = vmul.f32 1.0, %v7092
    %v7094 = vrcp.pop %v7002
    %v7095 = vmul.f32 %v7002, %v7094
    %v7096 = vsub.f32 1.0, %v7095
    %v7097 = vmul.f32 %v7094, %v7096
    %v7098 = vadd.f32 %v7094, %v7097
    %vm7099 = vweird.f32 %v7002
    %vm7100 = vweird.f32 %v7094
    %vm7101 = vmor %vm7099, %vm7100
    %v7102 = vsel %vm7101, %v7094, %v7098
    %v7103 = vand.u32 2147483647, %v7002
    %vm7104 = vcmp.eq.f32.partialorder %v7103, 8.507059e+37
    %v7105 = vand.u32 %v7002, 2147483648
    %v7106 = vor.u32 1.1754944e-38, %v7105
    %v7107 = vsel %vm7104, %v7106, %v7102
    %v7108 = vmul.f32 1.0, %v7107
    %v7109 = vrcp.pop %v7003
    %v7110 = vmul.f32 %v7003, %v7109
    %v7111 = vsub.f32 1.0, %v7110
    %v7112 = vmul.f32 %v7109, %v7111
    %v7113 = vadd.f32 %v7109, %v7112
    %vm7114 = vweird.f32 %v7003
    %vm7115 = vweird.f32 %v7109
    %vm7116 = vmor %vm7114, %vm7115
    %v7117 = vsel %vm7116, %v7109, %v7113
    %v7118 = vand.u32 2147483647, %v7003
    %vm7119 = vcmp.eq.f32.partialorder %v7118, 8.507059e+37
    %v7120 = vand.u32 %v7003, 2147483648
    %v7121 = vor.u32 1.1754944e-38, %v7120
    %v7122 = vsel %vm7119, %v7121, %v7117
    %v7123 = vmul.f32 1.0, %v7122
    %v7132 = vrot.slane %v7033, 6
    %v7133 = vrot.slane %v7048, 4
    %v7134 = vrot.slane %v7063, 2
    %v7135 = vrot.slane %v7093, 6
    %v7136 = vrot.slane %v7108, 4
    %v7137 = vrot.slane %v7123, 2
    %v7138 = vsel %vm2878, %v7018, %v7132
    %v7139 = vsel %vm2880, %v7133, %v7134
    %v7140 = vsel %vm2882, %v7138, %v7139
    %v7141 = vsel %vm2878, %v7078, %v7135
    %v7142 = vsel %vm2880, %v7136, %v7137
    %v7143 = vsel %vm2882, %v7141, %v7142
    %s7146 = scalar_lea.vmem [#allocation22], 32
    %7147 = vst [vmem:[%s7146] sm:$0xff] %v7140
    %7148 = vst [vmem:[%s7146 + $0x8] sm:$0xff] %v7143
    %v7149 = vpack.c.bf16 %v7018, %v7018
    %v7150 = vpack.c.bf16 %v7033, %v7033
    %v7151 = vpack.c.bf16 %v7048, %v7048
    %v7152 = vpack.c.bf16 %v7063, %v7063
    %v7153 = vpack.c.bf16 %v7078, %v7078
    %v7154 = vpack.c.bf16 %v7093, %v7093
    %v7155 = vpack.c.bf16 %v7108, %v7108
    %v7156 = vpack.c.bf16 %v7123, %v7123
    %v7157 = vld [vmem:[#allocation5] sm:$0xf]
    %v7158 = vld [vmem:[#allocation5 + $0x4] sm:$0xf]
    %v7159 = vld [vmem:[#allocation5 + $0x8] sm:$0xf]
    %v7160 = vld [vmem:[#allocation5 + $0xc] sm:$0xf]
    %v7161 = vld [vmem:[#allocation5 + $0x10] sm:$0xf]
    %v7162 = vld [vmem:[#allocation5 + $0x14] sm:$0xf]
    %v7163 = vld [vmem:[#allocation5 + $0x18] sm:$0xf]
    %v7164 = vld [vmem:[#allocation5 + $0x1c] sm:$0xf]
    %v7165 = vld [vmem:[#allocation5 + $0x20] sm:$0xf]
    %v7166 = vld [vmem:[#allocation5 + $0x24] sm:$0xf]
    %v7167 = vld [vmem:[#allocation5 + $0x28] sm:$0xf]
    %v7168 = vld [vmem:[#allocation5 + $0x2c] sm:$0xf]
    %v7169 = vld [vmem:[#allocation5 + $0x30] sm:$0xf]
    %v7170 = vld [vmem:[#allocation5 + $0x34] sm:$0xf]
    %v7171 = vld [vmem:[#allocation5 + $0x38] sm:$0xf]
    %v7172 = vld [vmem:[#allocation5 + $0x3c] sm:$0xf]
    %v7173 = vld [vmem:[#allocation5 + $0x40] sm:$0xf]
    %v7174 = vld [vmem:[#allocation5 + $0x44] sm:$0xf]
    %v7175 = vld [vmem:[#allocation5 + $0x48] sm:$0xf]
    %v7176 = vld [vmem:[#allocation5 + $0x4c] sm:$0xf]
    %v7177 = vld [vmem:[#allocation5 + $0x50] sm:$0xf]
    %v7178 = vld [vmem:[#allocation5 + $0x54] sm:$0xf]
    %v7179 = vld [vmem:[#allocation5 + $0x58] sm:$0xf]
    %v7180 = vld [vmem:[#allocation5 + $0x5c] sm:$0xf]
    %v7181 = vld [vmem:[#allocation5 + $0x60] sm:$0xf]
    %v7182 = vld [vmem:[#allocation5 + $0x64] sm:$0xf]
    %v7183 = vld [vmem:[#allocation5 + $0x68] sm:$0xf]
    %v7184 = vld [vmem:[#allocation5 + $0x6c] sm:$0xf]
    %v7185 = vld [vmem:[#allocation5 + $0x70] sm:$0xf]
    %v7186 = vld [vmem:[#allocation5 + $0x74] sm:$0xf]
    %v7187 = vld [vmem:[#allocation5 + $0x78] sm:$0xf]
    %v7188 = vld [vmem:[#allocation5 + $0x7c] sm:$0xf]
    %v7189 = vld [vmem:[#allocation5 + $0x80] sm:$0xf]
    %v7190 = vld [vmem:[#allocation5 + $0x84] sm:$0xf]
    %v7191 = vld [vmem:[#allocation5 + $0x88] sm:$0xf]
    %v7192 = vld [vmem:[#allocation5 + $0x8c] sm:$0xf]
    %v7193 = vld [vmem:[#allocation5 + $0x90] sm:$0xf]
    %v7194 = vld [vmem:[#allocation5 + $0x94] sm:$0xf]
    %v7195 = vld [vmem:[#allocation5 + $0x98] sm:$0xf]
    %v7196 = vld [vmem:[#allocation5 + $0x9c] sm:$0xf]
    %v7197 = vld [vmem:[#allocation5 + $0xa0] sm:$0xf]
    %v7198 = vld [vmem:[#allocation5 + $0xa4] sm:$0xf]
    %v7199 = vld [vmem:[#allocation5 + $0xa8] sm:$0xf]
    %v7200 = vld [vmem:[#allocation5 + $0xac] sm:$0xf]
    %v7201 = vld [vmem:[#allocation5 + $0xb0] sm:$0xf]
    %v7202 = vld [vmem:[#allocation5 + $0xb4] sm:$0xf]
    %v7203 = vld [vmem:[#allocation5 + $0xb8] sm:$0xf]
    %v7204 = vld [vmem:[#allocation5 + $0xbc] sm:$0xf]
    %v7205 = vld [vmem:[#allocation5 + $0xc0] sm:$0xf]
    %v7206 = vld [vmem:[#allocation5 + $0xc4] sm:$0xf]
    %v7207 = vld [vmem:[#allocation5 + $0xc8] sm:$0xf]
    %v7208 = vld [vmem:[#allocation5 + $0xcc] sm:$0xf]
    %v7209 = vld [vmem:[#allocation5 + $0xd0] sm:$0xf]
    %v7210 = vld [vmem:[#allocation5 + $0xd4] sm:$0xf]
    %v7211 = vld [vmem:[#allocation5 + $0xd8] sm:$0xf]
    %v7212 = vld [vmem:[#allocation5 + $0xdc] sm:$0xf]
    %v7213 = vld [vmem:[#allocation5 + $0xe0] sm:$0xf]
    %v7214 = vld [vmem:[#allocation5 + $0xe4] sm:$0xf]
    %v7215 = vld [vmem:[#allocation5 + $0xe8] sm:$0xf]
    %v7216 = vld [vmem:[#allocation5 + $0xec] sm:$0xf]
    %v7217 = vld [vmem:[#allocation5 + $0xf0] sm:$0xf]
    %v7218 = vld [vmem:[#allocation5 + $0xf4] sm:$0xf]
    %v7219 = vld [vmem:[#allocation5 + $0xf8] sm:$0xf]
    %v7220 = vld [vmem:[#allocation5 + $0xfc] sm:$0xf]
    %v7221 = vld [vmem:[#allocation5 + $0x100] sm:$0xf]
    %v7222 = vld [vmem:[#allocation5 + $0x104] sm:$0xf]
    %v7223 = vld [vmem:[#allocation5 + $0x108] sm:$0xf]
    %v7224 = vld [vmem:[#allocation5 + $0x10c] sm:$0xf]
    %v7225 = vld [vmem:[#allocation5 + $0x110] sm:$0xf]
    %v7226 = vld [vmem:[#allocation5 + $0x114] sm:$0xf]
    %v7227 = vld [vmem:[#allocation5 + $0x118] sm:$0xf]
    %v7228 = vld [vmem:[#allocation5 + $0x11c] sm:$0xf]
    %v7229 = vld [vmem:[#allocation5 + $0x120] sm:$0xf]
    %v7230 = vld [vmem:[#allocation5 + $0x124] sm:$0xf]
    %v7231 = vld [vmem:[#allocation5 + $0x128] sm:$0xf]
    %v7232 = vld [vmem:[#allocation5 + $0x12c] sm:$0xf]
    %v7233 = vld [vmem:[#allocation5 + $0x130] sm:$0xf]
    %v7234 = vld [vmem:[#allocation5 + $0x134] sm:$0xf]
    %v7235 = vld [vmem:[#allocation5 + $0x138] sm:$0xf]
    %v7236 = vld [vmem:[#allocation5 + $0x13c] sm:$0xf]
    %v7237 = vld [vmem:[#allocation5 + $0x140] sm:$0xf]
    %v7238 = vld [vmem:[#allocation5 + $0x144] sm:$0xf]
    %v7239 = vld [vmem:[#allocation5 + $0x148] sm:$0xf]
    %v7240 = vld [vmem:[#allocation5 + $0x14c] sm:$0xf]
    %v7241 = vld [vmem:[#allocation5 + $0x150] sm:$0xf]
    %v7242 = vld [vmem:[#allocation5 + $0x154] sm:$0xf]
    %v7243 = vld [vmem:[#allocation5 + $0x158] sm:$0xf]
    %v7244 = vld [vmem:[#allocation5 + $0x15c] sm:$0xf]
    %v7245 = vld [vmem:[#allocation5 + $0x160] sm:$0xf]
    %v7246 = vld [vmem:[#allocation5 + $0x164] sm:$0xf]
    %v7247 = vld [vmem:[#allocation5 + $0x168] sm:$0xf]
    %v7248 = vld [vmem:[#allocation5 + $0x16c] sm:$0xf]
    %v7249 = vld [vmem:[#allocation5 + $0x170] sm:$0xf]
    %v7250 = vld [vmem:[#allocation5 + $0x174] sm:$0xf]
    %v7251 = vld [vmem:[#allocation5 + $0x178] sm:$0xf]
    %v7252 = vld [vmem:[#allocation5 + $0x17c] sm:$0xf]
    %v7253 = vld [vmem:[#allocation5 + $0x180] sm:$0xf]
    %v7254 = vld [vmem:[#allocation5 + $0x184] sm:$0xf]
    %v7255 = vld [vmem:[#allocation5 + $0x188] sm:$0xf]
    %v7256 = vld [vmem:[#allocation5 + $0x18c] sm:$0xf]
    %v7257 = vld [vmem:[#allocation5 + $0x190] sm:$0xf]
    %v7258 = vld [vmem:[#allocation5 + $0x194] sm:$0xf]
    %v7259 = vld [vmem:[#allocation5 + $0x198] sm:$0xf]
    %v7260 = vld [vmem:[#allocation5 + $0x19c] sm:$0xf]
    %v7261 = vld [vmem:[#allocation5 + $0x1a0] sm:$0xf]
    %v7262 = vld [vmem:[#allocation5 + $0x1a4] sm:$0xf]
    %v7263 = vld [vmem:[#allocation5 + $0x1a8] sm:$0xf]
    %v7264 = vld [vmem:[#allocation5 + $0x1ac] sm:$0xf]
    %v7265 = vld [vmem:[#allocation5 + $0x1b0] sm:$0xf]
    %v7266 = vld [vmem:[#allocation5 + $0x1b4] sm:$0xf]
    %v7267 = vld [vmem:[#allocation5 + $0x1b8] sm:$0xf]
    %v7268 = vld [vmem:[#allocation5 + $0x1bc] sm:$0xf]
    %v7269 = vld [vmem:[#allocation5 + $0x1c0] sm:$0xf]
    %v7270 = vld [vmem:[#allocation5 + $0x1c4] sm:$0xf]
    %v7271 = vld [vmem:[#allocation5 + $0x1c8] sm:$0xf]
    %v7272 = vld [vmem:[#allocation5 + $0x1cc] sm:$0xf]
    %v7273 = vld [vmem:[#allocation5 + $0x1d0] sm:$0xf]
    %v7274 = vld [vmem:[#allocation5 + $0x1d4] sm:$0xf]
    %v7275 = vld [vmem:[#allocation5 + $0x1d8] sm:$0xf]
    %v7276 = vld [vmem:[#allocation5 + $0x1dc] sm:$0xf]
    %v7277 = vld [vmem:[#allocation5 + $0x1e0] sm:$0xf]
    %v7278 = vld [vmem:[#allocation5 + $0x1e4] sm:$0xf]
    %v7279 = vld [vmem:[#allocation5 + $0x1e8] sm:$0xf]
    %v7280 = vld [vmem:[#allocation5 + $0x1ec] sm:$0xf]
    %v7281 = vld [vmem:[#allocation5 + $0x1f0] sm:$0xf]
    %v7282 = vld [vmem:[#allocation5 + $0x1f4] sm:$0xf]
    %v7283 = vld [vmem:[#allocation5 + $0x1f8] sm:$0xf]
    %v7284 = vld [vmem:[#allocation5 + $0x1fc] sm:$0xf]
    %v7285 = vld [vmem:[#allocation7] sm:$0x1]
    %v7287 = vperm.slane %v7285, 0
    %v7417 = vunpack.c.l.b16 %v7157
    %v7418 = vunpack.c.l.b16 %v7158
    %v7419 = vunpack.c.l.b16 %v7159
    %v7420 = vunpack.c.l.b16 %v7160
    %v7421 = vunpack.c.l.b16 %v7161
    %v7422 = vunpack.c.l.b16 %v7162
    %v7423 = vunpack.c.l.b16 %v7163
    %v7424 = vunpack.c.l.b16 %v7164
    %v7425 = vunpack.c.l.b16 %v7165
    %v7426 = vunpack.c.l.b16 %v7166
    %v7427 = vunpack.c.l.b16 %v7167
    %v7428 = vunpack.c.l.b16 %v7168
    %v7429 = vunpack.c.l.b16 %v7169
    %v7430 = vunpack.c.l.b16 %v7170
    %v7431 = vunpack.c.l.b16 %v7171
    %v7432 = vunpack.c.l.b16 %v7172
    %v7433 = vunpack.c.l.b16 %v7173
    %v7434 = vunpack.c.l.b16 %v7174
    %v7435 = vunpack.c.l.b16 %v7175
    %v7436 = vunpack.c.l.b16 %v7176
    %v7437 = vunpack.c.l.b16 %v7177
    %v7438 = vunpack.c.l.b16 %v7178
    %v7439 = vunpack.c.l.b16 %v7179
    %v7440 = vunpack.c.l.b16 %v7180
    %v7441 = vunpack.c.l.b16 %v7181
    %v7442 = vunpack.c.l.b16 %v7182
    %v7443 = vunpack.c.l.b16 %v7183
    %v7444 = vunpack.c.l.b16 %v7184
    %v7445 = vunpack.c.l.b16 %v7185
    %v7446 = vunpack.c.l.b16 %v7186
    %v7447 = vunpack.c.l.b16 %v7187
    %v7448 = vunpack.c.l.b16 %v7188
    %v7449 = vunpack.c.l.b16 %v7189
    %v7450 = vunpack.c.l.b16 %v7190
    %v7451 = vunpack.c.l.b16 %v7191
    %v7452 = vunpack.c.l.b16 %v7192
    %v7453 = vunpack.c.l.b16 %v7193
    %v7454 = vunpack.c.l.b16 %v7194
    %v7455 = vunpack.c.l.b16 %v7195
    %v7456 = vunpack.c.l.b16 %v7196
    %v7457 = vunpack.c.l.b16 %v7197
    %v7458 = vunpack.c.l.b16 %v7198
    %v7459 = vunpack.c.l.b16 %v7199
    %v7460 = vunpack.c.l.b16 %v7200
    %v7461 = vunpack.c.l.b16 %v7201
    %v7462 = vunpack.c.l.b16 %v7202
    %v7463 = vunpack.c.l.b16 %v7203
    %v7464 = vunpack.c.l.b16 %v7204
    %v7465 = vunpack.c.l.b16 %v7205
    %v7466 = vunpack.c.l.b16 %v7206
    %v7467 = vunpack.c.l.b16 %v7207
    %v7468 = vunpack.c.l.b16 %v7208
    %v7469 = vunpack.c.l.b16 %v7209
    %v7470 = vunpack.c.l.b16 %v7210
    %v7471 = vunpack.c.l.b16 %v7211
    %v7472 = vunpack.c.l.b16 %v7212
    %v7473 = vunpack.c.l.b16 %v7213
    %v7474 = vunpack.c.l.b16 %v7214
    %v7475 = vunpack.c.l.b16 %v7215
    %v7476 = vunpack.c.l.b16 %v7216
    %v7477 = vunpack.c.l.b16 %v7217
    %v7478 = vunpack.c.l.b16 %v7218
    %v7479 = vunpack.c.l.b16 %v7219
    %v7480 = vunpack.c.l.b16 %v7220
    %v7481 = vunpack.c.l.b16 %v7221
    %v7482 = vunpack.c.l.b16 %v7222
    %v7483 = vunpack.c.l.b16 %v7223
    %v7484 = vunpack.c.l.b16 %v7224
    %v7485 = vunpack.c.l.b16 %v7225
    %v7486 = vunpack.c.l.b16 %v7226
    %v7487 = vunpack.c.l.b16 %v7227
    %v7488 = vunpack.c.l.b16 %v7228
    %v7489 = vunpack.c.l.b16 %v7229
    %v7490 = vunpack.c.l.b16 %v7230
    %v7491 = vunpack.c.l.b16 %v7231
    %v7492 = vunpack.c.l.b16 %v7232
    %v7493 = vunpack.c.l.b16 %v7233
    %v7494 = vunpack.c.l.b16 %v7234
    %v7495 = vunpack.c.l.b16 %v7235
    %v7496 = vunpack.c.l.b16 %v7236
    %v7497 = vunpack.c.l.b16 %v7237
    %v7498 = vunpack.c.l.b16 %v7238
    %v7499 = vunpack.c.l.b16 %v7239
    %v7500 = vunpack.c.l.b16 %v7240
    %v7501 = vunpack.c.l.b16 %v7241
    %v7502 = vunpack.c.l.b16 %v7242
    %v7503 = vunpack.c.l.b16 %v7243
    %v7504 = vunpack.c.l.b16 %v7244
    %v7505 = vunpack.c.l.b16 %v7245
    %v7506 = vunpack.c.l.b16 %v7246
    %v7507 = vunpack.c.l.b16 %v7247
    %v7508 = vunpack.c.l.b16 %v7248
    %v7509 = vunpack.c.l.b16 %v7249
    %v7510 = vunpack.c.l.b16 %v7250
    %v7511 = vunpack.c.l.b16 %v7251
    %v7512 = vunpack.c.l.b16 %v7252
    %v7513 = vunpack.c.l.b16 %v7253
    %v7514 = vunpack.c.l.b16 %v7254
    %v7515 = vunpack.c.l.b16 %v7255
    %v7516 = vunpack.c.l.b16 %v7256
    %v7517 = vunpack.c.l.b16 %v7257
    %v7518 = vunpack.c.l.b16 %v7258
    %v7519 = vunpack.c.l.b16 %v7259
    %v7520 = vunpack.c.l.b16 %v7260
    %v7521 = vunpack.c.l.b16 %v7261
    %v7522 = vunpack.c.l.b16 %v7262
    %v7523 = vunpack.c.l.b16 %v7263
    %v7524 = vunpack.c.l.b16 %v7264
    %v7525 = vunpack.c.l.b16 %v7265
    %v7526 = vunpack.c.l.b16 %v7266
    %v7527 = vunpack.c.l.b16 %v7267
    %v7528 = vunpack.c.l.b16 %v7268
    %v7529 = vunpack.c.l.b16 %v7269
    %v7530 = vunpack.c.l.b16 %v7270
    %v7531 = vunpack.c.l.b16 %v7271
    %v7532 = vunpack.c.l.b16 %v7272
    %v7533 = vunpack.c.l.b16 %v7273
    %v7534 = vunpack.c.l.b16 %v7274
    %v7535 = vunpack.c.l.b16 %v7275
    %v7536 = vunpack.c.l.b16 %v7276
    %v7537 = vunpack.c.l.b16 %v7277
    %v7538 = vunpack.c.l.b16 %v7278
    %v7539 = vunpack.c.l.b16 %v7279
    %v7540 = vunpack.c.l.b16 %v7280
    %v7541 = vunpack.c.l.b16 %v7281
    %v7542 = vunpack.c.l.b16 %v7282
    %v7543 = vunpack.c.l.b16 %v7283
    %v7544 = vunpack.c.l.b16 %v7284
    %v7545 = vpack.c.b16 %v7418, %v7417
    %v7546 = vpack.c.b16 %v7420, %v7419
    %v7547 = vpack.c.b16 %v7422, %v7421
    %v7548 = vpack.c.b16 %v7424, %v7423
    %v7549 = vpack.c.b16 %v7426, %v7425
    %v7550 = vpack.c.b16 %v7428, %v7427
    %v7551 = vpack.c.b16 %v7430, %v7429
    %v7552 = vpack.c.b16 %v7432, %v7431
    %v7553 = vpack.c.b16 %v7434, %v7433
    %v7554 = vpack.c.b16 %v7436, %v7435
    %v7555 = vpack.c.b16 %v7438, %v7437
    %v7556 = vpack.c.b16 %v7440, %v7439
    %v7557 = vpack.c.b16 %v7442, %v7441
    %v7558 = vpack.c.b16 %v7444, %v7443
    %v7559 = vpack.c.b16 %v7446, %v7445
    %v7560 = vpack.c.b16 %v7448, %v7447
    %v7561 = vpack.c.b16 %v7450, %v7449
    %v7562 = vpack.c.b16 %v7452, %v7451
    %v7563 = vpack.c.b16 %v7454, %v7453
    %v7564 = vpack.c.b16 %v7456, %v7455
    %v7565 = vpack.c.b16 %v7458, %v7457
    %v7566 = vpack.c.b16 %v7460, %v7459
    %v7567 = vpack.c.b16 %v7462, %v7461
    %v7568 = vpack.c.b16 %v7464, %v7463
    %v7569 = vpack.c.b16 %v7466, %v7465
    %v7570 = vpack.c.b16 %v7468, %v7467
    %v7571 = vpack.c.b16 %v7470, %v7469
    %v7572 = vpack.c.b16 %v7472, %v7471
    %v7573 = vpack.c.b16 %v7474, %v7473
    %v7574 = vpack.c.b16 %v7476, %v7475
    %v7575 = vpack.c.b16 %v7478, %v7477
    %v7576 = vpack.c.b16 %v7480, %v7479
    %v7577 = vpack.c.b16 %v7482, %v7481
    %v7578 = vpack.c.b16 %v7484, %v7483
    %v7579 = vpack.c.b16 %v7486, %v7485
    %v7580 = vpack.c.b16 %v7488, %v7487
    %v7581 = vpack.c.b16 %v7490, %v7489
    %v7582 = vpack.c.b16 %v7492, %v7491
    %v7583 = vpack.c.b16 %v7494, %v7493
    %v7584 = vpack.c.b16 %v7496, %v7495
    %v7585 = vpack.c.b16 %v7498, %v7497
    %v7586 = vpack.c.b16 %v7500, %v7499
    %v7587 = vpack.c.b16 %v7502, %v7501
    %v7588 = vpack.c.b16 %v7504, %v7503
    %v7589 = vpack.c.b16 %v7506, %v7505
    %v7590 = vpack.c.b16 %v7508, %v7507
    %v7591 = vpack.c.b16 %v7510, %v7509
    %v7592 = vpack.c.b16 %v7512, %v7511
    %v7593 = vpack.c.b16 %v7514, %v7513
    %v7594 = vpack.c.b16 %v7516, %v7515
    %v7595 = vpack.c.b16 %v7518, %v7517
    %v7596 = vpack.c.b16 %v7520, %v7519
    %v7597 = vpack.c.b16 %v7522, %v7521
    %v7598 = vpack.c.b16 %v7524, %v7523
    %v7599 = vpack.c.b16 %v7526, %v7525
    %v7600 = vpack.c.b16 %v7528, %v7527
    %v7601 = vpack.c.b16 %v7530, %v7529
    %v7602 = vpack.c.b16 %v7532, %v7531
    %v7603 = vpack.c.b16 %v7534, %v7533
    %v7604 = vpack.c.b16 %v7536, %v7535
    %v7605 = vpack.c.b16 %v7538, %v7537
    %v7606 = vpack.c.b16 %v7540, %v7539
    %v7607 = vpack.c.b16 %v7542, %v7541
    %v7608 = vpack.c.b16 %v7544, %v7543
    %7673 = vmatpush.bf16.msra.mxu0 %v7552
    %7674 = vmatpush.bf16.msra.mxu0 %v7551
    %7675 = vmatpush.bf16.msra.mxu0 %v7550
    %7676 = vmatpush.bf16.msra.mxu0 %v7549
    %7677 = vmatpush.bf16.msra.mxu0 %v7548
    %7678 = vmatpush.bf16.msra.mxu0 %v7547
    %7679 = vmatpush.bf16.msra.mxu0 %v7546
    %7680 = vmatpush.bf16.msra.mxu0 %v7545
    %7681 = vmatmul.bf16.gmra.mxu0 %v7149
    %v7682 = vpop.f32.mrf.mxu0
    %v7683 = vadd.f32 %v7287, %v7682
    %v7684 = vpop.f32.mrf.mxu0
    %7685 = vdwg.mxu0
    %7686 = vmatpush.bf16.msra.mxu0 %v7560
    %7687 = vmatpush.bf16.msra.mxu0 %v7559
    %7688 = vmatpush.bf16.msra.mxu0 %v7558
    %7689 = vmatpush.bf16.msra.mxu0 %v7557
    %7690 = vmatpush.bf16.msra.mxu0 %v7556
    %7691 = vmatpush.bf16.msra.mxu0 %v7555
    %7692 = vmatpush.bf16.msra.mxu0 %v7554
    %7693 = vmatpush.bf16.msra.mxu0 %v7553
    %7694 = vmatmul.bf16.gmra.mxu0 %v7150
    %v7695 = vpop.f32.mrf.mxu0
    %v7696 = vadd.f32 %v7683, %v7695
    %v7697 = vpop.f32.mrf.mxu0
    %7698 = vdwg.mxu0
    %7699 = vmatpush.bf16.msra.mxu0 %v7568
    %7700 = vmatpush.bf16.msra.mxu0 %v7567
    %7701 = vmatpush.bf16.msra.mxu0 %v7566
    %7702 = vmatpush.bf16.msra.mxu0 %v7565
    %7703 = vmatpush.bf16.msra.mxu0 %v7564
    %7704 = vmatpush.bf16.msra.mxu0 %v7563
    %7705 = vmatpush.bf16.msra.mxu0 %v7562
    %7706 = vmatpush.bf16.msra.mxu0 %v7561
    %7707 = vmatmul.bf16.gmra.mxu0 %v7151
    %v7708 = vpop.f32.mrf.mxu0
    %v7709 = vadd.f32 %v7696, %v7708
    %v7710 = vpop.f32.mrf.mxu0
    %7711 = vdwg.mxu0
    %7712 = vmatpush.bf16.msra.mxu0 %v7576
    %7713 = vmatpush.bf16.msra.mxu0 %v7575
    %7714 = vmatpush.bf16.msra.mxu0 %v7574
    %7715 = vmatpush.bf16.msra.mxu0 %v7573
    %7716 = vmatpush.bf16.msra.mxu0 %v7572
    %7717 = vmatpush.bf16.msra.mxu0 %v7571
    %7718 = vmatpush.bf16.msra.mxu0 %v7570
    %7719 = vmatpush.bf16.msra.mxu0 %v7569
    %7720 = vmatmul.bf16.gmra.mxu0 %v7152
    %v7721 = vpop.f32.mrf.mxu0
    %v7722 = vadd.f32 %v7709, %v7721
    %v7723 = vpop.f32.mrf.mxu0
    %7724 = vdwg.mxu0
    %7725 = vmatpush.bf16.msra.mxu0 %v7584
    %7726 = vmatpush.bf16.msra.mxu0 %v7583
    %7727 = vmatpush.bf16.msra.mxu0 %v7582
    %7728 = vmatpush.bf16.msra.mxu0 %v7581
    %7729 = vmatpush.bf16.msra.mxu0 %v7580
    %7730 = vmatpush.bf16.msra.mxu0 %v7579
    %7731 = vmatpush.bf16.msra.mxu0 %v7578
    %7732 = vmatpush.bf16.msra.mxu0 %v7577
    %7733 = vmatmul.bf16.gmra.mxu0 %v7153
    %v7734 = vpop.f32.mrf.mxu0
    %v7735 = vadd.f32 %v7722, %v7734
    %v7736 = vpop.f32.mrf.mxu0
    %7737 = vdwg.mxu0
    %7738 = vmatpush.bf16.msra.mxu0 %v7592
    %7739 = vmatpush.bf16.msra.mxu0 %v7591
    %7740 = vmatpush.bf16.msra.mxu0 %v7590
    %7741 = vmatpush.bf16.msra.mxu0 %v7589
    %7742 = vmatpush.bf16.msra.mxu0 %v7588
    %7743 = vmatpush.bf16.msra.mxu0 %v7587
    %7744 = vmatpush.bf16.msra.mxu0 %v7586
    %7745 = vmatpush.bf16.msra.mxu0 %v7585
    %7746 = vmatmul.bf16.gmra.mxu0 %v7154
    %v7747 = vpop.f32.mrf.mxu0
    %v7748 = vadd.f32 %v7735, %v7747
    %v7749 = vpop.f32.mrf.mxu0
    %7750 = vdwg.mxu0
    %7751 = vmatpush.bf16.msra.mxu0 %v7600
    %7752 = vmatpush.bf16.msra.mxu0 %v7599
    %7753 = vmatpush.bf16.msra.mxu0 %v7598
    %7754 = vmatpush.bf16.msra.mxu0 %v7597
    %7755 = vmatpush.bf16.msra.mxu0 %v7596
    %7756 = vmatpush.bf16.msra.mxu0 %v7595
    %7757 = vmatpush.bf16.msra.mxu0 %v7594
    %7758 = vmatpush.bf16.msra.mxu0 %v7593
    %7759 = vmatmul.bf16.gmra.mxu0 %v7155
    %v7760 = vpop.f32.mrf.mxu0
    %v7761 = vadd.f32 %v7748, %v7760
    %v7762 = vpop.f32.mrf.mxu0
    %7763 = vdwg.mxu0
    %7764 = vmatpush.bf16.msra.mxu0 %v7608
    %7765 = vmatpush.bf16.msra.mxu0 %v7607
    %7766 = vmatpush.bf16.msra.mxu0 %v7606
    %7767 = vmatpush.bf16.msra.mxu0 %v7605
    %7768 = vmatpush.bf16.msra.mxu0 %v7604
    %7769 = vmatpush.bf16.msra.mxu0 %v7603
    %7770 = vmatpush.bf16.msra.mxu0 %v7602
    %7771 = vmatpush.bf16.msra.mxu0 %v7601
    %7772 = vmatmul.bf16.gmra.mxu0 %v7156
    %v7773 = vpop.f32.mrf.mxu0
    %v7774 = vadd.f32 %v7761, %v7773
    %v7775 = vpop.f32.mrf.mxu0
    %7776 = vdwg.mxu0
    %v7777 = vmax.f32 %v7774, 0.0
    %v7778 = vpack.c.bf16 %v7777, %v7777
    %v7779 = vld [vmem:[#allocation8] sm:$0xf]
    %v7780 = vld [vmem:[#allocation8 + $0x4] sm:$0xf]
    %v7781 = vld [vmem:[#allocation8 + $0x8] sm:$0xf]
    %v7782 = vld [vmem:[#allocation8 + $0xc] sm:$0xf]
    %v7783 = vld [vmem:[#allocation8 + $0x10] sm:$0xf]
    %v7784 = vld [vmem:[#allocation8 + $0x14] sm:$0xf]
    %v7785 = vld [vmem:[#allocation8 + $0x18] sm:$0xf]
    %v7786 = vld [vmem:[#allocation8 + $0x1c] sm:$0xf]
    %v7787 = vld [vmem:[#allocation8 + $0x20] sm:$0xf]
    %v7788 = vld [vmem:[#allocation8 + $0x24] sm:$0xf]
    %v7789 = vld [vmem:[#allocation8 + $0x28] sm:$0xf]
    %v7790 = vld [vmem:[#allocation8 + $0x2c] sm:$0xf]
    %v7791 = vld [vmem:[#allocation8 + $0x30] sm:$0xf]
    %v7792 = vld [vmem:[#allocation8 + $0x34] sm:$0xf]
    %v7793 = vld [vmem:[#allocation8 + $0x38] sm:$0xf]
    %v7794 = vld [vmem:[#allocation8 + $0x3c] sm:$0xf]
    %v7795 = vld [vmem:[#allocation10] sm:$0x1]
    %v7797 = vperm.slane %v7795, 0
    %v7815 = vunpack.c.l.b16 %v7779
    %v7816 = vunpack.c.l.b16 %v7780
    %v7817 = vunpack.c.l.b16 %v7781
    %v7818 = vunpack.c.l.b16 %v7782
    %v7819 = vunpack.c.l.b16 %v7783
    %v7820 = vunpack.c.l.b16 %v7784
    %v7821 = vunpack.c.l.b16 %v7785
    %v7822 = vunpack.c.l.b16 %v7786
    %v7823 = vunpack.c.l.b16 %v7787
    %v7824 = vunpack.c.l.b16 %v7788
    %v7825 = vunpack.c.l.b16 %v7789
    %v7826 = vunpack.c.l.b16 %v7790
    %v7827 = vunpack.c.l.b16 %v7791
    %v7828 = vunpack.c.l.b16 %v7792
    %v7829 = vunpack.c.l.b16 %v7793
    %v7830 = vunpack.c.l.b16 %v7794
    %v7831 = vpack.c.b16 %v7816, %v7815
    %v7832 = vpack.c.b16 %v7818, %v7817
    %v7833 = vpack.c.b16 %v7820, %v7819
    %v7834 = vpack.c.b16 %v7822, %v7821
    %v7835 = vpack.c.b16 %v7824, %v7823
    %v7836 = vpack.c.b16 %v7826, %v7825
    %v7837 = vpack.c.b16 %v7828, %v7827
    %v7838 = vpack.c.b16 %v7830, %v7829
    %7847 = vmatpush.bf16.msra.mxu0 %v7838
    %7848 = vmatpush.bf16.msra.mxu0 %v7837
    %7849 = vmatpush.bf16.msra.mxu0 %v7836
    %7850 = vmatpush.bf16.msra.mxu0 %v7835
    %7851 = vmatpush.bf16.msra.mxu0 %v7834
    %7852 = vmatpush.bf16.msra.mxu0 %v7833
    %7853 = vmatpush.bf16.msra.mxu0 %v7832
    %7854 = vmatpush.bf16.msra.mxu0 %v7831
    %7855 = vmatmul.bf16.gmra.mxu0 %v7778
    %v7856 = vpop.f32.mrf.mxu0
    %v7857 = vadd.f32 %v7797, %v7856
    %v7858 = vpop.f32.mrf.mxu0
    %7859 = vdwg.mxu0
    %v7860 = vtanh.pop %v7857
    %v7861 = vpack.c.bf16 %v7860, %v7860
    %v7862 = vld [vmem:[#allocation11] sm:$0xff]
    %v7863 = vld [vmem:[#allocation11 + $0x8] sm:$0xff]
    %v7864 = vld [vmem:[#allocation11 + $0x10] sm:$0xff]
    %v7865 = vld [vmem:[#allocation11 + $0x18] sm:$0xff]
    %v7866 = vld [vmem:[#allocation11 + $0x20] sm:$0xff]
    %v7867 = vld [vmem:[#allocation11 + $0x28] sm:$0xff]
    %v7868 = vld [vmem:[#allocation11 + $0x30] sm:$0xff]
    %v7869 = vld [vmem:[#allocation11 + $0x38] sm:$0xff]
    %v7870 = vld [vmem:[#allocation11 + $0x40] sm:$0xff]
    %v7871 = vld [vmem:[#allocation11 + $0x48] sm:$0xff]
    %v7872 = vld [vmem:[#allocation11 + $0x50] sm:$0xff]
    %v7873 = vld [vmem:[#allocation11 + $0x58] sm:$0xff]
    %v7874 = vld [vmem:[#allocation11 + $0x60] sm:$0xff]
    %v7875 = vld [vmem:[#allocation11 + $0x68] sm:$0xff]
    %v7876 = vld [vmem:[#allocation11 + $0x70] sm:$0xff]
    %v7877 = vld [vmem:[#allocation11 + $0x78] sm:$0xff]
    %v7878 = vld [vmem:[#allocation11 + $0x80] sm:$0xff]
    %v7879 = vld [vmem:[#allocation11 + $0x88] sm:$0xff]
    %v7880 = vld [vmem:[#allocation11 + $0x90] sm:$0xff]
    %v7881 = vld [vmem:[#allocation11 + $0x98] sm:$0xff]
    %v7882 = vld [vmem:[#allocation11 + $0xa0] sm:$0xff]
    %v7883 = vld [vmem:[#allocation11 + $0xa8] sm:$0xff]
    %v7884 = vld [vmem:[#allocation11 + $0xb0] sm:$0xff]
    %v7885 = vld [vmem:[#allocation11 + $0xb8] sm:$0xff]
    %v7886 = vld [vmem:[#allocation11 + $0xc0] sm:$0xff]
    %v7887 = vld [vmem:[#allocation11 + $0xc8] sm:$0xff]
    %v7888 = vld [vmem:[#allocation11 + $0xd0] sm:$0xff]
    %v7889 = vld [vmem:[#allocation11 + $0xd8] sm:$0xff]
    %v7890 = vld [vmem:[#allocation11 + $0xe0] sm:$0xff]
    %v7891 = vld [vmem:[#allocation11 + $0xe8] sm:$0xff]
    %v7892 = vld [vmem:[#allocation11 + $0xf0] sm:$0xff]
    %v7893 = vld [vmem:[#allocation11 + $0xf8] sm:$0xff]
    %v7894 = vld [vmem:[#allocation13] sm:$0xff]
    %v7895 = vld [vmem:[#allocation13 + $0x8] sm:$0xff]
    %v7896 = vld [vmem:[#allocation13 + $0x10] sm:$0xff]
    %v7897 = vld [vmem:[#allocation13 + $0x18] sm:$0xff]
    %v7898 = vld [vmem:[#allocation13 + $0x20] sm:$0xff]
    %v7899 = vld [vmem:[#allocation13 + $0x28] sm:$0xff]
    %v7900 = vld [vmem:[#allocation13 + $0x30] sm:$0xff]
    %v7901 = vld [vmem:[#allocation13 + $0x38] sm:$0xff]
    %v7902 = vld [vmem:[#allocation13 + $0x40] sm:$0xff]
    %v7903 = vld [vmem:[#allocation13 + $0x48] sm:$0xff]
    %v7904 = vld [vmem:[#allocation13 + $0x50] sm:$0xff]
    %v7905 = vld [vmem:[#allocation13 + $0x58] sm:$0xff]
    %v7906 = vld [vmem:[#allocation13 + $0x60] sm:$0xff]
    %v7907 = vld [vmem:[#allocation13 + $0x68] sm:$0xff]
    %v7908 = vld [vmem:[#allocation13 + $0x70] sm:$0xff]
    %v7909 = vld [vmem:[#allocation13 + $0x78] sm:$0xff]
    %v7910 = vld [vmem:[#allocation13 + $0x80] sm:$0xff]
    %v7911 = vld [vmem:[#allocation13 + $0x88] sm:$0xff]
    %v7912 = vld [vmem:[#allocation13 + $0x90] sm:$0xff]
    %v7913 = vld [vmem:[#allocation13 + $0x98] sm:$0xff]
    %v7914 = vld [vmem:[#allocation13 + $0xa0] sm:$0xff]
    %v7915 = vld [vmem:[#allocation13 + $0xa8] sm:$0xff]
    %v7916 = vld [vmem:[#allocation13 + $0xb0] sm:$0xff]
    %v7917 = vld [vmem:[#allocation13 + $0xb8] sm:$0xff]
    %v7918 = vld [vmem:[#allocation13 + $0xc0] sm:$0xff]
    %v7919 = vld [vmem:[#allocation13 + $0xc8] sm:$0xff]
    %v7920 = vld [vmem:[#allocation13 + $0xd0] sm:$0xff]
    %v7921 = vld [vmem:[#allocation13 + $0xd8] sm:$0xff]
    %v7922 = vld [vmem:[#allocation13 + $0xe0] sm:$0xff]
    %v7923 = vld [vmem:[#allocation13 + $0xe8] sm:$0xff]
    %v7924 = vld [vmem:[#allocation13 + $0xf0] sm:$0xff]
    %v7925 = vld [vmem:[#allocation13 + $0xf8] sm:$0xff]
    %v7958 = vunpack.c.l.b16 %v7894
    %v7959 = vunpack.c.h.b16 %v7894
    %v7960 = vunpack.c.l.b16 %v7895
    %v7961 = vunpack.c.h.b16 %v7895
    %v7962 = vunpack.c.l.b16 %v7896
    %v7963 = vunpack.c.h.b16 %v7896
    %v7964 = vunpack.c.l.b16 %v7897
    %v7965 = vunpack.c.h.b16 %v7897
    %v7966 = vunpack.c.l.b16 %v7898
    %v7967 = vunpack.c.h.b16 %v7898
    %v7968 = vunpack.c.l.b16 %v7899
    %v7969 = vunpack.c.h.b16 %v7899
    %v7970 = vunpack.c.l.b16 %v7900
    %v7971 = vunpack.c.h.b16 %v7900
    %v7972 = vunpack.c.l.b16 %v7901
    %v7973 = vunpack.c.h.b16 %v7901
    %v7974 = vunpack.c.l.b16 %v7902
    %v7975 = vunpack.c.h.b16 %v7902
    %v7976 = vunpack.c.l.b16 %v7903
    %v7977 = vunpack.c.h.b16 %v7903
    %v7978 = vunpack.c.l.b16 %v7904
    %v7979 = vunpack.c.h.b16 %v7904
    %v7980 = vunpack.c.l.b16 %v7905
    %v7981 = vunpack.c.h.b16 %v7905
    %v7982 = vunpack.c.l.b16 %v7906
    %v7983 = vunpack.c.h.b16 %v7906
    %v7984 = vunpack.c.l.b16 %v7907
    %v7985 = vunpack.c.h.b16 %v7907
    %v7986 = vunpack.c.l.b16 %v7908
    %v7987 = vunpack.c.h.b16 %v7908
    %v7988 = vunpack.c.l.b16 %v7909
    %v7989 = vunpack.c.h.b16 %v7909
    %v7990 = vunpack.c.l.b16 %v7910
    %v7991 = vunpack.c.h.b16 %v7910
    %v7992 = vunpack.c.l.b16 %v7911
    %v7993 = vunpack.c.h.b16 %v7911
    %v7994 = vunpack.c.l.b16 %v7912
    %v7995 = vunpack.c.h.b16 %v7912
    %v7996 = vunpack.c.l.b16 %v7913
    %v7997 = vunpack.c.h.b16 %v7913
    %v7998 = vunpack.c.l.b16 %v7914
    %v7999 = vunpack.c.h.b16 %v7914
    %v8000 = vunpack.c.l.b16 %v7915
    %v8001 = vunpack.c.h.b16 %v7915
    %v8002 = vunpack.c.l.b16 %v7916
    %v8003 = vunpack.c.h.b16 %v7916
    %v8004 = vunpack.c.l.b16 %v7917
    %v8005 = vunpack.c.h.b16 %v7917
    %v8006 = vunpack.c.l.b16 %v7918
    %v8007 = vunpack.c.h.b16 %v7918
    %v8008 = vunpack.c.l.b16 %v7919
    %v8009 = vunpack.c.h.b16 %v7919
    %v8010 = vunpack.c.l.b16 %v7920
    %v8011 = vunpack.c.h.b16 %v7920
    %v8012 = vunpack.c.l.b16 %v7921
    %v8013 = vunpack.c.h.b16 %v7921
    %v8014 = vunpack.c.l.b16 %v7922
    %v8015 = vunpack.c.h.b16 %v7922
    %v8016 = vunpack.c.l.b16 %v7923
    %v8017 = vunpack.c.h.b16 %v7923
    %v8018 = vunpack.c.l.b16 %v7924
    %v8019 = vunpack.c.h.b16 %v7924
    %v8020 = vunpack.c.l.b16 %v7925
    %v8021 = vunpack.c.h.b16 %v7925
    %v8022 = vpack.c.b16 %v7962, %v7958
    %v8023 = vpack.c.b16 %v7963, %v7959
    %v8024 = vpack.c.b16 %v7964, %v7960
    %v8025 = vpack.c.b16 %v7965, %v7961
    %v8026 = vpack.c.b16 %v7970, %v7966
    %v8027 = vpack.c.b16 %v7971, %v7967
    %v8028 = vpack.c.b16 %v7972, %v7968
    %v8029 = vpack.c.b16 %v7973, %v7969
    %v8030 = vpack.c.b16 %v7978, %v7974
    %v8031 = vpack.c.b16 %v7979, %v7975
    %v8032 = vpack.c.b16 %v7980, %v7976
    %v8033 = vpack.c.b16 %v7981, %v7977
    %v8034 = vpack.c.b16 %v7986, %v7982
    %v8035 = vpack.c.b16 %v7987, %v7983
    %v8036 = vpack.c.b16 %v7988, %v7984
    %v8037 = vpack.c.b16 %v7989, %v7985
    %v8038 = vpack.c.b16 %v7994, %v7990
    %v8039 = vpack.c.b16 %v7995, %v7991
    %v8040 = vpack.c.b16 %v7996, %v7992
    %v8041 = vpack.c.b16 %v7997, %v7993
    %v8042 = vpack.c.b16 %v8002, %v7998
    %v8043 = vpack.c.b16 %v8003, %v7999
    %v8044 = vpack.c.b16 %v8004, %v8000
    %v8045 = vpack.c.b16 %v8005, %v8001
    %v8046 = vpack.c.b16 %v8010, %v8006
    %v8047 = vpack.c.b16 %v8011, %v8007
    %v8048 = vpack.c.b16 %v8012, %v8008
    %v8049 = vpack.c.b16 %v8013, %v8009
    %v8050 = vpack.c.b16 %v8018, %v8014
    %v8051 = vpack.c.b16 %v8019, %v8015
    %v8052 = vpack.c.b16 %v8020, %v8016
    %v8053 = vpack.c.b16 %v8021, %v8017
    %8086 = vmatpush.bf16.msra.mxu0 %v8050
    %8087 = vmatpush.bf16.msra.mxu0 %v8046
    %8088 = vmatpush.bf16.msra.mxu0 %v8042
    %8089 = vmatpush.bf16.msra.mxu0 %v8038
    %8090 = vmatpush.bf16.msra.mxu0 %v8034
    %8091 = vmatpush.bf16.msra.mxu0 %v8030
    %8092 = vmatpush.bf16.msra.mxu0 %v8026
    %8093 = vmatpush.bf16.msra.mxu0 %v8022
    %8094 = vmatmul.bf16.gmra.mxu0 %v6298
    %v8095 = vpop.f32.mrf.mxu0
    %v8096 = vadd.f32 0.0, %v8095
    %v8097 = vpop.f32.mrf.mxu0
    %8098 = vdwg.mxu0
    %8099 = vmatpush.bf16.msra.mxu0 %v8051
    %8100 = vmatpush.bf16.msra.mxu0 %v8047
    %8101 = vmatpush.bf16.msra.mxu0 %v8043
    %8102 = vmatpush.bf16.msra.mxu0 %v8039
    %8103 = vmatpush.bf16.msra.mxu0 %v8035
    %8104 = vmatpush.bf16.msra.mxu0 %v8031
    %8105 = vmatpush.bf16.msra.mxu0 %v8027
    %8106 = vmatpush.bf16.msra.mxu0 %v8023
    %8107 = vmatmul.bf16.gmra.mxu0 %v6298
    %v8108 = vpop.f32.mrf.mxu0
    %v8109 = vadd.f32 0.0, %v8108
    %v8110 = vpop.f32.mrf.mxu0
    %8111 = vdwg.mxu0
    %8112 = vmatpush.bf16.msra.mxu0 %v8052
    %8113 = vmatpush.bf16.msra.mxu0 %v8048
    %8114 = vmatpush.bf16.msra.mxu0 %v8044
    %8115 = vmatpush.bf16.msra.mxu0 %v8040
    %8116 = vmatpush.bf16.msra.mxu0 %v8036
    %8117 = vmatpush.bf16.msra.mxu0 %v8032
    %8118 = vmatpush.bf16.msra.mxu0 %v8028
    %8119 = vmatpush.bf16.msra.mxu0 %v8024
    %8120 = vmatmul.bf16.gmra.mxu0 %v6298
    %v8121 = vpop.f32.mrf.mxu0
    %v8122 = vadd.f32 0.0, %v8121
    %v8123 = vpop.f32.mrf.mxu0
    %8124 = vdwg.mxu0
    %8125 = vmatpush.bf16.msra.mxu0 %v8053
    %8126 = vmatpush.bf16.msra.mxu0 %v8049
    %8127 = vmatpush.bf16.msra.mxu0 %v8045
    %8128 = vmatpush.bf16.msra.mxu0 %v8041
    %8129 = vmatpush.bf16.msra.mxu0 %v8037
    %8130 = vmatpush.bf16.msra.mxu0 %v8033
    %8131 = vmatpush.bf16.msra.mxu0 %v8029
    %8132 = vmatpush.bf16.msra.mxu0 %v8025
    %8133 = vmatmul.bf16.gmra.mxu0 %v6298
    %v8134 = vpop.f32.mrf.mxu0
    %v8135 = vadd.f32 0.0, %v8134
    %v8136 = vpop.f32.mrf.mxu0
    %8137 = vdwg.mxu0
    %v8170 = vunpack.c.l.b16 %v7862
    %v8171 = vunpack.c.h.b16 %v7862
    %v8172 = vunpack.c.l.b16 %v7863
    %v8173 = vunpack.c.h.b16 %v7863
    %v8174 = vunpack.c.l.b16 %v7864
    %v8175 = vunpack.c.h.b16 %v7864
    %v8176 = vunpack.c.l.b16 %v7865
    %v8177 = vunpack.c.h.b16 %v7865
    %v8178 = vunpack.c.l.b16 %v7866
    %v8179 = vunpack.c.h.b16 %v7866
    %v8180 = vunpack.c.l.b16 %v7867
    %v8181 = vunpack.c.h.b16 %v7867
    %v8182 = vunpack.c.l.b16 %v7868
    %v8183 = vunpack.c.h.b16 %v7868
    %v8184 = vunpack.c.l.b16 %v7869
    %v8185 = vunpack.c.h.b16 %v7869
    %v8186 = vunpack.c.l.b16 %v7870
    %v8187 = vunpack.c.h.b16 %v7870
    %v8188 = vunpack.c.l.b16 %v7871
    %v8189 = vunpack.c.h.b16 %v7871
    %v8190 = vunpack.c.l.b16 %v7872
    %v8191 = vunpack.c.h.b16 %v7872
    %v8192 = vunpack.c.l.b16 %v7873
    %v8193 = vunpack.c.h.b16 %v7873
    %v8194 = vunpack.c.l.b16 %v7874
    %v8195 = vunpack.c.h.b16 %v7874
    %v8196 = vunpack.c.l.b16 %v7875
    %v8197 = vunpack.c.h.b16 %v7875
    %v8198 = vunpack.c.l.b16 %v7876
    %v8199 = vunpack.c.h.b16 %v7876
    %v8200 = vunpack.c.l.b16 %v7877
    %v8201 = vunpack.c.h.b16 %v7877
    %v8202 = vunpack.c.l.b16 %v7878
    %v8203 = vunpack.c.h.b16 %v7878
    %v8204 = vunpack.c.l.b16 %v7879
    %v8205 = vunpack.c.h.b16 %v7879
    %v8206 = vunpack.c.l.b16 %v7880
    %v8207 = vunpack.c.h.b16 %v7880
    %v8208 = vunpack.c.l.b16 %v7881
    %v8209 = vunpack.c.h.b16 %v7881
    %v8210 = vunpack.c.l.b16 %v7882
    %v8211 = vunpack.c.h.b16 %v7882
    %v8212 = vunpack.c.l.b16 %v7883
    %v8213 = vunpack.c.h.b16 %v7883
    %v8214 = vunpack.c.l.b16 %v7884
    %v8215 = vunpack.c.h.b16 %v7884
    %v8216 = vunpack.c.l.b16 %v7885
    %v8217 = vunpack.c.h.b16 %v7885
    %v8218 = vunpack.c.l.b16 %v7886
    %v8219 = vunpack.c.h.b16 %v7886
    %v8220 = vunpack.c.l.b16 %v7887
    %v8221 = vunpack.c.h.b16 %v7887
    %v8222 = vunpack.c.l.b16 %v7888
    %v8223 = vunpack.c.h.b16 %v7888
    %v8224 = vunpack.c.l.b16 %v7889
    %v8225 = vunpack.c.h.b16 %v7889
    %v8226 = vunpack.c.l.b16 %v7890
    %v8227 = vunpack.c.h.b16 %v7890
    %v8228 = vunpack.c.l.b16 %v7891
    %v8229 = vunpack.c.h.b16 %v7891
    %v8230 = vunpack.c.l.b16 %v7892
    %v8231 = vunpack.c.h.b16 %v7892
    %v8232 = vunpack.c.l.b16 %v7893
    %v8233 = vunpack.c.h.b16 %v7893
    %v8234 = vpack.c.b16 %v8174, %v8170
    %v8235 = vpack.c.b16 %v8175, %v8171
    %v8236 = vpack.c.b16 %v8176, %v8172
    %v8237 = vpack.c.b16 %v8177, %v8173
    %v8238 = vpack.c.b16 %v8182, %v8178
    %v8239 = vpack.c.b16 %v8183, %v8179
    %v8240 = vpack.c.b16 %v8184, %v8180
    %v8241 = vpack.c.b16 %v8185, %v8181
    %v8242 = vpack.c.b16 %v8190, %v8186
    %v8243 = vpack.c.b16 %v8191, %v8187
    %v8244 = vpack.c.b16 %v8192, %v8188
    %v8245 = vpack.c.b16 %v8193, %v8189
    %v8246 = vpack.c.b16 %v8198, %v8194
    %v8247 = vpack.c.b16 %v8199, %v8195
    %v8248 = vpack.c.b16 %v8200, %v8196
    %v8249 = vpack.c.b16 %v8201, %v8197
    %v8250 = vpack.c.b16 %v8206, %v8202
    %v8251 = vpack.c.b16 %v8207, %v8203
    %v8252 = vpack.c.b16 %v8208, %v8204
    %v8253 = vpack.c.b16 %v8209, %v8205
    %v8254 = vpack.c.b16 %v8214, %v8210
    %v8255 = vpack.c.b16 %v8215, %v8211
    %v8256 = vpack.c.b16 %v8216, %v8212
    %v8257 = vpack.c.b16 %v8217, %v8213
    %v8258 = vpack.c.b16 %v8222, %v8218
    %v8259 = vpack.c.b16 %v8223, %v8219
    %v8260 = vpack.c.b16 %v8224, %v8220
    %v8261 = vpack.c.b16 %v8225, %v8221
    %v8262 = vpack.c.b16 %v8230, %v8226
    %v8263 = vpack.c.b16 %v8231, %v8227
    %v8264 = vpack.c.b16 %v8232, %v8228
    %v8265 = vpack.c.b16 %v8233, %v8229
    %8298 = vmatpush.bf16.msra.mxu0 %v8262
    %8299 = vmatpush.bf16.msra.mxu0 %v8258
    %8300 = vmatpush.bf16.msra.mxu0 %v8254
    %8301 = vmatpush.bf16.msra.mxu0 %v8250
    %8302 = vmatpush.bf16.msra.mxu0 %v8246
    %8303 = vmatpush.bf16.msra.mxu0 %v8242
    %8304 = vmatpush.bf16.msra.mxu0 %v8238
    %8305 = vmatpush.bf16.msra.mxu0 %v8234
    %8306 = vmatmul.bf16.gmra.mxu0 %v7861
    %v8307 = vpop.f32.mrf.mxu0
    %v8308 = vadd.f32 %v8096, %v8307
    %v8309 = vpop.f32.mrf.mxu0
    %8310 = vdwg.mxu0
    %8311 = vmatpush.bf16.msra.mxu0 %v8263
    %8312 = vmatpush.bf16.msra.mxu0 %v8259
    %8313 = vmatpush.bf16.msra.mxu0 %v8255
    %8314 = vmatpush.bf16.msra.mxu0 %v8251
    %8315 = vmatpush.bf16.msra.mxu0 %v8247
    %8316 = vmatpush.bf16.msra.mxu0 %v8243
    %8317 = vmatpush.bf16.msra.mxu0 %v8239
    %8318 = vmatpush.bf16.msra.mxu0 %v8235
    %8319 = vmatmul.bf16.gmra.mxu0 %v7861
    %v8320 = vpop.f32.mrf.mxu0
    %v8321 = vadd.f32 %v8109, %v8320
    %v8322 = vpop.f32.mrf.mxu0
    %8323 = vdwg.mxu0
    %8324 = vmatpush.bf16.msra.mxu0 %v8264
    %8325 = vmatpush.bf16.msra.mxu0 %v8260
    %8326 = vmatpush.bf16.msra.mxu0 %v8256
    %8327 = vmatpush.bf16.msra.mxu0 %v8252
    %8328 = vmatpush.bf16.msra.mxu0 %v8248
    %8329 = vmatpush.bf16.msra.mxu0 %v8244
    %8330 = vmatpush.bf16.msra.mxu0 %v8240
    %8331 = vmatpush.bf16.msra.mxu0 %v8236
    %8332 = vmatmul.bf16.gmra.mxu0 %v7861
    %v8333 = vpop.f32.mrf.mxu0
    %v8334 = vadd.f32 %v8122, %v8333
    %v8335 = vpop.f32.mrf.mxu0
    %8336 = vdwg.mxu0
    %8337 = vmatpush.bf16.msra.mxu0 %v8265
    %8338 = vmatpush.bf16.msra.mxu0 %v8261
    %8339 = vmatpush.bf16.msra.mxu0 %v8257
    %8340 = vmatpush.bf16.msra.mxu0 %v8253
    %8341 = vmatpush.bf16.msra.mxu0 %v8249
    %8342 = vmatpush.bf16.msra.mxu0 %v8245
    %8343 = vmatpush.bf16.msra.mxu0 %v8241
    %8344 = vmatpush.bf16.msra.mxu0 %v8237
    %8345 = vmatmul.bf16.gmra.mxu0 %v7861
    %v8346 = vpop.f32.mrf.mxu0
    %v8347 = vadd.f32 %v8135, %v8346
    %v8348 = vpop.f32.mrf.mxu0
    %8349 = vdwg.mxu0
    %v8350 = vld [vmem:[%s7] sm:$0xf]
    %v8352 = vperm.slane %v8350, 0
    %v8353 = vperm.slane %v8350, 1
    %v8354 = vperm.slane %v8350, 2
    %v8355 = vperm.slane %v8350, 3
    %v8360 = vadd.f32 %v8308, %v8352
    %v8361 = vadd.f32 %v8321, %v8353
    %v8362 = vadd.f32 %v8334, %v8354
    %v8363 = vadd.f32 %v8347, %v8355
    %v8364 = vxor.u32 %v8360, 2147483648
    %v8365 = vmul.f32 %v8364, 1.442695
    %v8366 = vpow.pop %v8365
    %v8367 = vadd.f32 %v8366, 1.0
    %v8368 = vrcp.pop %v8367
    %v8369 = vmul.f32 %v8367, %v8368
    %v8370 = vsub.f32 1.0, %v8369
    %v8371 = vmul.f32 %v8368, %v8370
    %v8372 = vadd.f32 %v8368, %v8371
    %vm8373 = vweird.f32 %v8367
    %vm8374 = vweird.f32 %v8368
    %vm8375 = vmor %vm8373, %vm8374
    %v8376 = vsel %vm8375, %v8368, %v8372
    %v8377 = vand.u32 2147483647, %v8367
    %vm8378 = vcmp.eq.f32.partialorder %v8377, 8.507059e+37
    %v8379 = vand.u32 %v8367, 2147483648
    %v8380 = vor.u32 1.1754944e-38, %v8379
    %v8381 = vsel %vm8378, %v8380, %v8376
    %v8382 = vmul.f32 1.0, %v8381
    %v8383 = vxor.u32 %v8361, 2147483648
    %v8384 = vmul.f32 %v8383, 1.442695
    %v8385 = vpow.pop %v8384
    %v8386 = vadd.f32 %v8385, 1.0
    %v8387 = vrcp.pop %v8386
    %v8388 = vmul.f32 %v8386, %v8387
    %v8389 = vsub.f32 1.0, %v8388
    %v8390 = vmul.f32 %v8387, %v8389
    %v8391 = vadd.f32 %v8387, %v8390
    %vm8392 = vweird.f32 %v8386
    %vm8393 = vweird.f32 %v8387
    %vm8394 = vmor %vm8392, %vm8393
    %v8395 = vsel %vm8394, %v8387, %v8391
    %v8396 = vand.u32 2147483647, %v8386
    %vm8397 = vcmp.eq.f32.partialorder %v8396, 8.507059e+37
    %v8398 = vand.u32 %v8386, 2147483648
    %v8399 = vor.u32 1.1754944e-38, %v8398
    %v8400 = vsel %vm8397, %v8399, %v8395
    %v8401 = vmul.f32 1.0, %v8400
    %v8402 = vtanh.pop %v8362
    %v8403 = vxor.u32 %v8363, 2147483648
    %v8404 = vmul.f32 %v8403, 1.442695
    %v8405 = vpow.pop %v8404
    %v8406 = vadd.f32 %v8405, 1.0
    %v8407 = vrcp.pop %v8406
    %v8408 = vmul.f32 %v8406, %v8407
    %v8409 = vsub.f32 1.0, %v8408
    %v8410 = vmul.f32 %v8407, %v8409
    %v8411 = vadd.f32 %v8407, %v8410
    %vm8412 = vweird.f32 %v8406
    %vm8413 = vweird.f32 %v8407
    %vm8414 = vmor %vm8412, %vm8413
    %v8415 = vsel %vm8414, %v8407, %v8411
    %v8416 = vand.u32 2147483647, %v8406
    %vm8417 = vcmp.eq.f32.partialorder %v8416, 8.507059e+37
    %v8418 = vand.u32 %v8406, 2147483648
    %v8419 = vor.u32 1.1754944e-38, %v8418
    %v8420 = vsel %vm8417, %v8419, %v8415
    %v8421 = vmul.f32 1.0, %v8420
    %v8422 = vmul.f32 %v8401, %v6295
    %v8423 = vmul.f32 %v8382, %v8402
    %v8424 = vadd.f32 %v8422, %v8423
    %v8425 = vtanh.pop %v8424
    %v8426 = vmul.f32 %v8421, %v8425
    %v8427 = vpack.c.bf16 %v8426, %v8426
    %v8428 = vld [vmem:[#allocation14] sm:$0xf]
    %v8429 = vld [vmem:[#allocation14 + $0x4] sm:$0xf]
    %v8430 = vld [vmem:[#allocation14 + $0x8] sm:$0xf]
    %v8431 = vld [vmem:[#allocation14 + $0xc] sm:$0xf]
    %v8432 = vld [vmem:[#allocation14 + $0x10] sm:$0xf]
    %v8433 = vld [vmem:[#allocation14 + $0x14] sm:$0xf]
    %v8434 = vld [vmem:[#allocation14 + $0x18] sm:$0xf]
    %v8435 = vld [vmem:[#allocation14 + $0x1c] sm:$0xf]
    %v8436 = vld [vmem:[#allocation14 + $0x20] sm:$0xf]
    %v8437 = vld [vmem:[#allocation14 + $0x24] sm:$0xf]
    %v8438 = vld [vmem:[#allocation14 + $0x28] sm:$0xf]
    %v8439 = vld [vmem:[#allocation14 + $0x2c] sm:$0xf]
    %v8440 = vld [vmem:[#allocation14 + $0x30] sm:$0xf]
    %v8441 = vld [vmem:[#allocation14 + $0x34] sm:$0xf]
    %v8442 = vld [vmem:[#allocation14 + $0x38] sm:$0xf]
    %v8443 = vld [vmem:[#allocation14 + $0x3c] sm:$0xf]
    %v8444 = vld [vmem:[#allocation16] sm:$0x1]
    %v8446 = vperm.slane %v8444, 0
    %v8464 = vunpack.c.l.b16 %v8428
    %v8465 = vunpack.c.l.b16 %v8429
    %v8466 = vunpack.c.l.b16 %v8430
    %v8467 = vunpack.c.l.b16 %v8431
    %v8468 = vunpack.c.l.b16 %v8432
    %v8469 = vunpack.c.l.b16 %v8433
    %v8470 = vunpack.c.l.b16 %v8434
    %v8471 = vunpack.c.l.b16 %v8435
    %v8472 = vunpack.c.l.b16 %v8436
    %v8473 = vunpack.c.l.b16 %v8437
    %v8474 = vunpack.c.l.b16 %v8438
    %v8475 = vunpack.c.l.b16 %v8439
    %v8476 = vunpack.c.l.b16 %v8440
    %v8477 = vunpack.c.l.b16 %v8441
    %v8478 = vunpack.c.l.b16 %v8442
    %v8479 = vunpack.c.l.b16 %v8443
    %v8480 = vpack.c.b16 %v8465, %v8464
    %v8481 = vpack.c.b16 %v8467, %v8466
    %v8482 = vpack.c.b16 %v8469, %v8468
    %v8483 = vpack.c.b16 %v8471, %v8470
    %v8484 = vpack.c.b16 %v8473, %v8472
    %v8485 = vpack.c.b16 %v8475, %v8474
    %v8486 = vpack.c.b16 %v8477, %v8476
    %v8487 = vpack.c.b16 %v8479, %v8478
    %8496 = vmatpush.bf16.msra.mxu0 %v8487
    %8497 = vmatpush.bf16.msra.mxu0 %v8486
    %8498 = vmatpush.bf16.msra.mxu0 %v8485
    %8499 = vmatpush.bf16.msra.mxu0 %v8484
    %8500 = vmatpush.bf16.msra.mxu0 %v8483
    %8501 = vmatpush.bf16.msra.mxu0 %v8482
    %8502 = vmatpush.bf16.msra.mxu0 %v8481
    %8503 = vmatpush.bf16.msra.mxu0 %v8480
    %8504 = vmatmul.bf16.gmra.mxu0 %v8427
    %v8505 = vpop.f32.mrf.mxu0
    %v8506 = vadd.f32 %v8446, %v8505
    %v8507 = vpop.f32.mrf.mxu0
    %8508 = vdwg.mxu0
    %v8509 = vtanh.pop %v8506
    %v8510 = vpack.c.bf16 %v8509, %v8509
    %v8511 = vld [vmem:[#allocation17] sm:$0xf]
    %v8512 = vld [vmem:[#allocation17 + $0x4] sm:$0xf]
    %v8513 = vld [vmem:[#allocation17 + $0x8] sm:$0xf]
    %v8514 = vld [vmem:[#allocation17 + $0xc] sm:$0xf]
    %v8515 = vld [vmem:[#allocation17 + $0x10] sm:$0xf]
    %v8516 = vld [vmem:[#allocation17 + $0x14] sm:$0xf]
    %v8517 = vld [vmem:[#allocation17 + $0x18] sm:$0xf]
    %v8518 = vld [vmem:[#allocation17 + $0x1c] sm:$0xf]
    %v8519 = vld [vmem:[#allocation17 + $0x20] sm:$0xf]
    %v8520 = vld [vmem:[#allocation17 + $0x24] sm:$0xf]
    %v8521 = vld [vmem:[#allocation17 + $0x28] sm:$0xf]
    %v8522 = vld [vmem:[#allocation17 + $0x2c] sm:$0xf]
    %v8523 = vld [vmem:[#allocation17 + $0x30] sm:$0xf]
    %v8524 = vld [vmem:[#allocation17 + $0x34] sm:$0xf]
    %v8525 = vld [vmem:[#allocation17 + $0x38] sm:$0xf]
    %v8526 = vld [vmem:[#allocation17 + $0x3c] sm:$0xf]
    %v8527 = vld [vmem:[#allocation19] sm:$0x1]
    %v8529 = vperm.slane %v8527, 0
    %v8547 = vunpack.c.l.b16 %v8511
    %v8548 = vunpack.c.l.b16 %v8512
    %v8549 = vunpack.c.l.b16 %v8513
    %v8550 = vunpack.c.l.b16 %v8514
    %v8551 = vunpack.c.l.b16 %v8515
    %v8552 = vunpack.c.l.b16 %v8516
    %v8553 = vunpack.c.l.b16 %v8517
    %v8554 = vunpack.c.l.b16 %v8518
    %v8555 = vunpack.c.l.b16 %v8519
    %v8556 = vunpack.c.l.b16 %v8520
    %v8557 = vunpack.c.l.b16 %v8521
    %v8558 = vunpack.c.l.b16 %v8522
    %v8559 = vunpack.c.l.b16 %v8523
    %v8560 = vunpack.c.l.b16 %v8524
    %v8561 = vunpack.c.l.b16 %v8525
    %v8562 = vunpack.c.l.b16 %v8526
    %v8563 = vpack.c.b16 %v8548, %v8547
    %v8564 = vpack.c.b16 %v8550, %v8549
    %v8565 = vpack.c.b16 %v8552, %v8551
    %v8566 = vpack.c.b16 %v8554, %v8553
    %v8567 = vpack.c.b16 %v8556, %v8555
    %v8568 = vpack.c.b16 %v8558, %v8557
    %v8569 = vpack.c.b16 %v8560, %v8559
    %v8570 = vpack.c.b16 %v8562, %v8561
    %8579 = vmatpush.bf16.msra.mxu0 %v8570
    %8580 = vmatpush.bf16.msra.mxu0 %v8569
    %8581 = vmatpush.bf16.msra.mxu0 %v8568
    %8582 = vmatpush.bf16.msra.mxu0 %v8567
    %8583 = vmatpush.bf16.msra.mxu0 %v8566
    %8584 = vmatpush.bf16.msra.mxu0 %v8565
    %8585 = vmatpush.bf16.msra.mxu0 %v8564
    %8586 = vmatpush.bf16.msra.mxu0 %v8563
    %8587 = vmatmul.bf16.gmra.mxu0 %v8510
    %v8588 = vpop.f32.mrf.mxu0
    %v8589 = vadd.f32 %v8529, %v8588
    %v8590 = vpop.f32.mrf.mxu0
    %8591 = vdwg.mxu0
    %v8592 = vadd.f32 %v8589, %v2201
    %v8593 = vmax.f32 %v8592, 0.0
    %v8594 = vpack.c.bf16 %v8593, %v8593
    %v8595 = vld [vmem:[#allocation20] sm:$0xff]
    %v8596 = vld [vmem:[#allocation20 + $0x8] sm:$0xff]
    %v8597 = vld [vmem:[#allocation20 + $0x10] sm:$0xff]
    %v8598 = vld [vmem:[#allocation20 + $0x18] sm:$0xff]
    %v8599 = vld [vmem:[#allocation20 + $0x20] sm:$0xff]
    %v8600 = vld [vmem:[#allocation20 + $0x28] sm:$0xff]
    %v8601 = vld [vmem:[#allocation20 + $0x30] sm:$0xff]
    %v8602 = vld [vmem:[#allocation20 + $0x38] sm:$0xff]
    %v8603 = vld [vmem:[#allocation20 + $0x40] sm:$0xff]
    %v8604 = vld [vmem:[#allocation20 + $0x48] sm:$0xff]
    %v8605 = vld [vmem:[#allocation20 + $0x50] sm:$0xff]
    %v8606 = vld [vmem:[#allocation20 + $0x58] sm:$0xff]
    %v8607 = vld [vmem:[#allocation20 + $0x60] sm:$0xff]
    %v8608 = vld [vmem:[#allocation20 + $0x68] sm:$0xff]
    %v8609 = vld [vmem:[#allocation20 + $0x70] sm:$0xff]
    %v8610 = vld [vmem:[#allocation20 + $0x78] sm:$0xff]
    %v8611 = vld [vmem:[#allocation20 + $0x80] sm:$0xff]
    %v8612 = vld [vmem:[#allocation20 + $0x88] sm:$0xff]
    %v8613 = vld [vmem:[#allocation20 + $0x90] sm:$0xff]
    %v8614 = vld [vmem:[#allocation20 + $0x98] sm:$0xff]
    %v8615 = vld [vmem:[#allocation20 + $0xa0] sm:$0xff]
    %v8616 = vld [vmem:[#allocation20 + $0xa8] sm:$0xff]
    %v8617 = vld [vmem:[#allocation20 + $0xb0] sm:$0xff]
    %v8618 = vld [vmem:[#allocation20 + $0xb8] sm:$0xff]
    %v8619 = vld [vmem:[#allocation20 + $0xc0] sm:$0xff]
    %v8620 = vld [vmem:[#allocation20 + $0xc8] sm:$0xff]
    %v8621 = vld [vmem:[#allocation20 + $0xd0] sm:$0xff]
    %v8622 = vld [vmem:[#allocation20 + $0xd8] sm:$0xff]
    %v8623 = vld [vmem:[#allocation20 + $0xe0] sm:$0xff]
    %v8624 = vld [vmem:[#allocation20 + $0xe8] sm:$0xff]
    %v8625 = vld [vmem:[#allocation20 + $0xf0] sm:$0xff]
    %v8626 = vld [vmem:[#allocation20 + $0xf8] sm:$0xff]
    %v8627 = vld [vmem:[#allocation20 + $0x100] sm:$0xff]
    %v8628 = vld [vmem:[#allocation20 + $0x108] sm:$0xff]
    %v8629 = vld [vmem:[#allocation20 + $0x110] sm:$0xff]
    %v8630 = vld [vmem:[#allocation20 + $0x118] sm:$0xff]
    %v8631 = vld [vmem:[#allocation20 + $0x120] sm:$0xff]
    %v8632 = vld [vmem:[#allocation20 + $0x128] sm:$0xff]
    %v8633 = vld [vmem:[#allocation20 + $0x130] sm:$0xff]
    %v8634 = vld [vmem:[#allocation20 + $0x138] sm:$0xff]
    %v8635 = vld [vmem:[#allocation20 + $0x140] sm:$0xff]
    %v8636 = vld [vmem:[#allocation20 + $0x148] sm:$0xff]
    %v8637 = vld [vmem:[#allocation20 + $0x150] sm:$0xff]
    %v8638 = vld [vmem:[#allocation20 + $0x158] sm:$0xff]
    %v8639 = vld [vmem:[#allocation20 + $0x160] sm:$0xff]
    %v8640 = vld [vmem:[#allocation20 + $0x168] sm:$0xff]
    %v8641 = vld [vmem:[#allocation20 + $0x170] sm:$0xff]
    %v8642 = vld [vmem:[#allocation20 + $0x178] sm:$0xff]
    %v8643 = vld [vmem:[#allocation20 + $0x180] sm:$0xff]
    %v8644 = vld [vmem:[#allocation20 + $0x188] sm:$0xff]
    %v8645 = vld [vmem:[#allocation20 + $0x190] sm:$0xff]
    %v8646 = vld [vmem:[#allocation20 + $0x198] sm:$0xff]
    %v8647 = vld [vmem:[#allocation20 + $0x1a0] sm:$0xff]
    %v8648 = vld [vmem:[#allocation20 + $0x1a8] sm:$0xff]
    %v8649 = vld [vmem:[#allocation20 + $0x1b0] sm:$0xff]
    %v8650 = vld [vmem:[#allocation20 + $0x1b8] sm:$0xff]
    %v8651 = vld [vmem:[#allocation20 + $0x1c0] sm:$0xff]
    %v8652 = vld [vmem:[#allocation20 + $0x1c8] sm:$0xff]
    %v8653 = vld [vmem:[#allocation20 + $0x1d0] sm:$0xff]
    %v8654 = vld [vmem:[#allocation20 + $0x1d8] sm:$0xff]
    %v8655 = vld [vmem:[#allocation20 + $0x1e0] sm:$0xff]
    %v8656 = vld [vmem:[#allocation20 + $0x1e8] sm:$0xff]
    %v8657 = vld [vmem:[#allocation20 + $0x1f0] sm:$0xff]
    %v8658 = vld [vmem:[#allocation20 + $0x1f8] sm:$0xff]
    %v8659 = vld [vmem:[%s13] sm:$0xff]
    %v8661 = vperm.slane %v8659, 0
    %v8662 = vperm.slane %v8659, 1
    %v8663 = vperm.slane %v8659, 2
    %v8664 = vperm.slane %v8659, 3
    %v8665 = vperm.slane %v8659, 4
    %v8666 = vperm.slane %v8659, 5
    %v8667 = vperm.slane %v8659, 6
    %v8668 = vperm.slane %v8659, 7
    %v8741 = vunpack.c.l.b16 %v8595
    %v8742 = vunpack.c.h.b16 %v8595
    %v8743 = vunpack.c.l.b16 %v8596
    %v8744 = vunpack.c.h.b16 %v8596
    %v8745 = vunpack.c.l.b16 %v8597
    %v8746 = vunpack.c.h.b16 %v8597
    %v8747 = vunpack.c.l.b16 %v8598
    %v8748 = vunpack.c.h.b16 %v8598
    %v8749 = vunpack.c.l.b16 %v8599
    %v8750 = vunpack.c.h.b16 %v8599
    %v8751 = vunpack.c.l.b16 %v8600
    %v8752 = vunpack.c.h.b16 %v8600
    %v8753 = vunpack.c.l.b16 %v8601
    %v8754 = vunpack.c.h.b16 %v8601
    %v8755 = vunpack.c.l.b16 %v8602
    %v8756 = vunpack.c.h.b16 %v8602
    %v8757 = vunpack.c.l.b16 %v8603
    %v8758 = vunpack.c.h.b16 %v8603
    %v8759 = vunpack.c.l.b16 %v8604
    %v8760 = vunpack.c.h.b16 %v8604
    %v8761 = vunpack.c.l.b16 %v8605
    %v8762 = vunpack.c.h.b16 %v8605
    %v8763 = vunpack.c.l.b16 %v8606
    %v8764 = vunpack.c.h.b16 %v8606
    %v8765 = vunpack.c.l.b16 %v8607
    %v8766 = vunpack.c.h.b16 %v8607
    %v8767 = vunpack.c.l.b16 %v8608
    %v8768 = vunpack.c.h.b16 %v8608
    %v8769 = vunpack.c.l.b16 %v8609
    %v8770 = vunpack.c.h.b16 %v8609
    %v8771 = vunpack.c.l.b16 %v8610
    %v8772 = vunpack.c.h.b16 %v8610
    %v8773 = vunpack.c.l.b16 %v8611
    %v8774 = vunpack.c.h.b16 %v8611
    %v8775 = vunpack.c.l.b16 %v8612
    %v8776 = vunpack.c.h.b16 %v8612
    %v8777 = vunpack.c.l.b16 %v8613
    %v8778 = vunpack.c.h.b16 %v8613
    %v8779 = vunpack.c.l.b16 %v8614
    %v8780 = vunpack.c.h.b16 %v8614
    %v8781 = vunpack.c.l.b16 %v8615
    %v8782 = vunpack.c.h.b16 %v8615
    %v8783 = vunpack.c.l.b16 %v8616
    %v8784 = vunpack.c.h.b16 %v8616
    %v8785 = vunpack.c.l.b16 %v8617
    %v8786 = vunpack.c.h.b16 %v8617
    %v8787 = vunpack.c.l.b16 %v8618
    %v8788 = vunpack.c.h.b16 %v8618
    %v8789 = vunpack.c.l.b16 %v8619
    %v8790 = vunpack.c.h.b16 %v8619
    %v8791 = vunpack.c.l.b16 %v8620
    %v8792 = vunpack.c.h.b16 %v8620
    %v8793 = vunpack.c.l.b16 %v8621
    %v8794 = vunpack.c.h.b16 %v8621
    %v8795 = vunpack.c.l.b16 %v8622
    %v8796 = vunpack.c.h.b16 %v8622
    %v8797 = vunpack.c.l.b16 %v8623
    %v8798 = vunpack.c.h.b16 %v8623
    %v8799 = vunpack.c.l.b16 %v8624
    %v8800 = vunpack.c.h.b16 %v8624
    %v8801 = vunpack.c.l.b16 %v8625
    %v8802 = vunpack.c.h.b16 %v8625
    %v8803 = vunpack.c.l.b16 %v8626
    %v8804 = vunpack.c.h.b16 %v8626
    %v8805 = vunpack.c.l.b16 %v8627
    %v8806 = vunpack.c.h.b16 %v8627
    %v8807 = vunpack.c.l.b16 %v8628
    %v8808 = vunpack.c.h.b16 %v8628
    %v8809 = vunpack.c.l.b16 %v8629
    %v8810 = vunpack.c.h.b16 %v8629
    %v8811 = vunpack.c.l.b16 %v8630
    %v8812 = vunpack.c.h.b16 %v8630
    %v8813 = vunpack.c.l.b16 %v8631
    %v8814 = vunpack.c.h.b16 %v8631
    %v8815 = vunpack.c.l.b16 %v8632
    %v8816 = vunpack.c.h.b16 %v8632
    %v8817 = vunpack.c.l.b16 %v8633
    %v8818 = vunpack.c.h.b16 %v8633
    %v8819 = vunpack.c.l.b16 %v8634
    %v8820 = vunpack.c.h.b16 %v8634
    %v8821 = vunpack.c.l.b16 %v8635
    %v8822 = vunpack.c.h.b16 %v8635
    %v8823 = vunpack.c.l.b16 %v8636
    %v8824 = vunpack.c.h.b16 %v8636
    %v8825 = vunpack.c.l.b16 %v8637
    %v8826 = vunpack.c.h.b16 %v8637
    %v8827 = vunpack.c.l.b16 %v8638
    %v8828 = vunpack.c.h.b16 %v8638
    %v8829 = vunpack.c.l.b16 %v8639
    %v8830 = vunpack.c.h.b16 %v8639
    %v8831 = vunpack.c.l.b16 %v8640
    %v8832 = vunpack.c.h.b16 %v8640
    %v8833 = vunpack.c.l.b16 %v8641
    %v8834 = vunpack.c.h.b16 %v8641
    %v8835 = vunpack.c.l.b16 %v8642
    %v8836 = vunpack.c.h.b16 %v8642
    %v8837 = vunpack.c.l.b16 %v8643
    %v8838 = vunpack.c.h.b16 %v8643
    %v8839 = vunpack.c.l.b16 %v8644
    %v8840 = vunpack.c.h.b16 %v8644
    %v8841 = vunpack.c.l.b16 %v8645
    %v8842 = vunpack.c.h.b16 %v8645
    %v8843 = vunpack.c.l.b16 %v8646
    %v8844 = vunpack.c.h.b16 %v8646
    %v8845 = vunpack.c.l.b16 %v8647
    %v8846 = vunpack.c.h.b16 %v8647
    %v8847 = vunpack.c.l.b16 %v8648
    %v8848 = vunpack.c.h.b16 %v8648
    %v8849 = vunpack.c.l.b16 %v8649
    %v8850 = vunpack.c.h.b16 %v8649
    %v8851 = vunpack.c.l.b16 %v8650
    %v8852 = vunpack.c.h.b16 %v8650
    %v8853 = vunpack.c.l.b16 %v8651
    %v8854 = vunpack.c.h.b16 %v8651
    %v8855 = vunpack.c.l.b16 %v8652
    %v8856 = vunpack.c.h.b16 %v8652
    %v8857 = vunpack.c.l.b16 %v8653
    %v8858 = vunpack.c.h.b16 %v8653
    %v8859 = vunpack.c.l.b16 %v8654
    %v8860 = vunpack.c.h.b16 %v8654
    %v8861 = vunpack.c.l.b16 %v8655
    %v8862 = vunpack.c.h.b16 %v8655
    %v8863 = vunpack.c.l.b16 %v8656
    %v8864 = vunpack.c.h.b16 %v8656
    %v8865 = vunpack.c.l.b16 %v8657
    %v8866 = vunpack.c.h.b16 %v8657
    %v8867 = vunpack.c.l.b16 %v8658
    %v8868 = vunpack.c.h.b16 %v8658
    %v8869 = vpack.c.b16 %v8749, %v8741
    %v8870 = vpack.c.b16 %v8750, %v8742
    %v8871 = vpack.c.b16 %v8751, %v8743
    %v8872 = vpack.c.b16 %v8752, %v8744
    %v8873 = vpack.c.b16 %v8753, %v8745
    %v8874 = vpack.c.b16 %v8754, %v8746
    %v8875 = vpack.c.b16 %v8755, %v8747
    %v8876 = vpack.c.b16 %v8756, %v8748
    %v8877 = vpack.c.b16 %v8765, %v8757
    %v8878 = vpack.c.b16 %v8766, %v8758
    %v8879 = vpack.c.b16 %v8767, %v8759
    %v8880 = vpack.c.b16 %v8768, %v8760
    %v8881 = vpack.c.b16 %v8769, %v8761
    %v8882 = vpack.c.b16 %v8770, %v8762
    %v8883 = vpack.c.b16 %v8771, %v8763
    %v8884 = vpack.c.b16 %v8772, %v8764
    %v8885 = vpack.c.b16 %v8781, %v8773
    %v8886 = vpack.c.b16 %v8782, %v8774
    %v8887 = vpack.c.b16 %v8783, %v8775
    %v8888 = vpack.c.b16 %v8784, %v8776
    %v8889 = vpack.c.b16 %v8785, %v8777
    %v8890 = vpack.c.b16 %v8786, %v8778
    %v8891 = vpack.c.b16 %v8787, %v8779
    %v8892 = vpack.c.b16 %v8788, %v8780
    %v8893 = vpack.c.b16 %v8797, %v8789
    %v8894 = vpack.c.b16 %v8798, %v8790
    %v8895 = vpack.c.b16 %v8799, %v8791
    %v8896 = vpack.c.b16 %v8800, %v8792
    %v8897 = vpack.c.b16 %v8801, %v8793
    %v8898 = vpack.c.b16 %v8802, %v8794
    %v8899 = vpack.c.b16 %v8803, %v8795
    %v8900 = vpack.c.b16 %v8804, %v8796
    %v8901 = vpack.c.b16 %v8813, %v8805
    %v8902 = vpack.c.b16 %v8814, %v8806
    %v8903 = vpack.c.b16 %v8815, %v8807
    %v8904 = vpack.c.b16 %v8816, %v8808
    %v8905 = vpack.c.b16 %v8817, %v8809
    %v8906 = vpack.c.b16 %v8818, %v8810
    %v8907 = vpack.c.b16 %v8819, %v8811
    %v8908 = vpack.c.b16 %v8820, %v8812
    %v8909 = vpack.c.b16 %v8829, %v8821
    %v8910 = vpack.c.b16 %v8830, %v8822
    %v8911 = vpack.c.b16 %v8831, %v8823
    %v8912 = vpack.c.b16 %v8832, %v8824
    %v8913 = vpack.c.b16 %v8833, %v8825
    %v8914 = vpack.c.b16 %v8834, %v8826
    %v8915 = vpack.c.b16 %v8835, %v8827
    %v8916 = vpack.c.b16 %v8836, %v8828
    %v8917 = vpack.c.b16 %v8845, %v8837
    %v8918 = vpack.c.b16 %v8846, %v8838
    %v8919 = vpack.c.b16 %v8847, %v8839
    %v8920 = vpack.c.b16 %v8848, %v8840
    %v8921 = vpack.c.b16 %v8849, %v8841
    %v8922 = vpack.c.b16 %v8850, %v8842
    %v8923 = vpack.c.b16 %v8851, %v8843
    %v8924 = vpack.c.b16 %v8852, %v8844
    %v8925 = vpack.c.b16 %v8861, %v8853
    %v8926 = vpack.c.b16 %v8862, %v8854
    %v8927 = vpack.c.b16 %v8863, %v8855
    %v8928 = vpack.c.b16 %v8864, %v8856
    %v8929 = vpack.c.b16 %v8865, %v8857
    %v8930 = vpack.c.b16 %v8866, %v8858
    %v8931 = vpack.c.b16 %v8867, %v8859
    %v8932 = vpack.c.b16 %v8868, %v8860
    %8997 = vmatpush.bf16.msra.mxu0 %v8925
    %8998 = vmatpush.bf16.msra.mxu0 %v8917
    %8999 = vmatpush.bf16.msra.mxu0 %v8909
    %9000 = vmatpush.bf16.msra.mxu0 %v8901
    %9001 = vmatpush.bf16.msra.mxu0 %v8893
    %9002 = vmatpush.bf16.msra.mxu0 %v8885
    %9003 = vmatpush.bf16.msra.mxu0 %v8877
    %9004 = vmatpush.bf16.msra.mxu0 %v8869
    %9005 = vmatmul.bf16.gmra.mxu0 %v8594
    %v9006 = vpop.f32.mrf.mxu0
    %v9007 = vadd.f32 %v8661, %v9006
    %v9008 = vpop.f32.mrf.mxu0
    %9009 = vdwg.mxu0
    %9010 = vmatpush.bf16.msra.mxu0 %v8926
    %9011 = vmatpush.bf16.msra.mxu0 %v8918
    %9012 = vmatpush.bf16.msra.mxu0 %v8910
    %9013 = vmatpush.bf16.msra.mxu0 %v8902
    %9014 = vmatpush.bf16.msra.mxu0 %v8894
    %9015 = vmatpush.bf16.msra.mxu0 %v8886
    %9016 = vmatpush.bf16.msra.mxu0 %v8878
    %9017 = vmatpush.bf16.msra.mxu0 %v8870
    %9018 = vmatmul.bf16.gmra.mxu0 %v8594
    %v9019 = vpop.f32.mrf.mxu0
    %v9020 = vadd.f32 %v8662, %v9019
    %v9021 = vpop.f32.mrf.mxu0
    %9022 = vdwg.mxu0
    %9023 = vmatpush.bf16.msra.mxu0 %v8927
    %9024 = vmatpush.bf16.msra.mxu0 %v8919
    %9025 = vmatpush.bf16.msra.mxu0 %v8911
    %9026 = vmatpush.bf16.msra.mxu0 %v8903
    %9027 = vmatpush.bf16.msra.mxu0 %v8895
    %9028 = vmatpush.bf16.msra.mxu0 %v8887
    %9029 = vmatpush.bf16.msra.mxu0 %v8879
    %9030 = vmatpush.bf16.msra.mxu0 %v8871
    %9031 = vmatmul.bf16.gmra.mxu0 %v8594
    %v9032 = vpop.f32.mrf.mxu0
    %v9033 = vadd.f32 %v8663, %v9032
    %v9034 = vpop.f32.mrf.mxu0
    %9035 = vdwg.mxu0
    %9036 = vmatpush.bf16.msra.mxu0 %v8928
    %9037 = vmatpush.bf16.msra.mxu0 %v8920
    %9038 = vmatpush.bf16.msra.mxu0 %v8912
    %9039 = vmatpush.bf16.msra.mxu0 %v8904
    %9040 = vmatpush.bf16.msra.mxu0 %v8896
    %9041 = vmatpush.bf16.msra.mxu0 %v8888
    %9042 = vmatpush.bf16.msra.mxu0 %v8880
    %9043 = vmatpush.bf16.msra.mxu0 %v8872
    %9044 = vmatmul.bf16.gmra.mxu0 %v8594
    %v9045 = vpop.f32.mrf.mxu0
    %v9046 = vadd.f32 %v8664, %v9045
    %v9047 = vpop.f32.mrf.mxu0
    %9048 = vdwg.mxu0
    %9049 = vmatpush.bf16.msra.mxu0 %v8929
    %9050 = vmatpush.bf16.msra.mxu0 %v8921
    %9051 = vmatpush.bf16.msra.mxu0 %v8913
    %9052 = vmatpush.bf16.msra.mxu0 %v8905
    %9053 = vmatpush.bf16.msra.mxu0 %v8897
    %9054 = vmatpush.bf16.msra.mxu0 %v8889
    %9055 = vmatpush.bf16.msra.mxu0 %v8881
    %9056 = vmatpush.bf16.msra.mxu0 %v8873
    %9057 = vmatmul.bf16.gmra.mxu0 %v8594
    %v9058 = vpop.f32.mrf.mxu0
    %v9059 = vadd.f32 %v8665, %v9058
    %v9060 = vpop.f32.mrf.mxu0
    %9061 = vdwg.mxu0
    %9062 = vmatpush.bf16.msra.mxu0 %v8930
    %9063 = vmatpush.bf16.msra.mxu0 %v8922
    %9064 = vmatpush.bf16.msra.mxu0 %v8914
    %9065 = vmatpush.bf16.msra.mxu0 %v8906
    %9066 = vmatpush.bf16.msra.mxu0 %v8898
    %9067 = vmatpush.bf16.msra.mxu0 %v8890
    %9068 = vmatpush.bf16.msra.mxu0 %v8882
    %9069 = vmatpush.bf16.msra.mxu0 %v8874
    %9070 = vmatmul.bf16.gmra.mxu0 %v8594
    %v9071 = vpop.f32.mrf.mxu0
    %v9072 = vadd.f32 %v8666, %v9071
    %v9073 = vpop.f32.mrf.mxu0
    %9074 = vdwg.mxu0
    %9075 = vmatpush.bf16.msra.mxu0 %v8931
    %9076 = vmatpush.bf16.msra.mxu0 %v8923
    %9077 = vmatpush.bf16.msra.mxu0 %v8915
    %9078 = vmatpush.bf16.msra.mxu0 %v8907
    %9079 = vmatpush.bf16.msra.mxu0 %v8899
    %9080 = vmatpush.bf16.msra.mxu0 %v8891
    %9081 = vmatpush.bf16.msra.mxu0 %v8883
    %9082 = vmatpush.bf16.msra.mxu0 %v8875
    %9083 = vmatmul.bf16.gmra.mxu0 %v8594
    %v9084 = vpop.f32.mrf.mxu0
    %v9085 = vadd.f32 %v8667, %v9084
    %v9086 = vpop.f32.mrf.mxu0
    %9087 = vdwg.mxu0
    %9088 = vmatpush.bf16.msra.mxu0 %v8932
    %9089 = vmatpush.bf16.msra.mxu0 %v8924
    %9090 = vmatpush.bf16.msra.mxu0 %v8916
    %9091 = vmatpush.bf16.msra.mxu0 %v8908
    %9092 = vmatpush.bf16.msra.mxu0 %v8900
    %9093 = vmatpush.bf16.msra.mxu0 %v8892
    %9094 = vmatpush.bf16.msra.mxu0 %v8884
    %9095 = vmatpush.bf16.msra.mxu0 %v8876
    %9096 = vmatmul.bf16.gmra.mxu0 %v8594
    %v9097 = vpop.f32.mrf.mxu0
    %v9098 = vadd.f32 %v8668, %v9097
    %v9099 = vpop.f32.mrf.mxu0
    %9100 = vdwg.mxu0
    %v9101 = vxor.u32 %v9007, 2147483648
    %v9102 = vxor.u32 %v9020, 2147483648
    %v9103 = vxor.u32 %v9033, 2147483648
    %v9104 = vxor.u32 %v9046, 2147483648
    %v9105 = vxor.u32 %v9059, 2147483648
    %v9106 = vxor.u32 %v9072, 2147483648
    %v9107 = vxor.u32 %v9085, 2147483648
    %v9108 = vxor.u32 %v9098, 2147483648
    %v9109 = vmul.f32 %v9101, 1.442695
    %v9110 = vpow.pop %v9109
    %v9111 = vmul.f32 %v9102, 1.442695
    %v9112 = vpow.pop %v9111
    %v9113 = vmul.f32 %v9103, 1.442695
    %v9114 = vpow.pop %v9113
    %v9115 = vmul.f32 %v9104, 1.442695
    %v9116 = vpow.pop %v9115
    %v9117 = vmul.f32 %v9105, 1.442695
    %v9118 = vpow.pop %v9117
    %v9119 = vmul.f32 %v9106, 1.442695
    %v9120 = vpow.pop %v9119
    %v9121 = vmul.f32 %v9107, 1.442695
    %v9122 = vpow.pop %v9121
    %v9123 = vmul.f32 %v9108, 1.442695
    %v9124 = vpow.pop %v9123
    %v9125 = vadd.f32 %v9110, 1.0
    %v9126 = vadd.f32 %v9112, 1.0
    %v9127 = vadd.f32 %v9114, 1.0
    %v9128 = vadd.f32 %v9116, 1.0
    %v9129 = vadd.f32 %v9118, 1.0
    %v9130 = vadd.f32 %v9120, 1.0
    %v9131 = vadd.f32 %v9122, 1.0
    %v9132 = vadd.f32 %v9124, 1.0
    %v9133 = vrcp.pop %v9125
    %v9134 = vmul.f32 %v9125, %v9133
    %v9135 = vsub.f32 1.0, %v9134
    %v9136 = vmul.f32 %v9133, %v9135
    %v9137 = vadd.f32 %v9133, %v9136
    %vm9138 = vweird.f32 %v9125
    %vm9139 = vweird.f32 %v9133
    %vm9140 = vmor %vm9138, %vm9139
    %v9141 = vsel %vm9140, %v9133, %v9137
    %v9142 = vand.u32 2147483647, %v9125
    %vm9143 = vcmp.eq.f32.partialorder %v9142, 8.507059e+37
    %v9144 = vand.u32 %v9125, 2147483648
    %v9145 = vor.u32 1.1754944e-38, %v9144
    %v9146 = vsel %vm9143, %v9145, %v9141
    %v9147 = vmul.f32 1.0, %v9146
    %v9148 = vrcp.pop %v9126
    %v9149 = vmul.f32 %v9126, %v9148
    %v9150 = vsub.f32 1.0, %v9149
    %v9151 = vmul.f32 %v9148, %v9150
    %v9152 = vadd.f32 %v9148, %v9151
    %vm9153 = vweird.f32 %v9126
    %vm9154 = vweird.f32 %v9148
    %vm9155 = vmor %vm9153, %vm9154
    %v9156 = vsel %vm9155, %v9148, %v9152
    %v9157 = vand.u32 2147483647, %v9126
    %vm9158 = vcmp.eq.f32.partialorder %v9157, 8.507059e+37
    %v9159 = vand.u32 %v9126, 2147483648
    %v9160 = vor.u32 1.1754944e-38, %v9159
    %v9161 = vsel %vm9158, %v9160, %v9156
    %v9162 = vmul.f32 1.0, %v9161
    %v9163 = vrcp.pop %v9127
    %v9164 = vmul.f32 %v9127, %v9163
    %v9165 = vsub.f32 1.0, %v9164
    %v9166 = vmul.f32 %v9163, %v9165
    %v9167 = vadd.f32 %v9163, %v9166
    %vm9168 = vweird.f32 %v9127
    %vm9169 = vweird.f32 %v9163
    %vm9170 = vmor %vm9168, %vm9169
    %v9171 = vsel %vm9170, %v9163, %v9167
    %v9172 = vand.u32 2147483647, %v9127
    %vm9173 = vcmp.eq.f32.partialorder %v9172, 8.507059e+37
    %v9174 = vand.u32 %v9127, 2147483648
    %v9175 = vor.u32 1.1754944e-38, %v9174
    %v9176 = vsel %vm9173, %v9175, %v9171
    %v9177 = vmul.f32 1.0, %v9176
    %v9178 = vrcp.pop %v9128
    %v9179 = vmul.f32 %v9128, %v9178
    %v9180 = vsub.f32 1.0, %v9179
    %v9181 = vmul.f32 %v9178, %v9180
    %v9182 = vadd.f32 %v9178, %v9181
    %vm9183 = vweird.f32 %v9128
    %vm9184 = vweird.f32 %v9178
    %vm9185 = vmor %vm9183, %vm9184
    %v9186 = vsel %vm9185, %v9178, %v9182
    %v9187 = vand.u32 2147483647, %v9128
    %vm9188 = vcmp.eq.f32.partialorder %v9187, 8.507059e+37
    %v9189 = vand.u32 %v9128, 2147483648
    %v9190 = vor.u32 1.1754944e-38, %v9189
    %v9191 = vsel %vm9188, %v9190, %v9186
    %v9192 = vmul.f32 1.0, %v9191
    %v9193 = vrcp.pop %v9129
    %v9194 = vmul.f32 %v9129, %v9193
    %v9195 = vsub.f32 1.0, %v9194
    %v9196 = vmul.f32 %v9193, %v9195
    %v9197 = vadd.f32 %v9193, %v9196
    %vm9198 = vweird.f32 %v9129
    %vm9199 = vweird.f32 %v9193
    %vm9200 = vmor %vm9198, %vm9199
    %v9201 = vsel %vm9200, %v9193, %v9197
    %v9202 = vand.u32 2147483647, %v9129
    %vm9203 = vcmp.eq.f32.partialorder %v9202, 8.507059e+37
    %v9204 = vand.u32 %v9129, 2147483648
    %v9205 = vor.u32 1.1754944e-38, %v9204
    %v9206 = vsel %vm9203, %v9205, %v9201
    %v9207 = vmul.f32 1.0, %v9206
    %v9208 = vrcp.pop %v9130
    %v9209 = vmul.f32 %v9130, %v9208
    %v9210 = vsub.f32 1.0, %v9209
    %v9211 = vmul.f32 %v9208, %v9210
    %v9212 = vadd.f32 %v9208, %v9211
    %vm9213 = vweird.f32 %v9130
    %vm9214 = vweird.f32 %v9208
    %vm9215 = vmor %vm9213, %vm9214
    %v9216 = vsel %vm9215, %v9208, %v9212
    %v9217 = vand.u32 2147483647, %v9130
    %vm9218 = vcmp.eq.f32.partialorder %v9217, 8.507059e+37
    %v9219 = vand.u32 %v9130, 2147483648
    %v9220 = vor.u32 1.1754944e-38, %v9219
    %v9221 = vsel %vm9218, %v9220, %v9216
    %v9222 = vmul.f32 1.0, %v9221
    %v9223 = vrcp.pop %v9131
    %v9224 = vmul.f32 %v9131, %v9223
    %v9225 = vsub.f32 1.0, %v9224
    %v9226 = vmul.f32 %v9223, %v9225
    %v9227 = vadd.f32 %v9223, %v9226
    %vm9228 = vweird.f32 %v9131
    %vm9229 = vweird.f32 %v9223
    %vm9230 = vmor %vm9228, %vm9229
    %v9231 = vsel %vm9230, %v9223, %v9227
    %v9232 = vand.u32 2147483647, %v9131
    %vm9233 = vcmp.eq.f32.partialorder %v9232, 8.507059e+37
    %v9234 = vand.u32 %v9131, 2147483648
    %v9235 = vor.u32 1.1754944e-38, %v9234
    %v9236 = vsel %vm9233, %v9235, %v9231
    %v9237 = vmul.f32 1.0, %v9236
    %v9238 = vrcp.pop %v9132
    %v9239 = vmul.f32 %v9132, %v9238
    %v9240 = vsub.f32 1.0, %v9239
    %v9241 = vmul.f32 %v9238, %v9240
    %v9242 = vadd.f32 %v9238, %v9241
    %vm9243 = vweird.f32 %v9132
    %vm9244 = vweird.f32 %v9238
    %vm9245 = vmor %vm9243, %vm9244
    %v9246 = vsel %vm9245, %v9238, %v9242
    %v9247 = vand.u32 2147483647, %v9132
    %vm9248 = vcmp.eq.f32.partialorder %v9247, 8.507059e+37
    %v9249 = vand.u32 %v9132, 2147483648
    %v9250 = vor.u32 1.1754944e-38, %v9249
    %v9251 = vsel %vm9248, %v9250, %v9246
    %v9252 = vmul.f32 1.0, %v9251
    %v9261 = vrot.slane %v9162, 6
    %v9262 = vrot.slane %v9177, 4
    %v9263 = vrot.slane %v9192, 2
    %v9264 = vrot.slane %v9222, 6
    %v9265 = vrot.slane %v9237, 4
    %v9266 = vrot.slane %v9252, 2
    %v9267 = vsel %vm2878, %v9147, %v9261
    %v9268 = vsel %vm2880, %v9262, %v9263
    %v9269 = vsel %vm2882, %v9267, %v9268
    %v9270 = vsel %vm2878, %v9207, %v9264
    %v9271 = vsel %vm2880, %v9265, %v9266
    %v9272 = vsel %vm2882, %v9270, %v9271
    %s9275 = scalar_lea.vmem [#allocation22], 48
    %9276 = vst [vmem:[%s9275] sm:$0xff] %v9269
    %9277 = vst [vmem:[%s9275 + $0x8] sm:$0xff] %v9272
    // Predicated region
    $region106: #{tpu_custom_call.1} parent=1 // pred_check
      _
    $region107: #{tpu_custom_call.1} parent=1 // pred_check_branch
      %9279 = sbr.rel (0) target = $region109
    $region108: #{tpu_custom_call.1} parent=1 // pred_region
      %9281 = vsyncadd [#allocation4], 0
      %s9282 = sshll.u32 [#allocation22], 4
      %s9283 = int_to_ptr.vmem [resolvable:$true] %s9282
      %s9284 = sshll.u32 %s14, 4
      %s9285 = int_to_ptr.hbm [resolvable:$true] %s9284
      %9290 = dma.vmem_to_hbm [thread:$0]  %s9283, 1024, %s9285, [#allocation4], 256, 256, 16
    $region109: #{tpu_custom_call.1} parent=1 // pred_fallthru
      _
    // Predicated region
    $region110: #{tpu_custom_call.1} parent=1 // pred_check
      _
    $region111: #{tpu_custom_call.1} parent=1 // pred_check_branch
      %9292 = sbr.rel (0) target = $region113
    $region112: #{tpu_custom_call.1} parent=1 // pred_region
      %9294 = dma.done [#allocation4], 1024
    $region113: #{tpu_custom_call.1} parent=1 // pred_fallthru
      _
    %9295 = vsyncpa [#allocation3], 1
    %9296 = vsyncpa [#allocation6], 1
    %9297 = vsyncpa [#allocation9], 1
    %9298 = vsyncpa [#allocation12], 1
    %9299 = vsyncpa [#allocation15], 1
    %9300 = vsyncpa [#allocation18], 1
    %9301 = vsyncpa [#allocation21], 1
    %9302 = vsyncpa [#allocation4], 1

</llo_original>
